<compile_context>
chip_gen: v7x
topology: tpu7x:2x2x1
jax: 0.10.0
libtpu: 0.0.40
codegen_flags: <defaults>
</compile_context>

<pallas_src>
import jax
import jax.numpy as jnp
from jax.experimental import pallas as pl
from jax.experimental.pallas import tpu as pltpu

EPS_BN = 1e-5                      # nn.BatchNorm1d default eps
VMEM_LIMIT = 32 * 1024 * 1024      # safe scoped-VMEM cap on v5e/v6e/v7x


def _cp(semantics):
    return pltpu.CompilerParams(dimension_semantics=semantics,
                                vmem_limit_bytes=VMEM_LIMIT)


def _choose_tile(total, target, align=8):
    """Largest multiple of `align` that divides `total`, capped at max(align, target)."""
    cap = max(align, target)
    best = align
    t = align
    while t <= total:
        if total % t == 0 and t <= cap:
            best = t
        t += align
    return best


def _full_spec(arr):
    """Full-resident block (constant block index -> fetched once, no re-DMA)."""
    zeros = (0,) * arr.ndim
    return pl.BlockSpec(arr.shape, lambda *args: zeros)


# ----------------------------------------------------------------------------
# Pointwise kernels: Linear, masked BN statistics, fused BN-apply+Swish(+Linear)
# ----------------------------------------------------------------------------
def _linear_kernel(x_ref, w_ref, b_ref, o_ref):
    o_ref[...] = (jnp.dot(x_ref[...], w_ref[...],
                          preferred_element_type=jnp.float32) + b_ref[...])


def linear_pallas(x2d, W, b, tm=None):
    R, Cin = x2d.shape
    Cout = W.shape[1]
    tm = _choose_tile(R, 512) if tm is None else tm
    return pl.pallas_call(
        _linear_kernel,
        out_shape=jax.ShapeDtypeStruct((R, Cout), jnp.float32),
        grid=(R // tm,),
        in_specs=[pl.BlockSpec((tm, Cin), lambda i: (i, 0)),
                  pl.BlockSpec((Cin, Cout), lambda i: (0, 0)),
                  pl.BlockSpec((1, Cout), lambda i: (0, 0))],
        out_specs=pl.BlockSpec((tm, Cout), lambda i: (i, 0)),
        compiler_params=_cp(("parallel",)),
    )(x2d, W, b.reshape(1, Cout))


def _masked_stats_kernel(x_ref, m_ref, s_ref, q_ref):
    # Tiled masked reduction: accumulate per-channel sum and sum-of-squares.
    @pl.when(pl.program_id(0) == 0)
    def _():
        s_ref[...] = jnp.zeros_like(s_ref)
        q_ref[...] = jnp.zeros_like(q_ref)

    x0 = x_ref[...] * m_ref[...]
    s_ref[...] += jnp.sum(x0, axis=0, keepdims=True)
    q_ref[...] += jnp.sum(x0 * x0, axis=0, keepdims=True)


def masked_stats_pallas(x2d, m2d, tm=None):
    R, C = x2d.shape
    tm = _choose_tile(R, 512) if tm is None else tm
    return pl.pallas_call(
        _masked_stats_kernel,
        out_shape=(jax.ShapeDtypeStruct((1, C), jnp.float32),
                   jax.ShapeDtypeStruct((1, C), jnp.float32)),
        grid=(R // tm,),
        in_specs=[pl.BlockSpec((tm, C), lambda i: (i, 0)),
                  pl.BlockSpec((tm, 1), lambda i: (i, 0))],
        out_specs=[pl.BlockSpec((1, C), lambda i: (0, 0)),
                   pl.BlockSpec((1, C), lambda i: (0, 0))],
        compiler_params=_cp(("arbitrary",)),
    )(x2d, m2d)


def bn_scale_shift(stats, count, gamma, beta):
    """MaskBatchNormNd (training mode): std = sqrt(clamp(biased var, eps))."""
    s, sq = stats
    mean = s / count
    var = sq / count - mean * mean
    std = jnp.sqrt(jnp.maximum(var, EPS_BN))
    scale = gamma.reshape(1, -1) / std
    shift = beta.reshape(1, -1) - mean * scale
    return scale, shift


def _bn_swish_kernel(x_ref, m_ref, sc_ref, sh_ref, o_ref):
    y = x_ref[...] * m_ref[...] * sc_ref[...] + sh_ref[...]
    o_ref[...] = y * jax.nn.sigmoid(y)


def bn_swish_pallas(x2d, m2d, scale, shift, tm=None):
    R, C = x2d.shape
    tm = _choose_tile(R, 512) if tm is None else tm
    return pl.pallas_call(
        _bn_swish_kernel,
        out_shape=jax.ShapeDtypeStruct((R, C), jnp.float32),
        grid=(R // tm,),
        in_specs=[pl.BlockSpec((tm, C), lambda i: (i, 0)),
                  pl.BlockSpec((tm, 1), lambda i: (i, 0)),
                  pl.BlockSpec((1, C), lambda i: (0, 0)),
                  pl.BlockSpec((1, C), lambda i: (0, 0))],
        out_specs=pl.BlockSpec((tm, C), lambda i: (i, 0)),
        compiler_params=_cp(("parallel",)),
    )(x2d, m2d, scale, shift)


def _bn_swish_linear_kernel(x_ref, m_ref, sc_ref, sh_ref, w_ref, b_ref, o_ref):
    y = x_ref[...] * m_ref[...] * sc_ref[...] + sh_ref[...]
    s = y * jax.nn.sigmoid(y)
    o_ref[...] = (jnp.dot(s, w_ref[...], preferred_element_type=jnp.float32)
                  + b_ref[...])


def bn_swish_linear_pallas(x2d, m2d, scale, shift, W, b, tm=None):
    R, C = x2d.shape
    Cout = W.shape[1]
    tm = _choose_tile(R, 512) if tm is None else tm
    return pl.pallas_call(
        _bn_swish_linear_kernel,
        out_shape=jax.ShapeDtypeStruct((R, Cout), jnp.float32),
        grid=(R // tm,),
        in_specs=[pl.BlockSpec((tm, C), lambda i: (i, 0)),
                  pl.BlockSpec((tm, 1), lambda i: (i, 0)),
                  pl.BlockSpec((1, C), lambda i: (0, 0)),
                  pl.BlockSpec((1, C), lambda i: (0, 0)),
                  pl.BlockSpec((C, Cout), lambda i: (0, 0)),
                  pl.BlockSpec((1, Cout), lambda i: (0, 0))],
        out_specs=pl.BlockSpec((tm, Cout), lambda i: (i, 0)),
        compiler_params=_cp(("parallel",)),
    )(x2d, m2d, scale, shift, W, b.reshape(1, Cout))


# ----------------------------------------------------------------------------
# Fused LieConv: WeightNet chain + point convolution, built from coordinate
# tiles in VMEM (no O(n^2) tensors in HBM).
# ----------------------------------------------------------------------------
def _pair_deltas(cq_ref, cp_ref):
    """T(3) lift: pairwise deltas for a (tq query) x (tp neighbor) tile."""
    cq = cq_ref[0]                                  # (tq, 3)
    cp = cp_ref[0]                                  # (tp, 3)
    tq, d = cq.shape
    tp = cp.shape[0]
    d3 = cq[:, None, :] - cp[None, :, :]            # (tq, tp, 3)
    return d3.reshape(tq * tp, d), tq, tp


def _wn_chain(x, layer_refs):
    """Apply [Linear -> BN(precomputed scale/shift) -> Swish] per 4-ref group.
    Masked rows are zeroed later (at the contraction / at the stats reduce),
    which is output-equivalent to the reference per-row masking."""
    for i in range(0, len(layer_refs), 4):
        w, bb, sc, sh = layer_refs[i:i + 4]
        h = jnp.dot(x, w[...], preferred_element_type=jnp.float32) + bb[...]
        h = h * sc[...] + sh[...]
        x = h * jax.nn.sigmoid(h)
    return x


def _make_wn_stats_kernel(n_done):
    """Masked batch-stats for WeightNet layer `n_done`: recompute the n_done
    already-finalized layers, apply this layer's Linear, and accumulate the
    masked per-channel sum / sum-of-squares of its output."""
    def kernel(*refs):
        cq_ref, cp_ref, m_ref, qv_ref = refs[:4]
        layer_refs = refs[4:4 + 4 * n_done]
        w_ref, b_ref = refs[4 + 4 * n_done:6 + 4 * n_done]
        s_ref, q_ref = refs[6 + 4 * n_done:8 + 4 * n_done]

        first = ((pl.program_id(0) == 0) & (pl.program_id(1) == 0)
                 & (pl.program_id(2) == 0))

        @pl.when(first)
        def _():
            s_ref[...] = jnp.zeros_like(s_ref)
            q_ref[...] = jnp.zeros_like(q_ref)

        x, tq, tp = _pair_deltas(cq_ref, cp_ref)
        x = _wn_chain(x, layer_refs)
        z = (jnp.dot(x, w_ref[...], preferred_element_type=jnp.float32)
             + b_ref[...])
        # row mask = (real query row) * (point mask); padding rows drop out.
        rm = (qv_ref[0][:, None, :] * m_ref[0][None, :, :]).reshape(tq * tp, 1)
        zm = z * rm
        s_ref[...] += jnp.sum(zm, axis=0, keepdims=True)
        q_ref[...] += jnp.sum(zm * zm, axis=0, keepdims=True)

    return kernel


def wn_stats_pallas(coords, mask_col, qv, done_layers, W, b, tq, tp):
    bs, n_p, _ = coords.shape
    C = W.shape[1]
    grid = (bs, n_p // tq, n_p // tp)
    in_specs = [
        pl.BlockSpec((1, tq, 3), lambda bi, qi, pi: (bi, qi, 0)),   # query coords
        pl.BlockSpec((1, tp, 3), lambda bi, qi, pi: (bi, pi, 0)),   # nbhd coords
        pl.BlockSpec((1, tp, 1), lambda bi, qi, pi: (bi, pi, 0)),   # point mask
        pl.BlockSpec((1, tq, 1), lambda bi, qi, pi: (bi, qi, 0)),   # valid query rows
    ]
    args = [coords, coords, mask_col, qv]
    for layer in done_layers:
        for a in layer:
            in_specs.append(_full_spec(a))
            args.append(a)
    for a in (W, b.reshape(1, C)):
        in_specs.append(_full_spec(a))
        args.append(a)
    return pl.pallas_call(
        _make_wn_stats_kernel(len(done_layers)),
        out_shape=(jax.ShapeDtypeStruct((1, C), jnp.float32),
                   jax.ShapeDtypeStruct((1, C), jnp.float32)),
        grid=grid,
        in_specs=in_specs,
        out_specs=[pl.BlockSpec((1, C), lambda bi, qi, pi: (0, 0)),
                   pl.BlockSpec((1, C), lambda bi, qi, pi: (0, 0))],
        compiler_params=_cp(("arbitrary", "arbitrary", "arbitrary")),
    )(*args)


def _lieconv_fused_kernel(*refs):
    # inputs: coords_q, coords_p, values_p, mask_p, mask_q, inv_nbhd_count,
    #         3 x (W, b, scale, shift) weightnet layers, conv W, conv b
    # outputs: conv result tile; scratch: (tq, ci, cmco) accumulator over p-tiles
    cq_ref, cp_ref, v_ref, mp_ref, mq_ref, ic_ref = refs[:6]
    wn_refs = refs[6:18]
    wl_ref, bl_ref = refs[18:20]
    o_ref = refs[20]
    acc_ref = refs[21]

    pi = pl.program_id(2)

    @pl.when(pi == 0)
    def _():
        acc_ref[...] = jnp.zeros_like(acc_ref)

    x, tq, tp = _pair_deltas(cq_ref, cp_ref)
    kw = _wn_chain(x, wn_refs)                    # (tq*tp, cmco)
    cmco = kw.shape[-1]
    pm = mp_ref[0]                                # (tp, 1)
    kw = kw.reshape(tq, tp, cmco) * pm[None, :, :]
    vm = v_ref[0] * pm                            # (tp, ci), masked values
    ci = vm.shape[-1]
    vb = jnp.broadcast_to(vm[None, :, :], (tq, tp, ci))   # VMEM-only broadcast
    partial = jax.lax.dot_general(                # (tq, ci, cmco)
        vb, kw, dimension_numbers=(((1,), (1,)), ((0,), (0,))),
        preferred_element_type=jnp.float32)
    acc_ref[...] += partial

    @pl.when(pi == pl.num_programs(2) - 1)
    def _():
        acc = acc_ref[...]
        co = o_ref.shape[-1]
        # Final Linear(ci*cmco -> co) on the row-major flattened partials; done
        # per input channel once per output tile (off the hot p-loop).
        out = jnp.zeros((tq, co), jnp.float32)
        for c in range(ci):
            out = out + jnp.dot(acc[:, c, :],
                                wl_ref[c * cmco:(c + 1) * cmco, :],
                                preferred_element_type=jnp.float32)
        out = out + bl_ref[...]
        # mean=True division and query-mask zeroing (convolved_wzeros)
        o_ref[0] = out * ic_ref[0] * mq_ref[0]


def lieconv_fused_pallas(coords, v, mask_col, inv_cnt, wn_layers, Wl, bl, tq, tp):
    bs, n_p, _ = coords.shape
    ci = v.shape[-1]
    cmco = wn_layers[-1][0].shape[1]
    co = Wl.shape[1]
    grid = (bs, n_p // tq, n_p // tp)
    in_specs = [
        pl.BlockSpec((1, tq, 3), lambda bi, qi, pi: (bi, qi, 0)),
        pl.BlockSpec((1, tp, 3), lambda bi, qi, pi: (bi, pi, 0)),
        pl.BlockSpec((1, tp, ci), lambda bi, qi, pi: (bi, pi, 0)),
        pl.BlockSpec((1, tp, 1), lambda bi, qi, pi: (bi, pi, 0)),
        pl.BlockSpec((1, tq, 1), lambda bi, qi, pi: (bi, qi, 0)),
        pl.BlockSpec((1, 1, 1), lambda bi, qi, pi: (bi, 0, 0)),
    ]
    args = [coords, coords, v, mask_col, mask_col, inv_cnt]
    for layer in wn_layers:
        for a in layer:
            in_specs.append(_full_spec(a))
            args.append(a)
    for a in (Wl, bl.reshape(1, co)):
        in_specs.append(_full_spec(a))
        args.append(a)
    return pl.pallas_call(
        _lieconv_fused_kernel,
        out_shape=jax.ShapeDtypeStruct((bs, n_p, co), jnp.float32),
        grid=grid,
        in_specs=in_specs,
        out_specs=pl.BlockSpec((1, tq, co), lambda bi, qi, pi: (bi, qi, 0)),
        scratch_shapes=[pltpu.VMEM((tq, ci, cmco), jnp.float32)],
        compiler_params=_cp(("parallel", "parallel", "arbitrary")),
    )(*args)


# ----------------------------------------------------------------------------
# GlobalPool(mean=True): tiled masked sum over the point axis
# ----------------------------------------------------------------------------
def _pool_kernel(v_ref, m_ref, o_ref):
    @pl.when(pl.program_id(0) == 0)
    def _():
        o_ref[...] = jnp.zeros_like(o_ref)
    o_ref[...] += jnp.sum(v_ref[...] * m_ref[...], axis=1)


def global_pool_pallas(vals, mask_col, tp=None):
    bs, n_p, c = vals.shape
    tp = _choose_tile(n_p, 512) if tp is None else tp
    return pl.pallas_call(
        _pool_kernel,
        out_shape=jax.ShapeDtypeStruct((bs, c), jnp.float32),
        grid=(n_p // tp,),
        in_specs=[pl.BlockSpec((bs, tp, c), lambda i: (0, i, 0)),
                  pl.BlockSpec((bs, tp, 1), lambda i: (0, i, 0))],
        out_specs=pl.BlockSpec((bs, c), lambda i: (0, 0)),
        compiler_params=_cp(("arbitrary",)),
    )(vals, mask_col)


# ----------------------------------------------------------------------------
# Model glue (plain JAX: parameter plumbing, scale/shift math, residual adds)
# ----------------------------------------------------------------------------
def lieconv_apply(p, v, ctx):
    """LieConv(ds_frac=1, nbhd=inf): two-pass BN stats for each WeightNet layer
    followed by the fully fused weightnet+pointconv kernel."""
    done = []
    for layer in p["weightnet"]:
        stats = wn_stats_pallas(ctx["coords"], ctx["mask_col"], ctx["qv"],
                                done, layer["W"], layer["b"],
                                ctx["tq"], ctx["tp"])
        sc, sh = bn_scale_shift(stats, ctx["wn_count"],
                                layer["gamma"], layer["beta"])
        done.append((layer["W"], layer["b"].reshape(1, -1), sc, sh))
    return lieconv_fused_pallas(ctx["coords"], v, ctx["mask_col"],
                                ctx["inv_nbhd"], done, p["W"], p["b"],
                                ctx["tq"], ctx["tp"])


def bottleblock_apply(p, x, ctx):
    bs, n_p, chin = x.shape
    R = bs * n_p
    m2d, cnt = ctx["m2d"], ctx["cnt"]
    x2d = x.reshape(R, chin)
    # BN -> Swish -> Linear(chin, chin//4)
    sc1, sh1 = bn_scale_shift(masked_stats_pallas(x2d, m2d), cnt, *p["bn1"])
    h = bn_swish_linear_pallas(x2d, m2d, sc1, sh1, *p["lin_a"])
    # BN -> Swish  (conv input values)
    sc2, sh2 = bn_scale_shift(masked_stats_pallas(h, m2d), cnt, *p["bn2"])
    v = bn_swish_pallas(h, m2d, sc2, sh2).reshape(bs, n_p, -1)
    # LieConv
    y = lieconv_apply(p["conv"], v, ctx)
    # BN -> Swish -> Linear(chout//4, chout)
    y2d = y.reshape(R, y.shape[-1])
    sc3, sh3 = bn_scale_shift(masked_stats_pallas(y2d, m2d), cnt, *p["bn3"])
    z = bn_swish_linear_pallas(y2d, m2d, sc3, sh3, *p["lin_b"]).reshape(bs, n_p, -1)
    # residual: new_values[..., :chin] += sub_values (ds_frac=1 -> identity sub)
    return z.at[..., :chin].add(x)


def lieresnet_forward(params, coords, vals, mask):
    bs, n, _ = coords.shape
    chin = vals.shape[-1]
    # pad the point axis once (multiple of 8); padded points are masked out.
    n_p = ((n + 7) // 8) * 8
    pad = n_p - n
    coords_p = jnp.pad(coords.astype(jnp.float32), ((0, 0), (0, pad), (0, 0)))
    vals_p = jnp.pad(vals.astype(jnp.float32), ((0, 0), (0, pad), (0, 0)))
    maskf = jnp.pad(mask.astype(jnp.float32), ((0, 0), (0, pad)))
    mask_col = maskf[:, :, None]                                    # (bs,n_p,1)
    qv = jnp.pad(jnp.ones((bs, n), jnp.float32), ((0, 0), (0, pad)))[:, :, None]

    R = bs * n_p
    m2d = maskf.reshape(R, 1)
    cnt = jnp.sum(maskf)
    tp = _choose_tile(n_p, 256)
    tq = _choose_tile(n_p, max(8, 2048 // tp))
    ctx = {
        "coords": coords_p, "mask_col": mask_col, "qv": qv, "m2d": m2d,
        "cnt": cnt,
        "wn_count": float(n) * cnt,          # = nbhd_mask.sum() of the reference
        "inv_nbhd": (1.0 / jnp.maximum(jnp.sum(maskf, axis=1), 1.0)
                     ).reshape(bs, 1, 1),
        "tq": tq, "tp": tp,
    }

    # Pass(nn.Linear(chin, k))
    x = linear_pallas(vals_p.reshape(R, chin), *params["lin_in"]
                      ).reshape(bs, n_p, -1)
    for blk in params["blocks"]:
        x = bottleblock_apply(blk, x, ctx)
    # MaskBN -> Swish -> Linear(k, num_outputs)
    x2d = x.reshape(R, x.shape[-1])
    sco, sho = bn_scale_shift(masked_stats_pallas(x2d, m2d), cnt,
                              *params["bn_out"])
    logits = bn_swish_linear_pallas(x2d, m2d, sco, sho, *params["lin_out"]
                                    ).reshape(bs, n_p, -1)
    # GlobalPool(mean=True)
    summed = global_pool_pallas(logits, mask_col)
    return summed / jnp.sum(maskf, axis=1, keepdims=True)


# ----------------------------------------------------------------------------
# Deterministic parameter init (PyTorch nn.Linear default: U(-1/sqrt(fan_in), .))
# ----------------------------------------------------------------------------
def init_linear(key, cin, cout):
    kw, kb = jax.random.split(key)
    bound = 1.0 / (cin ** 0.5)
    W = jax.random.uniform(kw, (cin, cout), jnp.float32, -bound, bound)
    b = jax.random.uniform(kb, (cout,), jnp.float32, -bound, bound)
    return W, b


def init_bn(c):
    return jnp.ones((c,), jnp.float32), jnp.zeros((c,), jnp.float32)


def build_params(key, chin=4, k=32, num_layers=2, num_outputs=1,
                 cmco_ci=16, wn_hidden=32, xyz_dim=3):
    keys = iter(jax.random.split(key, 8 * num_layers + 8))
    params = {"lin_in": init_linear(next(keys), chin, k), "blocks": []}
    for _ in range(num_layers):
        blk = {
            "bn1": init_bn(k),
            "lin_a": init_linear(next(keys), k, k // 4),
            "bn2": init_bn(k // 4),
            "bn3": init_bn(k // 4),
            "lin_b": init_linear(next(keys), k // 4, k),
        }
        wn = []
        for cin, cout in [(xyz_dim, wn_hidden), (wn_hidden, wn_hidden),
                          (wn_hidden, cmco_ci)]:
            W, b = init_linear(next(keys), cin, cout)
            g, be = init_bn(cout)
            wn.append({"W": W, "b": b, "gamma": g, "beta": be})
        Wc, bc = init_linear(next(keys), cmco_ci * (k // 4), k // 4)
        blk["conv"] = {"weightnet": wn, "W": Wc, "b": bc}
        params["blocks"].append(blk)
    params["bn_out"] = init_bn(k)
    params["lin_out"] = init_linear(next(keys), k, num_outputs)
    return params


if __name__ == "__main__":
    key = jax.random.PRNGKey(0)
    kp, kc, kv = jax.random.split(key, 3)
    bs, n, chin = 2, 8, 4
    params = build_params(kp, chin=chin, k=32, num_layers=2, num_outputs=1)
    coords = jax.random.normal(kc, (bs, n, 3), jnp.float32)
    vals = jax.random.normal(kv, (bs, n, chin), jnp.float32)
    mask = jnp.ones((bs, n), dtype=bool).at[1, 6:].set(False)  # padded points

    fwd = jax.jit(lieresnet_forward)
    out = fwd(params, coords, vals, mask)
    jax.block_until_ready(out)
    assert out.shape == (bs, 1), out.shape
    assert bool(jnp.all(jnp.isfinite(out)))
    print("KERNEL_OK")
</pallas_src>

<mosaic_0001>
module attributes {stable_mosaic.version = 11 : i64} {
  func.func @kernel(%arg0: i32, %arg1: i32, %arg2: i32, %arg3: memref<1x8x3xf32, #tpu.memory_space<vmem>>, %arg4: memref<1x8x3xf32, #tpu.memory_space<vmem>>, %arg5: memref<1x8x1xf32, #tpu.memory_space<vmem>>, %arg6: memref<1x8x1xf32, #tpu.memory_space<vmem>>, %arg7: memref<3x32xf32, #tpu.memory_space<vmem>>, %arg8: memref<1x32xf32, #tpu.memory_space<vmem>>, %arg9: memref<1x32xf32, #tpu.memory_space<vmem>>, %arg10: memref<1x32xf32, #tpu.memory_space<vmem>>) attributes {dimension_semantics = [#tpu.dimension_semantics<arbitrary>, #tpu.dimension_semantics<arbitrary>, #tpu.dimension_semantics<arbitrary>], iteration_bounds = array<i64: 2, 1, 1>, scalar_prefetch = 0 : i64, scratch_operands = 0 : i64, tpu.core_type = #tpu.core_type<tc>, window_params = [{transform_indices = @transform_0, window_bounds = array<i64: 1, 8, 3>}, {transform_indices = @transform_1, window_bounds = array<i64: 1, 8, 3>}, {transform_indices = @transform_2, window_bounds = array<i64: 1, 8, 1>}, {transform_indices = @transform_3, window_bounds = array<i64: 1, 8, 1>}, {pipeline_mode = #tpu.pipeline_mode<synchronous>, transform_indices = @transform_4, window_bounds = array<i64: 3, 32>}, {pipeline_mode = #tpu.pipeline_mode<synchronous>, transform_indices = @transform_5, window_bounds = array<i64: 1, 32>}, {pipeline_mode = #tpu.pipeline_mode<synchronous>, transform_indices = @transform_6, window_bounds = array<i64: 1, 32>}, {pipeline_mode = #tpu.pipeline_mode<synchronous>, transform_indices = @transform_7, window_bounds = array<i64: 1, 32>}]} {
    %c0_i32 = arith.constant 0 : i32
    %0 = arith.cmpi eq, %arg0, %c0_i32 : i32
    %c0_i32_0 = arith.constant 0 : i32
    %1 = arith.cmpi eq, %arg1, %c0_i32_0 : i32
    %2 = arith.andi %0, %1 : i1
    %c0_i32_1 = arith.constant 0 : i32
    %3 = arith.cmpi eq, %arg2, %c0_i32_1 : i32
    %4 = arith.andi %2, %3 : i1
    %5 = arith.extui %4 : i1 to i32
    %c0_i32_2 = arith.constant 0 : i32
    %6 = arith.cmpi ne, %5, %c0_i32_2 : i32
    scf.if %6 {
      %cst_28 = arith.constant 0.000000e+00 : f32
      %45 = vector.broadcast %cst_28 : f32 to vector<1x32xf32>
      %c0_29 = arith.constant 0 : index
      %c0_30 = arith.constant 0 : index
      %46 = vector.load %arg9[%c0_29, %c0_30] : memref<1x32xf32, #tpu.memory_space<vmem>>, vector<1x32xf32>
      tpu.vector_store %arg9[%c0_29, %c0_30], %45 {strides = array<i32>} : memref<1x32xf32, #tpu.memory_space<vmem>>, vector<1x32xf32>,
      %cst_31 = arith.constant 0.000000e+00 : f32
      %47 = vector.broadcast %cst_31 : f32 to vector<1x32xf32>
      %c0_32 = arith.constant 0 : index
      %c0_33 = arith.constant 0 : index
      %48 = vector.load %arg10[%c0_32, %c0_33] : memref<1x32xf32, #tpu.memory_space<vmem>>, vector<1x32xf32>
      tpu.vector_store %arg10[%c0_32, %c0_33], %47 {strides = array<i32>} : memref<1x32xf32, #tpu.memory_space<vmem>>, vector<1x32xf32>,
    } else {
    }
    %c0 = arith.constant 0 : index
    %c0_3 = arith.constant 0 : index
    %c0_4 = arith.constant 0 : index
    %7 = vector.load %arg3[%c0, %c0_3, %c0_4] : memref<1x8x3xf32, #tpu.memory_space<vmem>>, vector<1x8x3xf32>
    %8 = vector.shape_cast %7 : vector<1x8x3xf32> to vector<8x3xf32>
    %c0_5 = arith.constant 0 : index
    %c0_6 = arith.constant 0 : index
    %c0_7 = arith.constant 0 : index
    %9 = vector.load %arg4[%c0_5, %c0_6, %c0_7] : memref<1x8x3xf32, #tpu.memory_space<vmem>>, vector<1x8x3xf32>
    %10 = vector.shape_cast %9 : vector<1x8x3xf32> to vector<8x3xf32>
    %11 = vector.shape_cast %8 : vector<8x3xf32> to vector<8x1x3xf32>
    %12 = vector.shape_cast %10 : vector<8x3xf32> to vector<1x8x3xf32>
    %13 = vector.broadcast %11 : vector<8x1x3xf32> to vector<8x8x3xf32>
    %14 = vector.broadcast %12 : vector<1x8x3xf32> to vector<8x8x3xf32>
    %15 = arith.subf %13, %14 : vector<8x8x3xf32>
    %16 = vector.shape_cast %15 : vector<8x8x3xf32> to vector<64x3xf32>
    %c0_8 = arith.constant 0 : index
    %c0_9 = arith.constant 0 : index
    %17 = vector.load %arg7[%c0_8, %c0_9] : memref<3x32xf32, #tpu.memory_space<vmem>>, vector<3x32xf32>
    %cst = arith.constant dense<0.000000e+00> : vector<64x32xf32>
    %18 = tpu.matmul %16, %17, %cst {dimension_numbers = #tpu.dot_dimension_numbers<[1], [0], [0], [1], [0, 0, 1, 1], [], []>} : vector<64x3xf32>, vector<3x32xf32>, vector<64x32xf32> -> vector<64x32xf32>
    %c0_10 = arith.constant 0 : index
    %c0_11 = arith.constant 0 : index
    %19 = vector.load %arg8[%c0_10, %c0_11] : memref<1x32xf32, #tpu.memory_space<vmem>>, vector<1x32xf32>
    %20 = vector.broadcast %19 : vector<1x32xf32> to vector<64x32xf32>
    %21 = arith.addf %18, %20 : vector<64x32xf32>
    %c0_12 = arith.constant 0 : index
    %c0_13 = arith.constant 0 : index
    %c0_14 = arith.constant 0 : index
    %22 = vector.load %arg6[%c0_12, %c0_13, %c0_14] : memref<1x8x1xf32, #tpu.memory_space<vmem>>, vector<1x8x1xf32>
    %23 = vector.shape_cast %22 : vector<1x8x1xf32> to vector<8x1xf32>
    %24 = vector.shape_cast %23 : vector<8x1xf32> to vector<8x1x1xf32>
    %c0_15 = arith.constant 0 : index
    %c0_16 = arith.constant 0 : index
    %c0_17 = arith.constant 0 : index
    %25 = vector.load %arg5[%c0_15, %c0_16, %c0_17] : memref<1x8x1xf32, #tpu.memory_space<vmem>>, vector<1x8x1xf32>
    %26 = vector.shape_cast %25 : vector<1x8x1xf32> to vector<8x1xf32>
    %27 = vector.shape_cast %26 : vector<8x1xf32> to vector<1x8x1xf32>
    %28 = vector.broadcast %24 : vector<8x1x1xf32> to vector<8x8x1xf32>
    %29 = vector.broadcast %27 : vector<1x8x1xf32> to vector<8x8x1xf32>
    %30 = arith.mulf %28, %29 : vector<8x8x1xf32>
    %31 = vector.shape_cast %30 : vector<8x8x1xf32> to vector<64x1xf32>
    %32 = vector.broadcast %31 : vector<64x1xf32> to vector<64x32xf32>
    %33 = arith.mulf %21, %32 : vector<64x32xf32>
    %c0_18 = arith.constant 0 : index
    %c0_19 = arith.constant 0 : index
    %34 = vector.load %arg9[%c0_18, %c0_19] : memref<1x32xf32, #tpu.memory_space<vmem>>, vector<1x32xf32>
    %cst_20 = arith.constant dense<0.000000e+00> : vector<32xf32>
    %35 = vector.multi_reduction <add>, %33, %cst_20 [0] : vector<64x32xf32> to vector<32xf32>
    %36 = vector.shape_cast %35 : vector<32xf32> to vector<1x32xf32>
    %37 = arith.addf %34, %36 : vector<1x32xf32>
    %c0_21 = arith.constant 0 : index
    %c0_22 = arith.constant 0 : index
    %38 = vector.load %arg9[%c0_21, %c0_22] : memref<1x32xf32, #tpu.memory_space<vmem>>, vector<1x32xf32>
    tpu.vector_store %arg9[%c0_21, %c0_22], %37 {strides = array<i32>} : memref<1x32xf32, #tpu.memory_space<vmem>>, vector<1x32xf32>,
    %c0_23 = arith.constant 0 : index
    %c0_24 = arith.constant 0 : index
    %39 = vector.load %arg10[%c0_23, %c0_24] : memref<1x32xf32, #tpu.memory_space<vmem>>, vector<1x32xf32>
    %40 = arith.mulf %33, %33 : vector<64x32xf32>
    %cst_25 = arith.constant dense<0.000000e+00> : vector<32xf32>
    %41 = vector.multi_reduction <add>, %40, %cst_25 [0] : vector<64x32xf32> to vector<32xf32>
    %42 = vector.shape_cast %41 : vector<32xf32> to vector<1x32xf32>
    %43 = arith.addf %39, %42 : vector<1x32xf32>
    %c0_26 = arith.constant 0 : index
    %c0_27 = arith.constant 0 : index
    %44 = vector.load %arg10[%c0_26, %c0_27] : memref<1x32xf32, #tpu.memory_space<vmem>>, vector<1x32xf32>
    tpu.vector_store %arg10[%c0_26, %c0_27], %43 {strides = array<i32>} : memref<1x32xf32, #tpu.memory_space<vmem>>, vector<1x32xf32>,
    return
  }
  func.func @transform_0(%arg0: i32, %arg1: i32, %arg2: i32) -> (i32, i32, i32) {
    %c0_i32 = arith.constant 0 : i32
    %c0_i32_0 = arith.constant 0 : i32
    return %arg0, %arg1, %c0_i32 : i32, i32, i32
  }
  func.func @transform_1(%arg0: i32, %arg1: i32, %arg2: i32) -> (i32, i32, i32) {
    %c0_i32 = arith.constant 0 : i32
    %c0_i32_0 = arith.constant 0 : i32
    return %arg0, %arg2, %c0_i32 : i32, i32, i32
  }
  func.func @transform_2(%arg0: i32, %arg1: i32, %arg2: i32) -> (i32, i32, i32) {
    %c0_i32 = arith.constant 0 : i32
    %c0_i32_0 = arith.constant 0 : i32
    return %arg0, %arg2, %c0_i32 : i32, i32, i32
  }
  func.func @transform_3(%arg0: i32, %arg1: i32, %arg2: i32) -> (i32, i32, i32) {
    %c0_i32 = arith.constant 0 : i32
    %c0_i32_0 = arith.constant 0 : i32
    return %arg0, %arg1, %c0_i32 : i32, i32, i32
  }
  func.func @transform_4(%arg0: i32, %arg1: i32, %arg2: i32) -> (i32, i32) {
    %c0_i32 = arith.constant 0 : i32
    %c0_i32_0 = arith.constant 0 : i32
    %c0_i32_1 = arith.constant 0 : i32
    return %c0_i32, %c0_i32_0 : i32, i32
  }
  func.func @transform_5(%arg0: i32, %arg1: i32, %arg2: i32) -> (i32, i32) {
    %c0_i32 = arith.constant 0 : i32
    %c0_i32_0 = arith.constant 0 : i32
    %c0_i32_1 = arith.constant 0 : i32
    return %c0_i32, %c0_i32_0 : i32, i32
  }
  func.func @transform_6(%arg0: i32, %arg1: i32, %arg2: i32) -> (i32, i32) {
    %c0_i32 = arith.constant 0 : i32
    %c0_i32_0 = arith.constant 0 : i32
    %c0_i32_1 = arith.constant 0 : i32
    return %c0_i32, %c0_i32_0 : i32, i32
  }
  func.func @transform_7(%arg0: i32, %arg1: i32, %arg2: i32) -> (i32, i32) {
    %c0_i32 = arith.constant 0 : i32
    %c0_i32_0 = arith.constant 0 : i32
    %c0_i32_1 = arith.constant 0 : i32
    return %c0_i32, %c0_i32_0 : i32, i32
  }
}

module attributes {stable_mosaic.version = 11 : i64} {
  func.func @kernel(%arg0: i32, %arg1: i32, %arg2: i32, %arg3: memref<1x8x3xf32, #tpu.memory_space<vmem>>, %arg4: memref<1x8x3xf32, #tpu.memory_space<vmem>>, %arg5: memref<1x8x1xf32, #tpu.memory_space<vmem>>, %arg6: memref<1x8x1xf32, #tpu.memory_space<vmem>>, %arg7: memref<3x32xf32, #tpu.memory_space<vmem>>, %arg8: memref<1x32xf32, #tpu.memory_space<vmem>>, %arg9: memref<1x32xf32, #tpu.memory_space<vmem>>, %arg10: memref<1x32xf32, #tpu.memory_space<vmem>>, %arg11: memref<32x32xf32, #tpu.memory_space<vmem>>, %arg12: memref<1x32xf32, #tpu.memory_space<vmem>>, %arg13: memref<1x32xf32, #tpu.memory_space<vmem>>, %arg14: memref<1x32xf32, #tpu.memory_space<vmem>>) attributes {dimension_semantics = [#tpu.dimension_semantics<arbitrary>, #tpu.dimension_semantics<arbitrary>, #tpu.dimension_semantics<arbitrary>], iteration_bounds = array<i64: 2, 1, 1>, scalar_prefetch = 0 : i64, scratch_operands = 0 : i64, tpu.core_type = #tpu.core_type<tc>, window_params = [{transform_indices = @transform_0, window_bounds = array<i64: 1, 8, 3>}, {transform_indices = @transform_1, window_bounds = array<i64: 1, 8, 3>}, {transform_indices = @transform_2, window_bounds = array<i64: 1, 8, 1>}, {transform_indices = @transform_3, window_bounds = array<i64: 1, 8, 1>}, {pipeline_mode = #tpu.pipeline_mode<synchronous>, transform_indices = @transform_4, window_bounds = array<i64: 3, 32>}, {pipeline_mode = #tpu.pipeline_mode<synchronous>, transform_indices = @transform_5, window_bounds = array<i64: 1, 32>}, {pipeline_mode = #tpu.pipeline_mode<synchronous>, transform_indices = @transform_6, window_bounds = array<i64: 1, 32>}, {pipeline_mode = #tpu.pipeline_mode<synchronous>, transform_indices = @transform_7, window_bounds = array<i64: 1, 32>}, {pipeline_mode = #tpu.pipeline_mode<synchronous>, transform_indices = @transform_8, window_bounds = array<i64: 32, 32>}, {pipeline_mode = #tpu.pipeline_mode<synchronous>, transform_indices = @transform_9, window_bounds = array<i64: 1, 32>}, {pipeline_mode = #tpu.pipeline_mode<synchronous>, transform_indices = @transform_10, window_bounds = array<i64: 1, 32>}, {pipeline_mode = #tpu.pipeline_mode<synchronous>, transform_indices = @transform_11, window_bounds = array<i64: 1, 32>}]} {
    %c0_i32 = arith.constant 0 : i32
    %0 = arith.cmpi eq, %arg0, %c0_i32 : i32
    %c0_i32_0 = arith.constant 0 : i32
    %1 = arith.cmpi eq, %arg1, %c0_i32_0 : i32
    %2 = arith.andi %0, %1 : i1
    %c0_i32_1 = arith.constant 0 : i32
    %3 = arith.cmpi eq, %arg2, %c0_i32_1 : i32
    %4 = arith.andi %2, %3 : i1
    %5 = arith.extui %4 : i1 to i32
    %c0_i32_2 = arith.constant 0 : i32
    %6 = arith.cmpi ne, %5, %c0_i32_2 : i32
    scf.if %6 {
      %cst_38 = arith.constant 0.000000e+00 : f32
      %62 = vector.broadcast %cst_38 : f32 to vector<1x32xf32>
      %c0_39 = arith.constant 0 : index
      %c0_40 = arith.constant 0 : index
      %63 = vector.load %arg13[%c0_39, %c0_40] : memref<1x32xf32, #tpu.memory_space<vmem>>, vector<1x32xf32>
      tpu.vector_store %arg13[%c0_39, %c0_40], %62 {strides = array<i32>} : memref<1x32xf32, #tpu.memory_space<vmem>>, vector<1x32xf32>,
      %cst_41 = arith.constant 0.000000e+00 : f32
      %64 = vector.broadcast %cst_41 : f32 to vector<1x32xf32>
      %c0_42 = arith.constant 0 : index
      %c0_43 = arith.constant 0 : index
      %65 = vector.load %arg14[%c0_42, %c0_43] : memref<1x32xf32, #tpu.memory_space<vmem>>, vector<1x32xf32>
      tpu.vector_store %arg14[%c0_42, %c0_43], %64 {strides = array<i32>} : memref<1x32xf32, #tpu.memory_space<vmem>>, vector<1x32xf32>,
    } else {
    }
    %c0 = arith.constant 0 : index
    %c0_3 = arith.constant 0 : index
    %c0_4 = arith.constant 0 : index
    %7 = vector.load %arg3[%c0, %c0_3, %c0_4] : memref<1x8x3xf32, #tpu.memory_space<vmem>>, vector<1x8x3xf32>
    %8 = vector.shape_cast %7 : vector<1x8x3xf32> to vector<8x3xf32>
    %c0_5 = arith.constant 0 : index
    %c0_6 = arith.constant 0 : index
    %c0_7 = arith.constant 0 : index
    %9 = vector.load %arg4[%c0_5, %c0_6, %c0_7] : memref<1x8x3xf32, #tpu.memory_space<vmem>>, vector<1x8x3xf32>
    %10 = vector.shape_cast %9 : vector<1x8x3xf32> to vector<8x3xf32>
    %11 = vector.shape_cast %8 : vector<8x3xf32> to vector<8x1x3xf32>
    %12 = vector.shape_cast %10 : vector<8x3xf32> to vector<1x8x3xf32>
    %13 = vector.broadcast %11 : vector<8x1x3xf32> to vector<8x8x3xf32>
    %14 = vector.broadcast %12 : vector<1x8x3xf32> to vector<8x8x3xf32>
    %15 = arith.subf %13, %14 : vector<8x8x3xf32>
    %16 = vector.shape_cast %15 : vector<8x8x3xf32> to vector<64x3xf32>
    %c0_8 = arith.constant 0 : index
    %c0_9 = arith.constant 0 : index
    %17 = vector.load %arg7[%c0_8, %c0_9] : memref<3x32xf32, #tpu.memory_space<vmem>>, vector<3x32xf32>
    %cst = arith.constant dense<0.000000e+00> : vector<64x32xf32>
    %18 = tpu.matmul %16, %17, %cst {dimension_numbers = #tpu.dot_dimension_numbers<[1], [0], [0], [1], [0, 0, 1, 1], [], []>} : vector<64x3xf32>, vector<3x32xf32>, vector<64x32xf32> -> vector<64x32xf32>
    %c0_10 = arith.constant 0 : index
    %c0_11 = arith.constant 0 : index
    %19 = vector.load %arg8[%c0_10, %c0_11] : memref<1x32xf32, #tpu.memory_space<vmem>>, vector<1x32xf32>
    %20 = vector.broadcast %19 : vector<1x32xf32> to vector<64x32xf32>
    %21 = arith.addf %18, %20 : vector<64x32xf32>
    %c0_12 = arith.constant 0 : index
    %c0_13 = arith.constant 0 : index
    %22 = vector.load %arg9[%c0_12, %c0_13] : memref<1x32xf32, #tpu.memory_space<vmem>>, vector<1x32xf32>
    %23 = vector.broadcast %22 : vector<1x32xf32> to vector<64x32xf32>
    %24 = arith.mulf %21, %23 : vector<64x32xf32>
    %c0_14 = arith.constant 0 : index
    %c0_15 = arith.constant 0 : index
    %25 = vector.load %arg10[%c0_14, %c0_15] : memref<1x32xf32, #tpu.memory_space<vmem>>, vector<1x32xf32>
    %26 = vector.broadcast %25 : vector<1x32xf32> to vector<64x32xf32>
    %27 = arith.addf %24, %26 : vector<64x32xf32>
    %28 = arith.negf %27 : vector<64x32xf32>
    %29 = math.exp %28 : vector<64x32xf32>
    %cst_16 = arith.constant 1.000000e+00 : f32
    %30 = vector.broadcast %cst_16 : f32 to vector<64x32xf32>
    %31 = arith.addf %30, %29 : vector<64x32xf32>
    %32 = arith.divf %30, %31 : vector<64x32xf32>
    %33 = arith.mulf %27, %32 : vector<64x32xf32>
    %c0_17 = arith.constant 0 : index
    %c0_18 = arith.constant 0 : index
    %34 = vector.load %arg11[%c0_17, %c0_18] : memref<32x32xf32, #tpu.memory_space<vmem>>, vector<32x32xf32>
    %cst_19 = arith.constant dense<0.000000e+00> : vector<64x32xf32>
    %35 = tpu.matmul %33, %34, %cst_19 {dimension_numbers = #tpu.dot_dimension_numbers<[1], [0], [0], [1], [0, 0, 1, 1], [], []>} : vector<64x32xf32>, vector<32x32xf32>, vector<64x32xf32> -> vector<64x32xf32>
    %c0_20 = arith.constant 0 : index
    %c0_21 = arith.constant 0 : index
    %36 = vector.load %arg12[%c0_20, %c0_21] : memref<1x32xf32, #tpu.memory_space<vmem>>, vector<1x32xf32>
    %37 = vector.broadcast %36 : vector<1x32xf32> to vector<64x32xf32>
    %38 = arith.addf %35, %37 : vector<64x32xf32>
    %c0_22 = arith.constant 0 : index
    %c0_23 = arith.constant 0 : index
    %c0_24 = arith.constant 0 : index
    %39 = vector.load %arg6[%c0_22, %c0_23, %c0_24] : memref<1x8x1xf32, #tpu.memory_space<vmem>>, vector<1x8x1xf32>
    %40 = vector.shape_cast %39 : vector<1x8x1xf32> to vector<8x1xf32>
    %41 = vector.shape_cast %40 : vector<8x1xf32> to vector<8x1x1xf32>
    %c0_25 = arith.constant 0 : index
    %c0_26 = arith.constant 0 : index
    %c0_27 = arith.constant 0 : index
    %42 = vector.load %arg5[%c0_25, %c0_26, %c0_27] : memref<1x8x1xf32, #tpu.memory_space<vmem>>, vector<1x8x1xf32>
    %43 = vector.shape_cast %42 : vector<1x8x1xf32> to vector<8x1xf32>
    %44 = vector.shape_cast %43 : vector<8x1xf32> to vector<1x8x1xf32>
    %45 = vector.broadcast %41 : vector<8x1x1xf32> to vector<8x8x1xf32>
    %46 = vector.broadcast %44 : vector<1x8x1xf32> to vector<8x8x1xf32>
    %47 = arith.mulf %45, %46 : vector<8x8x1xf32>
    %48 = vector.shape_cast %47 : vector<8x8x1xf32> to vector<64x1xf32>
    %49 = vector.broadcast %48 : vector<64x1xf32> to vector<64x32xf32>
    %50 = arith.mulf %38, %49 : vector<64x32xf32>
    %c0_28 = arith.constant 0 : index
    %c0_29 = arith.constant 0 : index
    %51 = vector.load %arg13[%c0_28, %c0_29] : memref<1x32xf32, #tpu.memory_space<vmem>>, vector<1x32xf32>
    %cst_30 = arith.constant dense<0.000000e+00> : vector<32xf32>
    %52 = vector.multi_reduction <add>, %50, %cst_30 [0] : vector<64x32xf32> to vector<32xf32>
    %53 = vector.shape_cast %52 : vector<32xf32> to vector<1x32xf32>
    %54 = arith.addf %51, %53 : vector<1x32xf32>
    %c0_31 = arith.constant 0 : index
    %c0_32 = arith.constant 0 : index
    %55 = vector.load %arg13[%c0_31, %c0_32] : memref<1x32xf32, #tpu.memory_space<vmem>>, vector<1x32xf32>
    tpu.vector_store %arg13[%c0_31, %c0_32], %54 {strides = array<i32>} : memref<1x32xf32, #tpu.memory_space<vmem>>, vector<1x32xf32>,
    %c0_33 = arith.constant 0 : index
    %c0_34 = arith.constant 0 : index
    %56 = vector.load %arg14[%c0_33, %c0_34] : memref<1x32xf32, #tpu.memory_space<vmem>>, vector<1x32xf32>
    %57 = arith.mulf %50, %50 : vector<64x32xf32>
    %cst_35 = arith.constant dense<0.000000e+00> : vector<32xf32>
    %58 = vector.multi_reduction <add>, %57, %cst_35 [0] : vector<64x32xf32> to vector<32xf32>
    %59 = vector.shape_cast %58 : vector<32xf32> to vector<1x32xf32>
    %60 = arith.addf %56, %59 : vector<1x32xf32>
    %c0_36 = arith.constant 0 : index
    %c0_37 = arith.constant 0 : index
    %61 = vector.load %arg14[%c0_36, %c0_37] : memref<1x32xf32, #tpu.memory_space<vmem>>, vector<1x32xf32>
    tpu.vector_store %arg14[%c0_36, %c0_37], %60 {strides = array<i32>} : memref<1x32xf32, #tpu.memory_space<vmem>>, vector<1x32xf32>,
    return
  }
  func.func @transform_0(%arg0: i32, %arg1: i32, %arg2: i32) -> (i32, i32, i32) {
    %c0_i32 = arith.constant 0 : i32
    %c0_i32_0 = arith.constant 0 : i32
    return %arg0, %arg1, %c0_i32 : i32, i32, i32
  }
  func.func @transform_1(%arg0: i32, %arg1: i32, %arg2: i32) -> (i32, i32, i32) {
    %c0_i32 = arith.constant 0 : i32
    %c0_i32_0 = arith.constant 0 : i32
    return %arg0, %arg2, %c0_i32 : i32, i32, i32
  }
  func.func @transform_2(%arg0: i32, %arg1: i32, %arg2: i32) -> (i32, i32, i32) {
    %c0_i32 = arith.constant 0 : i32
    %c0_i32_0 = arith.constant 0 : i32
    return %arg0, %arg2, %c0_i32 : i32, i32, i32
  }
  func.func @transform_3(%arg0: i32, %arg1: i32, %arg2: i32) -> (i32, i32, i32) {
    %c0_i32 = arith.constant 0 : i32
    %c0_i32_0 = arith.constant 0 : i32
    return %arg0, %arg1, %c0_i32 : i32, i32, i32
  }
  func.func @transform_4(%arg0: i32, %arg1: i32, %arg2: i32) -> (i32, i32) {
    %c0_i32 = arith.constant 0 : i32
    %c0_i32_0 = arith.constant 0 : i32
    %c0_i32_1 = arith.constant 0 : i32
    return %c0_i32, %c0_i32_0 : i32, i32
  }
  func.func @transform_5(%arg0: i32, %arg1: i32, %arg2: i32) -> (i32, i32) {
    %c0_i32 = arith.constant 0 : i32
    %c0_i32_0 = arith.constant 0 : i32
    %c0_i32_1 = arith.constant 0 : i32
    return %c0_i32, %c0_i32_0 : i32, i32
  }
  func.func @transform_6(%arg0: i32, %arg1: i32, %arg2: i32) -> (i32, i32) {
    %c0_i32 = arith.constant 0 : i32
    %c0_i32_0 = arith.constant 0 : i32
    %c0_i32_1 = arith.constant 0 : i32
    return %c0_i32, %c0_i32_0 : i32, i32
  }
  func.func @transform_7(%arg0: i32, %arg1: i32, %arg2: i32) -> (i32, i32) {
    %c0_i32 = arith.constant 0 : i32
    %c0_i32_0 = arith.constant 0 : i32
    %c0_i32_1 = arith.constant 0 : i32
    return %c0_i32, %c0_i32_0 : i32, i32
  }
  func.func @transform_8(%arg0: i32, %arg1: i32, %arg2: i32) -> (i32, i32) {
    %c0_i32 = arith.constant 0 : i32
    %c0_i32_0 = arith.constant 0 : i32
    %c0_i32_1 = arith.constant 0 : i32
    return %c0_i32, %c0_i32_0 : i32, i32
  }
  func.func @transform_9(%arg0: i32, %arg1: i32, %arg2: i32) -> (i32, i32) {
    %c0_i32 = arith.constant 0 : i32
    %c0_i32_0 = arith.constant 0 : i32
    %c0_i32_1 = arith.constant 0 : i32
    return %c0_i32, %c0_i32_0 : i32, i32
  }
  func.func @transform_10(%arg0: i32, %arg1: i32, %arg2: i32) -> (i32, i32) {
    %c0_i32 = arith.constant 0 : i32
    %c0_i32_0 = arith.constant 0 : i32
    %c0_i32_1 = arith.constant 0 : i32
    return %c0_i32, %c0_i32_0 : i32, i32
  }
  func.func @transform_11(%arg0: i32, %arg1: i32, %arg2: i32) -> (i32, i32) {
    %c0_i32 = arith.constant 0 : i32
    %c0_i32_0 = arith.constant 0 : i32
    %c0_i32_1 = arith.constant 0 : i32
    return %c0_i32, %c0_i32_0 : i32, i32
  }
}

module attributes {stable_mosaic.version = 11 : i64} {
  func.func @kernel(%arg0: i32, %arg1: i32, %arg2: i32, %arg3: memref<1x8x3xf32, #tpu.memory_space<vmem>>, %arg4: memref<1x8x3xf32, #tpu.memory_space<vmem>>, %arg5: memref<1x8x1xf32, #tpu.memory_space<vmem>>, %arg6: memref<1x8x1xf32, #tpu.memory_space<vmem>>, %arg7: memref<3x32xf32, #tpu.memory_space<vmem>>, %arg8: memref<1x32xf32, #tpu.memory_space<vmem>>, %arg9: memref<1x32xf32, #tpu.memory_space<vmem>>, %arg10: memref<1x32xf32, #tpu.memory_space<vmem>>, %arg11: memref<32x32xf32, #tpu.memory_space<vmem>>, %arg12: memref<1x32xf32, #tpu.memory_space<vmem>>, %arg13: memref<1x32xf32, #tpu.memory_space<vmem>>, %arg14: memref<1x32xf32, #tpu.memory_space<vmem>>, %arg15: memref<32x16xf32, #tpu.memory_space<vmem>>, %arg16: memref<1x16xf32, #tpu.memory_space<vmem>>, %arg17: memref<1x16xf32, #tpu.memory_space<vmem>>, %arg18: memref<1x16xf32, #tpu.memory_space<vmem>>) attributes {dimension_semantics = [#tpu.dimension_semantics<arbitrary>, #tpu.dimension_semantics<arbitrary>, #tpu.dimension_semantics<arbitrary>], iteration_bounds = array<i64: 2, 1, 1>, scalar_prefetch = 0 : i64, scratch_operands = 0 : i64, tpu.core_type = #tpu.core_type<tc>, window_params = [{transform_indices = @transform_0, window_bounds = array<i64: 1, 8, 3>}, {transform_indices = @transform_1, window_bounds = array<i64: 1, 8, 3>}, {transform_indices = @transform_2, window_bounds = array<i64: 1, 8, 1>}, {transform_indices = @transform_3, window_bounds = array<i64: 1, 8, 1>}, {pipeline_mode = #tpu.pipeline_mode<synchronous>, transform_indices = @transform_4, window_bounds = array<i64: 3, 32>}, {pipeline_mode = #tpu.pipeline_mode<synchronous>, transform_indices = @transform_5, window_bounds = array<i64: 1, 32>}, {pipeline_mode = #tpu.pipeline_mode<synchronous>, transform_indices = @transform_6, window_bounds = array<i64: 1, 32>}, {pipeline_mode = #tpu.pipeline_mode<synchronous>, transform_indices = @transform_7, window_bounds = array<i64: 1, 32>}, {pipeline_mode = #tpu.pipeline_mode<synchronous>, transform_indices = @transform_8, window_bounds = array<i64: 32, 32>}, {pipeline_mode = #tpu.pipeline_mode<synchronous>, transform_indices = @transform_9, window_bounds = array<i64: 1, 32>}, {pipeline_mode = #tpu.pipeline_mode<synchronous>, transform_indices = @transform_10, window_bounds = array<i64: 1, 32>}, {pipeline_mode = #tpu.pipeline_mode<synchronous>, transform_indices = @transform_11, window_bounds = array<i64: 1, 32>}, {pipeline_mode = #tpu.pipeline_mode<synchronous>, transform_indices = @transform_12, window_bounds = array<i64: 32, 16>}, {pipeline_mode = #tpu.pipeline_mode<synchronous>, transform_indices = @transform_13, window_bounds = array<i64: 1, 16>}, {pipeline_mode = #tpu.pipeline_mode<synchronous>, transform_indices = @transform_14, window_bounds = array<i64: 1, 16>}, {pipeline_mode = #tpu.pipeline_mode<synchronous>, transform_indices = @transform_15, window_bounds = array<i64: 1, 16>}]} {
    %c0_i32 = arith.constant 0 : i32
    %0 = arith.cmpi eq, %arg0, %c0_i32 : i32
    %c0_i32_0 = arith.constant 0 : i32
    %1 = arith.cmpi eq, %arg1, %c0_i32_0 : i32
    %2 = arith.andi %0, %1 : i1
    %c0_i32_1 = arith.constant 0 : i32
    %3 = arith.cmpi eq, %arg2, %c0_i32_1 : i32
    %4 = arith.andi %2, %3 : i1
    %5 = arith.extui %4 : i1 to i32
    %c0_i32_2 = arith.constant 0 : i32
    %6 = arith.cmpi ne, %5, %c0_i32_2 : i32
    scf.if %6 {
      %cst_48 = arith.constant 0.000000e+00 : f32
      %79 = vector.broadcast %cst_48 : f32 to vector<1x16xf32>
      %c0_49 = arith.constant 0 : index
      %c0_50 = arith.constant 0 : index
      %80 = vector.load %arg17[%c0_49, %c0_50] : memref<1x16xf32, #tpu.memory_space<vmem>>, vector<1x16xf32>
      tpu.vector_store %arg17[%c0_49, %c0_50], %79 {strides = array<i32>} : memref<1x16xf32, #tpu.memory_space<vmem>>, vector<1x16xf32>,
      %cst_51 = arith.constant 0.000000e+00 : f32
      %81 = vector.broadcast %cst_51 : f32 to vector<1x16xf32>
      %c0_52 = arith.constant 0 : index
      %c0_53 = arith.constant 0 : index
      %82 = vector.load %arg18[%c0_52, %c0_53] : memref<1x16xf32, #tpu.memory_space<vmem>>, vector<1x16xf32>
      tpu.vector_store %arg18[%c0_52, %c0_53], %81 {strides = array<i32>} : memref<1x16xf32, #tpu.memory_space<vmem>>, vector<1x16xf32>,
    } else {
    }
    %c0 = arith.constant 0 : index
    %c0_3 = arith.constant 0 : index
    %c0_4 = arith.constant 0 : index
    %7 = vector.load %arg3[%c0, %c0_3, %c0_4] : memref<1x8x3xf32, #tpu.memory_space<vmem>>, vector<1x8x3xf32>
    %8 = vector.shape_cast %7 : vector<1x8x3xf32> to vector<8x3xf32>
    %c0_5 = arith.constant 0 : index
    %c0_6 = arith.constant 0 : index
    %c0_7 = arith.constant 0 : index
    %9 = vector.load %arg4[%c0_5, %c0_6, %c0_7] : memref<1x8x3xf32, #tpu.memory_space<vmem>>, vector<1x8x3xf32>
    %10 = vector.shape_cast %9 : vector<1x8x3xf32> to vector<8x3xf32>
    %11 = vector.shape_cast %8 : vector<8x3xf32> to vector<8x1x3xf32>
    %12 = vector.shape_cast %10 : vector<8x3xf32> to vector<1x8x3xf32>
    %13 = vector.broadcast %11 : vector<8x1x3xf32> to vector<8x8x3xf32>
    %14 = vector.broadcast %12 : vector<1x8x3xf32> to vector<8x8x3xf32>
    %15 = arith.subf %13, %14 : vector<8x8x3xf32>
    %16 = vector.shape_cast %15 : vector<8x8x3xf32> to vector<64x3xf32>
    %c0_8 = arith.constant 0 : index
    %c0_9 = arith.constant 0 : index
    %17 = vector.load %arg7[%c0_8, %c0_9] : memref<3x32xf32, #tpu.memory_space<vmem>>, vector<3x32xf32>
    %cst = arith.constant dense<0.000000e+00> : vector<64x32xf32>
    %18 = tpu.matmul %16, %17, %cst {dimension_numbers = #tpu.dot_dimension_numbers<[1], [0], [0], [1], [0, 0, 1, 1], [], []>} : vector<64x3xf32>, vector<3x32xf32>, vector<64x32xf32> -> vector<64x32xf32>
    %c0_10 = arith.constant 0 : index
    %c0_11 = arith.constant 0 : index
    %19 = vector.load %arg8[%c0_10, %c0_11] : memref<1x32xf32, #tpu.memory_space<vmem>>, vector<1x32xf32>
    %20 = vector.broadcast %19 : vector<1x32xf32> to vector<64x32xf32>
    %21 = arith.addf %18, %20 : vector<64x32xf32>
    %c0_12 = arith.constant 0 : index
    %c0_13 = arith.constant 0 : index
    %22 = vector.load %arg9[%c0_12, %c0_13] : memref<1x32xf32, #tpu.memory_space<vmem>>, vector<1x32xf32>
    %23 = vector.broadcast %22 : vector<1x32xf32> to vector<64x32xf32>
    %24 = arith.mulf %21, %23 : vector<64x32xf32>
    %c0_14 = arith.constant 0 : index
    %c0_15 = arith.constant 0 : index
    %25 = vector.load %arg10[%c0_14, %c0_15] : memref<1x32xf32, #tpu.memory_space<vmem>>, vector<1x32xf32>
    %26 = vector.broadcast %25 : vector<1x32xf32> to vector<64x32xf32>
    %27 = arith.addf %24, %26 : vector<64x32xf32>
    %28 = arith.negf %27 : vector<64x32xf32>
    %29 = math.exp %28 : vector<64x32xf32>
    %cst_16 = arith.constant 1.000000e+00 : f32
    %30 = vector.broadcast %cst_16 : f32 to vector<64x32xf32>
    %31 = arith.addf %30, %29 : vector<64x32xf32>
    %32 = arith.divf %30, %31 : vector<64x32xf32>
    %33 = arith.mulf %27, %32 : vector<64x32xf32>
    %c0_17 = arith.constant 0 : index
    %c0_18 = arith.constant 0 : index
    %34 = vector.load %arg11[%c0_17, %c0_18] : memref<32x32xf32, #tpu.memory_space<vmem>>, vector<32x32xf32>
    %cst_19 = arith.constant dense<0.000000e+00> : vector<64x32xf32>
    %35 = tpu.matmul %33, %34, %cst_19 {dimension_numbers = #tpu.dot_dimension_numbers<[1], [0], [0], [1], [0, 0, 1, 1], [], []>} : vector<64x32xf32>, vector<32x32xf32>, vector<64x32xf32> -> vector<64x32xf32>
    %c0_20 = arith.constant 0 : index
    %c0_21 = arith.constant 0 : index
    %36 = vector.load %arg12[%c0_20, %c0_21] : memref<1x32xf32, #tpu.memory_space<vmem>>, vector<1x32xf32>
    %37 = vector.broadcast %36 : vector<1x32xf32> to vector<64x32xf32>
    %38 = arith.addf %35, %37 : vector<64x32xf32>
    %c0_22 = arith.constant 0 : index
    %c0_23 = arith.constant 0 : index
    %39 = vector.load %arg13[%c0_22, %c0_23] : memref<1x32xf32, #tpu.memory_space<vmem>>, vector<1x32xf32>
    %40 = vector.broadcast %39 : vector<1x32xf32> to vector<64x32xf32>
    %41 = arith.mulf %38, %40 : vector<64x32xf32>
    %c0_24 = arith.constant 0 : index
    %c0_25 = arith.constant 0 : index
    %42 = vector.load %arg14[%c0_24, %c0_25] : memref<1x32xf32, #tpu.memory_space<vmem>>, vector<1x32xf32>
    %43 = vector.broadcast %42 : vector<1x32xf32> to vector<64x32xf32>
    %44 = arith.addf %41, %43 : vector<64x32xf32>
    %45 = arith.negf %44 : vector<64x32xf32>
    %46 = math.exp %45 : vector<64x32xf32>
    %cst_26 = arith.constant 1.000000e+00 : f32
    %47 = vector.broadcast %cst_26 : f32 to vector<64x32xf32>
    %48 = arith.addf %47, %46 : vector<64x32xf32>
    %49 = arith.divf %47, %48 : vector<64x32xf32>
    %50 = arith.mulf %44, %49 : vector<64x32xf32>
    %c0_27 = arith.constant 0 : index
    %c0_28 = arith.constant 0 : index
    %51 = vector.load %arg15[%c0_27, %c0_28] : memref<32x16xf32, #tpu.memory_space<vmem>>, vector<32x16xf32>
    %cst_29 = arith.constant dense<0.000000e+00> : vector<64x16xf32>
    %52 = tpu.matmul %50, %51, %cst_29 {dimension_numbers = #tpu.dot_dimension_numbers<[1], [0], [0], [1], [0, 0, 1, 1], [], []>} : vector<64x32xf32>, vector<32x16xf32>, vector<64x16xf32> -> vector<64x16xf32>
    %c0_30 = arith.constant 0 : index
    %c0_31 = arith.constant 0 : index
    %53 = vector.load %arg16[%c0_30, %c0_31] : memref<1x16xf32, #tpu.memory_space<vmem>>, vector<1x16xf32>
    %54 = vector.broadcast %53 : vector<1x16xf32> to vector<64x16xf32>
    %55 = arith.addf %52, %54 : vector<64x16xf32>
    %c0_32 = arith.constant 0 : index
    %c0_33 = arith.constant 0 : index
    %c0_34 = arith.constant 0 : index
    %56 = vector.load %arg6[%c0_32, %c0_33, %c0_34] : memref<1x8x1xf32, #tpu.memory_space<vmem>>, vector<1x8x1xf32>
    %57 = vector.shape_cast %56 : vector<1x8x1xf32> to vector<8x1xf32>
    %58 = vector.shape_cast %57 : vector<8x1xf32> to vector<8x1x1xf32>
    %c0_35 = arith.constant 0 : index
    %c0_36 = arith.constant 0 : index
    %c0_37 = arith.constant 0 : index
    %59 = vector.load %arg5[%c0_35, %c0_36, %c0_37] : memref<1x8x1xf32, #tpu.memory_space<vmem>>, vector<1x8x1xf32>
    %60 = vector.shape_cast %59 : vector<1x8x1xf32> to vector<8x1xf32>
    %61 = vector.shape_cast %60 : vector<8x1xf32> to vector<1x8x1xf32>
    %62 = vector.broadcast %58 : vector<8x1x1xf32> to vector<8x8x1xf32>
    %63 = vector.broadcast %61 : vector<1x8x1xf32> to vector<8x8x1xf32>
    %64 = arith.mulf %62, %63 : vector<8x8x1xf32>
    %65 = vector.shape_cast %64 : vector<8x8x1xf32> to vector<64x1xf32>
    %66 = vector.broadcast %65 : vector<64x1xf32> to vector<64x16xf32>
    %67 = arith.mulf %55, %66 : vector<64x16xf32>
    %c0_38 = arith.constant 0 : index
    %c0_39 = arith.constant 0 : index
    %68 = vector.load %arg17[%c0_38, %c0_39] : memref<1x16xf32, #tpu.memory_space<vmem>>, vector<1x16xf32>
    %cst_40 = arith.constant dense<0.000000e+00> : vector<16xf32>
    %69 = vector.multi_reduction <add>, %67, %cst_40 [0] : vector<64x16xf32> to vector<16xf32>
    %70 = vector.shape_cast %69 : vector<16xf32> to vector<1x16xf32>
    %71 = arith.addf %68, %70 : vector<1x16xf32>
    %c0_41 = arith.constant 0 : index
    %c0_42 = arith.constant 0 : index
    %72 = vector.load %arg17[%c0_41, %c0_42] : memref<1x16xf32, #tpu.memory_space<vmem>>, vector<1x16xf32>
    tpu.vector_store %arg17[%c0_41, %c0_42], %71 {strides = array<i32>} : memref<1x16xf32, #tpu.memory_space<vmem>>, vector<1x16xf32>,
    %c0_43 = arith.constant 0 : index
    %c0_44 = arith.constant 0 : index
    %73 = vector.load %arg18[%c0_43, %c0_44] : memref<1x16xf32, #tpu.memory_space<vmem>>, vector<1x16xf32>
    %74 = arith.mulf %67, %67 : vector<64x16xf32>
    %cst_45 = arith.constant dense<0.000000e+00> : vector<16xf32>
    %75 = vector.multi_reduction <add>, %74, %cst_45 [0] : vector<64x16xf32> to vector<16xf32>
    %76 = vector.shape_cast %75 : vector<16xf32> to vector<1x16xf32>
    %77 = arith.addf %73, %76 : vector<1x16xf32>
    %c0_46 = arith.constant 0 : index
    %c0_47 = arith.constant 0 : index
    %78 = vector.load %arg18[%c0_46, %c0_47] : memref<1x16xf32, #tpu.memory_space<vmem>>, vector<1x16xf32>
    tpu.vector_store %arg18[%c0_46, %c0_47], %77 {strides = array<i32>} : memref<1x16xf32, #tpu.memory_space<vmem>>, vector<1x16xf32>,
    return
  }
  func.func @transform_0(%arg0: i32, %arg1: i32, %arg2: i32) -> (i32, i32, i32) {
    %c0_i32 = arith.constant 0 : i32
    %c0_i32_0 = arith.constant 0 : i32
    return %arg0, %arg1, %c0_i32 : i32, i32, i32
  }
  func.func @transform_1(%arg0: i32, %arg1: i32, %arg2: i32) -> (i32, i32, i32) {
    %c0_i32 = arith.constant 0 : i32
    %c0_i32_0 = arith.constant 0 : i32
    return %arg0, %arg2, %c0_i32 : i32, i32, i32
  }
  func.func @transform_2(%arg0: i32, %arg1: i32, %arg2: i32) -> (i32, i32, i32) {
    %c0_i32 = arith.constant 0 : i32
    %c0_i32_0 = arith.constant 0 : i32
    return %arg0, %arg2, %c0_i32 : i32, i32, i32
  }
  func.func @transform_3(%arg0: i32, %arg1: i32, %arg2: i32) -> (i32, i32, i32) {
    %c0_i32 = arith.constant 0 : i32
    %c0_i32_0 = arith.constant 0 : i32
    return %arg0, %arg1, %c0_i32 : i32, i32, i32
  }
  func.func @transform_4(%arg0: i32, %arg1: i32, %arg2: i32) -> (i32, i32) {
    %c0_i32 = arith.constant 0 : i32
    %c0_i32_0 = arith.constant 0 : i32
    %c0_i32_1 = arith.constant 0 : i32
    return %c0_i32, %c0_i32_0 : i32, i32
  }
  func.func @transform_5(%arg0: i32, %arg1: i32, %arg2: i32) -> (i32, i32) {
    %c0_i32 = arith.constant 0 : i32
    %c0_i32_0 = arith.constant 0 : i32
    %c0_i32_1 = arith.constant 0 : i32
    return %c0_i32, %c0_i32_0 : i32, i32
  }
  func.func @transform_6(%arg0: i32, %arg1: i32, %arg2: i32) -> (i32, i32) {
    %c0_i32 = arith.constant 0 : i32
    %c0_i32_0 = arith.constant 0 : i32
    %c0_i32_1 = arith.constant 0 : i32
    return %c0_i32, %c0_i32_0 : i32, i32
  }
  func.func @transform_7(%arg0: i32, %arg1: i32, %arg2: i32) -> (i32, i32) {
    %c0_i32 = arith.constant 0 : i32
    %c0_i32_0 = arith.constant 0 : i32
    %c0_i32_1 = arith.constant 0 : i32
    return %c0_i32, %c0_i32_0 : i32, i32
  }
  func.func @transform_8(%arg0: i32, %arg1: i32, %arg2: i32) -> (i32, i32) {
    %c0_i32 = arith.constant 0 : i32
    %c0_i32_0 = arith.constant 0 : i32
    %c0_i32_1 = arith.constant 0 : i32
    return %c0_i32, %c0_i32_0 : i32, i32
  }
  func.func @transform_9(%arg0: i32, %arg1: i32, %arg2: i32) -> (i32, i32) {
    %c0_i32 = arith.constant 0 : i32
    %c0_i32_0 = arith.constant 0 : i32
    %c0_i32_1 = arith.constant 0 : i32
    return %c0_i32, %c0_i32_0 : i32, i32
  }
  func.func @transform_10(%arg0: i32, %arg1: i32, %arg2: i32) -> (i32, i32) {
    %c0_i32 = arith.constant 0 : i32
    %c0_i32_0 = arith.constant 0 : i32
    %c0_i32_1 = arith.constant 0 : i32
    return %c0_i32, %c0_i32_0 : i32, i32
  }
  func.func @transform_11(%arg0: i32, %arg1: i32, %arg2: i32) -> (i32, i32) {
    %c0_i32 = arith.constant 0 : i32
    %c0_i32_0 = arith.constant 0 : i32
    %c0_i32_1 = arith.constant 0 : i32
    return %c0_i32, %c0_i32_0 : i32, i32
  }
  func.func @transform_12(%arg0: i32, %arg1: i32, %arg2: i32) -> (i32, i32) {
    %c0_i32 = arith.constant 0 : i32
    %c0_i32_0 = arith.constant 0 : i32
    %c0_i32_1 = arith.constant 0 : i32
    return %c0_i32, %c0_i32_0 : i32, i32
  }
  func.func @transform_13(%arg0: i32, %arg1: i32, %arg2: i32) -> (i32, i32) {
    %c0_i32 = arith.constant 0 : i32
    %c0_i32_0 = arith.constant 0 : i32
    %c0_i32_1 = arith.constant 0 : i32
    return %c0_i32, %c0_i32_0 : i32, i32
  }
  func.func @transform_14(%arg0: i32, %arg1: i32, %arg2: i32) -> (i32, i32) {
    %c0_i32 = arith.constant 0 : i32
    %c0_i32_0 = arith.constant 0 : i32
    %c0_i32_1 = arith.constant 0 : i32
    return %c0_i32, %c0_i32_0 : i32, i32
  }
  func.func @transform_15(%arg0: i32, %arg1: i32, %arg2: i32) -> (i32, i32) {
    %c0_i32 = arith.constant 0 : i32
    %c0_i32_0 = arith.constant 0 : i32
    %c0_i32_1 = arith.constant 0 : i32
    return %c0_i32, %c0_i32_0 : i32, i32
  }
}

module attributes {stable_mosaic.version = 11 : i64} {
  func.func @_linear_kernel(%arg0: i32, %arg1: memref<16x4xf32, #tpu.memory_space<vmem>>, %arg2: memref<4x32xf32, #tpu.memory_space<vmem>>, %arg3: memref<1x32xf32, #tpu.memory_space<vmem>>, %arg4: memref<16x32xf32, #tpu.memory_space<vmem>>) attributes {dimension_semantics = [#tpu.dimension_semantics<parallel>], iteration_bounds = array<i64: 1>, scalar_prefetch = 0 : i64, scratch_operands = 0 : i64, tpu.core_type = #tpu.core_type<tc>, window_params = [{transform_indices = @transform_0, window_bounds = array<i64: 16, 4>}, {pipeline_mode = #tpu.pipeline_mode<synchronous>, transform_indices = @transform_1, window_bounds = array<i64: 4, 32>}, {pipeline_mode = #tpu.pipeline_mode<synchronous>, transform_indices = @transform_2, window_bounds = array<i64: 1, 32>}, {transform_indices = @transform_3, window_bounds = array<i64: 16, 32>}]} {
    %c0 = arith.constant 0 : index
    %c0_0 = arith.constant 0 : index
    %0 = vector.load %arg1[%c0, %c0_0] : memref<16x4xf32, #tpu.memory_space<vmem>>, vector<16x4xf32>
    %c0_1 = arith.constant 0 : index
    %c0_2 = arith.constant 0 : index
    %1 = vector.load %arg2[%c0_1, %c0_2] : memref<4x32xf32, #tpu.memory_space<vmem>>, vector<4x32xf32>
    %cst = arith.constant dense<0.000000e+00> : vector<16x32xf32>
    %2 = tpu.matmul %0, %1, %cst {dimension_numbers = #tpu.dot_dimension_numbers<[1], [0], [0], [1], [0, 0, 1, 1], [], []>} : vector<16x4xf32>, vector<4x32xf32>, vector<16x32xf32> -> vector<16x32xf32>
    %c0_3 = arith.constant 0 : index
    %c0_4 = arith.constant 0 : index
    %3 = vector.load %arg3[%c0_3, %c0_4] : memref<1x32xf32, #tpu.memory_space<vmem>>, vector<1x32xf32>
    %4 = vector.broadcast %3 : vector<1x32xf32> to vector<16x32xf32>
    %5 = arith.addf %2, %4 : vector<16x32xf32>
    %c0_5 = arith.constant 0 : index
    %c0_6 = arith.constant 0 : index
    %6 = vector.load %arg4[%c0_5, %c0_6] : memref<16x32xf32, #tpu.memory_space<vmem>>, vector<16x32xf32>
    tpu.vector_store %arg4[%c0_5, %c0_6], %5 {strides = array<i32>} : memref<16x32xf32, #tpu.memory_space<vmem>>, vector<16x32xf32>,
    return
  }
  func.func @transform_0(%arg0: i32) -> (i32, i32) {
    %c0_i32 = arith.constant 0 : i32
    %c0_i32_0 = arith.constant 0 : i32
    return %arg0, %c0_i32 : i32, i32
  }
  func.func @transform_1(%arg0: i32) -> (i32, i32) {
    %c0_i32 = arith.constant 0 : i32
    %c0_i32_0 = arith.constant 0 : i32
    %c0_i32_1 = arith.constant 0 : i32
    return %c0_i32, %c0_i32_0 : i32, i32
  }
  func.func @transform_2(%arg0: i32) -> (i32, i32) {
    %c0_i32 = arith.constant 0 : i32
    %c0_i32_0 = arith.constant 0 : i32
    %c0_i32_1 = arith.constant 0 : i32
    return %c0_i32, %c0_i32_0 : i32, i32
  }
  func.func @transform_3(%arg0: i32) -> (i32, i32) {
    %c0_i32 = arith.constant 0 : i32
    %c0_i32_0 = arith.constant 0 : i32
    return %arg0, %c0_i32 : i32, i32
  }
}

module attributes {stable_mosaic.version = 11 : i64} {
  func.func @_masked_stats_kernel(%arg0: i32, %arg1: memref<16x32xf32, #tpu.memory_space<vmem>>, %arg2: memref<16x1xf32, #tpu.memory_space<vmem>>, %arg3: memref<1x32xf32, #tpu.memory_space<vmem>>, %arg4: memref<1x32xf32, #tpu.memory_space<vmem>>) attributes {dimension_semantics = [#tpu.dimension_semantics<arbitrary>], iteration_bounds = array<i64: 1>, scalar_prefetch = 0 : i64, scratch_operands = 0 : i64, tpu.core_type = #tpu.core_type<tc>, window_params = [{transform_indices = @transform_0, window_bounds = array<i64: 16, 32>}, {transform_indices = @transform_1, window_bounds = array<i64: 16, 1>}, {pipeline_mode = #tpu.pipeline_mode<synchronous>, transform_indices = @transform_2, window_bounds = array<i64: 1, 32>}, {pipeline_mode = #tpu.pipeline_mode<synchronous>, transform_indices = @transform_3, window_bounds = array<i64: 1, 32>}]} {
    %c0_i32 = arith.constant 0 : i32
    %0 = arith.cmpi eq, %arg0, %c0_i32 : i32
    %1 = arith.extui %0 : i1 to i32
    %c0_i32_0 = arith.constant 0 : i32
    %2 = arith.cmpi ne, %1, %c0_i32_0 : i32
    scf.if %2 {
      %cst_13 = arith.constant 0.000000e+00 : f32
      %18 = vector.broadcast %cst_13 : f32 to vector<1x32xf32>
      %c0_14 = arith.constant 0 : index
      %c0_15 = arith.constant 0 : index
      %19 = vector.load %arg3[%c0_14, %c0_15] : memref<1x32xf32, #tpu.memory_space<vmem>>, vector<1x32xf32>
      tpu.vector_store %arg3[%c0_14, %c0_15], %18 {strides = array<i32>} : memref<1x32xf32, #tpu.memory_space<vmem>>, vector<1x32xf32>,
      %cst_16 = arith.constant 0.000000e+00 : f32
      %20 = vector.broadcast %cst_16 : f32 to vector<1x32xf32>
      %c0_17 = arith.constant 0 : index
      %c0_18 = arith.constant 0 : index
      %21 = vector.load %arg4[%c0_17, %c0_18] : memref<1x32xf32, #tpu.memory_space<vmem>>, vector<1x32xf32>
      tpu.vector_store %arg4[%c0_17, %c0_18], %20 {strides = array<i32>} : memref<1x32xf32, #tpu.memory_space<vmem>>, vector<1x32xf32>,
    } else {
    }
    %c0 = arith.constant 0 : index
    %c0_1 = arith.constant 0 : index
    %3 = vector.load %arg1[%c0, %c0_1] : memref<16x32xf32, #tpu.memory_space<vmem>>, vector<16x32xf32>
    %c0_2 = arith.constant 0 : index
    %c0_3 = arith.constant 0 : index
    %4 = vector.load %arg2[%c0_2, %c0_3] : memref<16x1xf32, #tpu.memory_space<vmem>>, vector<16x1xf32>
    %5 = vector.broadcast %4 : vector<16x1xf32> to vector<16x32xf32>
    %6 = arith.mulf %3, %5 : vector<16x32xf32>
    %c0_4 = arith.constant 0 : index
    %c0_5 = arith.constant 0 : index
    %7 = vector.load %arg3[%c0_4, %c0_5] : memref<1x32xf32, #tpu.memory_space<vmem>>, vector<1x32xf32>
    %cst = arith.constant dense<0.000000e+00> : vector<32xf32>
    %8 = vector.multi_reduction <add>, %6, %cst [0] : vector<16x32xf32> to vector<32xf32>
    %9 = vector.shape_cast %8 : vector<32xf32> to vector<1x32xf32>
    %10 = arith.addf %7, %9 : vector<1x32xf32>
    %c0_6 = arith.constant 0 : index
    %c0_7 = arith.constant 0 : index
    %11 = vector.load %arg3[%c0_6, %c0_7] : memref<1x32xf32, #tpu.memory_space<vmem>>, vector<1x32xf32>
    tpu.vector_store %arg3[%c0_6, %c0_7], %10 {strides = array<i32>} : memref<1x32xf32, #tpu.memory_space<vmem>>, vector<1x32xf32>,
    %c0_8 = arith.constant 0 : index
    %c0_9 = arith.constant 0 : index
    %12 = vector.load %arg4[%c0_8, %c0_9] : memref<1x32xf32, #tpu.memory_space<vmem>>, vector<1x32xf32>
    %13 = arith.mulf %6, %6 : vector<16x32xf32>
    %cst_10 = arith.constant dense<0.000000e+00> : vector<32xf32>
    %14 = vector.multi_reduction <add>, %13, %cst_10 [0] : vector<16x32xf32> to vector<32xf32>
    %15 = vector.shape_cast %14 : vector<32xf32> to vector<1x32xf32>
    %16 = arith.addf %12, %15 : vector<1x32xf32>
    %c0_11 = arith.constant 0 : index
    %c0_12 = arith.constant 0 : index
    %17 = vector.load %arg4[%c0_11, %c0_12] : memref<1x32xf32, #tpu.memory_space<vmem>>, vector<1x32xf32>
    tpu.vector_store %arg4[%c0_11, %c0_12], %16 {strides = array<i32>} : memref<1x32xf32, #tpu.memory_space<vmem>>, vector<1x32xf32>,
    return
  }
  func.func @transform_0(%arg0: i32) -> (i32, i32) {
    %c0_i32 = arith.constant 0 : i32
    %c0_i32_0 = arith.constant 0 : i32
    return %arg0, %c0_i32 : i32, i32
  }
  func.func @transform_1(%arg0: i32) -> (i32, i32) {
    %c0_i32 = arith.constant 0 : i32
    %c0_i32_0 = arith.constant 0 : i32
    return %arg0, %c0_i32 : i32, i32
  }
  func.func @transform_2(%arg0: i32) -> (i32, i32) {
    %c0_i32 = arith.constant 0 : i32
    %c0_i32_0 = arith.constant 0 : i32
    %c0_i32_1 = arith.constant 0 : i32
    return %c0_i32, %c0_i32_0 : i32, i32
  }
  func.func @transform_3(%arg0: i32) -> (i32, i32) {
    %c0_i32 = arith.constant 0 : i32
    %c0_i32_0 = arith.constant 0 : i32
    %c0_i32_1 = arith.constant 0 : i32
    return %c0_i32, %c0_i32_0 : i32, i32
  }
}

module attributes {stable_mosaic.version = 11 : i64} {
  func.func @_bn_swish_linear_kernel(%arg0: i32, %arg1: memref<16x32xf32, #tpu.memory_space<vmem>>, %arg2: memref<16x1xf32, #tpu.memory_space<vmem>>, %arg3: memref<1x32xf32, #tpu.memory_space<vmem>>, %arg4: memref<1x32xf32, #tpu.memory_space<vmem>>, %arg5: memref<32x8xf32, #tpu.memory_space<vmem>>, %arg6: memref<1x8xf32, #tpu.memory_space<vmem>>, %arg7: memref<16x8xf32, #tpu.memory_space<vmem>>) attributes {dimension_semantics = [#tpu.dimension_semantics<parallel>], iteration_bounds = array<i64: 1>, scalar_prefetch = 0 : i64, scratch_operands = 0 : i64, tpu.core_type = #tpu.core_type<tc>, window_params = [{transform_indices = @transform_0, window_bounds = array<i64: 16, 32>}, {transform_indices = @transform_1, window_bounds = array<i64: 16, 1>}, {pipeline_mode = #tpu.pipeline_mode<synchronous>, transform_indices = @transform_2, window_bounds = array<i64: 1, 32>}, {pipeline_mode = #tpu.pipeline_mode<synchronous>, transform_indices = @transform_3, window_bounds = array<i64: 1, 32>}, {pipeline_mode = #tpu.pipeline_mode<synchronous>, transform_indices = @transform_4, window_bounds = array<i64: 32, 8>}, {pipeline_mode = #tpu.pipeline_mode<synchronous>, transform_indices = @transform_5, window_bounds = array<i64: 1, 8>}, {transform_indices = @transform_6, window_bounds = array<i64: 16, 8>}]} {
    %c0 = arith.constant 0 : index
    %c0_0 = arith.constant 0 : index
    %0 = vector.load %arg1[%c0, %c0_0] : memref<16x32xf32, #tpu.memory_space<vmem>>, vector<16x32xf32>
    %c0_1 = arith.constant 0 : index
    %c0_2 = arith.constant 0 : index
    %1 = vector.load %arg2[%c0_1, %c0_2] : memref<16x1xf32, #tpu.memory_space<vmem>>, vector<16x1xf32>
    %2 = vector.broadcast %1 : vector<16x1xf32> to vector<16x32xf32>
    %3 = arith.mulf %0, %2 : vector<16x32xf32>
    %c0_3 = arith.constant 0 : index
    %c0_4 = arith.constant 0 : index
    %4 = vector.load %arg3[%c0_3, %c0_4] : memref<1x32xf32, #tpu.memory_space<vmem>>, vector<1x32xf32>
    %5 = vector.broadcast %4 : vector<1x32xf32> to vector<16x32xf32>
    %6 = arith.mulf %3, %5 : vector<16x32xf32>
    %c0_5 = arith.constant 0 : index
    %c0_6 = arith.constant 0 : index
    %7 = vector.load %arg4[%c0_5, %c0_6] : memref<1x32xf32, #tpu.memory_space<vmem>>, vector<1x32xf32>
    %8 = vector.broadcast %7 : vector<1x32xf32> to vector<16x32xf32>
    %9 = arith.addf %6, %8 : vector<16x32xf32>
    %10 = arith.negf %9 : vector<16x32xf32>
    %11 = math.exp %10 : vector<16x32xf32>
    %cst = arith.constant 1.000000e+00 : f32
    %12 = vector.broadcast %cst : f32 to vector<16x32xf32>
    %13 = arith.addf %12, %11 : vector<16x32xf32>
    %14 = arith.divf %12, %13 : vector<16x32xf32>
    %15 = arith.mulf %9, %14 : vector<16x32xf32>
    %c0_7 = arith.constant 0 : index
    %c0_8 = arith.constant 0 : index
    %16 = vector.load %arg5[%c0_7, %c0_8] : memref<32x8xf32, #tpu.memory_space<vmem>>, vector<32x8xf32>
    %cst_9 = arith.constant dense<0.000000e+00> : vector<16x8xf32>
    %17 = tpu.matmul %15, %16, %cst_9 {dimension_numbers = #tpu.dot_dimension_numbers<[1], [0], [0], [1], [0, 0, 1, 1], [], []>} : vector<16x32xf32>, vector<32x8xf32>, vector<16x8xf32> -> vector<16x8xf32>
    %c0_10 = arith.constant 0 : index
    %c0_11 = arith.constant 0 : index
    %18 = vector.load %arg6[%c0_10, %c0_11] : memref<1x8xf32, #tpu.memory_space<vmem>>, vector<1x8xf32>
    %19 = vector.broadcast %18 : vector<1x8xf32> to vector<16x8xf32>
    %20 = arith.addf %17, %19 : vector<16x8xf32>
    %c0_12 = arith.constant 0 : index
    %c0_13 = arith.constant 0 : index
    %21 = vector.load %arg7[%c0_12, %c0_13] : memref<16x8xf32, #tpu.memory_space<vmem>>, vector<16x8xf32>
    tpu.vector_store %arg7[%c0_12, %c0_13], %20 {strides = array<i32>} : memref<16x8xf32, #tpu.memory_space<vmem>>, vector<16x8xf32>,
    return
  }
  func.func @transform_0(%arg0: i32) -> (i32, i32) {
    %c0_i32 = arith.constant 0 : i32
    %c0_i32_0 = arith.constant 0 : i32
    return %arg0, %c0_i32 : i32, i32
  }
  func.func @transform_1(%arg0: i32) -> (i32, i32) {
    %c0_i32 = arith.constant 0 : i32
    %c0_i32_0 = arith.constant 0 : i32
    return %arg0, %c0_i32 : i32, i32
  }
  func.func @transform_2(%arg0: i32) -> (i32, i32) {
    %c0_i32 = arith.constant 0 : i32
    %c0_i32_0 = arith.constant 0 : i32
    %c0_i32_1 = arith.constant 0 : i32
    return %c0_i32, %c0_i32_0 : i32, i32
  }
  func.func @transform_3(%arg0: i32) -> (i32, i32) {
    %c0_i32 = arith.constant 0 : i32
    %c0_i32_0 = arith.constant 0 : i32
    %c0_i32_1 = arith.constant 0 : i32
    return %c0_i32, %c0_i32_0 : i32, i32
  }
  func.func @transform_4(%arg0: i32) -> (i32, i32) {
    %c0_i32 = arith.constant 0 : i32
    %c0_i32_0 = arith.constant 0 : i32
    %c0_i32_1 = arith.constant 0 : i32
    return %c0_i32, %c0_i32_0 : i32, i32
  }
  func.func @transform_5(%arg0: i32) -> (i32, i32) {
    %c0_i32 = arith.constant 0 : i32
    %c0_i32_0 = arith.constant 0 : i32
    %c0_i32_1 = arith.constant 0 : i32
    return %c0_i32, %c0_i32_0 : i32, i32
  }
  func.func @transform_6(%arg0: i32) -> (i32, i32) {
    %c0_i32 = arith.constant 0 : i32
    %c0_i32_0 = arith.constant 0 : i32
    return %arg0, %c0_i32 : i32, i32
  }
}

module attributes {stable_mosaic.version = 11 : i64} {
  func.func @_masked_stats_kernel(%arg0: i32, %arg1: memref<16x8xf32, #tpu.memory_space<vmem>>, %arg2: memref<16x1xf32, #tpu.memory_space<vmem>>, %arg3: memref<1x8xf32, #tpu.memory_space<vmem>>, %arg4: memref<1x8xf32, #tpu.memory_space<vmem>>) attributes {dimension_semantics = [#tpu.dimension_semantics<arbitrary>], iteration_bounds = array<i64: 1>, scalar_prefetch = 0 : i64, scratch_operands = 0 : i64, tpu.core_type = #tpu.core_type<tc>, window_params = [{transform_indices = @transform_0, window_bounds = array<i64: 16, 8>}, {transform_indices = @transform_1, window_bounds = array<i64: 16, 1>}, {pipeline_mode = #tpu.pipeline_mode<synchronous>, transform_indices = @transform_2, window_bounds = array<i64: 1, 8>}, {pipeline_mode = #tpu.pipeline_mode<synchronous>, transform_indices = @transform_3, window_bounds = array<i64: 1, 8>}]} {
    %c0_i32 = arith.constant 0 : i32
    %0 = arith.cmpi eq, %arg0, %c0_i32 : i32
    %1 = arith.extui %0 : i1 to i32
    %c0_i32_0 = arith.constant 0 : i32
    %2 = arith.cmpi ne, %1, %c0_i32_0 : i32
    scf.if %2 {
      %cst_13 = arith.constant 0.000000e+00 : f32
      %18 = vector.broadcast %cst_13 : f32 to vector<1x8xf32>
      %c0_14 = arith.constant 0 : index
      %c0_15 = arith.constant 0 : index
      %19 = vector.load %arg3[%c0_14, %c0_15] : memref<1x8xf32, #tpu.memory_space<vmem>>, vector<1x8xf32>
      tpu.vector_store %arg3[%c0_14, %c0_15], %18 {strides = array<i32>} : memref<1x8xf32, #tpu.memory_space<vmem>>, vector<1x8xf32>,
      %cst_16 = arith.constant 0.000000e+00 : f32
      %20 = vector.broadcast %cst_16 : f32 to vector<1x8xf32>
      %c0_17 = arith.constant 0 : index
      %c0_18 = arith.constant 0 : index
      %21 = vector.load %arg4[%c0_17, %c0_18] : memref<1x8xf32, #tpu.memory_space<vmem>>, vector<1x8xf32>
      tpu.vector_store %arg4[%c0_17, %c0_18], %20 {strides = array<i32>} : memref<1x8xf32, #tpu.memory_space<vmem>>, vector<1x8xf32>,
    } else {
    }
    %c0 = arith.constant 0 : index
    %c0_1 = arith.constant 0 : index
    %3 = vector.load %arg1[%c0, %c0_1] : memref<16x8xf32, #tpu.memory_space<vmem>>, vector<16x8xf32>
    %c0_2 = arith.constant 0 : index
    %c0_3 = arith.constant 0 : index
    %4 = vector.load %arg2[%c0_2, %c0_3] : memref<16x1xf32, #tpu.memory_space<vmem>>, vector<16x1xf32>
    %5 = vector.broadcast %4 : vector<16x1xf32> to vector<16x8xf32>
    %6 = arith.mulf %3, %5 : vector<16x8xf32>
    %c0_4 = arith.constant 0 : index
    %c0_5 = arith.constant 0 : index
    %7 = vector.load %arg3[%c0_4, %c0_5] : memref<1x8xf32, #tpu.memory_space<vmem>>, vector<1x8xf32>
    %cst = arith.constant dense<0.000000e+00> : vector<8xf32>
    %8 = vector.multi_reduction <add>, %6, %cst [0] : vector<16x8xf32> to vector<8xf32>
    %9 = vector.shape_cast %8 : vector<8xf32> to vector<1x8xf32>
    %10 = arith.addf %7, %9 : vector<1x8xf32>
    %c0_6 = arith.constant 0 : index
    %c0_7 = arith.constant 0 : index
    %11 = vector.load %arg3[%c0_6, %c0_7] : memref<1x8xf32, #tpu.memory_space<vmem>>, vector<1x8xf32>
    tpu.vector_store %arg3[%c0_6, %c0_7], %10 {strides = array<i32>} : memref<1x8xf32, #tpu.memory_space<vmem>>, vector<1x8xf32>,
    %c0_8 = arith.constant 0 : index
    %c0_9 = arith.constant 0 : index
    %12 = vector.load %arg4[%c0_8, %c0_9] : memref<1x8xf32, #tpu.memory_space<vmem>>, vector<1x8xf32>
    %13 = arith.mulf %6, %6 : vector<16x8xf32>
    %cst_10 = arith.constant dense<0.000000e+00> : vector<8xf32>
    %14 = vector.multi_reduction <add>, %13, %cst_10 [0] : vector<16x8xf32> to vector<8xf32>
    %15 = vector.shape_cast %14 : vector<8xf32> to vector<1x8xf32>
    %16 = arith.addf %12, %15 : vector<1x8xf32>
    %c0_11 = arith.constant 0 : index
    %c0_12 = arith.constant 0 : index
    %17 = vector.load %arg4[%c0_11, %c0_12] : memref<1x8xf32, #tpu.memory_space<vmem>>, vector<1x8xf32>
    tpu.vector_store %arg4[%c0_11, %c0_12], %16 {strides = array<i32>} : memref<1x8xf32, #tpu.memory_space<vmem>>, vector<1x8xf32>,
    return
  }
  func.func @transform_0(%arg0: i32) -> (i32, i32) {
    %c0_i32 = arith.constant 0 : i32
    %c0_i32_0 = arith.constant 0 : i32
    return %arg0, %c0_i32 : i32, i32
  }
  func.func @transform_1(%arg0: i32) -> (i32, i32) {
    %c0_i32 = arith.constant 0 : i32
    %c0_i32_0 = arith.constant 0 : i32
    return %arg0, %c0_i32 : i32, i32
  }
  func.func @transform_2(%arg0: i32) -> (i32, i32) {
    %c0_i32 = arith.constant 0 : i32
    %c0_i32_0 = arith.constant 0 : i32
    %c0_i32_1 = arith.constant 0 : i32
    return %c0_i32, %c0_i32_0 : i32, i32
  }
  func.func @transform_3(%arg0: i32) -> (i32, i32) {
    %c0_i32 = arith.constant 0 : i32
    %c0_i32_0 = arith.constant 0 : i32
    %c0_i32_1 = arith.constant 0 : i32
    return %c0_i32, %c0_i32_0 : i32, i32
  }
}

module attributes {stable_mosaic.version = 11 : i64} {
  func.func @_bn_swish_kernel(%arg0: i32, %arg1: memref<16x8xf32, #tpu.memory_space<vmem>>, %arg2: memref<16x1xf32, #tpu.memory_space<vmem>>, %arg3: memref<1x8xf32, #tpu.memory_space<vmem>>, %arg4: memref<1x8xf32, #tpu.memory_space<vmem>>, %arg5: memref<16x8xf32, #tpu.memory_space<vmem>>) attributes {dimension_semantics = [#tpu.dimension_semantics<parallel>], iteration_bounds = array<i64: 1>, scalar_prefetch = 0 : i64, scratch_operands = 0 : i64, tpu.core_type = #tpu.core_type<tc>, window_params = [{transform_indices = @transform_0, window_bounds = array<i64: 16, 8>}, {transform_indices = @transform_1, window_bounds = array<i64: 16, 1>}, {pipeline_mode = #tpu.pipeline_mode<synchronous>, transform_indices = @transform_2, window_bounds = array<i64: 1, 8>}, {pipeline_mode = #tpu.pipeline_mode<synchronous>, transform_indices = @transform_3, window_bounds = array<i64: 1, 8>}, {transform_indices = @transform_4, window_bounds = array<i64: 16, 8>}]} {
    %c0 = arith.constant 0 : index
    %c0_0 = arith.constant 0 : index
    %0 = vector.load %arg1[%c0, %c0_0] : memref<16x8xf32, #tpu.memory_space<vmem>>, vector<16x8xf32>
    %c0_1 = arith.constant 0 : index
    %c0_2 = arith.constant 0 : index
    %1 = vector.load %arg2[%c0_1, %c0_2] : memref<16x1xf32, #tpu.memory_space<vmem>>, vector<16x1xf32>
    %2 = vector.broadcast %1 : vector<16x1xf32> to vector<16x8xf32>
    %3 = arith.mulf %0, %2 : vector<16x8xf32>
    %c0_3 = arith.constant 0 : index
    %c0_4 = arith.constant 0 : index
    %4 = vector.load %arg3[%c0_3, %c0_4] : memref<1x8xf32, #tpu.memory_space<vmem>>, vector<1x8xf32>
    %5 = vector.broadcast %4 : vector<1x8xf32> to vector<16x8xf32>
    %6 = arith.mulf %3, %5 : vector<16x8xf32>
    %c0_5 = arith.constant 0 : index
    %c0_6 = arith.constant 0 : index
    %7 = vector.load %arg4[%c0_5, %c0_6] : memref<1x8xf32, #tpu.memory_space<vmem>>, vector<1x8xf32>
    %8 = vector.broadcast %7 : vector<1x8xf32> to vector<16x8xf32>
    %9 = arith.addf %6, %8 : vector<16x8xf32>
    %10 = arith.negf %9 : vector<16x8xf32>
    %11 = math.exp %10 : vector<16x8xf32>
    %cst = arith.constant 1.000000e+00 : f32
    %12 = vector.broadcast %cst : f32 to vector<16x8xf32>
    %13 = arith.addf %12, %11 : vector<16x8xf32>
    %14 = arith.divf %12, %13 : vector<16x8xf32>
    %15 = arith.mulf %9, %14 : vector<16x8xf32>
    %c0_7 = arith.constant 0 : index
    %c0_8 = arith.constant 0 : index
    %16 = vector.load %arg5[%c0_7, %c0_8] : memref<16x8xf32, #tpu.memory_space<vmem>>, vector<16x8xf32>
    tpu.vector_store %arg5[%c0_7, %c0_8], %15 {strides = array<i32>} : memref<16x8xf32, #tpu.memory_space<vmem>>, vector<16x8xf32>,
    return
  }
  func.func @transform_0(%arg0: i32) -> (i32, i32) {
    %c0_i32 = arith.constant 0 : i32
    %c0_i32_0 = arith.constant 0 : i32
    return %arg0, %c0_i32 : i32, i32
  }
  func.func @transform_1(%arg0: i32) -> (i32, i32) {
    %c0_i32 = arith.constant 0 : i32
    %c0_i32_0 = arith.constant 0 : i32
    return %arg0, %c0_i32 : i32, i32
  }
  func.func @transform_2(%arg0: i32) -> (i32, i32) {
    %c0_i32 = arith.constant 0 : i32
    %c0_i32_0 = arith.constant 0 : i32
    %c0_i32_1 = arith.constant 0 : i32
    return %c0_i32, %c0_i32_0 : i32, i32
  }
  func.func @transform_3(%arg0: i32) -> (i32, i32) {
    %c0_i32 = arith.constant 0 : i32
    %c0_i32_0 = arith.constant 0 : i32
    %c0_i32_1 = arith.constant 0 : i32
    return %c0_i32, %c0_i32_0 : i32, i32
  }
  func.func @transform_4(%arg0: i32) -> (i32, i32) {
    %c0_i32 = arith.constant 0 : i32
    %c0_i32_0 = arith.constant 0 : i32
    return %arg0, %c0_i32 : i32, i32
  }
}

module attributes {stable_mosaic.version = 11 : i64} {
  func.func @_lieconv_fused_kernel(%arg0: i32, %arg1: i32, %arg2: i32, %arg3: memref<1x8x3xf32, #tpu.memory_space<vmem>>, %arg4: memref<1x8x3xf32, #tpu.memory_space<vmem>>, %arg5: memref<1x8x8xf32, #tpu.memory_space<vmem>>, %arg6: memref<1x8x1xf32, #tpu.memory_space<vmem>>, %arg7: memref<1x8x1xf32, #tpu.memory_space<vmem>>, %arg8: memref<1x1x1xf32, #tpu.memory_space<vmem>>, %arg9: memref<3x32xf32, #tpu.memory_space<vmem>>, %arg10: memref<1x32xf32, #tpu.memory_space<vmem>>, %arg11: memref<1x32xf32, #tpu.memory_space<vmem>>, %arg12: memref<1x32xf32, #tpu.memory_space<vmem>>, %arg13: memref<32x32xf32, #tpu.memory_space<vmem>>, %arg14: memref<1x32xf32, #tpu.memory_space<vmem>>, %arg15: memref<1x32xf32, #tpu.memory_space<vmem>>, %arg16: memref<1x32xf32, #tpu.memory_space<vmem>>, %arg17: memref<32x16xf32, #tpu.memory_space<vmem>>, %arg18: memref<1x16xf32, #tpu.memory_space<vmem>>, %arg19: memref<1x16xf32, #tpu.memory_space<vmem>>, %arg20: memref<1x16xf32, #tpu.memory_space<vmem>>, %arg21: memref<128x8xf32, #tpu.memory_space<vmem>>, %arg22: memref<1x8xf32, #tpu.memory_space<vmem>>, %arg23: memref<1x8x8xf32, #tpu.memory_space<vmem>>, %arg24: memref<8x8x16xf32, #tpu.memory_space<vmem>>) attributes {dimension_semantics = [#tpu.dimension_semantics<parallel>, #tpu.dimension_semantics<parallel>, #tpu.dimension_semantics<arbitrary>], iteration_bounds = array<i64: 2, 1, 1>, scalar_prefetch = 0 : i64, scratch_operands = 1 : i64, tpu.core_type = #tpu.core_type<tc>, window_params = [{transform_indices = @transform_0, window_bounds = array<i64: 1, 8, 3>}, {transform_indices = @transform_1, window_bounds = array<i64: 1, 8, 3>}, {transform_indices = @transform_2, window_bounds = array<i64: 1, 8, 8>}, {transform_indices = @transform_3, window_bounds = array<i64: 1, 8, 1>}, {transform_indices = @transform_4, window_bounds = array<i64: 1, 8, 1>}, {transform_indices = @transform_5, window_bounds = array<i64: 1, 1, 1>}, {pipeline_mode = #tpu.pipeline_mode<synchronous>, transform_indices = @transform_6, window_bounds = array<i64: 3, 32>}, {pipeline_mode = #tpu.pipeline_mode<synchronous>, transform_indices = @transform_7, window_bounds = array<i64: 1, 32>}, {pipeline_mode = #tpu.pipeline_mode<synchronous>, transform_indices = @transform_8, window_bounds = array<i64: 1, 32>}, {pipeline_mode = #tpu.pipeline_mode<synchronous>, transform_indices = @transform_9, window_bounds = array<i64: 1, 32>}, {pipeline_mode = #tpu.pipeline_mode<synchronous>, transform_indices = @transform_10, window_bounds = array<i64: 32, 32>}, {pipeline_mode = #tpu.pipeline_mode<synchronous>, transform_indices = @transform_11, window_bounds = array<i64: 1, 32>}, {pipeline_mode = #tpu.pipeline_mode<synchronous>, transform_indices = @transform_12, window_bounds = array<i64: 1, 32>}, {pipeline_mode = #tpu.pipeline_mode<synchronous>, transform_indices = @transform_13, window_bounds = array<i64: 1, 32>}, {pipeline_mode = #tpu.pipeline_mode<synchronous>, transform_indices = @transform_14, window_bounds = array<i64: 32, 16>}, {pipeline_mode = #tpu.pipeline_mode<synchronous>, transform_indices = @transform_15, window_bounds = array<i64: 1, 16>}, {pipeline_mode = #tpu.pipeline_mode<synchronous>, transform_indices = @transform_16, window_bounds = array<i64: 1, 16>}, {pipeline_mode = #tpu.pipeline_mode<synchronous>, transform_indices = @transform_17, window_bounds = array<i64: 1, 16>}, {pipeline_mode = #tpu.pipeline_mode<synchronous>, transform_indices = @transform_18, window_bounds = array<i64: 128, 8>}, {pipeline_mode = #tpu.pipeline_mode<synchronous>, transform_indices = @transform_19, window_bounds = array<i64: 1, 8>}, {transform_indices = @transform_20, window_bounds = array<i64: 1, 8, 8>}]} {
    %c0_i32 = arith.constant 0 : i32
    %0 = arith.cmpi eq, %arg2, %c0_i32 : i32
    %1 = arith.extui %0 : i1 to i32
    %c0_i32_0 = arith.constant 0 : i32
    %2 = arith.cmpi ne, %1, %c0_i32_0 : i32
    scf.if %2 {
      %cst_50 = arith.constant 0.000000e+00 : f32
      %84 = vector.broadcast %cst_50 : f32 to vector<8x8x16xf32>
      %c0_51 = arith.constant 0 : index
      %c0_52 = arith.constant 0 : index
      %c0_53 = arith.constant 0 : index
      %85 = vector.load %arg24[%c0_51, %c0_52, %c0_53] : memref<8x8x16xf32, #tpu.memory_space<vmem>>, vector<8x8x16xf32>
      tpu.vector_store %arg24[%c0_51, %c0_52, %c0_53], %84 {strides = array<i32>} : memref<8x8x16xf32, #tpu.memory_space<vmem>>, vector<8x8x16xf32>,
    } else {
    }
    %c0 = arith.constant 0 : index
    %c0_1 = arith.constant 0 : index
    %c0_2 = arith.constant 0 : index
    %3 = vector.load %arg3[%c0, %c0_1, %c0_2] : memref<1x8x3xf32, #tpu.memory_space<vmem>>, vector<1x8x3xf32>
    %4 = vector.shape_cast %3 : vector<1x8x3xf32> to vector<8x3xf32>
    %c0_3 = arith.constant 0 : index
    %c0_4 = arith.constant 0 : index
    %c0_5 = arith.constant 0 : index
    %5 = vector.load %arg4[%c0_3, %c0_4, %c0_5] : memref<1x8x3xf32, #tpu.memory_space<vmem>>, vector<1x8x3xf32>
    %6 = vector.shape_cast %5 : vector<1x8x3xf32> to vector<8x3xf32>
    %7 = vector.shape_cast %4 : vector<8x3xf32> to vector<8x1x3xf32>
    %8 = vector.shape_cast %6 : vector<8x3xf32> to vector<1x8x3xf32>
    %9 = vector.broadcast %7 : vector<8x1x3xf32> to vector<8x8x3xf32>
    %10 = vector.broadcast %8 : vector<1x8x3xf32> to vector<8x8x3xf32>
    %11 = arith.subf %9, %10 : vector<8x8x3xf32>
    %12 = vector.shape_cast %11 : vector<8x8x3xf32> to vector<64x3xf32>
    %c0_6 = arith.constant 0 : index
    %c0_7 = arith.constant 0 : index
    %13 = vector.load %arg9[%c0_6, %c0_7] : memref<3x32xf32, #tpu.memory_space<vmem>>, vector<3x32xf32>
    %cst = arith.constant dense<0.000000e+00> : vector<64x32xf32>
    %14 = tpu.matmul %12, %13, %cst {dimension_numbers = #tpu.dot_dimension_numbers<[1], [0], [0], [1], [0, 0, 1, 1], [], []>} : vector<64x3xf32>, vector<3x32xf32>, vector<64x32xf32> -> vector<64x32xf32>
    %c0_8 = arith.constant 0 : index
    %c0_9 = arith.constant 0 : index
    %15 = vector.load %arg10[%c0_8, %c0_9] : memref<1x32xf32, #tpu.memory_space<vmem>>, vector<1x32xf32>
    %16 = vector.broadcast %15 : vector<1x32xf32> to vector<64x32xf32>
    %17 = arith.addf %14, %16 : vector<64x32xf32>
    %c0_10 = arith.constant 0 : index
    %c0_11 = arith.constant 0 : index
    %18 = vector.load %arg11[%c0_10, %c0_11] : memref<1x32xf32, #tpu.memory_space<vmem>>, vector<1x32xf32>
    %19 = vector.broadcast %18 : vector<1x32xf32> to vector<64x32xf32>
    %20 = arith.mulf %17, %19 : vector<64x32xf32>
    %c0_12 = arith.constant 0 : index
    %c0_13 = arith.constant 0 : index
    %21 = vector.load %arg12[%c0_12, %c0_13] : memref<1x32xf32, #tpu.memory_space<vmem>>, vector<1x32xf32>
    %22 = vector.broadcast %21 : vector<1x32xf32> to vector<64x32xf32>
    %23 = arith.addf %20, %22 : vector<64x32xf32>
    %24 = arith.negf %23 : vector<64x32xf32>
    %25 = math.exp %24 : vector<64x32xf32>
    %cst_14 = arith.constant 1.000000e+00 : f32
    %26 = vector.broadcast %cst_14 : f32 to vector<64x32xf32>
    %27 = arith.addf %26, %25 : vector<64x32xf32>
    %28 = arith.divf %26, %27 : vector<64x32xf32>
    %29 = arith.mulf %23, %28 : vector<64x32xf32>
    %c0_15 = arith.constant 0 : index
    %c0_16 = arith.constant 0 : index
    %30 = vector.load %arg13[%c0_15, %c0_16] : memref<32x32xf32, #tpu.memory_space<vmem>>, vector<32x32xf32>
    %cst_17 = arith.constant dense<0.000000e+00> : vector<64x32xf32>
    %31 = tpu.matmul %29, %30, %cst_17 {dimension_numbers = #tpu.dot_dimension_numbers<[1], [0], [0], [1], [0, 0, 1, 1], [], []>} : vector<64x32xf32>, vector<32x32xf32>, vector<64x32xf32> -> vector<64x32xf32>
    %c0_18 = arith.constant 0 : index
    %c0_19 = arith.constant 0 : index
    %32 = vector.load %arg14[%c0_18, %c0_19] : memref<1x32xf32, #tpu.memory_space<vmem>>, vector<1x32xf32>
    %33 = vector.broadcast %32 : vector<1x32xf32> to vector<64x32xf32>
    %34 = arith.addf %31, %33 : vector<64x32xf32>
    %c0_20 = arith.constant 0 : index
    %c0_21 = arith.constant 0 : index
    %35 = vector.load %arg15[%c0_20, %c0_21] : memref<1x32xf32, #tpu.memory_space<vmem>>, vector<1x32xf32>
    %36 = vector.broadcast %35 : vector<1x32xf32> to vector<64x32xf32>
    %37 = arith.mulf %34, %36 : vector<64x32xf32>
    %c0_22 = arith.constant 0 : index
    %c0_23 = arith.constant 0 : index
    %38 = vector.load %arg16[%c0_22, %c0_23] : memref<1x32xf32, #tpu.memory_space<vmem>>, vector<1x32xf32>
    %39 = vector.broadcast %38 : vector<1x32xf32> to vector<64x32xf32>
    %40 = arith.addf %37, %39 : vector<64x32xf32>
    %41 = arith.negf %40 : vector<64x32xf32>
    %42 = math.exp %41 : vector<64x32xf32>
    %cst_24 = arith.constant 1.000000e+00 : f32
    %43 = vector.broadcast %cst_24 : f32 to vector<64x32xf32>
    %44 = arith.addf %43, %42 : vector<64x32xf32>
    %45 = arith.divf %43, %44 : vector<64x32xf32>
    %46 = arith.mulf %40, %45 : vector<64x32xf32>
    %c0_25 = arith.constant 0 : index
    %c0_26 = arith.constant 0 : index
    %47 = vector.load %arg17[%c0_25, %c0_26] : memref<32x16xf32, #tpu.memory_space<vmem>>, vector<32x16xf32>
    %cst_27 = arith.constant dense<0.000000e+00> : vector<64x16xf32>
    %48 = tpu.matmul %46, %47, %cst_27 {dimension_numbers = #tpu.dot_dimension_numbers<[1], [0], [0], [1], [0, 0, 1, 1], [], []>} : vector<64x32xf32>, vector<32x16xf32>, vector<64x16xf32> -> vector<64x16xf32>
    %c0_28 = arith.constant 0 : index
    %c0_29 = arith.constant 0 : index
    %49 = vector.load %arg18[%c0_28, %c0_29] : memref<1x16xf32, #tpu.memory_space<vmem>>, vector<1x16xf32>
    %50 = vector.broadcast %49 : vector<1x16xf32> to vector<64x16xf32>
    %51 = arith.addf %48, %50 : vector<64x16xf32>
    %c0_30 = arith.constant 0 : index
    %c0_31 = arith.constant 0 : index
    %52 = vector.load %arg19[%c0_30, %c0_31] : memref<1x16xf32, #tpu.memory_space<vmem>>, vector<1x16xf32>
    %53 = vector.broadcast %52 : vector<1x16xf32> to vector<64x16xf32>
    %54 = arith.mulf %51, %53 : vector<64x16xf32>
    %c0_32 = arith.constant 0 : index
    %c0_33 = arith.constant 0 : index
    %55 = vector.load %arg20[%c0_32, %c0_33] : memref<1x16xf32, #tpu.memory_space<vmem>>, vector<1x16xf32>
    %56 = vector.broadcast %55 : vector<1x16xf32> to vector<64x16xf32>
    %57 = arith.addf %54, %56 : vector<64x16xf32>
    %58 = arith.negf %57 : vector<64x16xf32>
    %59 = math.exp %58 : vector<64x16xf32>
    %cst_34 = arith.constant 1.000000e+00 : f32
    %60 = vector.broadcast %cst_34 : f32 to vector<64x16xf32>
    %61 = arith.addf %60, %59 : vector<64x16xf32>
    %62 = arith.divf %60, %61 : vector<64x16xf32>
    %63 = arith.mulf %57, %62 : vector<64x16xf32>
    %c0_35 = arith.constant 0 : index
    %c0_36 = arith.constant 0 : index
    %c0_37 = arith.constant 0 : index
    %64 = vector.load %arg6[%c0_35, %c0_36, %c0_37] : memref<1x8x1xf32, #tpu.memory_space<vmem>>, vector<1x8x1xf32>
    %65 = vector.shape_cast %64 : vector<1x8x1xf32> to vector<8x1xf32>
    %66 = vector.shape_cast %63 : vector<64x16xf32> to vector<8x8x16xf32>
    %67 = vector.shape_cast %65 : vector<8x1xf32> to vector<1x8x1xf32>
    %68 = vector.broadcast %67 : vector<1x8x1xf32> to vector<8x8x16xf32>
    %69 = arith.mulf %66, %68 : vector<8x8x16xf32>
    %c0_38 = arith.constant 0 : index
    %c0_39 = arith.constant 0 : index
    %c0_40 = arith.constant 0 : index
    %70 = vector.load %arg5[%c0_38, %c0_39, %c0_40] : memref<1x8x8xf32, #tpu.memory_space<vmem>>, vector<1x8x8xf32>
    %71 = vector.shape_cast %70 : vector<1x8x8xf32> to vector<8x8xf32>
    %72 = vector.broadcast %65 : vector<8x1xf32> to vector<8x8xf32>
    %73 = arith.mulf %71, %72 : vector<8x8xf32>
    %74 = vector.shape_cast %73 : vector<8x8xf32> to vector<1x8x8xf32>
    %75 = vector.shape_cast %74 : vector<1x8x8xf32> to vector<1x8x8xf32>
    %76 = vector.broadcast %75 : vector<1x8x8xf32> to vector<8x8x8xf32>
    %cst_41 = arith.constant dense<0.000000e+00> : vector<8x8x16xf32>
    %77 = tpu.matmul %76, %69, %cst_41 {dimension_numbers = #tpu.dot_dimension_numbers<[1], [1], [2], [2], [0, 0, 0, 2, 1, 2], [0], [0]>} : vector<8x8x8xf32>, vector<8x8x16xf32>, vector<8x8x16xf32> -> vector<8x8x16xf32>
    %c0_42 = arith.constant 0 : index
    %c0_43 = arith.constant 0 : index
    %c0_44 = arith.constant 0 : index
    %78 = vector.load %arg24[%c0_42, %c0_43, %c0_44] : memref<8x8x16xf32, #tpu.memory_space<vmem>>, vector<8x8x16xf32>
    %79 = arith.addf %78, %77 : vector<8x8x16xf32>
    %c0_45 = arith.constant 0 : index
    %c0_46 = arith.constant 0 : index
    %c0_47 = arith.constant 0 : index
    %80 = vector.load %arg24[%c0_45, %c0_46, %c0_47] : memref<8x8x16xf32, #tpu.memory_space<vmem>>, vector<8x8x16xf32>
    tpu.vector_store %arg24[%c0_45, %c0_46, %c0_47], %79 {strides = array<i32>} : memref<8x8x16xf32, #tpu.memory_space<vmem>>, vector<8x8x16xf32>,
    %c0_i32_48 = arith.constant 0 : i32
    %81 = arith.cmpi eq, %arg2, %c0_i32_48 : i32
    %82 = arith.extui %81 : i1 to i32
    %c0_i32_49 = arith.constant 0 : i32
    %83 = arith.cmpi ne, %82, %c0_i32_49 : i32
    scf.if %83 {
      %c0_50 = arith.constant 0 : index
      %c0_51 = arith.constant 0 : index
      %c0_52 = arith.constant 0 : index
      %84 = vector.load %arg24[%c0_50, %c0_51, %c0_52] : memref<8x8x16xf32, #tpu.memory_space<vmem>>, vector<8x8x16xf32>
      %cst_53 = arith.constant 0.000000e+00 : f32
      %85 = vector.broadcast %cst_53 : f32 to vector<8x8xf32>
      %86 = vector.extract_strided_slice %84 {offsets = [0, 0, 0], sizes = [8, 1, 16], strides = [1, 1, 1]} : vector<8x8x16xf32> to vector<8x1x16xf32>
      %87 = vector.shape_cast %86 : vector<8x1x16xf32> to vector<8x16xf32>
      %c0_54 = arith.constant 0 : index
      %c0_55 = arith.constant 0 : index
      %88 = vector.load %arg21[%c0_54, %c0_55] : memref<128x8xf32, #tpu.memory_space<vmem>>, vector<16x8xf32>
      %cst_56 = arith.constant dense<0.000000e+00> : vector<8x8xf32>
      %89 = tpu.matmul %87, %88, %cst_56 {dimension_numbers = #tpu.dot_dimension_numbers<[1], [0], [0], [1], [0, 0, 1, 1], [], []>} : vector<8x16xf32>, vector<16x8xf32>, vector<8x8xf32> -> vector<8x8xf32>
      %90 = arith.addf %85, %89 : vector<8x8xf32>
      %91 = vector.extract_strided_slice %84 {offsets = [0, 1, 0], sizes = [8, 1, 16], strides = [1, 1, 1]} : vector<8x8x16xf32> to vector<8x1x16xf32>
      %92 = vector.shape_cast %91 : vector<8x1x16xf32> to vector<8x16xf32>
      %c16 = arith.constant 16 : index
      %c0_57 = arith.constant 0 : index
      %93 = vector.load %arg21[%c16, %c0_57] : memref<128x8xf32, #tpu.memory_space<vmem>>, vector<16x8xf32>
      %cst_58 = arith.constant dense<0.000000e+00> : vector<8x8xf32>
      %94 = tpu.matmul %92, %93, %cst_58 {dimension_numbers = #tpu.dot_dimension_numbers<[1], [0], [0], [1], [0, 0, 1, 1], [], []>} : vector<8x16xf32>, vector<16x8xf32>, vector<8x8xf32> -> vector<8x8xf32>
      %95 = arith.addf %90, %94 : vector<8x8xf32>
      %96 = vector.extract_strided_slice %84 {offsets = [0, 2, 0], sizes = [8, 1, 16], strides = [1, 1, 1]} : vector<8x8x16xf32> to vector<8x1x16xf32>
      %97 = vector.shape_cast %96 : vector<8x1x16xf32> to vector<8x16xf32>
      %c32 = arith.constant 32 : index
      %c0_59 = arith.constant 0 : index
      %98 = vector.load %arg21[%c32, %c0_59] : memref<128x8xf32, #tpu.memory_space<vmem>>, vector<16x8xf32>
      %cst_60 = arith.constant dense<0.000000e+00> : vector<8x8xf32>
      %99 = tpu.matmul %97, %98, %cst_60 {dimension_numbers = #tpu.dot_dimension_numbers<[1], [0], [0], [1], [0, 0, 1, 1], [], []>} : vector<8x16xf32>, vector<16x8xf32>, vector<8x8xf32> -> vector<8x8xf32>
      %100 = arith.addf %95, %99 : vector<8x8xf32>
      %101 = vector.extract_strided_slice %84 {offsets = [0, 3, 0], sizes = [8, 1, 16], strides = [1, 1, 1]} : vector<8x8x16xf32> to vector<8x1x16xf32>
      %102 = vector.shape_cast %101 : vector<8x1x16xf32> to vector<8x16xf32>
      %c48 = arith.constant 48 : index
      %c0_61 = arith.constant 0 : index
      %103 = vector.load %arg21[%c48, %c0_61] : memref<128x8xf32, #tpu.memory_space<vmem>>, vector<16x8xf32>
      %cst_62 = arith.constant dense<0.000000e+00> : vector<8x8xf32>
      %104 = tpu.matmul %102, %103, %cst_62 {dimension_numbers = #tpu.dot_dimension_numbers<[1], [0], [0], [1], [0, 0, 1, 1], [], []>} : vector<8x16xf32>, vector<16x8xf32>, vector<8x8xf32> -> vector<8x8xf32>
      %105 = arith.addf %100, %104 : vector<8x8xf32>
      %106 = vector.extract_strided_slice %84 {offsets = [0, 4, 0], sizes = [8, 1, 16], strides = [1, 1, 1]} : vector<8x8x16xf32> to vector<8x1x16xf32>
      %107 = vector.shape_cast %106 : vector<8x1x16xf32> to vector<8x16xf32>
      %c64 = arith.constant 64 : index
      %c0_63 = arith.constant 0 : index
      %108 = vector.load %arg21[%c64, %c0_63] : memref<128x8xf32, #tpu.memory_space<vmem>>, vector<16x8xf32>
      %cst_64 = arith.constant dense<0.000000e+00> : vector<8x8xf32>
      %109 = tpu.matmul %107, %108, %cst_64 {dimension_numbers = #tpu.dot_dimension_numbers<[1], [0], [0], [1], [0, 0, 1, 1], [], []>} : vector<8x16xf32>, vector<16x8xf32>, vector<8x8xf32> -> vector<8x8xf32>
      %110 = arith.addf %105, %109 : vector<8x8xf32>
      %111 = vector.extract_strided_slice %84 {offsets = [0, 5, 0], sizes = [8, 1, 16], strides = [1, 1, 1]} : vector<8x8x16xf32> to vector<8x1x16xf32>
      %112 = vector.shape_cast %111 : vector<8x1x16xf32> to vector<8x16xf32>
      %c80 = arith.constant 80 : index
      %c0_65 = arith.constant 0 : index
      %113 = vector.load %arg21[%c80, %c0_65] : memref<128x8xf32, #tpu.memory_space<vmem>>, vector<16x8xf32>
      %cst_66 = arith.constant dense<0.000000e+00> : vector<8x8xf32>
      %114 = tpu.matmul %112, %113, %cst_66 {dimension_numbers = #tpu.dot_dimension_numbers<[1], [0], [0], [1], [0, 0, 1, 1], [], []>} : vector<8x16xf32>, vector<16x8xf32>, vector<8x8xf32> -> vector<8x8xf32>
      %115 = arith.addf %110, %114 : vector<8x8xf32>
      %116 = vector.extract_strided_slice %84 {offsets = [0, 6, 0], sizes = [8, 1, 16], strides = [1, 1, 1]} : vector<8x8x16xf32> to vector<8x1x16xf32>
      %117 = vector.shape_cast %116 : vector<8x1x16xf32> to vector<8x16xf32>
      %c96 = arith.constant 96 : index
      %c0_67 = arith.constant 0 : index
      %118 = vector.load %arg21[%c96, %c0_67] : memref<128x8xf32, #tpu.memory_space<vmem>>, vector<16x8xf32>
      %cst_68 = arith.constant dense<0.000000e+00> : vector<8x8xf32>
      %119 = tpu.matmul %117, %118, %cst_68 {dimension_numbers = #tpu.dot_dimension_numbers<[1], [0], [0], [1], [0, 0, 1, 1], [], []>} : vector<8x16xf32>, vector<16x8xf32>, vector<8x8xf32> -> vector<8x8xf32>
      %120 = arith.addf %115, %119 : vector<8x8xf32>
      %121 = vector.extract_strided_slice %84 {offsets = [0, 7, 0], sizes = [8, 1, 16], strides = [1, 1, 1]} : vector<8x8x16xf32> to vector<8x1x16xf32>
      %122 = vector.shape_cast %121 : vector<8x1x16xf32> to vector<8x16xf32>
      %c112 = arith.constant 112 : index
      %c0_69 = arith.constant 0 : index
      %123 = vector.load %arg21[%c112, %c0_69] : memref<128x8xf32, #tpu.memory_space<vmem>>, vector<16x8xf32>
      %cst_70 = arith.constant dense<0.000000e+00> : vector<8x8xf32>
      %124 = tpu.matmul %122, %123, %cst_70 {dimension_numbers = #tpu.dot_dimension_numbers<[1], [0], [0], [1], [0, 0, 1, 1], [], []>} : vector<8x16xf32>, vector<16x8xf32>, vector<8x8xf32> -> vector<8x8xf32>
      %125 = arith.addf %120, %124 : vector<8x8xf32>
      %c0_71 = arith.constant 0 : index
      %c0_72 = arith.constant 0 : index
      %126 = vector.load %arg22[%c0_71, %c0_72] : memref<1x8xf32, #tpu.memory_space<vmem>>, vector<1x8xf32>
      %127 = vector.broadcast %126 : vector<1x8xf32> to vector<8x8xf32>
      %128 = arith.addf %125, %127 : vector<8x8xf32>
      %c0_73 = arith.constant 0 : index
      %c0_74 = arith.constant 0 : index
      %c0_75 = arith.constant 0 : index
      %129 = vector.load %arg8[%c0_73, %c0_74, %c0_75] : memref<1x1x1xf32, #tpu.memory_space<vmem>>, vector<1x1x1xf32>
      %130 = vector.shape_cast %129 : vector<1x1x1xf32> to vector<1x1xf32>
      %131 = vector.broadcast %130 : vector<1x1xf32> to vector<8x8xf32>
      %132 = arith.mulf %128, %131 : vector<8x8xf32>
      %c0_76 = arith.constant 0 : index
      %c0_77 = arith.constant 0 : index
      %c0_78 = arith.constant 0 : index
      %133 = vector.load %arg7[%c0_76, %c0_77, %c0_78] : memref<1x8x1xf32, #tpu.memory_space<vmem>>, vector<1x8x1xf32>
      %134 = vector.shape_cast %133 : vector<1x8x1xf32> to vector<8x1xf32>
      %135 = vector.broadcast %134 : vector<8x1xf32> to vector<8x8xf32>
      %136 = arith.mulf %132, %135 : vector<8x8xf32>
      %c0_79 = arith.constant 0 : index
      %c0_80 = arith.constant 0 : index
      %c0_81 = arith.constant 0 : index
      %137 = vector.load %arg23[%c0_79, %c0_80, %c0_81] : memref<1x8x8xf32, #tpu.memory_space<vmem>>, vector<1x8x8xf32>
      %138 = vector.shape_cast %137 : vector<1x8x8xf32> to vector<8x8xf32>
      %139 = vector.shape_cast %136 : vector<8x8xf32> to vector<1x8x8xf32>
      tpu.vector_store %arg23[%c0_79, %c0_80, %c0_81], %139 {strides = array<i32>} : memref<1x8x8xf32, #tpu.memory_space<vmem>>, vector<1x8x8xf32>,
    } else {
    }
    return
  }
  func.func @transform_0(%arg0: i32, %arg1: i32, %arg2: i32) -> (i32, i32, i32) {
    %c0_i32 = arith.constant 0 : i32
    %c0_i32_0 = arith.constant 0 : i32
    return %arg0, %arg1, %c0_i32 : i32, i32, i32
  }
  func.func @transform_1(%arg0: i32, %arg1: i32, %arg2: i32) -> (i32, i32, i32) {
    %c0_i32 = arith.constant 0 : i32
    %c0_i32_0 = arith.constant 0 : i32
    return %arg0, %arg2, %c0_i32 : i32, i32, i32
  }
  func.func @transform_2(%arg0: i32, %arg1: i32, %arg2: i32) -> (i32, i32, i32) {
    %c0_i32 = arith.constant 0 : i32
    %c0_i32_0 = arith.constant 0 : i32
    return %arg0, %arg2, %c0_i32 : i32, i32, i32
  }
  func.func @transform_3(%arg0: i32, %arg1: i32, %arg2: i32) -> (i32, i32, i32) {
    %c0_i32 = arith.constant 0 : i32
    %c0_i32_0 = arith.constant 0 : i32
    return %arg0, %arg2, %c0_i32 : i32, i32, i32
  }
  func.func @transform_4(%arg0: i32, %arg1: i32, %arg2: i32) -> (i32, i32, i32) {
    %c0_i32 = arith.constant 0 : i32
    %c0_i32_0 = arith.constant 0 : i32
    return %arg0, %arg1, %c0_i32 : i32, i32, i32
  }
  func.func @transform_5(%arg0: i32, %arg1: i32, %arg2: i32) -> (i32, i32, i32) {
    %c0_i32 = arith.constant 0 : i32
    %c0_i32_0 = arith.constant 0 : i32
    %c0_i32_1 = arith.constant 0 : i32
    return %arg0, %c0_i32, %c0_i32_0 : i32, i32, i32
  }
  func.func @transform_6(%arg0: i32, %arg1: i32, %arg2: i32) -> (i32, i32) {
    %c0_i32 = arith.constant 0 : i32
    %c0_i32_0 = arith.constant 0 : i32
    %c0_i32_1 = arith.constant 0 : i32
    return %c0_i32, %c0_i32_0 : i32, i32
  }
  func.func @transform_7(%arg0: i32, %arg1: i32, %arg2: i32) -> (i32, i32) {
    %c0_i32 = arith.constant 0 : i32
    %c0_i32_0 = arith.constant 0 : i32
    %c0_i32_1 = arith.constant 0 : i32
    return %c0_i32, %c0_i32_0 : i32, i32
  }
  func.func @transform_8(%arg0: i32, %arg1: i32, %arg2: i32) -> (i32, i32) {
    %c0_i32 = arith.constant 0 : i32
    %c0_i32_0 = arith.constant 0 : i32
    %c0_i32_1 = arith.constant 0 : i32
    return %c0_i32, %c0_i32_0 : i32, i32
  }
  func.func @transform_9(%arg0: i32, %arg1: i32, %arg2: i32) -> (i32, i32) {
    %c0_i32 = arith.constant 0 : i32
    %c0_i32_0 = arith.constant 0 : i32
    %c0_i32_1 = arith.constant 0 : i32
    return %c0_i32, %c0_i32_0 : i32, i32
  }
  func.func @transform_10(%arg0: i32, %arg1: i32, %arg2: i32) -> (i32, i32) {
    %c0_i32 = arith.constant 0 : i32
    %c0_i32_0 = arith.constant 0 : i32
    %c0_i32_1 = arith.constant 0 : i32
    return %c0_i32, %c0_i32_0 : i32, i32
  }
  func.func @transform_11(%arg0: i32, %arg1: i32, %arg2: i32) -> (i32, i32) {
    %c0_i32 = arith.constant 0 : i32
    %c0_i32_0 = arith.constant 0 : i32
    %c0_i32_1 = arith.constant 0 : i32
    return %c0_i32, %c0_i32_0 : i32, i32
  }
  func.func @transform_12(%arg0: i32, %arg1: i32, %arg2: i32) -> (i32, i32) {
    %c0_i32 = arith.constant 0 : i32
    %c0_i32_0 = arith.constant 0 : i32
    %c0_i32_1 = arith.constant 0 : i32
    return %c0_i32, %c0_i32_0 : i32, i32
  }
  func.func @transform_13(%arg0: i32, %arg1: i32, %arg2: i32) -> (i32, i32) {
    %c0_i32 = arith.constant 0 : i32
    %c0_i32_0 = arith.constant 0 : i32
    %c0_i32_1 = arith.constant 0 : i32
    return %c0_i32, %c0_i32_0 : i32, i32
  }
  func.func @transform_14(%arg0: i32, %arg1: i32, %arg2: i32) -> (i32, i32) {
    %c0_i32 = arith.constant 0 : i32
    %c0_i32_0 = arith.constant 0 : i32
    %c0_i32_1 = arith.constant 0 : i32
    return %c0_i32, %c0_i32_0 : i32, i32
  }
  func.func @transform_15(%arg0: i32, %arg1: i32, %arg2: i32) -> (i32, i32) {
    %c0_i32 = arith.constant 0 : i32
    %c0_i32_0 = arith.constant 0 : i32
    %c0_i32_1 = arith.constant 0 : i32
    return %c0_i32, %c0_i32_0 : i32, i32
  }
  func.func @transform_16(%arg0: i32, %arg1: i32, %arg2: i32) -> (i32, i32) {
    %c0_i32 = arith.constant 0 : i32
    %c0_i32_0 = arith.constant 0 : i32
    %c0_i32_1 = arith.constant 0 : i32
    return %c0_i32, %c0_i32_0 : i32, i32
  }
  func.func @transform_17(%arg0: i32, %arg1: i32, %arg2: i32) -> (i32, i32) {
    %c0_i32 = arith.constant 0 : i32
    %c0_i32_0 = arith.constant 0 : i32
    %c0_i32_1 = arith.constant 0 : i32
    return %c0_i32, %c0_i32_0 : i32, i32
  }
  func.func @transform_18(%arg0: i32, %arg1: i32, %arg2: i32) -> (i32, i32) {
    %c0_i32 = arith.constant 0 : i32
    %c0_i32_0 = arith.constant 0 : i32
    %c0_i32_1 = arith.constant 0 : i32
    return %c0_i32, %c0_i32_0 : i32, i32
  }
  func.func @transform_19(%arg0: i32, %arg1: i32, %arg2: i32) -> (i32, i32) {
    %c0_i32 = arith.constant 0 : i32
    %c0_i32_0 = arith.constant 0 : i32
    %c0_i32_1 = arith.constant 0 : i32
    return %c0_i32, %c0_i32_0 : i32, i32
  }
  func.func @transform_20(%arg0: i32, %arg1: i32, %arg2: i32) -> (i32, i32, i32) {
    %c0_i32 = arith.constant 0 : i32
    %c0_i32_0 = arith.constant 0 : i32
    return %arg0, %arg1, %c0_i32 : i32, i32, i32
  }
}

module attributes {stable_mosaic.version = 11 : i64} {
  func.func @_bn_swish_linear_kernel(%arg0: i32, %arg1: memref<16x8xf32, #tpu.memory_space<vmem>>, %arg2: memref<16x1xf32, #tpu.memory_space<vmem>>, %arg3: memref<1x8xf32, #tpu.memory_space<vmem>>, %arg4: memref<1x8xf32, #tpu.memory_space<vmem>>, %arg5: memref<8x32xf32, #tpu.memory_space<vmem>>, %arg6: memref<1x32xf32, #tpu.memory_space<vmem>>, %arg7: memref<16x32xf32, #tpu.memory_space<vmem>>) attributes {dimension_semantics = [#tpu.dimension_semantics<parallel>], iteration_bounds = array<i64: 1>, scalar_prefetch = 0 : i64, scratch_operands = 0 : i64, tpu.core_type = #tpu.core_type<tc>, window_params = [{transform_indices = @transform_0, window_bounds = array<i64: 16, 8>}, {transform_indices = @transform_1, window_bounds = array<i64: 16, 1>}, {pipeline_mode = #tpu.pipeline_mode<synchronous>, transform_indices = @transform_2, window_bounds = array<i64: 1, 8>}, {pipeline_mode = #tpu.pipeline_mode<synchronous>, transform_indices = @transform_3, window_bounds = array<i64: 1, 8>}, {pipeline_mode = #tpu.pipeline_mode<synchronous>, transform_indices = @transform_4, window_bounds = array<i64: 8, 32>}, {pipeline_mode = #tpu.pipeline_mode<synchronous>, transform_indices = @transform_5, window_bounds = array<i64: 1, 32>}, {transform_indices = @transform_6, window_bounds = array<i64: 16, 32>}]} {
    %c0 = arith.constant 0 : index
    %c0_0 = arith.constant 0 : index
    %0 = vector.load %arg1[%c0, %c0_0] : memref<16x8xf32, #tpu.memory_space<vmem>>, vector<16x8xf32>
    %c0_1 = arith.constant 0 : index
    %c0_2 = arith.constant 0 : index
    %1 = vector.load %arg2[%c0_1, %c0_2] : memref<16x1xf32, #tpu.memory_space<vmem>>, vector<16x1xf32>
    %2 = vector.broadcast %1 : vector<16x1xf32> to vector<16x8xf32>
    %3 = arith.mulf %0, %2 : vector<16x8xf32>
    %c0_3 = arith.constant 0 : index
    %c0_4 = arith.constant 0 : index
    %4 = vector.load %arg3[%c0_3, %c0_4] : memref<1x8xf32, #tpu.memory_space<vmem>>, vector<1x8xf32>
    %5 = vector.broadcast %4 : vector<1x8xf32> to vector<16x8xf32>
    %6 = arith.mulf %3, %5 : vector<16x8xf32>
    %c0_5 = arith.constant 0 : index
    %c0_6 = arith.constant 0 : index
    %7 = vector.load %arg4[%c0_5, %c0_6] : memref<1x8xf32, #tpu.memory_space<vmem>>, vector<1x8xf32>
    %8 = vector.broadcast %7 : vector<1x8xf32> to vector<16x8xf32>
    %9 = arith.addf %6, %8 : vector<16x8xf32>
    %10 = arith.negf %9 : vector<16x8xf32>
    %11 = math.exp %10 : vector<16x8xf32>
    %cst = arith.constant 1.000000e+00 : f32
    %12 = vector.broadcast %cst : f32 to vector<16x8xf32>
    %13 = arith.addf %12, %11 : vector<16x8xf32>
    %14 = arith.divf %12, %13 : vector<16x8xf32>
    %15 = arith.mulf %9, %14 : vector<16x8xf32>
    %c0_7 = arith.constant 0 : index
    %c0_8 = arith.constant 0 : index
    %16 = vector.load %arg5[%c0_7, %c0_8] : memref<8x32xf32, #tpu.memory_space<vmem>>, vector<8x32xf32>
    %cst_9 = arith.constant dense<0.000000e+00> : vector<16x32xf32>
    %17 = tpu.matmul %15, %16, %cst_9 {dimension_numbers = #tpu.dot_dimension_numbers<[1], [0], [0], [1], [0, 0, 1, 1], [], []>} : vector<16x8xf32>, vector<8x32xf32>, vector<16x32xf32> -> vector<16x32xf32>
    %c0_10 = arith.constant 0 : index
    %c0_11 = arith.constant 0 : index
    %18 = vector.load %arg6[%c0_10, %c0_11] : memref<1x32xf32, #tpu.memory_space<vmem>>, vector<1x32xf32>
    %19 = vector.broadcast %18 : vector<1x32xf32> to vector<16x32xf32>
    %20 = arith.addf %17, %19 : vector<16x32xf32>
    %c0_12 = arith.constant 0 : index
    %c0_13 = arith.constant 0 : index
    %21 = vector.load %arg7[%c0_12, %c0_13] : memref<16x32xf32, #tpu.memory_space<vmem>>, vector<16x32xf32>
    tpu.vector_store %arg7[%c0_12, %c0_13], %20 {strides = array<i32>} : memref<16x32xf32, #tpu.memory_space<vmem>>, vector<16x32xf32>,
    return
  }
  func.func @transform_0(%arg0: i32) -> (i32, i32) {
    %c0_i32 = arith.constant 0 : i32
    %c0_i32_0 = arith.constant 0 : i32
    return %arg0, %c0_i32 : i32, i32
  }
  func.func @transform_1(%arg0: i32) -> (i32, i32) {
    %c0_i32 = arith.constant 0 : i32
    %c0_i32_0 = arith.constant 0 : i32
    return %arg0, %c0_i32 : i32, i32
  }
  func.func @transform_2(%arg0: i32) -> (i32, i32) {
    %c0_i32 = arith.constant 0 : i32
    %c0_i32_0 = arith.constant 0 : i32
    %c0_i32_1 = arith.constant 0 : i32
    return %c0_i32, %c0_i32_0 : i32, i32
  }
  func.func @transform_3(%arg0: i32) -> (i32, i32) {
    %c0_i32 = arith.constant 0 : i32
    %c0_i32_0 = arith.constant 0 : i32
    %c0_i32_1 = arith.constant 0 : i32
    return %c0_i32, %c0_i32_0 : i32, i32
  }
  func.func @transform_4(%arg0: i32) -> (i32, i32) {
    %c0_i32 = arith.constant 0 : i32
    %c0_i32_0 = arith.constant 0 : i32
    %c0_i32_1 = arith.constant 0 : i32
    return %c0_i32, %c0_i32_0 : i32, i32
  }
  func.func @transform_5(%arg0: i32) -> (i32, i32) {
    %c0_i32 = arith.constant 0 : i32
    %c0_i32_0 = arith.constant 0 : i32
    %c0_i32_1 = arith.constant 0 : i32
    return %c0_i32, %c0_i32_0 : i32, i32
  }
  func.func @transform_6(%arg0: i32) -> (i32, i32) {
    %c0_i32 = arith.constant 0 : i32
    %c0_i32_0 = arith.constant 0 : i32
    return %arg0, %c0_i32 : i32, i32
  }
}

module attributes {stable_mosaic.version = 11 : i64} {
  func.func @_bn_swish_linear_kernel(%arg0: i32, %arg1: memref<16x32xf32, #tpu.memory_space<vmem>>, %arg2: memref<16x1xf32, #tpu.memory_space<vmem>>, %arg3: memref<1x32xf32, #tpu.memory_space<vmem>>, %arg4: memref<1x32xf32, #tpu.memory_space<vmem>>, %arg5: memref<32x1xf32, #tpu.memory_space<vmem>>, %arg6: memref<1x1xf32, #tpu.memory_space<vmem>>, %arg7: memref<16x1xf32, #tpu.memory_space<vmem>>) attributes {dimension_semantics = [#tpu.dimension_semantics<parallel>], iteration_bounds = array<i64: 1>, scalar_prefetch = 0 : i64, scratch_operands = 0 : i64, tpu.core_type = #tpu.core_type<tc>, window_params = [{transform_indices = @transform_0, window_bounds = array<i64: 16, 32>}, {transform_indices = @transform_1, window_bounds = array<i64: 16, 1>}, {pipeline_mode = #tpu.pipeline_mode<synchronous>, transform_indices = @transform_2, window_bounds = array<i64: 1, 32>}, {pipeline_mode = #tpu.pipeline_mode<synchronous>, transform_indices = @transform_3, window_bounds = array<i64: 1, 32>}, {pipeline_mode = #tpu.pipeline_mode<synchronous>, transform_indices = @transform_4, window_bounds = array<i64: 32, 1>}, {pipeline_mode = #tpu.pipeline_mode<synchronous>, transform_indices = @transform_5, window_bounds = array<i64: 1, 1>}, {transform_indices = @transform_6, window_bounds = array<i64: 16, 1>}]} {
    %c0 = arith.constant 0 : index
    %c0_0 = arith.constant 0 : index
    %0 = vector.load %arg1[%c0, %c0_0] : memref<16x32xf32, #tpu.memory_space<vmem>>, vector<16x32xf32>
    %c0_1 = arith.constant 0 : index
    %c0_2 = arith.constant 0 : index
    %1 = vector.load %arg2[%c0_1, %c0_2] : memref<16x1xf32, #tpu.memory_space<vmem>>, vector<16x1xf32>
    %2 = vector.broadcast %1 : vector<16x1xf32> to vector<16x32xf32>
    %3 = arith.mulf %0, %2 : vector<16x32xf32>
    %c0_3 = arith.constant 0 : index
    %c0_4 = arith.constant 0 : index
    %4 = vector.load %arg3[%c0_3, %c0_4] : memref<1x32xf32, #tpu.memory_space<vmem>>, vector<1x32xf32>
    %5 = vector.broadcast %4 : vector<1x32xf32> to vector<16x32xf32>
    %6 = arith.mulf %3, %5 : vector<16x32xf32>
    %c0_5 = arith.constant 0 : index
    %c0_6 = arith.constant 0 : index
    %7 = vector.load %arg4[%c0_5, %c0_6] : memref<1x32xf32, #tpu.memory_space<vmem>>, vector<1x32xf32>
    %8 = vector.broadcast %7 : vector<1x32xf32> to vector<16x32xf32>
    %9 = arith.addf %6, %8 : vector<16x32xf32>
    %10 = arith.negf %9 : vector<16x32xf32>
    %11 = math.exp %10 : vector<16x32xf32>
    %cst = arith.constant 1.000000e+00 : f32
    %12 = vector.broadcast %cst : f32 to vector<16x32xf32>
    %13 = arith.addf %12, %11 : vector<16x32xf32>
    %14 = arith.divf %12, %13 : vector<16x32xf32>
    %15 = arith.mulf %9, %14 : vector<16x32xf32>
    %c0_7 = arith.constant 0 : index
    %c0_8 = arith.constant 0 : index
    %16 = vector.load %arg5[%c0_7, %c0_8] : memref<32x1xf32, #tpu.memory_space<vmem>>, vector<32x1xf32>
    %cst_9 = arith.constant dense<0.000000e+00> : vector<16x1xf32>
    %17 = tpu.matmul %15, %16, %cst_9 {dimension_numbers = #tpu.dot_dimension_numbers<[1], [0], [0], [1], [0, 0, 1, 1], [], []>} : vector<16x32xf32>, vector<32x1xf32>, vector<16x1xf32> -> vector<16x1xf32>
    %c0_10 = arith.constant 0 : index
    %c0_11 = arith.constant 0 : index
    %18 = vector.load %arg6[%c0_10, %c0_11] : memref<1x1xf32, #tpu.memory_space<vmem>>, vector<1x1xf32>
    %19 = vector.broadcast %18 : vector<1x1xf32> to vector<16x1xf32>
    %20 = arith.addf %17, %19 : vector<16x1xf32>
    %c0_12 = arith.constant 0 : index
    %c0_13 = arith.constant 0 : index
    %21 = vector.load %arg7[%c0_12, %c0_13] : memref<16x1xf32, #tpu.memory_space<vmem>>, vector<16x1xf32>
    tpu.vector_store %arg7[%c0_12, %c0_13], %20 {strides = array<i32>} : memref<16x1xf32, #tpu.memory_space<vmem>>, vector<16x1xf32>,
    return
  }
  func.func @transform_0(%arg0: i32) -> (i32, i32) {
    %c0_i32 = arith.constant 0 : i32
    %c0_i32_0 = arith.constant 0 : i32
    return %arg0, %c0_i32 : i32, i32
  }
  func.func @transform_1(%arg0: i32) -> (i32, i32) {
    %c0_i32 = arith.constant 0 : i32
    %c0_i32_0 = arith.constant 0 : i32
    return %arg0, %c0_i32 : i32, i32
  }
  func.func @transform_2(%arg0: i32) -> (i32, i32) {
    %c0_i32 = arith.constant 0 : i32
    %c0_i32_0 = arith.constant 0 : i32
    %c0_i32_1 = arith.constant 0 : i32
    return %c0_i32, %c0_i32_0 : i32, i32
  }
  func.func @transform_3(%arg0: i32) -> (i32, i32) {
    %c0_i32 = arith.constant 0 : i32
    %c0_i32_0 = arith.constant 0 : i32
    %c0_i32_1 = arith.constant 0 : i32
    return %c0_i32, %c0_i32_0 : i32, i32
  }
  func.func @transform_4(%arg0: i32) -> (i32, i32) {
    %c0_i32 = arith.constant 0 : i32
    %c0_i32_0 = arith.constant 0 : i32
    %c0_i32_1 = arith.constant 0 : i32
    return %c0_i32, %c0_i32_0 : i32, i32
  }
  func.func @transform_5(%arg0: i32) -> (i32, i32) {
    %c0_i32 = arith.constant 0 : i32
    %c0_i32_0 = arith.constant 0 : i32
    %c0_i32_1 = arith.constant 0 : i32
    return %c0_i32, %c0_i32_0 : i32, i32
  }
  func.func @transform_6(%arg0: i32) -> (i32, i32) {
    %c0_i32 = arith.constant 0 : i32
    %c0_i32_0 = arith.constant 0 : i32
    return %arg0, %c0_i32 : i32, i32
  }
}

module attributes {stable_mosaic.version = 11 : i64} {
  func.func @_pool_kernel(%arg0: i32, %arg1: memref<2x8x1xf32, #tpu.memory_space<vmem>>, %arg2: memref<2x8x1xf32, #tpu.memory_space<vmem>>, %arg3: memref<2x1xf32, #tpu.memory_space<vmem>>) attributes {dimension_semantics = [#tpu.dimension_semantics<arbitrary>], iteration_bounds = array<i64: 1>, scalar_prefetch = 0 : i64, scratch_operands = 0 : i64, tpu.core_type = #tpu.core_type<tc>, window_params = [{transform_indices = @transform_0, window_bounds = array<i64: 2, 8, 1>}, {transform_indices = @transform_1, window_bounds = array<i64: 2, 8, 1>}, {pipeline_mode = #tpu.pipeline_mode<synchronous>, transform_indices = @transform_2, window_bounds = array<i64: 2, 1>}]} {
    %c0_i32 = arith.constant 0 : i32
    %0 = arith.cmpi eq, %arg0, %c0_i32 : i32
    %1 = arith.extui %0 : i1 to i32
    %c0_i32_0 = arith.constant 0 : i32
    %2 = arith.cmpi ne, %1, %c0_i32_0 : i32
    scf.if %2 {
      %cst_10 = arith.constant 0.000000e+00 : f32
      %10 = vector.broadcast %cst_10 : f32 to vector<2x1xf32>
      %c0_11 = arith.constant 0 : index
      %c0_12 = arith.constant 0 : index
      %11 = vector.load %arg3[%c0_11, %c0_12] : memref<2x1xf32, #tpu.memory_space<vmem>>, vector<2x1xf32>
      tpu.vector_store %arg3[%c0_11, %c0_12], %10 {strides = array<i32>} : memref<2x1xf32, #tpu.memory_space<vmem>>, vector<2x1xf32>,
    } else {
    }
    %c0 = arith.constant 0 : index
    %c0_1 = arith.constant 0 : index
    %3 = vector.load %arg3[%c0, %c0_1] : memref<2x1xf32, #tpu.memory_space<vmem>>, vector<2x1xf32>
    %c0_2 = arith.constant 0 : index
    %c0_3 = arith.constant 0 : index
    %c0_4 = arith.constant 0 : index
    %4 = vector.load %arg1[%c0_2, %c0_3, %c0_4] : memref<2x8x1xf32, #tpu.memory_space<vmem>>, vector<2x8x1xf32>
    %c0_5 = arith.constant 0 : index
    %c0_6 = arith.constant 0 : index
    %c0_7 = arith.constant 0 : index
    %5 = vector.load %arg2[%c0_5, %c0_6, %c0_7] : memref<2x8x1xf32, #tpu.memory_space<vmem>>, vector<2x8x1xf32>
    %6 = arith.mulf %4, %5 : vector<2x8x1xf32>
    %cst = arith.constant dense<0.000000e+00> : vector<2x1xf32>
    %7 = vector.multi_reduction <add>, %6, %cst [1] : vector<2x8x1xf32> to vector<2x1xf32>
    %8 = arith.addf %3, %7 : vector<2x1xf32>
    %c0_8 = arith.constant 0 : index
    %c0_9 = arith.constant 0 : index
    %9 = vector.load %arg3[%c0_8, %c0_9] : memref<2x1xf32, #tpu.memory_space<vmem>>, vector<2x1xf32>
    tpu.vector_store %arg3[%c0_8, %c0_9], %8 {strides = array<i32>} : memref<2x1xf32, #tpu.memory_space<vmem>>, vector<2x1xf32>,
    return
  }
  func.func @transform_0(%arg0: i32) -> (i32, i32, i32) {
    %c0_i32 = arith.constant 0 : i32
    %c0_i32_0 = arith.constant 0 : i32
    %c0_i32_1 = arith.constant 0 : i32
    return %c0_i32, %arg0, %c0_i32_0 : i32, i32, i32
  }
  func.func @transform_1(%arg0: i32) -> (i32, i32, i32) {
    %c0_i32 = arith.constant 0 : i32
    %c0_i32_0 = arith.constant 0 : i32
    %c0_i32_1 = arith.constant 0 : i32
    return %c0_i32, %arg0, %c0_i32_0 : i32, i32, i32
  }
  func.func @transform_2(%arg0: i32) -> (i32, i32) {
    %c0_i32 = arith.constant 0 : i32
    %c0_i32_0 = arith.constant 0 : i32
    %c0_i32_1 = arith.constant 0 : i32
    return %c0_i32, %c0_i32_0 : i32, i32
  }
}

</mosaic_0001>

<llo_original>
// kernel: lieresnet_forward.29
$region0: #{lieresnet_forward.29}
  #allocation0 [shape = 'u32[]', space=smem, size = 0x4, offset = 0x4, fixed_abs, tag = 'smem constant byte address 0x4 - core index']
  #allocation1 [shape = 'u32[144,128]{1,0:T(1,128)}', space=vmem, size = 0x12000, scoped, tag = 'internal scratch']
  %s0 = inlined_call_operand.vmem [shape: f32[2,8,3], index: 0, kind: input, shape index: {}, may-alias: {0,1}]
  %s1 = inlined_call_operand.vmem [shape: f32[2,8,3], index: 1, kind: input, shape index: {}, may-alias: {0,1}]
  %s2 = inlined_call_operand.vmem [shape: f32[2,8,1], index: 2, kind: input, shape index: {}]
  %s3 = inlined_call_operand.vmem [shape: f32[2,8,1], index: 3, kind: input, shape index: {}]
  %s4 = inlined_call_operand.vmem [shape: f32[3,32], index: 4, kind: input, shape index: {}]
  %s5 = inlined_call_operand.vmem [shape: f32[1,32], index: 5, kind: input, shape index: {}]
  %s6 = inlined_call_operand.vmem [shape: f32[1,32], index: 6, kind: output, shape index: {0}]
  %s7 = inlined_call_operand.vmem [shape: f32[1,32], index: 7, kind: output, shape index: {1}]
  %8 = xla_tuple %s6, %s7
  %s9 = sld [smem:[#allocation0]]
  $region69: #{lieresnet_forward.29} parent=0
    _
  %s11 = ssub.s32 1, %s9
  %s12 = scalar_select 0, %s11, %s9
  loop: start=0, step=1, limit=4
  $region2: #{lieresnet_forward.29} parent=0 // loop_pre_header
    _
  $region3: #{lieresnet_forward.29} parent=0 // loop_header
    %s14 = sphi 0, %s18
    %p15 = scmp.ge.s32.totalorder %s14, 4
    %s21 = sphi 0, %s40
    %s22 = sphi 0, %s36
    %s23 = sphi 0, %s32
    %s24 = sphi 0, %s21
    %s25 = sphi 0, %s22
    %s26 = sphi 0, %s23
    %s27 = sphi 0, %s24
    %s28 = sphi 0, %s25
    %s29 = sphi 0, %s26
    %s45 = sphi 0, %s47
    %s48 = sphi 0, %s45
    %s49 = sphi 0, %s48
    %s65 = sphi 0, %s49
    %s73 = sphi 0, %s75
    %s76 = sphi 0, %s73
    %s77 = sphi 0, %s76
    %s93 = sphi 0, %s77
    %s101 = sphi 0, %s103
    %s104 = sphi 0, %s101
    %s105 = sphi 0, %s104
    %s121 = sphi 0, %s105
    %s129 = sphi 0, %s131
    %s132 = sphi 0, %s129
    %s133 = sphi 0, %s132
    %s149 = sphi 0, %s133
    %s153 = sphi 0, %s153
    %s155 = sphi 0, %s153
    %s156 = sphi 0, %s155
    %s170 = sphi 0, %s156
    %s174 = sphi 0, %s174
    %s176 = sphi 0, %s174
    %s177 = sphi 0, %s176
    %s191 = sphi 0, %s177
    %s195 = sphi 0, %s195
    %s197 = sphi 0, %s195
    %s198 = sphi 0, %s197
    %s212 = sphi 0, %s198
    %s216 = sphi 0, %s216
    %s218 = sphi 0, %s216
    %s219 = sphi 0, %s218
    %s233 = sphi 0, %s219
  $region4: #{lieresnet_forward.29} parent=0 // loop_header_branch
    %17 = sbr.rel (%p15) target = $region8
  $region5: #{lieresnet_forward.29} parent=0 // loop_body
    %s19 = ssub.s32 %s14, 1
    %s20 = ssub.s32 %s14, 2
    %s30 = sadd.s32 1, %s23
    %p31 = scmp.ge.s32.totalorder %s30, 1
    %s32 = scalar_select %p31, 0, %s30
    %s33 = sadd.s32 1, %s22
    %s34 = scalar_select %p31, %s33, %s22
    %p35 = scmp.ge.s32.totalorder %s34, 1
    %s36 = scalar_select %p35, 0, %s34
    %s37 = sadd.s32 1, %s21
    %s38 = scalar_select %p35, %s37, %s21
    %p39 = scmp.ge.s32.totalorder %s38, 2
    %s40 = scalar_select %p39, 0, %s38
    %s41 = ssub.s32 %s21, %s40
    %s42 = ssub.s32 %s22, %s36
    %s43 = sor.u32 %s41, %s42
    %p44 = scmp.eq.s32.totalorder %s43, 0
    %s46 = sadd.s32 %s45, 1
    %s47 = scalar_select %p44, %s45, %s46
    %p50 = pneg %p44
    %p51 = scmp.eq.s32.totalorder %s14, 1
    %p52 = por %p50, %p51
    %p53 = scmp.ne.s32.totalorder %s45, %s48
    %p54 = scmp.eq.s32.totalorder %s14, 0
    %p55 = por %p53, %p54
    %p56 = scmp.ne.s32.totalorder %s45, %s48
    %p57 = scmp.eq.s32.totalorder %s19, 1
    %p58 = por %p56, %p57
    %p59 = scmp.ne.s32.totalorder %s48, %s49
    %p60 = scmp.eq.s32.totalorder %s19, 0
    %p61 = por %p59, %p60
    %p62 = scmp.ne.s32.totalorder %s48, %s49
    %p63 = scmp.eq.s32.totalorder %s20, 1
    %p64 = por %p62, %p63
    %p66 = scmp.ne.s32.totalorder %s49, %s65
    %p67 = scmp.eq.s32.totalorder %s20, 0
    %p68 = por %p66, %p67
    %s69 = ssub.s32 %s21, %s40
    %s70 = ssub.s32 %s23, %s32
    %s71 = sor.u32 %s69, %s70
    %p72 = scmp.eq.s32.totalorder %s71, 0
    %s74 = sadd.s32 %s73, 1
    %s75 = scalar_select %p72, %s73, %s74
    %p78 = pneg %p72
    %p79 = scmp.eq.s32.totalorder %s14, 1
    %p80 = por %p78, %p79
    %p81 = scmp.ne.s32.totalorder %s73, %s76
    %p82 = scmp.eq.s32.totalorder %s14, 0
    %p83 = por %p81, %p82
    %p84 = scmp.ne.s32.totalorder %s73, %s76
    %p85 = scmp.eq.s32.totalorder %s19, 1
    %p86 = por %p84, %p85
    %p87 = scmp.ne.s32.totalorder %s76, %s77
    %p88 = scmp.eq.s32.totalorder %s19, 0
    %p89 = por %p87, %p88
    %p90 = scmp.ne.s32.totalorder %s76, %s77
    %p91 = scmp.eq.s32.totalorder %s20, 1
    %p92 = por %p90, %p91
    %p94 = scmp.ne.s32.totalorder %s77, %s93
    %p95 = scmp.eq.s32.totalorder %s20, 0
    %p96 = por %p94, %p95
    %s97 = ssub.s32 %s21, %s40
    %s98 = ssub.s32 %s23, %s32
    %s99 = sor.u32 %s97, %s98
    %p100 = scmp.eq.s32.totalorder %s99, 0
    %s102 = sadd.s32 %s101, 1
    %s103 = scalar_select %p100, %s101, %s102
    %p106 = pneg %p100
    %p107 = scmp.eq.s32.totalorder %s14, 1
    %p108 = por %p106, %p107
    %p109 = scmp.ne.s32.totalorder %s101, %s104
    %p110 = scmp.eq.s32.totalorder %s14, 0
    %p111 = por %p109, %p110
    %p112 = scmp.ne.s32.totalorder %s101, %s104
    %p113 = scmp.eq.s32.totalorder %s19, 1
    %p114 = por %p112, %p113
    %p115 = scmp.ne.s32.totalorder %s104, %s105
    %p116 = scmp.eq.s32.totalorder %s19, 0
    %p117 = por %p115, %p116
    %p118 = scmp.ne.s32.totalorder %s104, %s105
    %p119 = scmp.eq.s32.totalorder %s20, 1
    %p120 = por %p118, %p119
    %p122 = scmp.ne.s32.totalorder %s105, %s121
    %p123 = scmp.eq.s32.totalorder %s20, 0
    %p124 = por %p122, %p123
    %s125 = ssub.s32 %s21, %s40
    %s126 = ssub.s32 %s22, %s36
    %s127 = sor.u32 %s125, %s126
    %p128 = scmp.eq.s32.totalorder %s127, 0
    %s130 = sadd.s32 %s129, 1
    %s131 = scalar_select %p128, %s129, %s130
    %p134 = pneg %p128
    %p135 = scmp.eq.s32.totalorder %s14, 1
    %p136 = por %p134, %p135
    %p137 = scmp.ne.s32.totalorder %s129, %s132
    %p138 = scmp.eq.s32.totalorder %s14, 0
    %p139 = por %p137, %p138
    %p140 = scmp.ne.s32.totalorder %s129, %s132
    %p141 = scmp.eq.s32.totalorder %s19, 1
    %p142 = por %p140, %p141
    %p143 = scmp.ne.s32.totalorder %s132, %s133
    %p144 = scmp.eq.s32.totalorder %s19, 0
    %p145 = por %p143, %p144
    %p146 = scmp.ne.s32.totalorder %s132, %s133
    %p147 = scmp.eq.s32.totalorder %s20, 1
    %p148 = por %p146, %p147
    %p150 = scmp.ne.s32.totalorder %s133, %s149
    %p151 = scmp.eq.s32.totalorder %s20, 0
    %p152 = por %p150, %p151
    %s154 = sadd.s32 %s153, 1
    %p157 = scmp.eq.s32.totalorder %s14, 1
    %p158 = scmp.ne.s32.totalorder %s153, %s155
    %p159 = scmp.eq.s32.totalorder %s14, 0
    %p160 = por %p158, %p159
    %p161 = scmp.ne.s32.totalorder %s153, %s155
    %p162 = scmp.eq.s32.totalorder %s19, 1
    %p163 = por %p161, %p162
    %p164 = scmp.ne.s32.totalorder %s155, %s156
    %p165 = scmp.eq.s32.totalorder %s19, 0
    %p166 = por %p164, %p165
    %p167 = scmp.ne.s32.totalorder %s155, %s156
    %p168 = scmp.eq.s32.totalorder %s20, 1
    %p169 = por %p167, %p168
    %p171 = scmp.ne.s32.totalorder %s156, %s170
    %p172 = scmp.eq.s32.totalorder %s20, 0
    %p173 = por %p171, %p172
    %s175 = sadd.s32 %s174, 1
    %p178 = scmp.eq.s32.totalorder %s14, 1
    %p179 = scmp.ne.s32.totalorder %s174, %s176
    %p180 = scmp.eq.s32.totalorder %s14, 0
    %p181 = por %p179, %p180
    %p182 = scmp.ne.s32.totalorder %s174, %s176
    %p183 = scmp.eq.s32.totalorder %s19, 1
    %p184 = por %p182, %p183
    %p185 = scmp.ne.s32.totalorder %s176, %s177
    %p186 = scmp.eq.s32.totalorder %s19, 0
    %p187 = por %p185, %p186
    %p188 = scmp.ne.s32.totalorder %s176, %s177
    %p189 = scmp.eq.s32.totalorder %s20, 1
    %p190 = por %p188, %p189
    %p192 = scmp.ne.s32.totalorder %s177, %s191
    %p193 = scmp.eq.s32.totalorder %s20, 0
    %p194 = por %p192, %p193
    %s196 = sadd.s32 %s195, 1
    %p199 = scmp.eq.s32.totalorder %s14, 1
    %p200 = scmp.ne.s32.totalorder %s195, %s197
    %p201 = scmp.eq.s32.totalorder %s14, 0
    %p202 = por %p200, %p201
    %p203 = scmp.ne.s32.totalorder %s195, %s197
    %p204 = scmp.eq.s32.totalorder %s19, 1
    %p205 = por %p203, %p204
    %p206 = scmp.ne.s32.totalorder %s197, %s198
    %p207 = scmp.eq.s32.totalorder %s19, 0
    %p208 = por %p206, %p207
    %p209 = scmp.ne.s32.totalorder %s197, %s198
    %p210 = scmp.eq.s32.totalorder %s20, 1
    %p211 = por %p209, %p210
    %p213 = scmp.ne.s32.totalorder %s198, %s212
    %p214 = scmp.eq.s32.totalorder %s20, 0
    %p215 = por %p213, %p214
    %s217 = sadd.s32 %s216, 1
    %p220 = scmp.eq.s32.totalorder %s14, 1
    %p221 = scmp.ne.s32.totalorder %s216, %s218
    %p222 = scmp.eq.s32.totalorder %s14, 0
    %p223 = por %p221, %p222
    %p224 = scmp.ne.s32.totalorder %s216, %s218
    %p225 = scmp.eq.s32.totalorder %s19, 1
    %p226 = por %p224, %p225
    %p227 = scmp.ne.s32.totalorder %s218, %s219
    %p228 = scmp.eq.s32.totalorder %s19, 0
    %p229 = por %p227, %p228
    %p230 = scmp.ne.s32.totalorder %s218, %s219
    %p231 = scmp.eq.s32.totalorder %s20, 1
    %p232 = por %p230, %p231
    %p234 = scmp.ne.s32.totalorder %s219, %s233
    %p235 = scmp.eq.s32.totalorder %s20, 0
    %p236 = por %p234, %p235
    %p237 = scmp.le.s32.totalorder 1, %s14
    %p238 = scmp.lt.s32.totalorder %s14, 3
    %p239 = pnand %p237, %p238
    %p240 = pneg %p239
    // Predicated region
    $region9: #{lieresnet_forward.29} parent=5 // pred_check
      _
    $region10: #{lieresnet_forward.29} parent=5 // pred_check_branch
      %242 = sbr.rel (%p239) target = $region12
    $region11: #{lieresnet_forward.29} parent=5 // pred_region
      %s243 = ssub.s32 %s14, 1
      // Predicated region
      $region13: #{lieresnet_forward.29} parent=11 // pred_check
        %p244 = pneg %p166
      $region14: #{lieresnet_forward.29} parent=11 // pred_check_branch
        %246 = sbr.rel (%p244) target = $region16
      $region15: #{lieresnet_forward.29} parent=11 // pred_region
        _
      $region16: #{lieresnet_forward.29} parent=11 // pred_fallthru
        _
      // Predicated region
      $region17: #{lieresnet_forward.29} parent=11 // pred_check
        %p247 = pneg %p187
      $region18: #{lieresnet_forward.29} parent=11 // pred_check_branch
        %249 = sbr.rel (%p247) target = $region20
      $region19: #{lieresnet_forward.29} parent=11 // pred_region
        _
      $region20: #{lieresnet_forward.29} parent=11 // pred_fallthru
        _
    $region12: #{lieresnet_forward.29} parent=5 // pred_fallthru
      _
    %p250 = scmp.lt.s32.totalorder %s14, 2
    // Predicated region
    $region21: #{lieresnet_forward.29} parent=5 // pred_check
      %p251 = pneg %p250
    $region22: #{lieresnet_forward.29} parent=5 // pred_check_branch
      %253 = sbr.rel (%p251) target = $region24
    $region23: #{lieresnet_forward.29} parent=5 // pred_region
      // Predicated region
      $region25: #{lieresnet_forward.29} parent=23 // pred_check
        %p254 = pneg %p55
      $region26: #{lieresnet_forward.29} parent=23 // pred_check_branch
        %256 = sbr.rel (%p254) target = $region28
      $region27: #{lieresnet_forward.29} parent=23 // pred_region
        %p257 = scmp.lt.s32.totalorder %s21, 1
        %s258 = scalar_select %p257, %s21, 1
        %p259 = scmp.lt.s32.totalorder %s22, 0
        %s260 = scalar_select %p259, %s22, 0
        %s261 = sadd.s32 %s260, %s258
        %s262 = smul.addr %s261, 8
        %s263 = scalar_lea.vmem %s0, %s262
      $region28: #{lieresnet_forward.29} parent=23 // pred_fallthru
        _
      // Predicated region
      $region29: #{lieresnet_forward.29} parent=23 // pred_check
        %p264 = pneg %p83
      $region30: #{lieresnet_forward.29} parent=23 // pred_check_branch
        %266 = sbr.rel (%p264) target = $region32
      $region31: #{lieresnet_forward.29} parent=23 // pred_region
        %p267 = scmp.lt.s32.totalorder %s21, 1
        %s268 = scalar_select %p267, %s21, 1
        %p269 = scmp.lt.s32.totalorder %s23, 0
        %s270 = scalar_select %p269, %s23, 0
        %s271 = sadd.s32 %s270, %s268
        %s272 = smul.addr %s271, 8
        %s273 = scalar_lea.vmem %s1, %s272
      $region32: #{lieresnet_forward.29} parent=23 // pred_fallthru
        _
      // Predicated region
      $region33: #{lieresnet_forward.29} parent=23 // pred_check
        %p274 = pneg %p111
      $region34: #{lieresnet_forward.29} parent=23 // pred_check_branch
        %276 = sbr.rel (%p274) target = $region36
      $region35: #{lieresnet_forward.29} parent=23 // pred_region
        %p277 = scmp.lt.s32.totalorder %s21, 1
        %s278 = scalar_select %p277, %s21, 1
        %p279 = scmp.lt.s32.totalorder %s23, 0
        %s280 = scalar_select %p279, %s23, 0
        %s281 = sadd.s32 %s280, %s278
        %s282 = smul.addr %s281, 8
        %s283 = scalar_lea.vmem %s2, %s282
      $region36: #{lieresnet_forward.29} parent=23 // pred_fallthru
        _
      // Predicated region
      $region37: #{lieresnet_forward.29} parent=23 // pred_check
        %p284 = pneg %p139
      $region38: #{lieresnet_forward.29} parent=23 // pred_check_branch
        %286 = sbr.rel (%p284) target = $region40
      $region39: #{lieresnet_forward.29} parent=23 // pred_region
        %p287 = scmp.lt.s32.totalorder %s21, 1
        %s288 = scalar_select %p287, %s21, 1
        %p289 = scmp.lt.s32.totalorder %s22, 0
        %s290 = scalar_select %p289, %s22, 0
        %s291 = sadd.s32 %s290, %s288
        %s292 = smul.addr %s291, 8
        %s293 = scalar_lea.vmem %s3, %s292
      $region40: #{lieresnet_forward.29} parent=23 // pred_fallthru
        _
    $region24: #{lieresnet_forward.29} parent=5 // pred_fallthru
      _
    %p294 = scmp.le.s32.totalorder 1, %s14
    %p295 = scmp.lt.s32.totalorder %s14, 3
    %p296 = pnand %p294, %p295
    %p297 = pneg %p296
    // Predicated region
    $region41: #{lieresnet_forward.29} parent=5 // pred_check
      _
    $region42: #{lieresnet_forward.29} parent=5 // pred_check_branch
      %299 = sbr.rel (%p296) target = $region44
    $region43: #{lieresnet_forward.29} parent=5 // pred_region
      %s300 = ssub.s32 %s14, 1
      %p301 = scmp.lt.s32.totalorder %s24, 1
      %s302 = scalar_select %p301, %s24, 1
      %p303 = scmp.lt.s32.totalorder %s25, 0
      %s304 = scalar_select %p303, %s25, 0
      %s305 = sadd.s32 %s304, %s302
      %s306 = smul.addr %s305, 8
      %s307 = scalar_lea.vmem %s0, %s306
      %p308 = pneg %p61
      %p309 = pneg %p58
      %p310 = scmp.lt.s32.totalorder %s24, 1
      %s311 = scalar_select %p310, %s24, 1
      %p312 = scmp.lt.s32.totalorder %s26, 0
      %s313 = scalar_select %p312, %s26, 0
      %s314 = sadd.s32 %s313, %s311
      %s315 = smul.addr %s314, 8
      %s316 = scalar_lea.vmem %s1, %s315
      %p317 = pneg %p89
      %p318 = pneg %p86
      %p319 = scmp.lt.s32.totalorder %s24, 1
      %s320 = scalar_select %p319, %s24, 1
      %p321 = scmp.lt.s32.totalorder %s26, 0
      %s322 = scalar_select %p321, %s26, 0
      %s323 = sadd.s32 %s322, %s320
      %s324 = smul.addr %s323, 8
      %s325 = scalar_lea.vmem %s2, %s324
      %p326 = pneg %p117
      %p327 = pneg %p114
      %p328 = scmp.lt.s32.totalorder %s24, 1
      %s329 = scalar_select %p328, %s24, 1
      %p330 = scmp.lt.s32.totalorder %s25, 0
      %s331 = scalar_select %p330, %s25, 0
      %s332 = sadd.s32 %s331, %s329
      %s333 = smul.addr %s332, 8
      %s334 = scalar_lea.vmem %s3, %s333
      %p335 = pneg %p145
      %p336 = pneg %p142
      %p337 = pneg %p166
      %p338 = pneg %p163
      %p339 = pneg %p187
      %p340 = pneg %p184
      %p341 = pneg %p208
      %p342 = pneg %p205
      %p343 = pneg %p229
      %p344 = pneg %p226
      %p345 = scmp.lt.s32.totalorder %s24, 1
      %s346 = scalar_select %p345, %s24, 1
      %p347 = scmp.lt.s32.totalorder %s25, 0
      %s348 = scalar_select %p347, %s25, 0
      %s349 = sadd.s32 %s348, %s346
      %s350 = smul.addr %s349, 8
      %s351 = scalar_lea.vmem %s0, %s350
      %p352 = scmp.lt.s32.totalorder %s24, 1
      %s353 = scalar_select %p352, %s24, 1
      %p354 = scmp.lt.s32.totalorder %s26, 0
      %s355 = scalar_select %p354, %s26, 0
      %s356 = sadd.s32 %s355, %s353
      %s357 = smul.addr %s356, 8
      %s358 = scalar_lea.vmem %s1, %s357
      %p359 = scmp.lt.s32.totalorder %s24, 1
      %s360 = scalar_select %p359, %s24, 1
      %p361 = scmp.lt.s32.totalorder %s26, 0
      %s362 = scalar_select %p361, %s26, 0
      %s363 = sadd.s32 %s362, %s360
      %s364 = smul.addr %s363, 8
      %s365 = scalar_lea.vmem %s2, %s364
      %p366 = scmp.lt.s32.totalorder %s24, 1
      %s367 = scalar_select %p366, %s24, 1
      %p368 = scmp.lt.s32.totalorder %s25, 0
      %s369 = scalar_select %p368, %s25, 0
      %s370 = sadd.s32 %s369, %s367
      %s371 = smul.addr %s370, 8
      %s372 = scalar_lea.vmem %s3, %s371
      %p373 = scmp.eq.s32.totalorder %s24, 0
      %p374 = scmp.eq.s32.totalorder %s25, 0
      %p375 = pnand %p373, %p374
      %p376 = pneg %p375
      %p377 = scmp.eq.s32.totalorder %s26, 0
      %p378 = pnand %p376, %p377
      %p379 = pneg %p378
      // Predicated region
      $region45: #{lieresnet_forward.29} parent=43 // pred_check
        _
      $region46: #{lieresnet_forward.29} parent=43 // pred_check_branch
        %381 = sbr.rel (%p378) target = $region48
      $region47: #{lieresnet_forward.29} parent=43 // pred_region
        %vm382 = vcmask 253952
        %383 = vst.msk [vmem:[%s6] sm:$0x1] %vm382, 0.0
        %384 = vst.msk [vmem:[%s7] sm:$0x1] %vm382, 0.0
      $region48: #{lieresnet_forward.29} parent=43 // pred_fallthru
        _
      %v385 = vld [vmem:[%s351] sm:$0xff]
      %v386 = vld [vmem:[%s358] sm:$0xff]
      %v388 = vcombine.high %v385, %v385
      %v390 = vunpack.c.l.s4 1966171168
      %v391 = vunpack.c.0.s8 %v390
      %v392 = vlaneseq
      %v393 = vshrl.u32 %v392, 7
      %v394 = vsub.s32 %v391, %v393
      %v395 = vrot.slane %v385, %v394
      %v397 = vunpack.c.l.s4 1966171168
      %v398 = vunpack.c.0.s8 %v397
      %v399 = vlaneseq
      %v400 = vshrl.u32 %v399, 7
      %v401 = vsub.s32 %v398, %v400
      %v402 = vrot.slane %v388, %v401
      %v403 = vcombine.high %v395, %v395
      %v404 = vcombine.high %v402, %v402
      %v406 = vunpack.c.l.s4 1966171168
      %v407 = vunpack.c.0.s8 %v406
      %v408 = vlaneseq
      %v409 = vshrl.u32 %v408, 7
      %v410 = vsub.s32 %v407, %v409
      %v411 = vrot.slane %v395, %v410
      %v413 = vunpack.c.l.s4 1966171168
      %v414 = vunpack.c.0.s8 %v413
      %v415 = vlaneseq
      %v416 = vshrl.u32 %v415, 7
      %v417 = vsub.s32 %v414, %v416
      %v418 = vrot.slane %v402, %v417
      %v420 = vunpack.c.l.s4 1966171168
      %v421 = vunpack.c.0.s8 %v420
      %v422 = vlaneseq
      %v423 = vshrl.u32 %v422, 7
      %v424 = vsub.s32 %v421, %v423
      %v425 = vrot.slane %v403, %v424
      %v427 = vunpack.c.l.s4 1966171168
      %v428 = vunpack.c.0.s8 %v427
      %v429 = vlaneseq
      %v430 = vshrl.u32 %v429, 7
      %v431 = vsub.s32 %v428, %v430
      %v432 = vrot.slane %v404, %v431
      %v433 = vcombine.high %v411, %v411
      %v434 = vcombine.high %v418, %v418
      %v435 = vcombine.high %v425, %v425
      %v436 = vcombine.high %v432, %v432
      %v437 = vlaneseq
      %v438 = vshrl.u32 %v437, 7
      %v439 = vsub.s32 0, %v438
      %v440 = vrot.slane %v411, %v439
      %v441 = vlaneseq
      %v442 = vshrl.u32 %v441, 7
      %v443 = vsub.s32 0, %v442
      %v444 = vrot.slane %v425, %v443
      %v445 = vlaneseq
      %v446 = vshrl.u32 %v445, 7
      %v447 = vsub.s32 0, %v446
      %v448 = vrot.slane %v433, %v447
      %v449 = vlaneseq
      %v450 = vshrl.u32 %v449, 7
      %v451 = vsub.s32 0, %v450
      %v452 = vrot.slane %v435, %v451
      %v453 = vlaneseq
      %v454 = vshrl.u32 %v453, 7
      %v455 = vsub.s32 0, %v454
      %v456 = vrot.slane %v418, %v455
      %v457 = vlaneseq
      %v458 = vshrl.u32 %v457, 7
      %v459 = vsub.s32 0, %v458
      %v460 = vrot.slane %v432, %v459
      %v461 = vlaneseq
      %v462 = vshrl.u32 %v461, 7
      %v463 = vsub.s32 0, %v462
      %v464 = vrot.slane %v434, %v463
      %v465 = vlaneseq
      %v466 = vshrl.u32 %v465, 7
      %v467 = vsub.s32 0, %v466
      %v468 = vrot.slane %v436, %v467
      %v477 = vsub.f32 %v440, %v386
      %v478 = vsub.f32 %v444, %v386
      %v479 = vsub.f32 %v448, %v386
      %v480 = vsub.f32 %v452, %v386
      %v481 = vsub.f32 %v456, %v386
      %v482 = vsub.f32 %v460, %v386
      %v483 = vsub.f32 %v464, %v386
      %v484 = vsub.f32 %v468, %v386
      %v485 = vld [vmem:[%s4] sm:$0x7]
      %v486 = vld [vmem:[%s5] sm:$0x1]
      %v488 = vlaneseq
      %v489 = vshrl.u32 %v488, 7
      %v490 = vsub.s32 0, %v489
      %v491 = vrot.slane %v486, %v490
      %vm493 = vcmask 23552
      %v495 = vsel %vm493, %v477, 0
      %v498 = vsel %vm493, %v478, 0
      %v501 = vsel %vm493, %v479, 0
      %v504 = vsel %vm493, %v480, 0
      %v507 = vsel %vm493, %v481, 0
      %v510 = vsel %vm493, %v482, 0
      %v513 = vsel %vm493, %v483, 0
      %v516 = vsel %vm493, %v484, 0
      %vm518 = vcmask 1042432
      %v520 = vsel %vm518, %v485, 0
      %522 = vmatprep.subr.mxu0 0.0
      %523 = vmatpush1.msra.mxu0 %v520
      %524 = vmatprep.subr.mxu0 0.0
      %525 = vmatpush1.msra.mxu0 0.0
      %526 = vmatprep.subr.mxu0 0.0
      %527 = vmatpush1.msra.mxu0 0.0
      %528 = vmatprep.subr.mxu0 0.0
      %529 = vmatpush1.msra.mxu0 0.0
      %530 = vmatprep.subr.mxu0 0.0
      %531 = vmatpush1.msra.mxu0 0.0
      %532 = vmatprep.subr.mxu0 0.0
      %533 = vmatpush1.msra.mxu0 0.0
      %534 = vmatprep.subr.mxu0 0.0
      %535 = vmatpush1.msra.mxu0 0.0
      %536 = vmatprep.subr.mxu0 0.0
      %537 = vmatpush1.msra.mxu0 0.0
      %538 = vmatprep.subr.mxu0 0.0
      %539 = vmatpush1.msra.mxu0 0.0
      %540 = vmatprep.subr.mxu0 0.0
      %541 = vmatpush1.msra.mxu0 0.0
      %542 = vmatprep.subr.mxu0 0.0
      %543 = vmatpush1.msra.mxu0 0.0
      %544 = vmatprep.subr.mxu0 0.0
      %545 = vmatpush1.msra.mxu0 0.0
      %546 = vmatprep.subr.mxu0 0.0
      %547 = vmatpush1.msra.mxu0 0.0
      %548 = vmatprep.subr.mxu0 0.0
      %549 = vmatpush1.msra.mxu0 0.0
      %550 = vmatprep.subr.mxu0 0.0
      %551 = vmatpush1.msra.mxu0 0.0
      %552 = vmatprep.subr.mxu0 0.0
      %553 = vmatpush1.msra.mxu0 0.0
      %554 = vmatprep.subr.mxu0 0.0
      %555 = vmatpush1.msra.mxu0 0.0
      %556 = vmatprep.subr.mxu0 0.0
      %557 = vmatpush1.msra.mxu0 0.0
      %558 = vmatprep.subr.mxu0 0.0
      %559 = vmatpush1.msra.mxu0 0.0
      %560 = vmatprep.subr.mxu0 0.0
      %561 = vmatpush1.msra.mxu0 0.0
      %562 = vmatprep.subr.mxu0 0.0
      %563 = vmatpush1.msra.mxu0 0.0
      %564 = vmatprep.subr.mxu0 0.0
      %565 = vmatpush1.msra.mxu0 0.0
      %566 = vmatprep.subr.mxu0 0.0
      %567 = vmatpush1.msra.mxu0 0.0
      %568 = vmatprep.subr.mxu0 0.0
      %569 = vmatpush1.msra.mxu0 0.0
      %570 = vmatprep.subr.mxu0 0.0
      %571 = vmatpush1.msra.mxu0 0.0
      %572 = vmatprep.subr.mxu0 0.0
      %573 = vmatpush1.msra.mxu0 0.0
      %574 = vmatprep.subr.mxu0 0.0
      %575 = vmatpush1.msra.mxu0 0.0
      %576 = vmatprep.subr.mxu0 0.0
      %577 = vmatpush1.msra.mxu0 0.0
      %578 = vmatprep.subr.mxu0 0.0
      %579 = vmatpush1.msra.mxu0 0.0
      %580 = vmatprep.subr.mxu0 0.0
      %581 = vmatpush1.msra.mxu0 0.0
      %582 = vmatprep.subr.mxu0 0.0
      %583 = vmatpush1.msra.mxu0 0.0
      %584 = vmatprep.subr.mxu0 0.0
      %585 = vmatpush1.msra.mxu0 0.0
      %586 = vmatprep.mubr.f32.mxu0 0.0
      %587 = vmatmul.mubr.f32.gmra.mrb[0].mxu0 %v495
      %v588 = vpop.f32.mrb[0].mxu0
      %v589 = vadd.f32 %v491, %v588
      %v590 = vpop.f32.mrb[0].mxu0
      %591 = vmatprep.mubr.f32.mxu0 0.0
      %592 = vmatmul.mubr.f32.gmra.mrb[0].mxu0 %v498
      %v593 = vpop.f32.mrb[0].mxu0
      %v594 = vadd.f32 %v491, %v593
      %v595 = vpop.f32.mrb[0].mxu0
      %596 = vmatprep.mubr.f32.mxu0 0.0
      %597 = vmatmul.mubr.f32.gmra.mrb[0].mxu0 %v501
      %v598 = vpop.f32.mrb[0].mxu0
      %v599 = vadd.f32 %v491, %v598
      %v600 = vpop.f32.mrb[0].mxu0
      %601 = vmatprep.mubr.f32.mxu0 0.0
      %602 = vmatmul.mubr.f32.gmra.mrb[0].mxu0 %v504
      %v603 = vpop.f32.mrb[0].mxu0
      %v604 = vadd.f32 %v491, %v603
      %v605 = vpop.f32.mrb[0].mxu0
      %606 = vmatprep.mubr.f32.mxu0 0.0
      %607 = vmatmul.mubr.f32.gmra.mrb[0].mxu0 %v507
      %v608 = vpop.f32.mrb[0].mxu0
      %v609 = vadd.f32 %v491, %v608
      %v610 = vpop.f32.mrb[0].mxu0
      %611 = vmatprep.mubr.f32.mxu0 0.0
      %612 = vmatmul.mubr.f32.gmra.mrb[0].mxu0 %v510
      %v613 = vpop.f32.mrb[0].mxu0
      %v614 = vadd.f32 %v491, %v613
      %v615 = vpop.f32.mrb[0].mxu0
      %616 = vmatprep.mubr.f32.mxu0 0.0
      %617 = vmatmul.mubr.f32.gmra.mrb[0].mxu0 %v513
      %v618 = vpop.f32.mrb[0].mxu0
      %v619 = vadd.f32 %v491, %v618
      %v620 = vpop.f32.mrb[0].mxu0
      %621 = vmatprep.mubr.f32.mxu0 0.0
      %622 = vmatmul.mubr.f32.gmra.mrb[0].mxu0 %v516
      %v623 = vpop.f32.mrb[0].mxu0
      %v624 = vadd.f32 %v491, %v623
      %v625 = vpop.f32.mrb[0].mxu0
      %626 = vdwg.mxu0
      %v627 = vld [vmem:[%s372] sm:$0xff]
      %v629 = vcombine.high %v627, %v627
      %v631 = vunpack.c.l.s4 1966171168
      %v632 = vunpack.c.0.s8 %v631
      %v633 = vlaneseq
      %v634 = vshrl.u32 %v633, 7
      %v635 = vsub.s32 %v632, %v634
      %v636 = vrot.slane %v627, %v635
      %v638 = vunpack.c.l.s4 1966171168
      %v639 = vunpack.c.0.s8 %v638
      %v640 = vlaneseq
      %v641 = vshrl.u32 %v640, 7
      %v642 = vsub.s32 %v639, %v641
      %v643 = vrot.slane %v629, %v642
      %v644 = vcombine.high %v636, %v636
      %v645 = vcombine.high %v643, %v643
      %v647 = vunpack.c.l.s4 1966171168
      %v648 = vunpack.c.0.s8 %v647
      %v649 = vlaneseq
      %v650 = vshrl.u32 %v649, 7
      %v651 = vsub.s32 %v648, %v650
      %v652 = vrot.slane %v636, %v651
      %v654 = vunpack.c.l.s4 1966171168
      %v655 = vunpack.c.0.s8 %v654
      %v656 = vlaneseq
      %v657 = vshrl.u32 %v656, 7
      %v658 = vsub.s32 %v655, %v657
      %v659 = vrot.slane %v643, %v658
      %v661 = vunpack.c.l.s4 1966171168
      %v662 = vunpack.c.0.s8 %v661
      %v663 = vlaneseq
      %v664 = vshrl.u32 %v663, 7
      %v665 = vsub.s32 %v662, %v664
      %v666 = vrot.slane %v644, %v665
      %v668 = vunpack.c.l.s4 1966171168
      %v669 = vunpack.c.0.s8 %v668
      %v670 = vlaneseq
      %v671 = vshrl.u32 %v670, 7
      %v672 = vsub.s32 %v669, %v671
      %v673 = vrot.slane %v645, %v672
      %v674 = vcombine.high %v652, %v652
      %v675 = vcombine.high %v659, %v659
      %v676 = vcombine.high %v666, %v666
      %v677 = vcombine.high %v673, %v673
      %v678 = vld [vmem:[%s365] sm:$0xff]
      %v679 = vlaneseq
      %v680 = vshrl.u32 %v679, 7
      %v681 = vsub.s32 0, %v680
      %v682 = vrot.slane %v652, %v681
      %v683 = vlaneseq
      %v684 = vshrl.u32 %v683, 7
      %v685 = vsub.s32 0, %v684
      %v686 = vrot.slane %v666, %v685
      %v687 = vlaneseq
      %v688 = vshrl.u32 %v687, 7
      %v689 = vsub.s32 0, %v688
      %v690 = vrot.slane %v674, %v689
      %v691 = vlaneseq
      %v692 = vshrl.u32 %v691, 7
      %v693 = vsub.s32 0, %v692
      %v694 = vrot.slane %v676, %v693
      %v695 = vlaneseq
      %v696 = vshrl.u32 %v695, 7
      %v697 = vsub.s32 0, %v696
      %v698 = vrot.slane %v659, %v697
      %v699 = vlaneseq
      %v700 = vshrl.u32 %v699, 7
      %v701 = vsub.s32 0, %v700
      %v702 = vrot.slane %v673, %v701
      %v703 = vlaneseq
      %v704 = vshrl.u32 %v703, 7
      %v705 = vsub.s32 0, %v704
      %v706 = vrot.slane %v675, %v705
      %v707 = vlaneseq
      %v708 = vshrl.u32 %v707, 7
      %v709 = vsub.s32 0, %v708
      %v710 = vrot.slane %v677, %v709
      %v719 = vmul.f32 %v682, %v678
      %v720 = vmul.f32 %v686, %v678
      %v721 = vmul.f32 %v690, %v678
      %v722 = vmul.f32 %v694, %v678
      %v723 = vmul.f32 %v698, %v678
      %v724 = vmul.f32 %v702, %v678
      %v725 = vmul.f32 %v706, %v678
      %v726 = vmul.f32 %v710, %v678
      %728 = vset.pattern.permute.xlu0 0
      %729 = vperm.xlu0 %728, %v719
      %v730 = vpop.permute.xlu0 %729
      %733 = vset.pattern.permute.xlu0 0
      %734 = vperm.xlu0 %733, %v720
      %v735 = vpop.permute.xlu0 %734
      %738 = vset.pattern.permute.xlu0 0
      %739 = vperm.xlu0 %738, %v721
      %v740 = vpop.permute.xlu0 %739
      %743 = vset.pattern.permute.xlu0 0
      %744 = vperm.xlu0 %743, %v722
      %v745 = vpop.permute.xlu0 %744
      %748 = vset.pattern.permute.xlu0 0
      %749 = vperm.xlu0 %748, %v723
      %v750 = vpop.permute.xlu0 %749
      %753 = vset.pattern.permute.xlu0 0
      %754 = vperm.xlu0 %753, %v724
      %v755 = vpop.permute.xlu0 %754
      %758 = vset.pattern.permute.xlu0 0
      %759 = vperm.xlu0 %758, %v725
      %v760 = vpop.permute.xlu0 %759
      %763 = vset.pattern.permute.xlu0 0
      %764 = vperm.xlu0 %763, %v726
      %v765 = vpop.permute.xlu0 %764
      %v767 = vmul.f32 %v589, %v730
      %v768 = vmul.f32 %v594, %v735
      %v769 = vmul.f32 %v599, %v740
      %v770 = vmul.f32 %v604, %v745
      %v771 = vmul.f32 %v609, %v750
      %v772 = vmul.f32 %v614, %v755
      %v773 = vmul.f32 %v619, %v760
      %v774 = vmul.f32 %v624, %v765
      %v775 = vld [vmem:[%s6] sm:$0x1]
      %vm776 = vcmask 261120
      %v777 = vsel %vm776, %v767, 0.0
      %v778 = vsel %vm776, %v768, 0.0
      %v779 = vadd.f32 %v777, %v778
      %v780 = vsel %vm776, %v769, 0.0
      %v781 = vadd.f32 %v779, %v780
      %v782 = vsel %vm776, %v770, 0.0
      %v783 = vadd.f32 %v781, %v782
      %v784 = vsel %vm776, %v771, 0.0
      %v785 = vadd.f32 %v783, %v784
      %v786 = vsel %vm776, %v772, 0.0
      %v787 = vadd.f32 %v785, %v786
      %v788 = vsel %vm776, %v773, 0.0
      %v789 = vadd.f32 %v787, %v788
      %v790 = vsel %vm776, %v774, 0.0
      %v791 = vadd.f32 %v789, %v790
      %v792 = vrot.slane %v791, 4
      %v793 = vadd.f32 %v791, %v792
      %v794 = vrot.slane %v793, 2
      %v795 = vadd.f32 %v793, %v794
      %v796 = vrot.slane %v795, 1
      %v797 = vadd.f32 %v795, %v796
      %v798 = vadd.f32 %v775, %v797
      %vm799 = vcmask 253952
      %800 = vst.msk [vmem:[%s6] sm:$0x1] %vm799, %v798
      %v801 = vld [vmem:[%s7] sm:$0x1]
      %v802 = vmul.f32 %v767, %v767
      %v803 = vmul.f32 %v768, %v768
      %v804 = vmul.f32 %v769, %v769
      %v805 = vmul.f32 %v770, %v770
      %v806 = vmul.f32 %v771, %v771
      %v807 = vmul.f32 %v772, %v772
      %v808 = vmul.f32 %v773, %v773
      %v809 = vmul.f32 %v774, %v774
      %v810 = vsel %vm776, %v802, 0.0
      %v811 = vsel %vm776, %v803, 0.0
      %v812 = vadd.f32 %v810, %v811
      %v813 = vsel %vm776, %v804, 0.0
      %v814 = vadd.f32 %v812, %v813
      %v815 = vsel %vm776, %v805, 0.0
      %v816 = vadd.f32 %v814, %v815
      %v817 = vsel %vm776, %v806, 0.0
      %v818 = vadd.f32 %v816, %v817
      %v819 = vsel %vm776, %v807, 0.0
      %v820 = vadd.f32 %v818, %v819
      %v821 = vsel %vm776, %v808, 0.0
      %v822 = vadd.f32 %v820, %v821
      %v823 = vsel %vm776, %v809, 0.0
      %v824 = vadd.f32 %v822, %v823
      %v825 = vrot.slane %v824, 4
      %v826 = vadd.f32 %v824, %v825
      %v827 = vrot.slane %v826, 2
      %v828 = vadd.f32 %v826, %v827
      %v829 = vrot.slane %v828, 1
      %v830 = vadd.f32 %v828, %v829
      %v831 = vadd.f32 %v801, %v830
      %832 = vst.msk [vmem:[%s7] sm:$0x1] %vm799, %v831
      // Predicated region
      $region49: #{lieresnet_forward.29} parent=43 // pred_check
        %p833 = pneg %p205
      $region50: #{lieresnet_forward.29} parent=43 // pred_check_branch
        %835 = sbr.rel (%p833) target = $region52
      $region51: #{lieresnet_forward.29} parent=43 // pred_region
        _
      $region52: #{lieresnet_forward.29} parent=43 // pred_fallthru
        _
      // Predicated region
      $region53: #{lieresnet_forward.29} parent=43 // pred_check
        %p836 = pneg %p226
      $region54: #{lieresnet_forward.29} parent=43 // pred_check_branch
        %838 = sbr.rel (%p836) target = $region56
      $region55: #{lieresnet_forward.29} parent=43 // pred_region
        _
      $region56: #{lieresnet_forward.29} parent=43 // pred_fallthru
        _
      // Predicated region
      $region57: #{lieresnet_forward.29} parent=43 // pred_check
        %p839 = pneg %p205
      $region58: #{lieresnet_forward.29} parent=43 // pred_check_branch
        %841 = sbr.rel (%p839) target = $region60
      $region59: #{lieresnet_forward.29} parent=43 // pred_region
        _
      $region60: #{lieresnet_forward.29} parent=43 // pred_fallthru
        _
      // Predicated region
      $region61: #{lieresnet_forward.29} parent=43 // pred_check
        %p842 = pneg %p226
      $region62: #{lieresnet_forward.29} parent=43 // pred_check_branch
        %844 = sbr.rel (%p842) target = $region64
      $region63: #{lieresnet_forward.29} parent=43 // pred_region
        _
      $region64: #{lieresnet_forward.29} parent=43 // pred_fallthru
        _
    $region44: #{lieresnet_forward.29} parent=5 // pred_fallthru
      _
    %p845 = scmp.le.s32.totalorder 2, %s14
    // Predicated region
    $region65: #{lieresnet_forward.29} parent=5 // pred_check
      %p846 = pneg %p845
    $region66: #{lieresnet_forward.29} parent=5 // pred_check_branch
      %848 = sbr.rel (%p846) target = $region68
    $region67: #{lieresnet_forward.29} parent=5 // pred_region
      %s849 = ssub.s32 %s14, 2
    $region68: #{lieresnet_forward.29} parent=5 // pred_fallthru
      _
  $region6: #{lieresnet_forward.29} parent=0 // loop_footer
    %s18 = sadd.s32 1, %s14
  $region7: #{lieresnet_forward.29} parent=0 // loop_footer_branch
    %13 = sbr.rel target = $region3
  $region8: #{lieresnet_forward.29} parent=0 // loop_exit
    _

// kernel: lieresnet_forward.24
$region0: #{lieresnet_forward.24}
  #allocation0 [shape = 'u32[]', space=smem, size = 0x4, offset = 0x4, fixed_abs, tag = 'smem constant byte address 0x4 - core index']
  #allocation1 [shape = 'u32[144,128]{1,0:T(1,128)}', space=vmem, size = 0x12000, scoped, tag = 'internal scratch']
  %s0 = inlined_call_operand.vmem [shape: f32[16,4], index: 0, kind: input, shape index: {}]
  %s1 = inlined_call_operand.vmem [shape: f32[4,32], index: 1, kind: input, shape index: {}]
  %s2 = inlined_call_operand.vmem [shape: f32[1,32], index: 2, kind: input, shape index: {}]
  %s3 = inlined_call_operand.vmem [shape: f32[16,32], index: 3, kind: output, shape index: {}]
  %s4 = sld [smem:[#allocation0]]
  $region22: #{lieresnet_forward.24} parent=0
    _
  %s6 = ssub.s32 1, %s4
  %s7 = scalar_select 0, %s6, %s4
  // Predicated region
  $region2: #{lieresnet_forward.24} parent=0 // pred_check
    _
  $region3: #{lieresnet_forward.24} parent=0 // pred_check_branch
    %9 = sbr.rel (0) target = $region5
  $region4: #{lieresnet_forward.24} parent=0 // pred_region
    _
  $region5: #{lieresnet_forward.24} parent=0 // pred_fallthru
    _
  // Predicated region
  $region6: #{lieresnet_forward.24} parent=0 // pred_check
    _
  $region7: #{lieresnet_forward.24} parent=0 // pred_check_branch
    %11 = sbr.rel (0) target = $region9
  $region8: #{lieresnet_forward.24} parent=0 // pred_region
    _
  $region9: #{lieresnet_forward.24} parent=0 // pred_fallthru
    _
  // Predicated region
  $region10: #{lieresnet_forward.24} parent=0 // pred_check
    _
  $region11: #{lieresnet_forward.24} parent=0 // pred_check_branch
    %13 = sbr.rel (0) target = $region13
  $region12: #{lieresnet_forward.24} parent=0 // pred_region
    _
  $region13: #{lieresnet_forward.24} parent=0 // pred_fallthru
    _
  %v14 = vld [vmem:[%s0] sm:$0xff]
  %v15 = vld [vmem:[%s0 + $0x8] sm:$0xff]
  %v16 = vld [vmem:[%s1] sm:$0xf]
  %v17 = vld [vmem:[%s2] sm:$0x1]
  %v19 = vlaneseq
  %v20 = vshrl.u32 %v19, 7
  %v21 = vsub.s32 0, %v20
  %v22 = vrot.slane %v17, %v21
  %vm24 = vcmask 31744
  %v26 = vsel %vm24, %v14, 0
  %v29 = vsel %vm24, %v15, 0
  %vm31 = vcmask 1043456
  %v33 = vsel %vm31, %v16, 0
  %35 = vmatprep.subr.mxu0 0.0
  %36 = vmatpush1.msra.mxu0 %v33
  %37 = vmatprep.subr.mxu0 0.0
  %38 = vmatpush1.msra.mxu0 0.0
  %39 = vmatprep.subr.mxu0 0.0
  %40 = vmatpush1.msra.mxu0 0.0
  %41 = vmatprep.subr.mxu0 0.0
  %42 = vmatpush1.msra.mxu0 0.0
  %43 = vmatprep.subr.mxu0 0.0
  %44 = vmatpush1.msra.mxu0 0.0
  %45 = vmatprep.subr.mxu0 0.0
  %46 = vmatpush1.msra.mxu0 0.0
  %47 = vmatprep.subr.mxu0 0.0
  %48 = vmatpush1.msra.mxu0 0.0
  %49 = vmatprep.subr.mxu0 0.0
  %50 = vmatpush1.msra.mxu0 0.0
  %51 = vmatprep.subr.mxu0 0.0
  %52 = vmatpush1.msra.mxu0 0.0
  %53 = vmatprep.subr.mxu0 0.0
  %54 = vmatpush1.msra.mxu0 0.0
  %55 = vmatprep.subr.mxu0 0.0
  %56 = vmatpush1.msra.mxu0 0.0
  %57 = vmatprep.subr.mxu0 0.0
  %58 = vmatpush1.msra.mxu0 0.0
  %59 = vmatprep.subr.mxu0 0.0
  %60 = vmatpush1.msra.mxu0 0.0
  %61 = vmatprep.subr.mxu0 0.0
  %62 = vmatpush1.msra.mxu0 0.0
  %63 = vmatprep.subr.mxu0 0.0
  %64 = vmatpush1.msra.mxu0 0.0
  %65 = vmatprep.subr.mxu0 0.0
  %66 = vmatpush1.msra.mxu0 0.0
  %67 = vmatprep.subr.mxu0 0.0
  %68 = vmatpush1.msra.mxu0 0.0
  %69 = vmatprep.subr.mxu0 0.0
  %70 = vmatpush1.msra.mxu0 0.0
  %71 = vmatprep.subr.mxu0 0.0
  %72 = vmatpush1.msra.mxu0 0.0
  %73 = vmatprep.subr.mxu0 0.0
  %74 = vmatpush1.msra.mxu0 0.0
  %75 = vmatprep.subr.mxu0 0.0
  %76 = vmatpush1.msra.mxu0 0.0
  %77 = vmatprep.subr.mxu0 0.0
  %78 = vmatpush1.msra.mxu0 0.0
  %79 = vmatprep.subr.mxu0 0.0
  %80 = vmatpush1.msra.mxu0 0.0
  %81 = vmatprep.subr.mxu0 0.0
  %82 = vmatpush1.msra.mxu0 0.0
  %83 = vmatprep.subr.mxu0 0.0
  %84 = vmatpush1.msra.mxu0 0.0
  %85 = vmatprep.subr.mxu0 0.0
  %86 = vmatpush1.msra.mxu0 0.0
  %87 = vmatprep.subr.mxu0 0.0
  %88 = vmatpush1.msra.mxu0 0.0
  %89 = vmatprep.subr.mxu0 0.0
  %90 = vmatpush1.msra.mxu0 0.0
  %91 = vmatprep.subr.mxu0 0.0
  %92 = vmatpush1.msra.mxu0 0.0
  %93 = vmatprep.subr.mxu0 0.0
  %94 = vmatpush1.msra.mxu0 0.0
  %95 = vmatprep.subr.mxu0 0.0
  %96 = vmatpush1.msra.mxu0 0.0
  %97 = vmatprep.subr.mxu0 0.0
  %98 = vmatpush1.msra.mxu0 0.0
  %99 = vmatprep.mubr.f32.mxu0 0.0
  %100 = vmatmul.mubr.f32.gmra.mrb[0].mxu0 %v26
  %v101 = vpop.f32.mrb[0].mxu0
  %v102 = vadd.f32 %v22, %v101
  %v103 = vpop.f32.mrb[0].mxu0
  %104 = vmatprep.mubr.f32.mxu0 0.0
  %105 = vmatmul.mubr.f32.gmra.mrb[0].mxu0 %v29
  %v106 = vpop.f32.mrb[0].mxu0
  %v107 = vadd.f32 %v22, %v106
  %v108 = vpop.f32.mrb[0].mxu0
  %109 = vdwg.mxu0
  %vm110 = vcmask 261120
  %111 = vst.msk [vmem:[%s3] sm:$0xff] %vm110, %v102
  %112 = vst.msk [vmem:[%s3 + $0x8] sm:$0xff] %vm110, %v107
  // Predicated region
  $region14: #{lieresnet_forward.24} parent=0 // pred_check
    _
  $region15: #{lieresnet_forward.24} parent=0 // pred_check_branch
    %114 = sbr.rel (0) target = $region17
  $region16: #{lieresnet_forward.24} parent=0 // pred_region
    _
  $region17: #{lieresnet_forward.24} parent=0 // pred_fallthru
    _
  // Predicated region
  $region18: #{lieresnet_forward.24} parent=0 // pred_check
    _
  $region19: #{lieresnet_forward.24} parent=0 // pred_check_branch
    %116 = sbr.rel (0) target = $region21
  $region20: #{lieresnet_forward.24} parent=0 // pred_region
    _
  $region21: #{lieresnet_forward.24} parent=0 // pred_fallthru
    _

// kernel: lieresnet_forward.30
$region0: #{lieresnet_forward.30}
  #allocation0 [shape = 'u32[]', space=smem, size = 0x4, offset = 0x4, fixed_abs, tag = 'smem constant byte address 0x4 - core index']
  #allocation1 [shape = 'u32[144,128]{1,0:T(1,128)}', space=vmem, size = 0x12000, scoped, tag = 'internal scratch']
  %s0 = inlined_call_operand.vmem [shape: f32[2,8,3], index: 0, kind: input, shape index: {}, may-alias: {0,1}]
  %s1 = inlined_call_operand.vmem [shape: f32[2,8,3], index: 1, kind: input, shape index: {}, may-alias: {0,1}]
  %s2 = inlined_call_operand.vmem [shape: f32[2,8,1], index: 2, kind: input, shape index: {}]
  %s3 = inlined_call_operand.vmem [shape: f32[2,8,1], index: 3, kind: input, shape index: {}]
  %s4 = inlined_call_operand.vmem [shape: f32[3,32], index: 4, kind: input, shape index: {}]
  %s5 = inlined_call_operand.vmem [shape: f32[1,32], index: 5, kind: input, shape index: {}]
  %s6 = inlined_call_operand.vmem [shape: f32[1,32], index: 6, kind: input, shape index: {}]
  %s7 = inlined_call_operand.vmem [shape: f32[1,32], index: 7, kind: input, shape index: {}]
  %s8 = inlined_call_operand.vmem [shape: f32[32,32], index: 8, kind: input, shape index: {}]
  %s9 = inlined_call_operand.vmem [shape: f32[1,32], index: 9, kind: input, shape index: {}]
  %s10 = inlined_call_operand.vmem [shape: f32[1,32], index: 10, kind: output, shape index: {0}]
  %s11 = inlined_call_operand.vmem [shape: f32[1,32], index: 11, kind: output, shape index: {1}]
  %12 = xla_tuple %s10, %s11
  %s13 = sld [smem:[#allocation0]]
  $region85: #{lieresnet_forward.30} parent=0
    _
  %s15 = ssub.s32 1, %s13
  %s16 = scalar_select 0, %s15, %s13
  loop: start=0, step=1, limit=4
  $region2: #{lieresnet_forward.30} parent=0 // loop_pre_header
    _
  $region3: #{lieresnet_forward.30} parent=0 // loop_header
    %s18 = sphi 0, %s22
    %p19 = scmp.ge.s32.totalorder %s18, 4
    %s25 = sphi 0, %s44
    %s26 = sphi 0, %s40
    %s27 = sphi 0, %s36
    %s28 = sphi 0, %s25
    %s29 = sphi 0, %s26
    %s30 = sphi 0, %s27
    %s31 = sphi 0, %s28
    %s32 = sphi 0, %s29
    %s33 = sphi 0, %s30
    %s49 = sphi 0, %s51
    %s52 = sphi 0, %s49
    %s53 = sphi 0, %s52
    %s69 = sphi 0, %s53
    %s77 = sphi 0, %s79
    %s80 = sphi 0, %s77
    %s81 = sphi 0, %s80
    %s97 = sphi 0, %s81
    %s105 = sphi 0, %s107
    %s108 = sphi 0, %s105
    %s109 = sphi 0, %s108
    %s125 = sphi 0, %s109
    %s133 = sphi 0, %s135
    %s136 = sphi 0, %s133
    %s137 = sphi 0, %s136
    %s153 = sphi 0, %s137
    %s157 = sphi 0, %s157
    %s159 = sphi 0, %s157
    %s160 = sphi 0, %s159
    %s174 = sphi 0, %s160
    %s178 = sphi 0, %s178
    %s180 = sphi 0, %s178
    %s181 = sphi 0, %s180
    %s195 = sphi 0, %s181
    %s199 = sphi 0, %s199
    %s201 = sphi 0, %s199
    %s202 = sphi 0, %s201
    %s216 = sphi 0, %s202
    %s220 = sphi 0, %s220
    %s222 = sphi 0, %s220
    %s223 = sphi 0, %s222
    %s237 = sphi 0, %s223
    %s241 = sphi 0, %s241
    %s243 = sphi 0, %s241
    %s244 = sphi 0, %s243
    %s258 = sphi 0, %s244
    %s262 = sphi 0, %s262
    %s264 = sphi 0, %s262
    %s265 = sphi 0, %s264
    %s279 = sphi 0, %s265
    %s283 = sphi 0, %s283
    %s285 = sphi 0, %s283
    %s286 = sphi 0, %s285
    %s300 = sphi 0, %s286
    %s304 = sphi 0, %s304
    %s306 = sphi 0, %s304
    %s307 = sphi 0, %s306
    %s321 = sphi 0, %s307
  $region4: #{lieresnet_forward.30} parent=0 // loop_header_branch
    %21 = sbr.rel (%p19) target = $region8
  $region5: #{lieresnet_forward.30} parent=0 // loop_body
    %s23 = ssub.s32 %s18, 1
    %s24 = ssub.s32 %s18, 2
    %s34 = sadd.s32 1, %s27
    %p35 = scmp.ge.s32.totalorder %s34, 1
    %s36 = scalar_select %p35, 0, %s34
    %s37 = sadd.s32 1, %s26
    %s38 = scalar_select %p35, %s37, %s26
    %p39 = scmp.ge.s32.totalorder %s38, 1
    %s40 = scalar_select %p39, 0, %s38
    %s41 = sadd.s32 1, %s25
    %s42 = scalar_select %p39, %s41, %s25
    %p43 = scmp.ge.s32.totalorder %s42, 2
    %s44 = scalar_select %p43, 0, %s42
    %s45 = ssub.s32 %s25, %s44
    %s46 = ssub.s32 %s26, %s40
    %s47 = sor.u32 %s45, %s46
    %p48 = scmp.eq.s32.totalorder %s47, 0
    %s50 = sadd.s32 %s49, 1
    %s51 = scalar_select %p48, %s49, %s50
    %p54 = pneg %p48
    %p55 = scmp.eq.s32.totalorder %s18, 1
    %p56 = por %p54, %p55
    %p57 = scmp.ne.s32.totalorder %s49, %s52
    %p58 = scmp.eq.s32.totalorder %s18, 0
    %p59 = por %p57, %p58
    %p60 = scmp.ne.s32.totalorder %s49, %s52
    %p61 = scmp.eq.s32.totalorder %s23, 1
    %p62 = por %p60, %p61
    %p63 = scmp.ne.s32.totalorder %s52, %s53
    %p64 = scmp.eq.s32.totalorder %s23, 0
    %p65 = por %p63, %p64
    %p66 = scmp.ne.s32.totalorder %s52, %s53
    %p67 = scmp.eq.s32.totalorder %s24, 1
    %p68 = por %p66, %p67
    %p70 = scmp.ne.s32.totalorder %s53, %s69
    %p71 = scmp.eq.s32.totalorder %s24, 0
    %p72 = por %p70, %p71
    %s73 = ssub.s32 %s25, %s44
    %s74 = ssub.s32 %s27, %s36
    %s75 = sor.u32 %s73, %s74
    %p76 = scmp.eq.s32.totalorder %s75, 0
    %s78 = sadd.s32 %s77, 1
    %s79 = scalar_select %p76, %s77, %s78
    %p82 = pneg %p76
    %p83 = scmp.eq.s32.totalorder %s18, 1
    %p84 = por %p82, %p83
    %p85 = scmp.ne.s32.totalorder %s77, %s80
    %p86 = scmp.eq.s32.totalorder %s18, 0
    %p87 = por %p85, %p86
    %p88 = scmp.ne.s32.totalorder %s77, %s80
    %p89 = scmp.eq.s32.totalorder %s23, 1
    %p90 = por %p88, %p89
    %p91 = scmp.ne.s32.totalorder %s80, %s81
    %p92 = scmp.eq.s32.totalorder %s23, 0
    %p93 = por %p91, %p92
    %p94 = scmp.ne.s32.totalorder %s80, %s81
    %p95 = scmp.eq.s32.totalorder %s24, 1
    %p96 = por %p94, %p95
    %p98 = scmp.ne.s32.totalorder %s81, %s97
    %p99 = scmp.eq.s32.totalorder %s24, 0
    %p100 = por %p98, %p99
    %s101 = ssub.s32 %s25, %s44
    %s102 = ssub.s32 %s27, %s36
    %s103 = sor.u32 %s101, %s102
    %p104 = scmp.eq.s32.totalorder %s103, 0
    %s106 = sadd.s32 %s105, 1
    %s107 = scalar_select %p104, %s105, %s106
    %p110 = pneg %p104
    %p111 = scmp.eq.s32.totalorder %s18, 1
    %p112 = por %p110, %p111
    %p113 = scmp.ne.s32.totalorder %s105, %s108
    %p114 = scmp.eq.s32.totalorder %s18, 0
    %p115 = por %p113, %p114
    %p116 = scmp.ne.s32.totalorder %s105, %s108
    %p117 = scmp.eq.s32.totalorder %s23, 1
    %p118 = por %p116, %p117
    %p119 = scmp.ne.s32.totalorder %s108, %s109
    %p120 = scmp.eq.s32.totalorder %s23, 0
    %p121 = por %p119, %p120
    %p122 = scmp.ne.s32.totalorder %s108, %s109
    %p123 = scmp.eq.s32.totalorder %s24, 1
    %p124 = por %p122, %p123
    %p126 = scmp.ne.s32.totalorder %s109, %s125
    %p127 = scmp.eq.s32.totalorder %s24, 0
    %p128 = por %p126, %p127
    %s129 = ssub.s32 %s25, %s44
    %s130 = ssub.s32 %s26, %s40
    %s131 = sor.u32 %s129, %s130
    %p132 = scmp.eq.s32.totalorder %s131, 0
    %s134 = sadd.s32 %s133, 1
    %s135 = scalar_select %p132, %s133, %s134
    %p138 = pneg %p132
    %p139 = scmp.eq.s32.totalorder %s18, 1
    %p140 = por %p138, %p139
    %p141 = scmp.ne.s32.totalorder %s133, %s136
    %p142 = scmp.eq.s32.totalorder %s18, 0
    %p143 = por %p141, %p142
    %p144 = scmp.ne.s32.totalorder %s133, %s136
    %p145 = scmp.eq.s32.totalorder %s23, 1
    %p146 = por %p144, %p145
    %p147 = scmp.ne.s32.totalorder %s136, %s137
    %p148 = scmp.eq.s32.totalorder %s23, 0
    %p149 = por %p147, %p148
    %p150 = scmp.ne.s32.totalorder %s136, %s137
    %p151 = scmp.eq.s32.totalorder %s24, 1
    %p152 = por %p150, %p151
    %p154 = scmp.ne.s32.totalorder %s137, %s153
    %p155 = scmp.eq.s32.totalorder %s24, 0
    %p156 = por %p154, %p155
    %s158 = sadd.s32 %s157, 1
    %p161 = scmp.eq.s32.totalorder %s18, 1
    %p162 = scmp.ne.s32.totalorder %s157, %s159
    %p163 = scmp.eq.s32.totalorder %s18, 0
    %p164 = por %p162, %p163
    %p165 = scmp.ne.s32.totalorder %s157, %s159
    %p166 = scmp.eq.s32.totalorder %s23, 1
    %p167 = por %p165, %p166
    %p168 = scmp.ne.s32.totalorder %s159, %s160
    %p169 = scmp.eq.s32.totalorder %s23, 0
    %p170 = por %p168, %p169
    %p171 = scmp.ne.s32.totalorder %s159, %s160
    %p172 = scmp.eq.s32.totalorder %s24, 1
    %p173 = por %p171, %p172
    %p175 = scmp.ne.s32.totalorder %s160, %s174
    %p176 = scmp.eq.s32.totalorder %s24, 0
    %p177 = por %p175, %p176
    %s179 = sadd.s32 %s178, 1
    %p182 = scmp.eq.s32.totalorder %s18, 1
    %p183 = scmp.ne.s32.totalorder %s178, %s180
    %p184 = scmp.eq.s32.totalorder %s18, 0
    %p185 = por %p183, %p184
    %p186 = scmp.ne.s32.totalorder %s178, %s180
    %p187 = scmp.eq.s32.totalorder %s23, 1
    %p188 = por %p186, %p187
    %p189 = scmp.ne.s32.totalorder %s180, %s181
    %p190 = scmp.eq.s32.totalorder %s23, 0
    %p191 = por %p189, %p190
    %p192 = scmp.ne.s32.totalorder %s180, %s181
    %p193 = scmp.eq.s32.totalorder %s24, 1
    %p194 = por %p192, %p193
    %p196 = scmp.ne.s32.totalorder %s181, %s195
    %p197 = scmp.eq.s32.totalorder %s24, 0
    %p198 = por %p196, %p197
    %s200 = sadd.s32 %s199, 1
    %p203 = scmp.eq.s32.totalorder %s18, 1
    %p204 = scmp.ne.s32.totalorder %s199, %s201
    %p205 = scmp.eq.s32.totalorder %s18, 0
    %p206 = por %p204, %p205
    %p207 = scmp.ne.s32.totalorder %s199, %s201
    %p208 = scmp.eq.s32.totalorder %s23, 1
    %p209 = por %p207, %p208
    %p210 = scmp.ne.s32.totalorder %s201, %s202
    %p211 = scmp.eq.s32.totalorder %s23, 0
    %p212 = por %p210, %p211
    %p213 = scmp.ne.s32.totalorder %s201, %s202
    %p214 = scmp.eq.s32.totalorder %s24, 1
    %p215 = por %p213, %p214
    %p217 = scmp.ne.s32.totalorder %s202, %s216
    %p218 = scmp.eq.s32.totalorder %s24, 0
    %p219 = por %p217, %p218
    %s221 = sadd.s32 %s220, 1
    %p224 = scmp.eq.s32.totalorder %s18, 1
    %p225 = scmp.ne.s32.totalorder %s220, %s222
    %p226 = scmp.eq.s32.totalorder %s18, 0
    %p227 = por %p225, %p226
    %p228 = scmp.ne.s32.totalorder %s220, %s222
    %p229 = scmp.eq.s32.totalorder %s23, 1
    %p230 = por %p228, %p229
    %p231 = scmp.ne.s32.totalorder %s222, %s223
    %p232 = scmp.eq.s32.totalorder %s23, 0
    %p233 = por %p231, %p232
    %p234 = scmp.ne.s32.totalorder %s222, %s223
    %p235 = scmp.eq.s32.totalorder %s24, 1
    %p236 = por %p234, %p235
    %p238 = scmp.ne.s32.totalorder %s223, %s237
    %p239 = scmp.eq.s32.totalorder %s24, 0
    %p240 = por %p238, %p239
    %s242 = sadd.s32 %s241, 1
    %p245 = scmp.eq.s32.totalorder %s18, 1
    %p246 = scmp.ne.s32.totalorder %s241, %s243
    %p247 = scmp.eq.s32.totalorder %s18, 0
    %p248 = por %p246, %p247
    %p249 = scmp.ne.s32.totalorder %s241, %s243
    %p250 = scmp.eq.s32.totalorder %s23, 1
    %p251 = por %p249, %p250
    %p252 = scmp.ne.s32.totalorder %s243, %s244
    %p253 = scmp.eq.s32.totalorder %s23, 0
    %p254 = por %p252, %p253
    %p255 = scmp.ne.s32.totalorder %s243, %s244
    %p256 = scmp.eq.s32.totalorder %s24, 1
    %p257 = por %p255, %p256
    %p259 = scmp.ne.s32.totalorder %s244, %s258
    %p260 = scmp.eq.s32.totalorder %s24, 0
    %p261 = por %p259, %p260
    %s263 = sadd.s32 %s262, 1
    %p266 = scmp.eq.s32.totalorder %s18, 1
    %p267 = scmp.ne.s32.totalorder %s262, %s264
    %p268 = scmp.eq.s32.totalorder %s18, 0
    %p269 = por %p267, %p268
    %p270 = scmp.ne.s32.totalorder %s262, %s264
    %p271 = scmp.eq.s32.totalorder %s23, 1
    %p272 = por %p270, %p271
    %p273 = scmp.ne.s32.totalorder %s264, %s265
    %p274 = scmp.eq.s32.totalorder %s23, 0
    %p275 = por %p273, %p274
    %p276 = scmp.ne.s32.totalorder %s264, %s265
    %p277 = scmp.eq.s32.totalorder %s24, 1
    %p278 = por %p276, %p277
    %p280 = scmp.ne.s32.totalorder %s265, %s279
    %p281 = scmp.eq.s32.totalorder %s24, 0
    %p282 = por %p280, %p281
    %s284 = sadd.s32 %s283, 1
    %p287 = scmp.eq.s32.totalorder %s18, 1
    %p288 = scmp.ne.s32.totalorder %s283, %s285
    %p289 = scmp.eq.s32.totalorder %s18, 0
    %p290 = por %p288, %p289
    %p291 = scmp.ne.s32.totalorder %s283, %s285
    %p292 = scmp.eq.s32.totalorder %s23, 1
    %p293 = por %p291, %p292
    %p294 = scmp.ne.s32.totalorder %s285, %s286
    %p295 = scmp.eq.s32.totalorder %s23, 0
    %p296 = por %p294, %p295
    %p297 = scmp.ne.s32.totalorder %s285, %s286
    %p298 = scmp.eq.s32.totalorder %s24, 1
    %p299 = por %p297, %p298
    %p301 = scmp.ne.s32.totalorder %s286, %s300
    %p302 = scmp.eq.s32.totalorder %s24, 0
    %p303 = por %p301, %p302
    %s305 = sadd.s32 %s304, 1
    %p308 = scmp.eq.s32.totalorder %s18, 1
    %p309 = scmp.ne.s32.totalorder %s304, %s306
    %p310 = scmp.eq.s32.totalorder %s18, 0
    %p311 = por %p309, %p310
    %p312 = scmp.ne.s32.totalorder %s304, %s306
    %p313 = scmp.eq.s32.totalorder %s23, 1
    %p314 = por %p312, %p313
    %p315 = scmp.ne.s32.totalorder %s306, %s307
    %p316 = scmp.eq.s32.totalorder %s23, 0
    %p317 = por %p315, %p316
    %p318 = scmp.ne.s32.totalorder %s306, %s307
    %p319 = scmp.eq.s32.totalorder %s24, 1
    %p320 = por %p318, %p319
    %p322 = scmp.ne.s32.totalorder %s307, %s321
    %p323 = scmp.eq.s32.totalorder %s24, 0
    %p324 = por %p322, %p323
    %p325 = scmp.le.s32.totalorder 1, %s18
    %p326 = scmp.lt.s32.totalorder %s18, 3
    %p327 = pnand %p325, %p326
    %p328 = pneg %p327
    // Predicated region
    $region9: #{lieresnet_forward.30} parent=5 // pred_check
      _
    $region10: #{lieresnet_forward.30} parent=5 // pred_check_branch
      %330 = sbr.rel (%p327) target = $region12
    $region11: #{lieresnet_forward.30} parent=5 // pred_region
      %s331 = ssub.s32 %s18, 1
      // Predicated region
      $region13: #{lieresnet_forward.30} parent=11 // pred_check
        %p332 = pneg %p170
      $region14: #{lieresnet_forward.30} parent=11 // pred_check_branch
        %334 = sbr.rel (%p332) target = $region16
      $region15: #{lieresnet_forward.30} parent=11 // pred_region
        _
      $region16: #{lieresnet_forward.30} parent=11 // pred_fallthru
        _
      // Predicated region
      $region17: #{lieresnet_forward.30} parent=11 // pred_check
        %p335 = pneg %p191
      $region18: #{lieresnet_forward.30} parent=11 // pred_check_branch
        %337 = sbr.rel (%p335) target = $region20
      $region19: #{lieresnet_forward.30} parent=11 // pred_region
        _
      $region20: #{lieresnet_forward.30} parent=11 // pred_fallthru
        _
      // Predicated region
      $region21: #{lieresnet_forward.30} parent=11 // pred_check
        %p338 = pneg %p212
      $region22: #{lieresnet_forward.30} parent=11 // pred_check_branch
        %340 = sbr.rel (%p338) target = $region24
      $region23: #{lieresnet_forward.30} parent=11 // pred_region
        _
      $region24: #{lieresnet_forward.30} parent=11 // pred_fallthru
        _
      // Predicated region
      $region25: #{lieresnet_forward.30} parent=11 // pred_check
        %p341 = pneg %p233
      $region26: #{lieresnet_forward.30} parent=11 // pred_check_branch
        %343 = sbr.rel (%p341) target = $region28
      $region27: #{lieresnet_forward.30} parent=11 // pred_region
        _
      $region28: #{lieresnet_forward.30} parent=11 // pred_fallthru
        _
      // Predicated region
      $region29: #{lieresnet_forward.30} parent=11 // pred_check
        %p344 = pneg %p254
      $region30: #{lieresnet_forward.30} parent=11 // pred_check_branch
        %346 = sbr.rel (%p344) target = $region32
      $region31: #{lieresnet_forward.30} parent=11 // pred_region
        _
      $region32: #{lieresnet_forward.30} parent=11 // pred_fallthru
        _
      // Predicated region
      $region33: #{lieresnet_forward.30} parent=11 // pred_check
        %p347 = pneg %p275
      $region34: #{lieresnet_forward.30} parent=11 // pred_check_branch
        %349 = sbr.rel (%p347) target = $region36
      $region35: #{lieresnet_forward.30} parent=11 // pred_region
        _
      $region36: #{lieresnet_forward.30} parent=11 // pred_fallthru
        _
    $region12: #{lieresnet_forward.30} parent=5 // pred_fallthru
      _
    %p350 = scmp.lt.s32.totalorder %s18, 2
    // Predicated region
    $region37: #{lieresnet_forward.30} parent=5 // pred_check
      %p351 = pneg %p350
    $region38: #{lieresnet_forward.30} parent=5 // pred_check_branch
      %353 = sbr.rel (%p351) target = $region40
    $region39: #{lieresnet_forward.30} parent=5 // pred_region
      // Predicated region
      $region41: #{lieresnet_forward.30} parent=39 // pred_check
        %p354 = pneg %p59
      $region42: #{lieresnet_forward.30} parent=39 // pred_check_branch
        %356 = sbr.rel (%p354) target = $region44
      $region43: #{lieresnet_forward.30} parent=39 // pred_region
        %p357 = scmp.lt.s32.totalorder %s25, 1
        %s358 = scalar_select %p357, %s25, 1
        %p359 = scmp.lt.s32.totalorder %s26, 0
        %s360 = scalar_select %p359, %s26, 0
        %s361 = sadd.s32 %s360, %s358
        %s362 = smul.addr %s361, 8
        %s363 = scalar_lea.vmem %s0, %s362
      $region44: #{lieresnet_forward.30} parent=39 // pred_fallthru
        _
      // Predicated region
      $region45: #{lieresnet_forward.30} parent=39 // pred_check
        %p364 = pneg %p87
      $region46: #{lieresnet_forward.30} parent=39 // pred_check_branch
        %366 = sbr.rel (%p364) target = $region48
      $region47: #{lieresnet_forward.30} parent=39 // pred_region
        %p367 = scmp.lt.s32.totalorder %s25, 1
        %s368 = scalar_select %p367, %s25, 1
        %p369 = scmp.lt.s32.totalorder %s27, 0
        %s370 = scalar_select %p369, %s27, 0
        %s371 = sadd.s32 %s370, %s368
        %s372 = smul.addr %s371, 8
        %s373 = scalar_lea.vmem %s1, %s372
      $region48: #{lieresnet_forward.30} parent=39 // pred_fallthru
        _
      // Predicated region
      $region49: #{lieresnet_forward.30} parent=39 // pred_check
        %p374 = pneg %p115
      $region50: #{lieresnet_forward.30} parent=39 // pred_check_branch
        %376 = sbr.rel (%p374) target = $region52
      $region51: #{lieresnet_forward.30} parent=39 // pred_region
        %p377 = scmp.lt.s32.totalorder %s25, 1
        %s378 = scalar_select %p377, %s25, 1
        %p379 = scmp.lt.s32.totalorder %s27, 0
        %s380 = scalar_select %p379, %s27, 0
        %s381 = sadd.s32 %s380, %s378
        %s382 = smul.addr %s381, 8
        %s383 = scalar_lea.vmem %s2, %s382
      $region52: #{lieresnet_forward.30} parent=39 // pred_fallthru
        _
      // Predicated region
      $region53: #{lieresnet_forward.30} parent=39 // pred_check
        %p384 = pneg %p143
      $region54: #{lieresnet_forward.30} parent=39 // pred_check_branch
        %386 = sbr.rel (%p384) target = $region56
      $region55: #{lieresnet_forward.30} parent=39 // pred_region
        %p387 = scmp.lt.s32.totalorder %s25, 1
        %s388 = scalar_select %p387, %s25, 1
        %p389 = scmp.lt.s32.totalorder %s26, 0
        %s390 = scalar_select %p389, %s26, 0
        %s391 = sadd.s32 %s390, %s388
        %s392 = smul.addr %s391, 8
        %s393 = scalar_lea.vmem %s3, %s392
      $region56: #{lieresnet_forward.30} parent=39 // pred_fallthru
        _
    $region40: #{lieresnet_forward.30} parent=5 // pred_fallthru
      _
    %p394 = scmp.le.s32.totalorder 1, %s18
    %p395 = scmp.lt.s32.totalorder %s18, 3
    %p396 = pnand %p394, %p395
    %p397 = pneg %p396
    // Predicated region
    $region57: #{lieresnet_forward.30} parent=5 // pred_check
      _
    $region58: #{lieresnet_forward.30} parent=5 // pred_check_branch
      %399 = sbr.rel (%p396) target = $region60
    $region59: #{lieresnet_forward.30} parent=5 // pred_region
      %s400 = ssub.s32 %s18, 1
      %p401 = scmp.lt.s32.totalorder %s28, 1
      %s402 = scalar_select %p401, %s28, 1
      %p403 = scmp.lt.s32.totalorder %s29, 0
      %s404 = scalar_select %p403, %s29, 0
      %s405 = sadd.s32 %s404, %s402
      %s406 = smul.addr %s405, 8
      %s407 = scalar_lea.vmem %s0, %s406
      %p408 = pneg %p65
      %p409 = pneg %p62
      %p410 = scmp.lt.s32.totalorder %s28, 1
      %s411 = scalar_select %p410, %s28, 1
      %p412 = scmp.lt.s32.totalorder %s30, 0
      %s413 = scalar_select %p412, %s30, 0
      %s414 = sadd.s32 %s413, %s411
      %s415 = smul.addr %s414, 8
      %s416 = scalar_lea.vmem %s1, %s415
      %p417 = pneg %p93
      %p418 = pneg %p90
      %p419 = scmp.lt.s32.totalorder %s28, 1
      %s420 = scalar_select %p419, %s28, 1
      %p421 = scmp.lt.s32.totalorder %s30, 0
      %s422 = scalar_select %p421, %s30, 0
      %s423 = sadd.s32 %s422, %s420
      %s424 = smul.addr %s423, 8
      %s425 = scalar_lea.vmem %s2, %s424
      %p426 = pneg %p121
      %p427 = pneg %p118
      %p428 = scmp.lt.s32.totalorder %s28, 1
      %s429 = scalar_select %p428, %s28, 1
      %p430 = scmp.lt.s32.totalorder %s29, 0
      %s431 = scalar_select %p430, %s29, 0
      %s432 = sadd.s32 %s431, %s429
      %s433 = smul.addr %s432, 8
      %s434 = scalar_lea.vmem %s3, %s433
      %p435 = pneg %p149
      %p436 = pneg %p146
      %p437 = pneg %p170
      %p438 = pneg %p167
      %p439 = pneg %p191
      %p440 = pneg %p188
      %p441 = pneg %p212
      %p442 = pneg %p209
      %p443 = pneg %p233
      %p444 = pneg %p230
      %p445 = pneg %p254
      %p446 = pneg %p251
      %p447 = pneg %p275
      %p448 = pneg %p272
      %p449 = pneg %p296
      %p450 = pneg %p293
      %p451 = pneg %p317
      %p452 = pneg %p314
      %p453 = scmp.lt.s32.totalorder %s28, 1
      %s454 = scalar_select %p453, %s28, 1
      %p455 = scmp.lt.s32.totalorder %s29, 0
      %s456 = scalar_select %p455, %s29, 0
      %s457 = sadd.s32 %s456, %s454
      %s458 = smul.addr %s457, 8
      %s459 = scalar_lea.vmem %s0, %s458
      %p460 = scmp.lt.s32.totalorder %s28, 1
      %s461 = scalar_select %p460, %s28, 1
      %p462 = scmp.lt.s32.totalorder %s30, 0
      %s463 = scalar_select %p462, %s30, 0
      %s464 = sadd.s32 %s463, %s461
      %s465 = smul.addr %s464, 8
      %s466 = scalar_lea.vmem %s1, %s465
      %p467 = scmp.lt.s32.totalorder %s28, 1
      %s468 = scalar_select %p467, %s28, 1
      %p469 = scmp.lt.s32.totalorder %s30, 0
      %s470 = scalar_select %p469, %s30, 0
      %s471 = sadd.s32 %s470, %s468
      %s472 = smul.addr %s471, 8
      %s473 = scalar_lea.vmem %s2, %s472
      %p474 = scmp.lt.s32.totalorder %s28, 1
      %s475 = scalar_select %p474, %s28, 1
      %p476 = scmp.lt.s32.totalorder %s29, 0
      %s477 = scalar_select %p476, %s29, 0
      %s478 = sadd.s32 %s477, %s475
      %s479 = smul.addr %s478, 8
      %s480 = scalar_lea.vmem %s3, %s479
      %p481 = scmp.eq.s32.totalorder %s28, 0
      %p482 = scmp.eq.s32.totalorder %s29, 0
      %p483 = pnand %p481, %p482
      %p484 = pneg %p483
      %p485 = scmp.eq.s32.totalorder %s30, 0
      %p486 = pnand %p484, %p485
      %p487 = pneg %p486
      // Predicated region
      $region61: #{lieresnet_forward.30} parent=59 // pred_check
        _
      $region62: #{lieresnet_forward.30} parent=59 // pred_check_branch
        %489 = sbr.rel (%p486) target = $region64
      $region63: #{lieresnet_forward.30} parent=59 // pred_region
        %vm490 = vcmask 253952
        %491 = vst.msk [vmem:[%s10] sm:$0x1] %vm490, 0.0
        %492 = vst.msk [vmem:[%s11] sm:$0x1] %vm490, 0.0
      $region64: #{lieresnet_forward.30} parent=59 // pred_fallthru
        _
      %v493 = vld [vmem:[%s459] sm:$0xff]
      %v494 = vld [vmem:[%s466] sm:$0xff]
      %v496 = vcombine.high %v493, %v493
      %v498 = vunpack.c.l.s4 1966171168
      %v499 = vunpack.c.0.s8 %v498
      %v500 = vlaneseq
      %v501 = vshrl.u32 %v500, 7
      %v502 = vsub.s32 %v499, %v501
      %v503 = vrot.slane %v493, %v502
      %v505 = vunpack.c.l.s4 1966171168
      %v506 = vunpack.c.0.s8 %v505
      %v507 = vlaneseq
      %v508 = vshrl.u32 %v507, 7
      %v509 = vsub.s32 %v506, %v508
      %v510 = vrot.slane %v496, %v509
      %v511 = vcombine.high %v503, %v503
      %v512 = vcombine.high %v510, %v510
      %v514 = vunpack.c.l.s4 1966171168
      %v515 = vunpack.c.0.s8 %v514
      %v516 = vlaneseq
      %v517 = vshrl.u32 %v516, 7
      %v518 = vsub.s32 %v515, %v517
      %v519 = vrot.slane %v503, %v518
      %v521 = vunpack.c.l.s4 1966171168
      %v522 = vunpack.c.0.s8 %v521
      %v523 = vlaneseq
      %v524 = vshrl.u32 %v523, 7
      %v525 = vsub.s32 %v522, %v524
      %v526 = vrot.slane %v510, %v525
      %v528 = vunpack.c.l.s4 1966171168
      %v529 = vunpack.c.0.s8 %v528
      %v530 = vlaneseq
      %v531 = vshrl.u32 %v530, 7
      %v532 = vsub.s32 %v529, %v531
      %v533 = vrot.slane %v511, %v532
      %v535 = vunpack.c.l.s4 1966171168
      %v536 = vunpack.c.0.s8 %v535
      %v537 = vlaneseq
      %v538 = vshrl.u32 %v537, 7
      %v539 = vsub.s32 %v536, %v538
      %v540 = vrot.slane %v512, %v539
      %v541 = vcombine.high %v519, %v519
      %v542 = vcombine.high %v526, %v526
      %v543 = vcombine.high %v533, %v533
      %v544 = vcombine.high %v540, %v540
      %v545 = vlaneseq
      %v546 = vshrl.u32 %v545, 7
      %v547 = vsub.s32 0, %v546
      %v548 = vrot.slane %v519, %v547
      %v549 = vlaneseq
      %v550 = vshrl.u32 %v549, 7
      %v551 = vsub.s32 0, %v550
      %v552 = vrot.slane %v533, %v551
      %v553 = vlaneseq
      %v554 = vshrl.u32 %v553, 7
      %v555 = vsub.s32 0, %v554
      %v556 = vrot.slane %v541, %v555
      %v557 = vlaneseq
      %v558 = vshrl.u32 %v557, 7
      %v559 = vsub.s32 0, %v558
      %v560 = vrot.slane %v543, %v559
      %v561 = vlaneseq
      %v562 = vshrl.u32 %v561, 7
      %v563 = vsub.s32 0, %v562
      %v564 = vrot.slane %v526, %v563
      %v565 = vlaneseq
      %v566 = vshrl.u32 %v565, 7
      %v567 = vsub.s32 0, %v566
      %v568 = vrot.slane %v540, %v567
      %v569 = vlaneseq
      %v570 = vshrl.u32 %v569, 7
      %v571 = vsub.s32 0, %v570
      %v572 = vrot.slane %v542, %v571
      %v573 = vlaneseq
      %v574 = vshrl.u32 %v573, 7
      %v575 = vsub.s32 0, %v574
      %v576 = vrot.slane %v544, %v575
      %v585 = vsub.f32 %v548, %v494
      %v586 = vsub.f32 %v552, %v494
      %v587 = vsub.f32 %v556, %v494
      %v588 = vsub.f32 %v560, %v494
      %v589 = vsub.f32 %v564, %v494
      %v590 = vsub.f32 %v568, %v494
      %v591 = vsub.f32 %v572, %v494
      %v592 = vsub.f32 %v576, %v494
      %v593 = vld [vmem:[%s4] sm:$0x7]
      %v594 = vld [vmem:[%s5] sm:$0x1]
      %v596 = vlaneseq
      %v597 = vshrl.u32 %v596, 7
      %v598 = vsub.s32 0, %v597
      %v599 = vrot.slane %v594, %v598
      %vm601 = vcmask 23552
      %v603 = vsel %vm601, %v585, 0
      %v606 = vsel %vm601, %v586, 0
      %v609 = vsel %vm601, %v587, 0
      %v612 = vsel %vm601, %v588, 0
      %v615 = vsel %vm601, %v589, 0
      %v618 = vsel %vm601, %v590, 0
      %v621 = vsel %vm601, %v591, 0
      %v624 = vsel %vm601, %v592, 0
      %vm626 = vcmask 1042432
      %v628 = vsel %vm626, %v593, 0
      %630 = vmatprep.subr.mxu0 0.0
      %631 = vmatpush1.msra.mxu0 %v628
      %632 = vmatprep.subr.mxu0 0.0
      %633 = vmatpush1.msra.mxu0 0.0
      %634 = vmatprep.subr.mxu0 0.0
      %635 = vmatpush1.msra.mxu0 0.0
      %636 = vmatprep.subr.mxu0 0.0
      %637 = vmatpush1.msra.mxu0 0.0
      %638 = vmatprep.subr.mxu0 0.0
      %639 = vmatpush1.msra.mxu0 0.0
      %640 = vmatprep.subr.mxu0 0.0
      %641 = vmatpush1.msra.mxu0 0.0
      %642 = vmatprep.subr.mxu0 0.0
      %643 = vmatpush1.msra.mxu0 0.0
      %644 = vmatprep.subr.mxu0 0.0
      %645 = vmatpush1.msra.mxu0 0.0
      %646 = vmatprep.subr.mxu0 0.0
      %647 = vmatpush1.msra.mxu0 0.0
      %648 = vmatprep.subr.mxu0 0.0
      %649 = vmatpush1.msra.mxu0 0.0
      %650 = vmatprep.subr.mxu0 0.0
      %651 = vmatpush1.msra.mxu0 0.0
      %652 = vmatprep.subr.mxu0 0.0
      %653 = vmatpush1.msra.mxu0 0.0
      %654 = vmatprep.subr.mxu0 0.0
      %655 = vmatpush1.msra.mxu0 0.0
      %656 = vmatprep.subr.mxu0 0.0
      %657 = vmatpush1.msra.mxu0 0.0
      %658 = vmatprep.subr.mxu0 0.0
      %659 = vmatpush1.msra.mxu0 0.0
      %660 = vmatprep.subr.mxu0 0.0
      %661 = vmatpush1.msra.mxu0 0.0
      %662 = vmatprep.subr.mxu0 0.0
      %663 = vmatpush1.msra.mxu0 0.0
      %664 = vmatprep.subr.mxu0 0.0
      %665 = vmatpush1.msra.mxu0 0.0
      %666 = vmatprep.subr.mxu0 0.0
      %667 = vmatpush1.msra.mxu0 0.0
      %668 = vmatprep.subr.mxu0 0.0
      %669 = vmatpush1.msra.mxu0 0.0
      %670 = vmatprep.subr.mxu0 0.0
      %671 = vmatpush1.msra.mxu0 0.0
      %672 = vmatprep.subr.mxu0 0.0
      %673 = vmatpush1.msra.mxu0 0.0
      %674 = vmatprep.subr.mxu0 0.0
      %675 = vmatpush1.msra.mxu0 0.0
      %676 = vmatprep.subr.mxu0 0.0
      %677 = vmatpush1.msra.mxu0 0.0
      %678 = vmatprep.subr.mxu0 0.0
      %679 = vmatpush1.msra.mxu0 0.0
      %680 = vmatprep.subr.mxu0 0.0
      %681 = vmatpush1.msra.mxu0 0.0
      %682 = vmatprep.subr.mxu0 0.0
      %683 = vmatpush1.msra.mxu0 0.0
      %684 = vmatprep.subr.mxu0 0.0
      %685 = vmatpush1.msra.mxu0 0.0
      %686 = vmatprep.subr.mxu0 0.0
      %687 = vmatpush1.msra.mxu0 0.0
      %688 = vmatprep.subr.mxu0 0.0
      %689 = vmatpush1.msra.mxu0 0.0
      %690 = vmatprep.subr.mxu0 0.0
      %691 = vmatpush1.msra.mxu0 0.0
      %692 = vmatprep.subr.mxu0 0.0
      %693 = vmatpush1.msra.mxu0 0.0
      %694 = vmatprep.mubr.f32.mxu0 0.0
      %695 = vmatmul.mubr.f32.gmra.mrb[0].mxu0 %v603
      %v696 = vpop.f32.mrb[0].mxu0
      %v697 = vadd.f32 %v599, %v696
      %v698 = vpop.f32.mrb[0].mxu0
      %699 = vmatprep.mubr.f32.mxu0 0.0
      %700 = vmatmul.mubr.f32.gmra.mrb[0].mxu0 %v606
      %v701 = vpop.f32.mrb[0].mxu0
      %v702 = vadd.f32 %v599, %v701
      %v703 = vpop.f32.mrb[0].mxu0
      %704 = vmatprep.mubr.f32.mxu0 0.0
      %705 = vmatmul.mubr.f32.gmra.mrb[0].mxu0 %v609
      %v706 = vpop.f32.mrb[0].mxu0
      %v707 = vadd.f32 %v599, %v706
      %v708 = vpop.f32.mrb[0].mxu0
      %709 = vmatprep.mubr.f32.mxu0 0.0
      %710 = vmatmul.mubr.f32.gmra.mrb[0].mxu0 %v612
      %v711 = vpop.f32.mrb[0].mxu0
      %v712 = vadd.f32 %v599, %v711
      %v713 = vpop.f32.mrb[0].mxu0
      %714 = vmatprep.mubr.f32.mxu0 0.0
      %715 = vmatmul.mubr.f32.gmra.mrb[0].mxu0 %v615
      %v716 = vpop.f32.mrb[0].mxu0
      %v717 = vadd.f32 %v599, %v716
      %v718 = vpop.f32.mrb[0].mxu0
      %719 = vmatprep.mubr.f32.mxu0 0.0
      %720 = vmatmul.mubr.f32.gmra.mrb[0].mxu0 %v618
      %v721 = vpop.f32.mrb[0].mxu0
      %v722 = vadd.f32 %v599, %v721
      %v723 = vpop.f32.mrb[0].mxu0
      %724 = vmatprep.mubr.f32.mxu0 0.0
      %725 = vmatmul.mubr.f32.gmra.mrb[0].mxu0 %v621
      %v726 = vpop.f32.mrb[0].mxu0
      %v727 = vadd.f32 %v599, %v726
      %v728 = vpop.f32.mrb[0].mxu0
      %729 = vmatprep.mubr.f32.mxu0 0.0
      %730 = vmatmul.mubr.f32.gmra.mrb[0].mxu0 %v624
      %v731 = vpop.f32.mrb[0].mxu0
      %v732 = vadd.f32 %v599, %v731
      %v733 = vpop.f32.mrb[0].mxu0
      %734 = vdwg.mxu0
      %v735 = vld [vmem:[%s6] sm:$0x1]
      %v737 = vlaneseq
      %v738 = vshrl.u32 %v737, 7
      %v739 = vsub.s32 0, %v738
      %v740 = vrot.slane %v735, %v739
      %v742 = vmul.f32 %v697, %v740
      %v743 = vmul.f32 %v702, %v740
      %v744 = vmul.f32 %v707, %v740
      %v745 = vmul.f32 %v712, %v740
      %v746 = vmul.f32 %v717, %v740
      %v747 = vmul.f32 %v722, %v740
      %v748 = vmul.f32 %v727, %v740
      %v749 = vmul.f32 %v732, %v740
      %v750 = vld [vmem:[%s7] sm:$0x1]
      %v752 = vlaneseq
      %v753 = vshrl.u32 %v752, 7
      %v754 = vsub.s32 0, %v753
      %v755 = vrot.slane %v750, %v754
      %v757 = vadd.f32 %v742, %v755
      %v758 = vadd.f32 %v743, %v755
      %v759 = vadd.f32 %v744, %v755
      %v760 = vadd.f32 %v745, %v755
      %v761 = vadd.f32 %v746, %v755
      %v762 = vadd.f32 %v747, %v755
      %v763 = vadd.f32 %v748, %v755
      %v764 = vadd.f32 %v749, %v755
      %v765 = vxor.u32 %v757, 2147483648
      %v766 = vxor.u32 %v758, 2147483648
      %v767 = vxor.u32 %v759, 2147483648
      %v768 = vxor.u32 %v760, 2147483648
      %v769 = vxor.u32 %v761, 2147483648
      %v770 = vxor.u32 %v762, 2147483648
      %v771 = vxor.u32 %v763, 2147483648
      %v772 = vxor.u32 %v764, 2147483648
      %v773 = vmul.f32 %v765, 1.442695
      %v774 = vpow.pop %v773
      %v775 = vmul.f32 %v766, 1.442695
      %v776 = vpow.pop %v775
      %v777 = vmul.f32 %v767, 1.442695
      %v778 = vpow.pop %v777
      %v779 = vmul.f32 %v768, 1.442695
      %v780 = vpow.pop %v779
      %v781 = vmul.f32 %v769, 1.442695
      %v782 = vpow.pop %v781
      %v783 = vmul.f32 %v770, 1.442695
      %v784 = vpow.pop %v783
      %v785 = vmul.f32 %v771, 1.442695
      %v786 = vpow.pop %v785
      %v787 = vmul.f32 %v772, 1.442695
      %v788 = vpow.pop %v787
      %v789 = vadd.f32 %v774, 1.0
      %v790 = vadd.f32 %v776, 1.0
      %v791 = vadd.f32 %v778, 1.0
      %v792 = vadd.f32 %v780, 1.0
      %v793 = vadd.f32 %v782, 1.0
      %v794 = vadd.f32 %v784, 1.0
      %v795 = vadd.f32 %v786, 1.0
      %v796 = vadd.f32 %v788, 1.0
      %v797 = vrcp.pop %v789
      %v798 = vmul.f32 1.0, %v797
      %v799 = vrcp.pop %v790
      %v800 = vmul.f32 1.0, %v799
      %v801 = vrcp.pop %v791
      %v802 = vmul.f32 1.0, %v801
      %v803 = vrcp.pop %v792
      %v804 = vmul.f32 1.0, %v803
      %v805 = vrcp.pop %v793
      %v806 = vmul.f32 1.0, %v805
      %v807 = vrcp.pop %v794
      %v808 = vmul.f32 1.0, %v807
      %v809 = vrcp.pop %v795
      %v810 = vmul.f32 1.0, %v809
      %v811 = vrcp.pop %v796
      %v812 = vmul.f32 1.0, %v811
      %v813 = vmul.f32 %v757, %v798
      %v814 = vmul.f32 %v758, %v800
      %v815 = vmul.f32 %v759, %v802
      %v816 = vmul.f32 %v760, %v804
      %v817 = vmul.f32 %v761, %v806
      %v818 = vmul.f32 %v762, %v808
      %v819 = vmul.f32 %v763, %v810
      %v820 = vmul.f32 %v764, %v812
      %v821 = vld [vmem:[%s8] sm:$0xff]
      %v822 = vld [vmem:[%s8 + $0x8] sm:$0xff]
      %v823 = vld [vmem:[%s8 + $0x10] sm:$0xff]
      %v824 = vld [vmem:[%s8 + $0x18] sm:$0xff]
      %v825 = vld [vmem:[%s9] sm:$0x1]
      %v827 = vlaneseq
      %v828 = vshrl.u32 %v827, 7
      %v829 = vsub.s32 0, %v828
      %v830 = vrot.slane %v825, %v829
      %vm832 = vcmask 261120
      %v834 = vsel %vm832, %v813, 0
      %v837 = vsel %vm832, %v814, 0
      %v840 = vsel %vm832, %v815, 0
      %v843 = vsel %vm832, %v816, 0
      %v846 = vsel %vm832, %v817, 0
      %v849 = vsel %vm832, %v818, 0
      %v852 = vsel %vm832, %v819, 0
      %v855 = vsel %vm832, %v820, 0
      %857 = vmatprep.subr.mxu0 0.0
      %858 = vmatpush1.msra.mxu0 %v821
      %859 = vmatprep.subr.mxu0 0.0
      %860 = vmatpush1.msra.mxu0 %v822
      %861 = vmatprep.subr.mxu0 0.0
      %862 = vmatpush1.msra.mxu0 %v823
      %863 = vmatprep.subr.mxu0 0.0
      %864 = vmatpush1.msra.mxu0 %v824
      %865 = vmatprep.subr.mxu0 0.0
      %866 = vmatpush1.msra.mxu0 0.0
      %867 = vmatprep.subr.mxu0 0.0
      %868 = vmatpush1.msra.mxu0 0.0
      %869 = vmatprep.subr.mxu0 0.0
      %870 = vmatpush1.msra.mxu0 0.0
      %871 = vmatprep.subr.mxu0 0.0
      %872 = vmatpush1.msra.mxu0 0.0
      %873 = vmatprep.subr.mxu0 0.0
      %874 = vmatpush1.msra.mxu0 0.0
      %875 = vmatprep.subr.mxu0 0.0
      %876 = vmatpush1.msra.mxu0 0.0
      %877 = vmatprep.subr.mxu0 0.0
      %878 = vmatpush1.msra.mxu0 0.0
      %879 = vmatprep.subr.mxu0 0.0
      %880 = vmatpush1.msra.mxu0 0.0
      %881 = vmatprep.subr.mxu0 0.0
      %882 = vmatpush1.msra.mxu0 0.0
      %883 = vmatprep.subr.mxu0 0.0
      %884 = vmatpush1.msra.mxu0 0.0
      %885 = vmatprep.subr.mxu0 0.0
      %886 = vmatpush1.msra.mxu0 0.0
      %887 = vmatprep.subr.mxu0 0.0
      %888 = vmatpush1.msra.mxu0 0.0
      %889 = vmatprep.subr.mxu0 0.0
      %890 = vmatpush1.msra.mxu0 0.0
      %891 = vmatprep.subr.mxu0 0.0
      %892 = vmatpush1.msra.mxu0 0.0
      %893 = vmatprep.subr.mxu0 0.0
      %894 = vmatpush1.msra.mxu0 0.0
      %895 = vmatprep.subr.mxu0 0.0
      %896 = vmatpush1.msra.mxu0 0.0
      %897 = vmatprep.subr.mxu0 0.0
      %898 = vmatpush1.msra.mxu0 0.0
      %899 = vmatprep.subr.mxu0 0.0
      %900 = vmatpush1.msra.mxu0 0.0
      %901 = vmatprep.subr.mxu0 0.0
      %902 = vmatpush1.msra.mxu0 0.0
      %903 = vmatprep.subr.mxu0 0.0
      %904 = vmatpush1.msra.mxu0 0.0
      %905 = vmatprep.subr.mxu0 0.0
      %906 = vmatpush1.msra.mxu0 0.0
      %907 = vmatprep.subr.mxu0 0.0
      %908 = vmatpush1.msra.mxu0 0.0
      %909 = vmatprep.subr.mxu0 0.0
      %910 = vmatpush1.msra.mxu0 0.0
      %911 = vmatprep.subr.mxu0 0.0
      %912 = vmatpush1.msra.mxu0 0.0
      %913 = vmatprep.subr.mxu0 0.0
      %914 = vmatpush1.msra.mxu0 0.0
      %915 = vmatprep.subr.mxu0 0.0
      %916 = vmatpush1.msra.mxu0 0.0
      %917 = vmatprep.subr.mxu0 0.0
      %918 = vmatpush1.msra.mxu0 0.0
      %919 = vmatprep.subr.mxu0 0.0
      %920 = vmatpush1.msra.mxu0 0.0
      %921 = vmatprep.mubr.f32.mxu0 0.0
      %922 = vmatmul.mubr.f32.gmra.mrb[0].mxu0 %v834
      %v923 = vpop.f32.mrb[0].mxu0
      %v924 = vadd.f32 %v830, %v923
      %v925 = vpop.f32.mrb[0].mxu0
      %926 = vmatprep.mubr.f32.mxu0 0.0
      %927 = vmatmul.mubr.f32.gmra.mrb[0].mxu0 %v837
      %v928 = vpop.f32.mrb[0].mxu0
      %v929 = vadd.f32 %v830, %v928
      %v930 = vpop.f32.mrb[0].mxu0
      %931 = vmatprep.mubr.f32.mxu0 0.0
      %932 = vmatmul.mubr.f32.gmra.mrb[0].mxu0 %v840
      %v933 = vpop.f32.mrb[0].mxu0
      %v934 = vadd.f32 %v830, %v933
      %v935 = vpop.f32.mrb[0].mxu0
      %936 = vmatprep.mubr.f32.mxu0 0.0
      %937 = vmatmul.mubr.f32.gmra.mrb[0].mxu0 %v843
      %v938 = vpop.f32.mrb[0].mxu0
      %v939 = vadd.f32 %v830, %v938
      %v940 = vpop.f32.mrb[0].mxu0
      %941 = vmatprep.mubr.f32.mxu0 0.0
      %942 = vmatmul.mubr.f32.gmra.mrb[0].mxu0 %v846
      %v943 = vpop.f32.mrb[0].mxu0
      %v944 = vadd.f32 %v830, %v943
      %v945 = vpop.f32.mrb[0].mxu0
      %946 = vmatprep.mubr.f32.mxu0 0.0
      %947 = vmatmul.mubr.f32.gmra.mrb[0].mxu0 %v849
      %v948 = vpop.f32.mrb[0].mxu0
      %v949 = vadd.f32 %v830, %v948
      %v950 = vpop.f32.mrb[0].mxu0
      %951 = vmatprep.mubr.f32.mxu0 0.0
      %952 = vmatmul.mubr.f32.gmra.mrb[0].mxu0 %v852
      %v953 = vpop.f32.mrb[0].mxu0
      %v954 = vadd.f32 %v830, %v953
      %v955 = vpop.f32.mrb[0].mxu0
      %956 = vmatprep.mubr.f32.mxu0 0.0
      %957 = vmatmul.mubr.f32.gmra.mrb[0].mxu0 %v855
      %v958 = vpop.f32.mrb[0].mxu0
      %v959 = vadd.f32 %v830, %v958
      %v960 = vpop.f32.mrb[0].mxu0
      %961 = vdwg.mxu0
      %v962 = vld [vmem:[%s480] sm:$0xff]
      %v964 = vcombine.high %v962, %v962
      %v966 = vunpack.c.l.s4 1966171168
      %v967 = vunpack.c.0.s8 %v966
      %v968 = vlaneseq
      %v969 = vshrl.u32 %v968, 7
      %v970 = vsub.s32 %v967, %v969
      %v971 = vrot.slane %v962, %v970
      %v973 = vunpack.c.l.s4 1966171168
      %v974 = vunpack.c.0.s8 %v973
      %v975 = vlaneseq
      %v976 = vshrl.u32 %v975, 7
      %v977 = vsub.s32 %v974, %v976
      %v978 = vrot.slane %v964, %v977
      %v979 = vcombine.high %v971, %v971
      %v980 = vcombine.high %v978, %v978
      %v982 = vunpack.c.l.s4 1966171168
      %v983 = vunpack.c.0.s8 %v982
      %v984 = vlaneseq
      %v985 = vshrl.u32 %v984, 7
      %v986 = vsub.s32 %v983, %v985
      %v987 = vrot.slane %v971, %v986
      %v989 = vunpack.c.l.s4 1966171168
      %v990 = vunpack.c.0.s8 %v989
      %v991 = vlaneseq
      %v992 = vshrl.u32 %v991, 7
      %v993 = vsub.s32 %v990, %v992
      %v994 = vrot.slane %v978, %v993
      %v996 = vunpack.c.l.s4 1966171168
      %v997 = vunpack.c.0.s8 %v996
      %v998 = vlaneseq
      %v999 = vshrl.u32 %v998, 7
      %v1000 = vsub.s32 %v997, %v999
      %v1001 = vrot.slane %v979, %v1000
      %v1003 = vunpack.c.l.s4 1966171168
      %v1004 = vunpack.c.0.s8 %v1003
      %v1005 = vlaneseq
      %v1006 = vshrl.u32 %v1005, 7
      %v1007 = vsub.s32 %v1004, %v1006
      %v1008 = vrot.slane %v980, %v1007
      %v1009 = vcombine.high %v987, %v987
      %v1010 = vcombine.high %v994, %v994
      %v1011 = vcombine.high %v1001, %v1001
      %v1012 = vcombine.high %v1008, %v1008
      %v1013 = vld [vmem:[%s473] sm:$0xff]
      %v1014 = vlaneseq
      %v1015 = vshrl.u32 %v1014, 7
      %v1016 = vsub.s32 0, %v1015
      %v1017 = vrot.slane %v987, %v1016
      %v1018 = vlaneseq
      %v1019 = vshrl.u32 %v1018, 7
      %v1020 = vsub.s32 0, %v1019
      %v1021 = vrot.slane %v1001, %v1020
      %v1022 = vlaneseq
      %v1023 = vshrl.u32 %v1022, 7
      %v1024 = vsub.s32 0, %v1023
      %v1025 = vrot.slane %v1009, %v1024
      %v1026 = vlaneseq
      %v1027 = vshrl.u32 %v1026, 7
      %v1028 = vsub.s32 0, %v1027
      %v1029 = vrot.slane %v1011, %v1028
      %v1030 = vlaneseq
      %v1031 = vshrl.u32 %v1030, 7
      %v1032 = vsub.s32 0, %v1031
      %v1033 = vrot.slane %v994, %v1032
      %v1034 = vlaneseq
      %v1035 = vshrl.u32 %v1034, 7
      %v1036 = vsub.s32 0, %v1035
      %v1037 = vrot.slane %v1008, %v1036
      %v1038 = vlaneseq
      %v1039 = vshrl.u32 %v1038, 7
      %v1040 = vsub.s32 0, %v1039
      %v1041 = vrot.slane %v1010, %v1040
      %v1042 = vlaneseq
      %v1043 = vshrl.u32 %v1042, 7
      %v1044 = vsub.s32 0, %v1043
      %v1045 = vrot.slane %v1012, %v1044
      %v1054 = vmul.f32 %v1017, %v1013
      %v1055 = vmul.f32 %v1021, %v1013
      %v1056 = vmul.f32 %v1025, %v1013
      %v1057 = vmul.f32 %v1029, %v1013
      %v1058 = vmul.f32 %v1033, %v1013
      %v1059 = vmul.f32 %v1037, %v1013
      %v1060 = vmul.f32 %v1041, %v1013
      %v1061 = vmul.f32 %v1045, %v1013
      %1063 = vset.pattern.permute.xlu0 0
      %1064 = vperm.xlu0 %1063, %v1054
      %v1065 = vpop.permute.xlu0 %1064
      %1068 = vset.pattern.permute.xlu0 0
      %1069 = vperm.xlu0 %1068, %v1055
      %v1070 = vpop.permute.xlu0 %1069
      %1073 = vset.pattern.permute.xlu0 0
      %1074 = vperm.xlu0 %1073, %v1056
      %v1075 = vpop.permute.xlu0 %1074
      %1078 = vset.pattern.permute.xlu0 0
      %1079 = vperm.xlu0 %1078, %v1057
      %v1080 = vpop.permute.xlu0 %1079
      %1083 = vset.pattern.permute.xlu0 0
      %1084 = vperm.xlu0 %1083, %v1058
      %v1085 = vpop.permute.xlu0 %1084
      %1088 = vset.pattern.permute.xlu0 0
      %1089 = vperm.xlu0 %1088, %v1059
      %v1090 = vpop.permute.xlu0 %1089
      %1093 = vset.pattern.permute.xlu0 0
      %1094 = vperm.xlu0 %1093, %v1060
      %v1095 = vpop.permute.xlu0 %1094
      %1098 = vset.pattern.permute.xlu0 0
      %1099 = vperm.xlu0 %1098, %v1061
      %v1100 = vpop.permute.xlu0 %1099
      %v1102 = vmul.f32 %v924, %v1065
      %v1103 = vmul.f32 %v929, %v1070
      %v1104 = vmul.f32 %v934, %v1075
      %v1105 = vmul.f32 %v939, %v1080
      %v1106 = vmul.f32 %v944, %v1085
      %v1107 = vmul.f32 %v949, %v1090
      %v1108 = vmul.f32 %v954, %v1095
      %v1109 = vmul.f32 %v959, %v1100
      %v1110 = vld [vmem:[%s10] sm:$0x1]
      %v1111 = vsel %vm832, %v1102, 0.0
      %v1112 = vsel %vm832, %v1103, 0.0
      %v1113 = vadd.f32 %v1111, %v1112
      %v1114 = vsel %vm832, %v1104, 0.0
      %v1115 = vadd.f32 %v1113, %v1114
      %v1116 = vsel %vm832, %v1105, 0.0
      %v1117 = vadd.f32 %v1115, %v1116
      %v1118 = vsel %vm832, %v1106, 0.0
      %v1119 = vadd.f32 %v1117, %v1118
      %v1120 = vsel %vm832, %v1107, 0.0
      %v1121 = vadd.f32 %v1119, %v1120
      %v1122 = vsel %vm832, %v1108, 0.0
      %v1123 = vadd.f32 %v1121, %v1122
      %v1124 = vsel %vm832, %v1109, 0.0
      %v1125 = vadd.f32 %v1123, %v1124
      %v1126 = vrot.slane %v1125, 4
      %v1127 = vadd.f32 %v1125, %v1126
      %v1128 = vrot.slane %v1127, 2
      %v1129 = vadd.f32 %v1127, %v1128
      %v1130 = vrot.slane %v1129, 1
      %v1131 = vadd.f32 %v1129, %v1130
      %v1132 = vadd.f32 %v1110, %v1131
      %vm1133 = vcmask 253952
      %1134 = vst.msk [vmem:[%s10] sm:$0x1] %vm1133, %v1132
      %v1135 = vld [vmem:[%s11] sm:$0x1]
      %v1136 = vmul.f32 %v1102, %v1102
      %v1137 = vmul.f32 %v1103, %v1103
      %v1138 = vmul.f32 %v1104, %v1104
      %v1139 = vmul.f32 %v1105, %v1105
      %v1140 = vmul.f32 %v1106, %v1106
      %v1141 = vmul.f32 %v1107, %v1107
      %v1142 = vmul.f32 %v1108, %v1108
      %v1143 = vmul.f32 %v1109, %v1109
      %v1144 = vsel %vm832, %v1136, 0.0
      %v1145 = vsel %vm832, %v1137, 0.0
      %v1146 = vadd.f32 %v1144, %v1145
      %v1147 = vsel %vm832, %v1138, 0.0
      %v1148 = vadd.f32 %v1146, %v1147
      %v1149 = vsel %vm832, %v1139, 0.0
      %v1150 = vadd.f32 %v1148, %v1149
      %v1151 = vsel %vm832, %v1140, 0.0
      %v1152 = vadd.f32 %v1150, %v1151
      %v1153 = vsel %vm832, %v1141, 0.0
      %v1154 = vadd.f32 %v1152, %v1153
      %v1155 = vsel %vm832, %v1142, 0.0
      %v1156 = vadd.f32 %v1154, %v1155
      %v1157 = vsel %vm832, %v1143, 0.0
      %v1158 = vadd.f32 %v1156, %v1157
      %v1159 = vrot.slane %v1158, 4
      %v1160 = vadd.f32 %v1158, %v1159
      %v1161 = vrot.slane %v1160, 2
      %v1162 = vadd.f32 %v1160, %v1161
      %v1163 = vrot.slane %v1162, 1
      %v1164 = vadd.f32 %v1162, %v1163
      %v1165 = vadd.f32 %v1135, %v1164
      %1166 = vst.msk [vmem:[%s11] sm:$0x1] %vm1133, %v1165
      // Predicated region
      $region65: #{lieresnet_forward.30} parent=59 // pred_check
        %p1167 = pneg %p293
      $region66: #{lieresnet_forward.30} parent=59 // pred_check_branch
        %1169 = sbr.rel (%p1167) target = $region68
      $region67: #{lieresnet_forward.30} parent=59 // pred_region
        _
      $region68: #{lieresnet_forward.30} parent=59 // pred_fallthru
        _
      // Predicated region
      $region69: #{lieresnet_forward.30} parent=59 // pred_check
        %p1170 = pneg %p314
      $region70: #{lieresnet_forward.30} parent=59 // pred_check_branch
        %1172 = sbr.rel (%p1170) target = $region72
      $region71: #{lieresnet_forward.30} parent=59 // pred_region
        _
      $region72: #{lieresnet_forward.30} parent=59 // pred_fallthru
        _
      // Predicated region
      $region73: #{lieresnet_forward.30} parent=59 // pred_check
        %p1173 = pneg %p293
      $region74: #{lieresnet_forward.30} parent=59 // pred_check_branch
        %1175 = sbr.rel (%p1173) target = $region76
      $region75: #{lieresnet_forward.30} parent=59 // pred_region
        _
      $region76: #{lieresnet_forward.30} parent=59 // pred_fallthru
        _
      // Predicated region
      $region77: #{lieresnet_forward.30} parent=59 // pred_check
        %p1176 = pneg %p314
      $region78: #{lieresnet_forward.30} parent=59 // pred_check_branch
        %1178 = sbr.rel (%p1176) target = $region80
      $region79: #{lieresnet_forward.30} parent=59 // pred_region
        _
      $region80: #{lieresnet_forward.30} parent=59 // pred_fallthru
        _
    $region60: #{lieresnet_forward.30} parent=5 // pred_fallthru
      _
    %p1179 = scmp.le.s32.totalorder 2, %s18
    // Predicated region
    $region81: #{lieresnet_forward.30} parent=5 // pred_check
      %p1180 = pneg %p1179
    $region82: #{lieresnet_forward.30} parent=5 // pred_check_branch
      %1182 = sbr.rel (%p1180) target = $region84
    $region83: #{lieresnet_forward.30} parent=5 // pred_region
      %s1183 = ssub.s32 %s18, 2
    $region84: #{lieresnet_forward.30} parent=5 // pred_fallthru
      _
  $region6: #{lieresnet_forward.30} parent=0 // loop_footer
    %s22 = sadd.s32 1, %s18
  $region7: #{lieresnet_forward.30} parent=0 // loop_footer_branch
    %17 = sbr.rel target = $region3
  $region8: #{lieresnet_forward.30} parent=0 // loop_exit
    _

// kernel: lieresnet_forward.31
$region0: #{lieresnet_forward.31}
  #allocation0 [shape = 'u32[]', space=smem, size = 0x4, offset = 0x4, fixed_abs, tag = 'smem constant byte address 0x4 - core index']
  #allocation1 [shape = 'u32[144,128]{1,0:T(1,128)}', space=vmem, size = 0x12000, scoped, tag = 'internal scratch']
  %s0 = inlined_call_operand.vmem [shape: f32[2,8,3], index: 0, kind: input, shape index: {}, may-alias: {0,1}]
  %s1 = inlined_call_operand.vmem [shape: f32[2,8,3], index: 1, kind: input, shape index: {}, may-alias: {0,1}]
  %s2 = inlined_call_operand.vmem [shape: f32[2,8,1], index: 2, kind: input, shape index: {}]
  %s3 = inlined_call_operand.vmem [shape: f32[2,8,1], index: 3, kind: input, shape index: {}]
  %s4 = inlined_call_operand.vmem [shape: f32[3,32], index: 4, kind: input, shape index: {}]
  %s5 = inlined_call_operand.vmem [shape: f32[1,32], index: 5, kind: input, shape index: {}]
  %s6 = inlined_call_operand.vmem [shape: f32[1,32], index: 6, kind: input, shape index: {}]
  %s7 = inlined_call_operand.vmem [shape: f32[1,32], index: 7, kind: input, shape index: {}]
  %s8 = inlined_call_operand.vmem [shape: f32[32,32], index: 8, kind: input, shape index: {}]
  %s9 = inlined_call_operand.vmem [shape: f32[1,32], index: 9, kind: input, shape index: {}]
  %s10 = inlined_call_operand.vmem [shape: f32[1,32], index: 10, kind: input, shape index: {}]
  %s11 = inlined_call_operand.vmem [shape: f32[1,32], index: 11, kind: input, shape index: {}]
  %s12 = inlined_call_operand.vmem [shape: f32[32,16], index: 12, kind: input, shape index: {}]
  %s13 = inlined_call_operand.vmem [shape: f32[1,16], index: 13, kind: input, shape index: {}]
  %s14 = inlined_call_operand.vmem [shape: f32[1,16], index: 14, kind: output, shape index: {0}]
  %s15 = inlined_call_operand.vmem [shape: f32[1,16], index: 15, kind: output, shape index: {1}]
  %16 = xla_tuple %s14, %s15
  %s17 = sld [smem:[#allocation0]]
  $region101: #{lieresnet_forward.31} parent=0
    _
  %s19 = ssub.s32 1, %s17
  %s20 = scalar_select 0, %s19, %s17
  loop: start=0, step=1, limit=4
  $region2: #{lieresnet_forward.31} parent=0 // loop_pre_header
    _
  $region3: #{lieresnet_forward.31} parent=0 // loop_header
    %s22 = sphi 0, %s26
    %p23 = scmp.ge.s32.totalorder %s22, 4
    %s29 = sphi 0, %s48
    %s30 = sphi 0, %s44
    %s31 = sphi 0, %s40
    %s32 = sphi 0, %s29
    %s33 = sphi 0, %s30
    %s34 = sphi 0, %s31
    %s35 = sphi 0, %s32
    %s36 = sphi 0, %s33
    %s37 = sphi 0, %s34
    %s53 = sphi 0, %s55
    %s56 = sphi 0, %s53
    %s57 = sphi 0, %s56
    %s73 = sphi 0, %s57
    %s81 = sphi 0, %s83
    %s84 = sphi 0, %s81
    %s85 = sphi 0, %s84
    %s101 = sphi 0, %s85
    %s109 = sphi 0, %s111
    %s112 = sphi 0, %s109
    %s113 = sphi 0, %s112
    %s129 = sphi 0, %s113
    %s137 = sphi 0, %s139
    %s140 = sphi 0, %s137
    %s141 = sphi 0, %s140
    %s157 = sphi 0, %s141
    %s161 = sphi 0, %s161
    %s163 = sphi 0, %s161
    %s164 = sphi 0, %s163
    %s178 = sphi 0, %s164
    %s182 = sphi 0, %s182
    %s184 = sphi 0, %s182
    %s185 = sphi 0, %s184
    %s199 = sphi 0, %s185
    %s203 = sphi 0, %s203
    %s205 = sphi 0, %s203
    %s206 = sphi 0, %s205
    %s220 = sphi 0, %s206
    %s224 = sphi 0, %s224
    %s226 = sphi 0, %s224
    %s227 = sphi 0, %s226
    %s241 = sphi 0, %s227
    %s245 = sphi 0, %s245
    %s247 = sphi 0, %s245
    %s248 = sphi 0, %s247
    %s262 = sphi 0, %s248
    %s266 = sphi 0, %s266
    %s268 = sphi 0, %s266
    %s269 = sphi 0, %s268
    %s283 = sphi 0, %s269
    %s287 = sphi 0, %s287
    %s289 = sphi 0, %s287
    %s290 = sphi 0, %s289
    %s304 = sphi 0, %s290
    %s308 = sphi 0, %s308
    %s310 = sphi 0, %s308
    %s311 = sphi 0, %s310
    %s325 = sphi 0, %s311
    %s329 = sphi 0, %s329
    %s331 = sphi 0, %s329
    %s332 = sphi 0, %s331
    %s346 = sphi 0, %s332
    %s350 = sphi 0, %s350
    %s352 = sphi 0, %s350
    %s353 = sphi 0, %s352
    %s367 = sphi 0, %s353
    %s371 = sphi 0, %s371
    %s373 = sphi 0, %s371
    %s374 = sphi 0, %s373
    %s388 = sphi 0, %s374
    %s392 = sphi 0, %s392
    %s394 = sphi 0, %s392
    %s395 = sphi 0, %s394
    %s409 = sphi 0, %s395
  $region4: #{lieresnet_forward.31} parent=0 // loop_header_branch
    %25 = sbr.rel (%p23) target = $region8
  $region5: #{lieresnet_forward.31} parent=0 // loop_body
    %s27 = ssub.s32 %s22, 1
    %s28 = ssub.s32 %s22, 2
    %s38 = sadd.s32 1, %s31
    %p39 = scmp.ge.s32.totalorder %s38, 1
    %s40 = scalar_select %p39, 0, %s38
    %s41 = sadd.s32 1, %s30
    %s42 = scalar_select %p39, %s41, %s30
    %p43 = scmp.ge.s32.totalorder %s42, 1
    %s44 = scalar_select %p43, 0, %s42
    %s45 = sadd.s32 1, %s29
    %s46 = scalar_select %p43, %s45, %s29
    %p47 = scmp.ge.s32.totalorder %s46, 2
    %s48 = scalar_select %p47, 0, %s46
    %s49 = ssub.s32 %s29, %s48
    %s50 = ssub.s32 %s30, %s44
    %s51 = sor.u32 %s49, %s50
    %p52 = scmp.eq.s32.totalorder %s51, 0
    %s54 = sadd.s32 %s53, 1
    %s55 = scalar_select %p52, %s53, %s54
    %p58 = pneg %p52
    %p59 = scmp.eq.s32.totalorder %s22, 1
    %p60 = por %p58, %p59
    %p61 = scmp.ne.s32.totalorder %s53, %s56
    %p62 = scmp.eq.s32.totalorder %s22, 0
    %p63 = por %p61, %p62
    %p64 = scmp.ne.s32.totalorder %s53, %s56
    %p65 = scmp.eq.s32.totalorder %s27, 1
    %p66 = por %p64, %p65
    %p67 = scmp.ne.s32.totalorder %s56, %s57
    %p68 = scmp.eq.s32.totalorder %s27, 0
    %p69 = por %p67, %p68
    %p70 = scmp.ne.s32.totalorder %s56, %s57
    %p71 = scmp.eq.s32.totalorder %s28, 1
    %p72 = por %p70, %p71
    %p74 = scmp.ne.s32.totalorder %s57, %s73
    %p75 = scmp.eq.s32.totalorder %s28, 0
    %p76 = por %p74, %p75
    %s77 = ssub.s32 %s29, %s48
    %s78 = ssub.s32 %s31, %s40
    %s79 = sor.u32 %s77, %s78
    %p80 = scmp.eq.s32.totalorder %s79, 0
    %s82 = sadd.s32 %s81, 1
    %s83 = scalar_select %p80, %s81, %s82
    %p86 = pneg %p80
    %p87 = scmp.eq.s32.totalorder %s22, 1
    %p88 = por %p86, %p87
    %p89 = scmp.ne.s32.totalorder %s81, %s84
    %p90 = scmp.eq.s32.totalorder %s22, 0
    %p91 = por %p89, %p90
    %p92 = scmp.ne.s32.totalorder %s81, %s84
    %p93 = scmp.eq.s32.totalorder %s27, 1
    %p94 = por %p92, %p93
    %p95 = scmp.ne.s32.totalorder %s84, %s85
    %p96 = scmp.eq.s32.totalorder %s27, 0
    %p97 = por %p95, %p96
    %p98 = scmp.ne.s32.totalorder %s84, %s85
    %p99 = scmp.eq.s32.totalorder %s28, 1
    %p100 = por %p98, %p99
    %p102 = scmp.ne.s32.totalorder %s85, %s101
    %p103 = scmp.eq.s32.totalorder %s28, 0
    %p104 = por %p102, %p103
    %s105 = ssub.s32 %s29, %s48
    %s106 = ssub.s32 %s31, %s40
    %s107 = sor.u32 %s105, %s106
    %p108 = scmp.eq.s32.totalorder %s107, 0
    %s110 = sadd.s32 %s109, 1
    %s111 = scalar_select %p108, %s109, %s110
    %p114 = pneg %p108
    %p115 = scmp.eq.s32.totalorder %s22, 1
    %p116 = por %p114, %p115
    %p117 = scmp.ne.s32.totalorder %s109, %s112
    %p118 = scmp.eq.s32.totalorder %s22, 0
    %p119 = por %p117, %p118
    %p120 = scmp.ne.s32.totalorder %s109, %s112
    %p121 = scmp.eq.s32.totalorder %s27, 1
    %p122 = por %p120, %p121
    %p123 = scmp.ne.s32.totalorder %s112, %s113
    %p124 = scmp.eq.s32.totalorder %s27, 0
    %p125 = por %p123, %p124
    %p126 = scmp.ne.s32.totalorder %s112, %s113
    %p127 = scmp.eq.s32.totalorder %s28, 1
    %p128 = por %p126, %p127
    %p130 = scmp.ne.s32.totalorder %s113, %s129
    %p131 = scmp.eq.s32.totalorder %s28, 0
    %p132 = por %p130, %p131
    %s133 = ssub.s32 %s29, %s48
    %s134 = ssub.s32 %s30, %s44
    %s135 = sor.u32 %s133, %s134
    %p136 = scmp.eq.s32.totalorder %s135, 0
    %s138 = sadd.s32 %s137, 1
    %s139 = scalar_select %p136, %s137, %s138
    %p142 = pneg %p136
    %p143 = scmp.eq.s32.totalorder %s22, 1
    %p144 = por %p142, %p143
    %p145 = scmp.ne.s32.totalorder %s137, %s140
    %p146 = scmp.eq.s32.totalorder %s22, 0
    %p147 = por %p145, %p146
    %p148 = scmp.ne.s32.totalorder %s137, %s140
    %p149 = scmp.eq.s32.totalorder %s27, 1
    %p150 = por %p148, %p149
    %p151 = scmp.ne.s32.totalorder %s140, %s141
    %p152 = scmp.eq.s32.totalorder %s27, 0
    %p153 = por %p151, %p152
    %p154 = scmp.ne.s32.totalorder %s140, %s141
    %p155 = scmp.eq.s32.totalorder %s28, 1
    %p156 = por %p154, %p155
    %p158 = scmp.ne.s32.totalorder %s141, %s157
    %p159 = scmp.eq.s32.totalorder %s28, 0
    %p160 = por %p158, %p159
    %s162 = sadd.s32 %s161, 1
    %p165 = scmp.eq.s32.totalorder %s22, 1
    %p166 = scmp.ne.s32.totalorder %s161, %s163
    %p167 = scmp.eq.s32.totalorder %s22, 0
    %p168 = por %p166, %p167
    %p169 = scmp.ne.s32.totalorder %s161, %s163
    %p170 = scmp.eq.s32.totalorder %s27, 1
    %p171 = por %p169, %p170
    %p172 = scmp.ne.s32.totalorder %s163, %s164
    %p173 = scmp.eq.s32.totalorder %s27, 0
    %p174 = por %p172, %p173
    %p175 = scmp.ne.s32.totalorder %s163, %s164
    %p176 = scmp.eq.s32.totalorder %s28, 1
    %p177 = por %p175, %p176
    %p179 = scmp.ne.s32.totalorder %s164, %s178
    %p180 = scmp.eq.s32.totalorder %s28, 0
    %p181 = por %p179, %p180
    %s183 = sadd.s32 %s182, 1
    %p186 = scmp.eq.s32.totalorder %s22, 1
    %p187 = scmp.ne.s32.totalorder %s182, %s184
    %p188 = scmp.eq.s32.totalorder %s22, 0
    %p189 = por %p187, %p188
    %p190 = scmp.ne.s32.totalorder %s182, %s184
    %p191 = scmp.eq.s32.totalorder %s27, 1
    %p192 = por %p190, %p191
    %p193 = scmp.ne.s32.totalorder %s184, %s185
    %p194 = scmp.eq.s32.totalorder %s27, 0
    %p195 = por %p193, %p194
    %p196 = scmp.ne.s32.totalorder %s184, %s185
    %p197 = scmp.eq.s32.totalorder %s28, 1
    %p198 = por %p196, %p197
    %p200 = scmp.ne.s32.totalorder %s185, %s199
    %p201 = scmp.eq.s32.totalorder %s28, 0
    %p202 = por %p200, %p201
    %s204 = sadd.s32 %s203, 1
    %p207 = scmp.eq.s32.totalorder %s22, 1
    %p208 = scmp.ne.s32.totalorder %s203, %s205
    %p209 = scmp.eq.s32.totalorder %s22, 0
    %p210 = por %p208, %p209
    %p211 = scmp.ne.s32.totalorder %s203, %s205
    %p212 = scmp.eq.s32.totalorder %s27, 1
    %p213 = por %p211, %p212
    %p214 = scmp.ne.s32.totalorder %s205, %s206
    %p215 = scmp.eq.s32.totalorder %s27, 0
    %p216 = por %p214, %p215
    %p217 = scmp.ne.s32.totalorder %s205, %s206
    %p218 = scmp.eq.s32.totalorder %s28, 1
    %p219 = por %p217, %p218
    %p221 = scmp.ne.s32.totalorder %s206, %s220
    %p222 = scmp.eq.s32.totalorder %s28, 0
    %p223 = por %p221, %p222
    %s225 = sadd.s32 %s224, 1
    %p228 = scmp.eq.s32.totalorder %s22, 1
    %p229 = scmp.ne.s32.totalorder %s224, %s226
    %p230 = scmp.eq.s32.totalorder %s22, 0
    %p231 = por %p229, %p230
    %p232 = scmp.ne.s32.totalorder %s224, %s226
    %p233 = scmp.eq.s32.totalorder %s27, 1
    %p234 = por %p232, %p233
    %p235 = scmp.ne.s32.totalorder %s226, %s227
    %p236 = scmp.eq.s32.totalorder %s27, 0
    %p237 = por %p235, %p236
    %p238 = scmp.ne.s32.totalorder %s226, %s227
    %p239 = scmp.eq.s32.totalorder %s28, 1
    %p240 = por %p238, %p239
    %p242 = scmp.ne.s32.totalorder %s227, %s241
    %p243 = scmp.eq.s32.totalorder %s28, 0
    %p244 = por %p242, %p243
    %s246 = sadd.s32 %s245, 1
    %p249 = scmp.eq.s32.totalorder %s22, 1
    %p250 = scmp.ne.s32.totalorder %s245, %s247
    %p251 = scmp.eq.s32.totalorder %s22, 0
    %p252 = por %p250, %p251
    %p253 = scmp.ne.s32.totalorder %s245, %s247
    %p254 = scmp.eq.s32.totalorder %s27, 1
    %p255 = por %p253, %p254
    %p256 = scmp.ne.s32.totalorder %s247, %s248
    %p257 = scmp.eq.s32.totalorder %s27, 0
    %p258 = por %p256, %p257
    %p259 = scmp.ne.s32.totalorder %s247, %s248
    %p260 = scmp.eq.s32.totalorder %s28, 1
    %p261 = por %p259, %p260
    %p263 = scmp.ne.s32.totalorder %s248, %s262
    %p264 = scmp.eq.s32.totalorder %s28, 0
    %p265 = por %p263, %p264
    %s267 = sadd.s32 %s266, 1
    %p270 = scmp.eq.s32.totalorder %s22, 1
    %p271 = scmp.ne.s32.totalorder %s266, %s268
    %p272 = scmp.eq.s32.totalorder %s22, 0
    %p273 = por %p271, %p272
    %p274 = scmp.ne.s32.totalorder %s266, %s268
    %p275 = scmp.eq.s32.totalorder %s27, 1
    %p276 = por %p274, %p275
    %p277 = scmp.ne.s32.totalorder %s268, %s269
    %p278 = scmp.eq.s32.totalorder %s27, 0
    %p279 = por %p277, %p278
    %p280 = scmp.ne.s32.totalorder %s268, %s269
    %p281 = scmp.eq.s32.totalorder %s28, 1
    %p282 = por %p280, %p281
    %p284 = scmp.ne.s32.totalorder %s269, %s283
    %p285 = scmp.eq.s32.totalorder %s28, 0
    %p286 = por %p284, %p285
    %s288 = sadd.s32 %s287, 1
    %p291 = scmp.eq.s32.totalorder %s22, 1
    %p292 = scmp.ne.s32.totalorder %s287, %s289
    %p293 = scmp.eq.s32.totalorder %s22, 0
    %p294 = por %p292, %p293
    %p295 = scmp.ne.s32.totalorder %s287, %s289
    %p296 = scmp.eq.s32.totalorder %s27, 1
    %p297 = por %p295, %p296
    %p298 = scmp.ne.s32.totalorder %s289, %s290
    %p299 = scmp.eq.s32.totalorder %s27, 0
    %p300 = por %p298, %p299
    %p301 = scmp.ne.s32.totalorder %s289, %s290
    %p302 = scmp.eq.s32.totalorder %s28, 1
    %p303 = por %p301, %p302
    %p305 = scmp.ne.s32.totalorder %s290, %s304
    %p306 = scmp.eq.s32.totalorder %s28, 0
    %p307 = por %p305, %p306
    %s309 = sadd.s32 %s308, 1
    %p312 = scmp.eq.s32.totalorder %s22, 1
    %p313 = scmp.ne.s32.totalorder %s308, %s310
    %p314 = scmp.eq.s32.totalorder %s22, 0
    %p315 = por %p313, %p314
    %p316 = scmp.ne.s32.totalorder %s308, %s310
    %p317 = scmp.eq.s32.totalorder %s27, 1
    %p318 = por %p316, %p317
    %p319 = scmp.ne.s32.totalorder %s310, %s311
    %p320 = scmp.eq.s32.totalorder %s27, 0
    %p321 = por %p319, %p320
    %p322 = scmp.ne.s32.totalorder %s310, %s311
    %p323 = scmp.eq.s32.totalorder %s28, 1
    %p324 = por %p322, %p323
    %p326 = scmp.ne.s32.totalorder %s311, %s325
    %p327 = scmp.eq.s32.totalorder %s28, 0
    %p328 = por %p326, %p327
    %s330 = sadd.s32 %s329, 1
    %p333 = scmp.eq.s32.totalorder %s22, 1
    %p334 = scmp.ne.s32.totalorder %s329, %s331
    %p335 = scmp.eq.s32.totalorder %s22, 0
    %p336 = por %p334, %p335
    %p337 = scmp.ne.s32.totalorder %s329, %s331
    %p338 = scmp.eq.s32.totalorder %s27, 1
    %p339 = por %p337, %p338
    %p340 = scmp.ne.s32.totalorder %s331, %s332
    %p341 = scmp.eq.s32.totalorder %s27, 0
    %p342 = por %p340, %p341
    %p343 = scmp.ne.s32.totalorder %s331, %s332
    %p344 = scmp.eq.s32.totalorder %s28, 1
    %p345 = por %p343, %p344
    %p347 = scmp.ne.s32.totalorder %s332, %s346
    %p348 = scmp.eq.s32.totalorder %s28, 0
    %p349 = por %p347, %p348
    %s351 = sadd.s32 %s350, 1
    %p354 = scmp.eq.s32.totalorder %s22, 1
    %p355 = scmp.ne.s32.totalorder %s350, %s352
    %p356 = scmp.eq.s32.totalorder %s22, 0
    %p357 = por %p355, %p356
    %p358 = scmp.ne.s32.totalorder %s350, %s352
    %p359 = scmp.eq.s32.totalorder %s27, 1
    %p360 = por %p358, %p359
    %p361 = scmp.ne.s32.totalorder %s352, %s353
    %p362 = scmp.eq.s32.totalorder %s27, 0
    %p363 = por %p361, %p362
    %p364 = scmp.ne.s32.totalorder %s352, %s353
    %p365 = scmp.eq.s32.totalorder %s28, 1
    %p366 = por %p364, %p365
    %p368 = scmp.ne.s32.totalorder %s353, %s367
    %p369 = scmp.eq.s32.totalorder %s28, 0
    %p370 = por %p368, %p369
    %s372 = sadd.s32 %s371, 1
    %p375 = scmp.eq.s32.totalorder %s22, 1
    %p376 = scmp.ne.s32.totalorder %s371, %s373
    %p377 = scmp.eq.s32.totalorder %s22, 0
    %p378 = por %p376, %p377
    %p379 = scmp.ne.s32.totalorder %s371, %s373
    %p380 = scmp.eq.s32.totalorder %s27, 1
    %p381 = por %p379, %p380
    %p382 = scmp.ne.s32.totalorder %s373, %s374
    %p383 = scmp.eq.s32.totalorder %s27, 0
    %p384 = por %p382, %p383
    %p385 = scmp.ne.s32.totalorder %s373, %s374
    %p386 = scmp.eq.s32.totalorder %s28, 1
    %p387 = por %p385, %p386
    %p389 = scmp.ne.s32.totalorder %s374, %s388
    %p390 = scmp.eq.s32.totalorder %s28, 0
    %p391 = por %p389, %p390
    %s393 = sadd.s32 %s392, 1
    %p396 = scmp.eq.s32.totalorder %s22, 1
    %p397 = scmp.ne.s32.totalorder %s392, %s394
    %p398 = scmp.eq.s32.totalorder %s22, 0
    %p399 = por %p397, %p398
    %p400 = scmp.ne.s32.totalorder %s392, %s394
    %p401 = scmp.eq.s32.totalorder %s27, 1
    %p402 = por %p400, %p401
    %p403 = scmp.ne.s32.totalorder %s394, %s395
    %p404 = scmp.eq.s32.totalorder %s27, 0
    %p405 = por %p403, %p404
    %p406 = scmp.ne.s32.totalorder %s394, %s395
    %p407 = scmp.eq.s32.totalorder %s28, 1
    %p408 = por %p406, %p407
    %p410 = scmp.ne.s32.totalorder %s395, %s409
    %p411 = scmp.eq.s32.totalorder %s28, 0
    %p412 = por %p410, %p411
    %p413 = scmp.le.s32.totalorder 1, %s22
    %p414 = scmp.lt.s32.totalorder %s22, 3
    %p415 = pnand %p413, %p414
    %p416 = pneg %p415
    // Predicated region
    $region9: #{lieresnet_forward.31} parent=5 // pred_check
      _
    $region10: #{lieresnet_forward.31} parent=5 // pred_check_branch
      %418 = sbr.rel (%p415) target = $region12
    $region11: #{lieresnet_forward.31} parent=5 // pred_region
      %s419 = ssub.s32 %s22, 1
      // Predicated region
      $region13: #{lieresnet_forward.31} parent=11 // pred_check
        %p420 = pneg %p174
      $region14: #{lieresnet_forward.31} parent=11 // pred_check_branch
        %422 = sbr.rel (%p420) target = $region16
      $region15: #{lieresnet_forward.31} parent=11 // pred_region
        _
      $region16: #{lieresnet_forward.31} parent=11 // pred_fallthru
        _
      // Predicated region
      $region17: #{lieresnet_forward.31} parent=11 // pred_check
        %p423 = pneg %p195
      $region18: #{lieresnet_forward.31} parent=11 // pred_check_branch
        %425 = sbr.rel (%p423) target = $region20
      $region19: #{lieresnet_forward.31} parent=11 // pred_region
        _
      $region20: #{lieresnet_forward.31} parent=11 // pred_fallthru
        _
      // Predicated region
      $region21: #{lieresnet_forward.31} parent=11 // pred_check
        %p426 = pneg %p216
      $region22: #{lieresnet_forward.31} parent=11 // pred_check_branch
        %428 = sbr.rel (%p426) target = $region24
      $region23: #{lieresnet_forward.31} parent=11 // pred_region
        _
      $region24: #{lieresnet_forward.31} parent=11 // pred_fallthru
        _
      // Predicated region
      $region25: #{lieresnet_forward.31} parent=11 // pred_check
        %p429 = pneg %p237
      $region26: #{lieresnet_forward.31} parent=11 // pred_check_branch
        %431 = sbr.rel (%p429) target = $region28
      $region27: #{lieresnet_forward.31} parent=11 // pred_region
        _
      $region28: #{lieresnet_forward.31} parent=11 // pred_fallthru
        _
      // Predicated region
      $region29: #{lieresnet_forward.31} parent=11 // pred_check
        %p432 = pneg %p258
      $region30: #{lieresnet_forward.31} parent=11 // pred_check_branch
        %434 = sbr.rel (%p432) target = $region32
      $region31: #{lieresnet_forward.31} parent=11 // pred_region
        _
      $region32: #{lieresnet_forward.31} parent=11 // pred_fallthru
        _
      // Predicated region
      $region33: #{lieresnet_forward.31} parent=11 // pred_check
        %p435 = pneg %p279
      $region34: #{lieresnet_forward.31} parent=11 // pred_check_branch
        %437 = sbr.rel (%p435) target = $region36
      $region35: #{lieresnet_forward.31} parent=11 // pred_region
        _
      $region36: #{lieresnet_forward.31} parent=11 // pred_fallthru
        _
      // Predicated region
      $region37: #{lieresnet_forward.31} parent=11 // pred_check
        %p438 = pneg %p300
      $region38: #{lieresnet_forward.31} parent=11 // pred_check_branch
        %440 = sbr.rel (%p438) target = $region40
      $region39: #{lieresnet_forward.31} parent=11 // pred_region
        _
      $region40: #{lieresnet_forward.31} parent=11 // pred_fallthru
        _
      // Predicated region
      $region41: #{lieresnet_forward.31} parent=11 // pred_check
        %p441 = pneg %p321
      $region42: #{lieresnet_forward.31} parent=11 // pred_check_branch
        %443 = sbr.rel (%p441) target = $region44
      $region43: #{lieresnet_forward.31} parent=11 // pred_region
        _
      $region44: #{lieresnet_forward.31} parent=11 // pred_fallthru
        _
      // Predicated region
      $region45: #{lieresnet_forward.31} parent=11 // pred_check
        %p444 = pneg %p342
      $region46: #{lieresnet_forward.31} parent=11 // pred_check_branch
        %446 = sbr.rel (%p444) target = $region48
      $region47: #{lieresnet_forward.31} parent=11 // pred_region
        _
      $region48: #{lieresnet_forward.31} parent=11 // pred_fallthru
        _
      // Predicated region
      $region49: #{lieresnet_forward.31} parent=11 // pred_check
        %p447 = pneg %p363
      $region50: #{lieresnet_forward.31} parent=11 // pred_check_branch
        %449 = sbr.rel (%p447) target = $region52
      $region51: #{lieresnet_forward.31} parent=11 // pred_region
        _
      $region52: #{lieresnet_forward.31} parent=11 // pred_fallthru
        _
    $region12: #{lieresnet_forward.31} parent=5 // pred_fallthru
      _
    %p450 = scmp.lt.s32.totalorder %s22, 2
    // Predicated region
    $region53: #{lieresnet_forward.31} parent=5 // pred_check
      %p451 = pneg %p450
    $region54: #{lieresnet_forward.31} parent=5 // pred_check_branch
      %453 = sbr.rel (%p451) target = $region56
    $region55: #{lieresnet_forward.31} parent=5 // pred_region
      // Predicated region
      $region57: #{lieresnet_forward.31} parent=55 // pred_check
        %p454 = pneg %p63
      $region58: #{lieresnet_forward.31} parent=55 // pred_check_branch
        %456 = sbr.rel (%p454) target = $region60
      $region59: #{lieresnet_forward.31} parent=55 // pred_region
        %p457 = scmp.lt.s32.totalorder %s29, 1
        %s458 = scalar_select %p457, %s29, 1
        %p459 = scmp.lt.s32.totalorder %s30, 0
        %s460 = scalar_select %p459, %s30, 0
        %s461 = sadd.s32 %s460, %s458
        %s462 = smul.addr %s461, 8
        %s463 = scalar_lea.vmem %s0, %s462
      $region60: #{lieresnet_forward.31} parent=55 // pred_fallthru
        _
      // Predicated region
      $region61: #{lieresnet_forward.31} parent=55 // pred_check
        %p464 = pneg %p91
      $region62: #{lieresnet_forward.31} parent=55 // pred_check_branch
        %466 = sbr.rel (%p464) target = $region64
      $region63: #{lieresnet_forward.31} parent=55 // pred_region
        %p467 = scmp.lt.s32.totalorder %s29, 1
        %s468 = scalar_select %p467, %s29, 1
        %p469 = scmp.lt.s32.totalorder %s31, 0
        %s470 = scalar_select %p469, %s31, 0
        %s471 = sadd.s32 %s470, %s468
        %s472 = smul.addr %s471, 8
        %s473 = scalar_lea.vmem %s1, %s472
      $region64: #{lieresnet_forward.31} parent=55 // pred_fallthru
        _
      // Predicated region
      $region65: #{lieresnet_forward.31} parent=55 // pred_check
        %p474 = pneg %p119
      $region66: #{lieresnet_forward.31} parent=55 // pred_check_branch
        %476 = sbr.rel (%p474) target = $region68
      $region67: #{lieresnet_forward.31} parent=55 // pred_region
        %p477 = scmp.lt.s32.totalorder %s29, 1
        %s478 = scalar_select %p477, %s29, 1
        %p479 = scmp.lt.s32.totalorder %s31, 0
        %s480 = scalar_select %p479, %s31, 0
        %s481 = sadd.s32 %s480, %s478
        %s482 = smul.addr %s481, 8
        %s483 = scalar_lea.vmem %s2, %s482
      $region68: #{lieresnet_forward.31} parent=55 // pred_fallthru
        _
      // Predicated region
      $region69: #{lieresnet_forward.31} parent=55 // pred_check
        %p484 = pneg %p147
      $region70: #{lieresnet_forward.31} parent=55 // pred_check_branch
        %486 = sbr.rel (%p484) target = $region72
      $region71: #{lieresnet_forward.31} parent=55 // pred_region
        %p487 = scmp.lt.s32.totalorder %s29, 1
        %s488 = scalar_select %p487, %s29, 1
        %p489 = scmp.lt.s32.totalorder %s30, 0
        %s490 = scalar_select %p489, %s30, 0
        %s491 = sadd.s32 %s490, %s488
        %s492 = smul.addr %s491, 8
        %s493 = scalar_lea.vmem %s3, %s492
      $region72: #{lieresnet_forward.31} parent=55 // pred_fallthru
        _
    $region56: #{lieresnet_forward.31} parent=5 // pred_fallthru
      _
    %p494 = scmp.le.s32.totalorder 1, %s22
    %p495 = scmp.lt.s32.totalorder %s22, 3
    %p496 = pnand %p494, %p495
    %p497 = pneg %p496
    // Predicated region
    $region73: #{lieresnet_forward.31} parent=5 // pred_check
      _
    $region74: #{lieresnet_forward.31} parent=5 // pred_check_branch
      %499 = sbr.rel (%p496) target = $region76
    $region75: #{lieresnet_forward.31} parent=5 // pred_region
      %s500 = ssub.s32 %s22, 1
      %p501 = scmp.lt.s32.totalorder %s32, 1
      %s502 = scalar_select %p501, %s32, 1
      %p503 = scmp.lt.s32.totalorder %s33, 0
      %s504 = scalar_select %p503, %s33, 0
      %s505 = sadd.s32 %s504, %s502
      %s506 = smul.addr %s505, 8
      %s507 = scalar_lea.vmem %s0, %s506
      %p508 = pneg %p69
      %p509 = pneg %p66
      %p510 = scmp.lt.s32.totalorder %s32, 1
      %s511 = scalar_select %p510, %s32, 1
      %p512 = scmp.lt.s32.totalorder %s34, 0
      %s513 = scalar_select %p512, %s34, 0
      %s514 = sadd.s32 %s513, %s511
      %s515 = smul.addr %s514, 8
      %s516 = scalar_lea.vmem %s1, %s515
      %p517 = pneg %p97
      %p518 = pneg %p94
      %p519 = scmp.lt.s32.totalorder %s32, 1
      %s520 = scalar_select %p519, %s32, 1
      %p521 = scmp.lt.s32.totalorder %s34, 0
      %s522 = scalar_select %p521, %s34, 0
      %s523 = sadd.s32 %s522, %s520
      %s524 = smul.addr %s523, 8
      %s525 = scalar_lea.vmem %s2, %s524
      %p526 = pneg %p125
      %p527 = pneg %p122
      %p528 = scmp.lt.s32.totalorder %s32, 1
      %s529 = scalar_select %p528, %s32, 1
      %p530 = scmp.lt.s32.totalorder %s33, 0
      %s531 = scalar_select %p530, %s33, 0
      %s532 = sadd.s32 %s531, %s529
      %s533 = smul.addr %s532, 8
      %s534 = scalar_lea.vmem %s3, %s533
      %p535 = pneg %p153
      %p536 = pneg %p150
      %p537 = pneg %p174
      %p538 = pneg %p171
      %p539 = pneg %p195
      %p540 = pneg %p192
      %p541 = pneg %p216
      %p542 = pneg %p213
      %p543 = pneg %p237
      %p544 = pneg %p234
      %p545 = pneg %p258
      %p546 = pneg %p255
      %p547 = pneg %p279
      %p548 = pneg %p276
      %p549 = pneg %p300
      %p550 = pneg %p297
      %p551 = pneg %p321
      %p552 = pneg %p318
      %p553 = pneg %p342
      %p554 = pneg %p339
      %p555 = pneg %p363
      %p556 = pneg %p360
      %p557 = pneg %p384
      %p558 = pneg %p381
      %p559 = pneg %p405
      %p560 = pneg %p402
      %p561 = scmp.lt.s32.totalorder %s32, 1
      %s562 = scalar_select %p561, %s32, 1
      %p563 = scmp.lt.s32.totalorder %s33, 0
      %s564 = scalar_select %p563, %s33, 0
      %s565 = sadd.s32 %s564, %s562
      %s566 = smul.addr %s565, 8
      %s567 = scalar_lea.vmem %s0, %s566
      %p568 = scmp.lt.s32.totalorder %s32, 1
      %s569 = scalar_select %p568, %s32, 1
      %p570 = scmp.lt.s32.totalorder %s34, 0
      %s571 = scalar_select %p570, %s34, 0
      %s572 = sadd.s32 %s571, %s569
      %s573 = smul.addr %s572, 8
      %s574 = scalar_lea.vmem %s1, %s573
      %p575 = scmp.lt.s32.totalorder %s32, 1
      %s576 = scalar_select %p575, %s32, 1
      %p577 = scmp.lt.s32.totalorder %s34, 0
      %s578 = scalar_select %p577, %s34, 0
      %s579 = sadd.s32 %s578, %s576
      %s580 = smul.addr %s579, 8
      %s581 = scalar_lea.vmem %s2, %s580
      %p582 = scmp.lt.s32.totalorder %s32, 1
      %s583 = scalar_select %p582, %s32, 1
      %p584 = scmp.lt.s32.totalorder %s33, 0
      %s585 = scalar_select %p584, %s33, 0
      %s586 = sadd.s32 %s585, %s583
      %s587 = smul.addr %s586, 8
      %s588 = scalar_lea.vmem %s3, %s587
      %p589 = scmp.eq.s32.totalorder %s32, 0
      %p590 = scmp.eq.s32.totalorder %s33, 0
      %p591 = pnand %p589, %p590
      %p592 = pneg %p591
      %p593 = scmp.eq.s32.totalorder %s34, 0
      %p594 = pnand %p592, %p593
      %p595 = pneg %p594
      // Predicated region
      $region77: #{lieresnet_forward.31} parent=75 // pred_check
        _
      $region78: #{lieresnet_forward.31} parent=75 // pred_check_branch
        %597 = sbr.rel (%p594) target = $region80
      $region79: #{lieresnet_forward.31} parent=75 // pred_region
        %vm598 = vcmask 122880
        %599 = vst.msk [vmem:[%s14] sm:$0x1] %vm598, 0.0
        %600 = vst.msk [vmem:[%s15] sm:$0x1] %vm598, 0.0
      $region80: #{lieresnet_forward.31} parent=75 // pred_fallthru
        _
      %v601 = vld [vmem:[%s567] sm:$0xff]
      %v602 = vld [vmem:[%s574] sm:$0xff]
      %v604 = vcombine.high %v601, %v601
      %v606 = vunpack.c.l.s4 1966171168
      %v607 = vunpack.c.0.s8 %v606
      %v608 = vlaneseq
      %v609 = vshrl.u32 %v608, 7
      %v610 = vsub.s32 %v607, %v609
      %v611 = vrot.slane %v601, %v610
      %v613 = vunpack.c.l.s4 1966171168
      %v614 = vunpack.c.0.s8 %v613
      %v615 = vlaneseq
      %v616 = vshrl.u32 %v615, 7
      %v617 = vsub.s32 %v614, %v616
      %v618 = vrot.slane %v604, %v617
      %v619 = vcombine.high %v611, %v611
      %v620 = vcombine.high %v618, %v618
      %v622 = vunpack.c.l.s4 1966171168
      %v623 = vunpack.c.0.s8 %v622
      %v624 = vlaneseq
      %v625 = vshrl.u32 %v624, 7
      %v626 = vsub.s32 %v623, %v625
      %v627 = vrot.slane %v611, %v626
      %v629 = vunpack.c.l.s4 1966171168
      %v630 = vunpack.c.0.s8 %v629
      %v631 = vlaneseq
      %v632 = vshrl.u32 %v631, 7
      %v633 = vsub.s32 %v630, %v632
      %v634 = vrot.slane %v618, %v633
      %v636 = vunpack.c.l.s4 1966171168
      %v637 = vunpack.c.0.s8 %v636
      %v638 = vlaneseq
      %v639 = vshrl.u32 %v638, 7
      %v640 = vsub.s32 %v637, %v639
      %v641 = vrot.slane %v619, %v640
      %v643 = vunpack.c.l.s4 1966171168
      %v644 = vunpack.c.0.s8 %v643
      %v645 = vlaneseq
      %v646 = vshrl.u32 %v645, 7
      %v647 = vsub.s32 %v644, %v646
      %v648 = vrot.slane %v620, %v647
      %v649 = vcombine.high %v627, %v627
      %v650 = vcombine.high %v634, %v634
      %v651 = vcombine.high %v641, %v641
      %v652 = vcombine.high %v648, %v648
      %v653 = vlaneseq
      %v654 = vshrl.u32 %v653, 7
      %v655 = vsub.s32 0, %v654
      %v656 = vrot.slane %v627, %v655
      %v657 = vlaneseq
      %v658 = vshrl.u32 %v657, 7
      %v659 = vsub.s32 0, %v658
      %v660 = vrot.slane %v641, %v659
      %v661 = vlaneseq
      %v662 = vshrl.u32 %v661, 7
      %v663 = vsub.s32 0, %v662
      %v664 = vrot.slane %v649, %v663
      %v665 = vlaneseq
      %v666 = vshrl.u32 %v665, 7
      %v667 = vsub.s32 0, %v666
      %v668 = vrot.slane %v651, %v667
      %v669 = vlaneseq
      %v670 = vshrl.u32 %v669, 7
      %v671 = vsub.s32 0, %v670
      %v672 = vrot.slane %v634, %v671
      %v673 = vlaneseq
      %v674 = vshrl.u32 %v673, 7
      %v675 = vsub.s32 0, %v674
      %v676 = vrot.slane %v648, %v675
      %v677 = vlaneseq
      %v678 = vshrl.u32 %v677, 7
      %v679 = vsub.s32 0, %v678
      %v680 = vrot.slane %v650, %v679
      %v681 = vlaneseq
      %v682 = vshrl.u32 %v681, 7
      %v683 = vsub.s32 0, %v682
      %v684 = vrot.slane %v652, %v683
      %v693 = vsub.f32 %v656, %v602
      %v694 = vsub.f32 %v660, %v602
      %v695 = vsub.f32 %v664, %v602
      %v696 = vsub.f32 %v668, %v602
      %v697 = vsub.f32 %v672, %v602
      %v698 = vsub.f32 %v676, %v602
      %v699 = vsub.f32 %v680, %v602
      %v700 = vsub.f32 %v684, %v602
      %v701 = vld [vmem:[%s4] sm:$0x7]
      %v702 = vld [vmem:[%s5] sm:$0x1]
      %v704 = vlaneseq
      %v705 = vshrl.u32 %v704, 7
      %v706 = vsub.s32 0, %v705
      %v707 = vrot.slane %v702, %v706
      %vm709 = vcmask 23552
      %v711 = vsel %vm709, %v693, 0
      %v714 = vsel %vm709, %v694, 0
      %v717 = vsel %vm709, %v695, 0
      %v720 = vsel %vm709, %v696, 0
      %v723 = vsel %vm709, %v697, 0
      %v726 = vsel %vm709, %v698, 0
      %v729 = vsel %vm709, %v699, 0
      %v732 = vsel %vm709, %v700, 0
      %vm734 = vcmask 1042432
      %v736 = vsel %vm734, %v701, 0
      %738 = vmatprep.subr.mxu0 0.0
      %739 = vmatpush1.msra.mxu0 %v736
      %740 = vmatprep.subr.mxu0 0.0
      %741 = vmatpush1.msra.mxu0 0.0
      %742 = vmatprep.subr.mxu0 0.0
      %743 = vmatpush1.msra.mxu0 0.0
      %744 = vmatprep.subr.mxu0 0.0
      %745 = vmatpush1.msra.mxu0 0.0
      %746 = vmatprep.subr.mxu0 0.0
      %747 = vmatpush1.msra.mxu0 0.0
      %748 = vmatprep.subr.mxu0 0.0
      %749 = vmatpush1.msra.mxu0 0.0
      %750 = vmatprep.subr.mxu0 0.0
      %751 = vmatpush1.msra.mxu0 0.0
      %752 = vmatprep.subr.mxu0 0.0
      %753 = vmatpush1.msra.mxu0 0.0
      %754 = vmatprep.subr.mxu0 0.0
      %755 = vmatpush1.msra.mxu0 0.0
      %756 = vmatprep.subr.mxu0 0.0
      %757 = vmatpush1.msra.mxu0 0.0
      %758 = vmatprep.subr.mxu0 0.0
      %759 = vmatpush1.msra.mxu0 0.0
      %760 = vmatprep.subr.mxu0 0.0
      %761 = vmatpush1.msra.mxu0 0.0
      %762 = vmatprep.subr.mxu0 0.0
      %763 = vmatpush1.msra.mxu0 0.0
      %764 = vmatprep.subr.mxu0 0.0
      %765 = vmatpush1.msra.mxu0 0.0
      %766 = vmatprep.subr.mxu0 0.0
      %767 = vmatpush1.msra.mxu0 0.0
      %768 = vmatprep.subr.mxu0 0.0
      %769 = vmatpush1.msra.mxu0 0.0
      %770 = vmatprep.subr.mxu0 0.0
      %771 = vmatpush1.msra.mxu0 0.0
      %772 = vmatprep.subr.mxu0 0.0
      %773 = vmatpush1.msra.mxu0 0.0
      %774 = vmatprep.subr.mxu0 0.0
      %775 = vmatpush1.msra.mxu0 0.0
      %776 = vmatprep.subr.mxu0 0.0
      %777 = vmatpush1.msra.mxu0 0.0
      %778 = vmatprep.subr.mxu0 0.0
      %779 = vmatpush1.msra.mxu0 0.0
      %780 = vmatprep.subr.mxu0 0.0
      %781 = vmatpush1.msra.mxu0 0.0
      %782 = vmatprep.subr.mxu0 0.0
      %783 = vmatpush1.msra.mxu0 0.0
      %784 = vmatprep.subr.mxu0 0.0
      %785 = vmatpush1.msra.mxu0 0.0
      %786 = vmatprep.subr.mxu0 0.0
      %787 = vmatpush1.msra.mxu0 0.0
      %788 = vmatprep.subr.mxu0 0.0
      %789 = vmatpush1.msra.mxu0 0.0
      %790 = vmatprep.subr.mxu0 0.0
      %791 = vmatpush1.msra.mxu0 0.0
      %792 = vmatprep.subr.mxu0 0.0
      %793 = vmatpush1.msra.mxu0 0.0
      %794 = vmatprep.subr.mxu0 0.0
      %795 = vmatpush1.msra.mxu0 0.0
      %796 = vmatprep.subr.mxu0 0.0
      %797 = vmatpush1.msra.mxu0 0.0
      %798 = vmatprep.subr.mxu0 0.0
      %799 = vmatpush1.msra.mxu0 0.0
      %800 = vmatprep.subr.mxu0 0.0
      %801 = vmatpush1.msra.mxu0 0.0
      %802 = vmatprep.mubr.f32.mxu0 0.0
      %803 = vmatmul.mubr.f32.gmra.mrb[0].mxu0 %v711
      %v804 = vpop.f32.mrb[0].mxu0
      %v805 = vadd.f32 %v707, %v804
      %v806 = vpop.f32.mrb[0].mxu0
      %807 = vmatprep.mubr.f32.mxu0 0.0
      %808 = vmatmul.mubr.f32.gmra.mrb[0].mxu0 %v714
      %v809 = vpop.f32.mrb[0].mxu0
      %v810 = vadd.f32 %v707, %v809
      %v811 = vpop.f32.mrb[0].mxu0
      %812 = vmatprep.mubr.f32.mxu0 0.0
      %813 = vmatmul.mubr.f32.gmra.mrb[0].mxu0 %v717
      %v814 = vpop.f32.mrb[0].mxu0
      %v815 = vadd.f32 %v707, %v814
      %v816 = vpop.f32.mrb[0].mxu0
      %817 = vmatprep.mubr.f32.mxu0 0.0
      %818 = vmatmul.mubr.f32.gmra.mrb[0].mxu0 %v720
      %v819 = vpop.f32.mrb[0].mxu0
      %v820 = vadd.f32 %v707, %v819
      %v821 = vpop.f32.mrb[0].mxu0
      %822 = vmatprep.mubr.f32.mxu0 0.0
      %823 = vmatmul.mubr.f32.gmra.mrb[0].mxu0 %v723
      %v824 = vpop.f32.mrb[0].mxu0
      %v825 = vadd.f32 %v707, %v824
      %v826 = vpop.f32.mrb[0].mxu0
      %827 = vmatprep.mubr.f32.mxu0 0.0
      %828 = vmatmul.mubr.f32.gmra.mrb[0].mxu0 %v726
      %v829 = vpop.f32.mrb[0].mxu0
      %v830 = vadd.f32 %v707, %v829
      %v831 = vpop.f32.mrb[0].mxu0
      %832 = vmatprep.mubr.f32.mxu0 0.0
      %833 = vmatmul.mubr.f32.gmra.mrb[0].mxu0 %v729
      %v834 = vpop.f32.mrb[0].mxu0
      %v835 = vadd.f32 %v707, %v834
      %v836 = vpop.f32.mrb[0].mxu0
      %837 = vmatprep.mubr.f32.mxu0 0.0
      %838 = vmatmul.mubr.f32.gmra.mrb[0].mxu0 %v732
      %v839 = vpop.f32.mrb[0].mxu0
      %v840 = vadd.f32 %v707, %v839
      %v841 = vpop.f32.mrb[0].mxu0
      %842 = vdwg.mxu0
      %v843 = vld [vmem:[%s6] sm:$0x1]
      %v845 = vlaneseq
      %v846 = vshrl.u32 %v845, 7
      %v847 = vsub.s32 0, %v846
      %v848 = vrot.slane %v843, %v847
      %v850 = vmul.f32 %v805, %v848
      %v851 = vmul.f32 %v810, %v848
      %v852 = vmul.f32 %v815, %v848
      %v853 = vmul.f32 %v820, %v848
      %v854 = vmul.f32 %v825, %v848
      %v855 = vmul.f32 %v830, %v848
      %v856 = vmul.f32 %v835, %v848
      %v857 = vmul.f32 %v840, %v848
      %v858 = vld [vmem:[%s7] sm:$0x1]
      %v860 = vlaneseq
      %v861 = vshrl.u32 %v860, 7
      %v862 = vsub.s32 0, %v861
      %v863 = vrot.slane %v858, %v862
      %v865 = vadd.f32 %v850, %v863
      %v866 = vadd.f32 %v851, %v863
      %v867 = vadd.f32 %v852, %v863
      %v868 = vadd.f32 %v853, %v863
      %v869 = vadd.f32 %v854, %v863
      %v870 = vadd.f32 %v855, %v863
      %v871 = vadd.f32 %v856, %v863
      %v872 = vadd.f32 %v857, %v863
      %v873 = vxor.u32 %v865, 2147483648
      %v874 = vxor.u32 %v866, 2147483648
      %v875 = vxor.u32 %v867, 2147483648
      %v876 = vxor.u32 %v868, 2147483648
      %v877 = vxor.u32 %v869, 2147483648
      %v878 = vxor.u32 %v870, 2147483648
      %v879 = vxor.u32 %v871, 2147483648
      %v880 = vxor.u32 %v872, 2147483648
      %v881 = vmul.f32 %v873, 1.442695
      %v882 = vpow.pop %v881
      %v883 = vmul.f32 %v874, 1.442695
      %v884 = vpow.pop %v883
      %v885 = vmul.f32 %v875, 1.442695
      %v886 = vpow.pop %v885
      %v887 = vmul.f32 %v876, 1.442695
      %v888 = vpow.pop %v887
      %v889 = vmul.f32 %v877, 1.442695
      %v890 = vpow.pop %v889
      %v891 = vmul.f32 %v878, 1.442695
      %v892 = vpow.pop %v891
      %v893 = vmul.f32 %v879, 1.442695
      %v894 = vpow.pop %v893
      %v895 = vmul.f32 %v880, 1.442695
      %v896 = vpow.pop %v895
      %v897 = vadd.f32 %v882, 1.0
      %v898 = vadd.f32 %v884, 1.0
      %v899 = vadd.f32 %v886, 1.0
      %v900 = vadd.f32 %v888, 1.0
      %v901 = vadd.f32 %v890, 1.0
      %v902 = vadd.f32 %v892, 1.0
      %v903 = vadd.f32 %v894, 1.0
      %v904 = vadd.f32 %v896, 1.0
      %v905 = vrcp.pop %v897
      %v906 = vmul.f32 1.0, %v905
      %v907 = vrcp.pop %v898
      %v908 = vmul.f32 1.0, %v907
      %v909 = vrcp.pop %v899
      %v910 = vmul.f32 1.0, %v909
      %v911 = vrcp.pop %v900
      %v912 = vmul.f32 1.0, %v911
      %v913 = vrcp.pop %v901
      %v914 = vmul.f32 1.0, %v913
      %v915 = vrcp.pop %v902
      %v916 = vmul.f32 1.0, %v915
      %v917 = vrcp.pop %v903
      %v918 = vmul.f32 1.0, %v917
      %v919 = vrcp.pop %v904
      %v920 = vmul.f32 1.0, %v919
      %v921 = vmul.f32 %v865, %v906
      %v922 = vmul.f32 %v866, %v908
      %v923 = vmul.f32 %v867, %v910
      %v924 = vmul.f32 %v868, %v912
      %v925 = vmul.f32 %v869, %v914
      %v926 = vmul.f32 %v870, %v916
      %v927 = vmul.f32 %v871, %v918
      %v928 = vmul.f32 %v872, %v920
      %v929 = vld [vmem:[%s8] sm:$0xff]
      %v930 = vld [vmem:[%s8 + $0x8] sm:$0xff]
      %v931 = vld [vmem:[%s8 + $0x10] sm:$0xff]
      %v932 = vld [vmem:[%s8 + $0x18] sm:$0xff]
      %v933 = vld [vmem:[%s9] sm:$0x1]
      %v935 = vlaneseq
      %v936 = vshrl.u32 %v935, 7
      %v937 = vsub.s32 0, %v936
      %v938 = vrot.slane %v933, %v937
      %vm940 = vcmask 261120
      %v942 = vsel %vm940, %v921, 0
      %v945 = vsel %vm940, %v922, 0
      %v948 = vsel %vm940, %v923, 0
      %v951 = vsel %vm940, %v924, 0
      %v954 = vsel %vm940, %v925, 0
      %v957 = vsel %vm940, %v926, 0
      %v960 = vsel %vm940, %v927, 0
      %v963 = vsel %vm940, %v928, 0
      %965 = vmatprep.subr.mxu0 0.0
      %966 = vmatpush1.msra.mxu0 %v929
      %967 = vmatprep.subr.mxu0 0.0
      %968 = vmatpush1.msra.mxu0 %v930
      %969 = vmatprep.subr.mxu0 0.0
      %970 = vmatpush1.msra.mxu0 %v931
      %971 = vmatprep.subr.mxu0 0.0
      %972 = vmatpush1.msra.mxu0 %v932
      %973 = vmatprep.subr.mxu0 0.0
      %974 = vmatpush1.msra.mxu0 0.0
      %975 = vmatprep.subr.mxu0 0.0
      %976 = vmatpush1.msra.mxu0 0.0
      %977 = vmatprep.subr.mxu0 0.0
      %978 = vmatpush1.msra.mxu0 0.0
      %979 = vmatprep.subr.mxu0 0.0
      %980 = vmatpush1.msra.mxu0 0.0
      %981 = vmatprep.subr.mxu0 0.0
      %982 = vmatpush1.msra.mxu0 0.0
      %983 = vmatprep.subr.mxu0 0.0
      %984 = vmatpush1.msra.mxu0 0.0
      %985 = vmatprep.subr.mxu0 0.0
      %986 = vmatpush1.msra.mxu0 0.0
      %987 = vmatprep.subr.mxu0 0.0
      %988 = vmatpush1.msra.mxu0 0.0
      %989 = vmatprep.subr.mxu0 0.0
      %990 = vmatpush1.msra.mxu0 0.0
      %991 = vmatprep.subr.mxu0 0.0
      %992 = vmatpush1.msra.mxu0 0.0
      %993 = vmatprep.subr.mxu0 0.0
      %994 = vmatpush1.msra.mxu0 0.0
      %995 = vmatprep.subr.mxu0 0.0
      %996 = vmatpush1.msra.mxu0 0.0
      %997 = vmatprep.subr.mxu0 0.0
      %998 = vmatpush1.msra.mxu0 0.0
      %999 = vmatprep.subr.mxu0 0.0
      %1000 = vmatpush1.msra.mxu0 0.0
      %1001 = vmatprep.subr.mxu0 0.0
      %1002 = vmatpush1.msra.mxu0 0.0
      %1003 = vmatprep.subr.mxu0 0.0
      %1004 = vmatpush1.msra.mxu0 0.0
      %1005 = vmatprep.subr.mxu0 0.0
      %1006 = vmatpush1.msra.mxu0 0.0
      %1007 = vmatprep.subr.mxu0 0.0
      %1008 = vmatpush1.msra.mxu0 0.0
      %1009 = vmatprep.subr.mxu0 0.0
      %1010 = vmatpush1.msra.mxu0 0.0
      %1011 = vmatprep.subr.mxu0 0.0
      %1012 = vmatpush1.msra.mxu0 0.0
      %1013 = vmatprep.subr.mxu0 0.0
      %1014 = vmatpush1.msra.mxu0 0.0
      %1015 = vmatprep.subr.mxu0 0.0
      %1016 = vmatpush1.msra.mxu0 0.0
      %1017 = vmatprep.subr.mxu0 0.0
      %1018 = vmatpush1.msra.mxu0 0.0
      %1019 = vmatprep.subr.mxu0 0.0
      %1020 = vmatpush1.msra.mxu0 0.0
      %1021 = vmatprep.subr.mxu0 0.0
      %1022 = vmatpush1.msra.mxu0 0.0
      %1023 = vmatprep.subr.mxu0 0.0
      %1024 = vmatpush1.msra.mxu0 0.0
      %1025 = vmatprep.subr.mxu0 0.0
      %1026 = vmatpush1.msra.mxu0 0.0
      %1027 = vmatprep.subr.mxu0 0.0
      %1028 = vmatpush1.msra.mxu0 0.0
      %1029 = vmatprep.mubr.f32.mxu0 0.0
      %1030 = vmatmul.mubr.f32.gmra.mrb[0].mxu0 %v942
      %v1031 = vpop.f32.mrb[0].mxu0
      %v1032 = vadd.f32 %v938, %v1031
      %v1033 = vpop.f32.mrb[0].mxu0
      %1034 = vmatprep.mubr.f32.mxu0 0.0
      %1035 = vmatmul.mubr.f32.gmra.mrb[0].mxu0 %v945
      %v1036 = vpop.f32.mrb[0].mxu0
      %v1037 = vadd.f32 %v938, %v1036
      %v1038 = vpop.f32.mrb[0].mxu0
      %1039 = vmatprep.mubr.f32.mxu0 0.0
      %1040 = vmatmul.mubr.f32.gmra.mrb[0].mxu0 %v948
      %v1041 = vpop.f32.mrb[0].mxu0
      %v1042 = vadd.f32 %v938, %v1041
      %v1043 = vpop.f32.mrb[0].mxu0
      %1044 = vmatprep.mubr.f32.mxu0 0.0
      %1045 = vmatmul.mubr.f32.gmra.mrb[0].mxu0 %v951
      %v1046 = vpop.f32.mrb[0].mxu0
      %v1047 = vadd.f32 %v938, %v1046
      %v1048 = vpop.f32.mrb[0].mxu0
      %1049 = vmatprep.mubr.f32.mxu0 0.0
      %1050 = vmatmul.mubr.f32.gmra.mrb[0].mxu0 %v954
      %v1051 = vpop.f32.mrb[0].mxu0
      %v1052 = vadd.f32 %v938, %v1051
      %v1053 = vpop.f32.mrb[0].mxu0
      %1054 = vmatprep.mubr.f32.mxu0 0.0
      %1055 = vmatmul.mubr.f32.gmra.mrb[0].mxu0 %v957
      %v1056 = vpop.f32.mrb[0].mxu0
      %v1057 = vadd.f32 %v938, %v1056
      %v1058 = vpop.f32.mrb[0].mxu0
      %1059 = vmatprep.mubr.f32.mxu0 0.0
      %1060 = vmatmul.mubr.f32.gmra.mrb[0].mxu0 %v960
      %v1061 = vpop.f32.mrb[0].mxu0
      %v1062 = vadd.f32 %v938, %v1061
      %v1063 = vpop.f32.mrb[0].mxu0
      %1064 = vmatprep.mubr.f32.mxu0 0.0
      %1065 = vmatmul.mubr.f32.gmra.mrb[0].mxu0 %v963
      %v1066 = vpop.f32.mrb[0].mxu0
      %v1067 = vadd.f32 %v938, %v1066
      %v1068 = vpop.f32.mrb[0].mxu0
      %1069 = vdwg.mxu0
      %v1070 = vld [vmem:[%s10] sm:$0x1]
      %v1072 = vlaneseq
      %v1073 = vshrl.u32 %v1072, 7
      %v1074 = vsub.s32 0, %v1073
      %v1075 = vrot.slane %v1070, %v1074
      %v1077 = vmul.f32 %v1032, %v1075
      %v1078 = vmul.f32 %v1037, %v1075
      %v1079 = vmul.f32 %v1042, %v1075
      %v1080 = vmul.f32 %v1047, %v1075
      %v1081 = vmul.f32 %v1052, %v1075
      %v1082 = vmul.f32 %v1057, %v1075
      %v1083 = vmul.f32 %v1062, %v1075
      %v1084 = vmul.f32 %v1067, %v1075
      %v1085 = vld [vmem:[%s11] sm:$0x1]
      %v1087 = vlaneseq
      %v1088 = vshrl.u32 %v1087, 7
      %v1089 = vsub.s32 0, %v1088
      %v1090 = vrot.slane %v1085, %v1089
      %v1092 = vadd.f32 %v1077, %v1090
      %v1093 = vadd.f32 %v1078, %v1090
      %v1094 = vadd.f32 %v1079, %v1090
      %v1095 = vadd.f32 %v1080, %v1090
      %v1096 = vadd.f32 %v1081, %v1090
      %v1097 = vadd.f32 %v1082, %v1090
      %v1098 = vadd.f32 %v1083, %v1090
      %v1099 = vadd.f32 %v1084, %v1090
      %v1100 = vxor.u32 %v1092, 2147483648
      %v1101 = vxor.u32 %v1093, 2147483648
      %v1102 = vxor.u32 %v1094, 2147483648
      %v1103 = vxor.u32 %v1095, 2147483648
      %v1104 = vxor.u32 %v1096, 2147483648
      %v1105 = vxor.u32 %v1097, 2147483648
      %v1106 = vxor.u32 %v1098, 2147483648
      %v1107 = vxor.u32 %v1099, 2147483648
      %v1108 = vmul.f32 %v1100, 1.442695
      %v1109 = vpow.pop %v1108
      %v1110 = vmul.f32 %v1101, 1.442695
      %v1111 = vpow.pop %v1110
      %v1112 = vmul.f32 %v1102, 1.442695
      %v1113 = vpow.pop %v1112
      %v1114 = vmul.f32 %v1103, 1.442695
      %v1115 = vpow.pop %v1114
      %v1116 = vmul.f32 %v1104, 1.442695
      %v1117 = vpow.pop %v1116
      %v1118 = vmul.f32 %v1105, 1.442695
      %v1119 = vpow.pop %v1118
      %v1120 = vmul.f32 %v1106, 1.442695
      %v1121 = vpow.pop %v1120
      %v1122 = vmul.f32 %v1107, 1.442695
      %v1123 = vpow.pop %v1122
      %v1124 = vadd.f32 %v1109, 1.0
      %v1125 = vadd.f32 %v1111, 1.0
      %v1126 = vadd.f32 %v1113, 1.0
      %v1127 = vadd.f32 %v1115, 1.0
      %v1128 = vadd.f32 %v1117, 1.0
      %v1129 = vadd.f32 %v1119, 1.0
      %v1130 = vadd.f32 %v1121, 1.0
      %v1131 = vadd.f32 %v1123, 1.0
      %v1132 = vrcp.pop %v1124
      %v1133 = vmul.f32 1.0, %v1132
      %v1134 = vrcp.pop %v1125
      %v1135 = vmul.f32 1.0, %v1134
      %v1136 = vrcp.pop %v1126
      %v1137 = vmul.f32 1.0, %v1136
      %v1138 = vrcp.pop %v1127
      %v1139 = vmul.f32 1.0, %v1138
      %v1140 = vrcp.pop %v1128
      %v1141 = vmul.f32 1.0, %v1140
      %v1142 = vrcp.pop %v1129
      %v1143 = vmul.f32 1.0, %v1142
      %v1144 = vrcp.pop %v1130
      %v1145 = vmul.f32 1.0, %v1144
      %v1146 = vrcp.pop %v1131
      %v1147 = vmul.f32 1.0, %v1146
      %v1148 = vmul.f32 %v1092, %v1133
      %v1149 = vmul.f32 %v1093, %v1135
      %v1150 = vmul.f32 %v1094, %v1137
      %v1151 = vmul.f32 %v1095, %v1139
      %v1152 = vmul.f32 %v1096, %v1141
      %v1153 = vmul.f32 %v1097, %v1143
      %v1154 = vmul.f32 %v1098, %v1145
      %v1155 = vmul.f32 %v1099, %v1147
      %v1156 = vld [vmem:[%s12] sm:$0xff]
      %v1157 = vld [vmem:[%s12 + $0x8] sm:$0xff]
      %v1158 = vld [vmem:[%s12 + $0x10] sm:$0xff]
      %v1159 = vld [vmem:[%s12 + $0x18] sm:$0xff]
      %v1160 = vld [vmem:[%s13] sm:$0x1]
      %v1162 = vlaneseq
      %v1163 = vshrl.u32 %v1162, 7
      %v1164 = vsub.s32 0, %v1163
      %v1165 = vrot.slane %v1160, %v1164
      %v1168 = vsel %vm940, %v1148, 0
      %v1171 = vsel %vm940, %v1149, 0
      %v1174 = vsel %vm940, %v1150, 0
      %v1177 = vsel %vm940, %v1151, 0
      %v1180 = vsel %vm940, %v1152, 0
      %v1183 = vsel %vm940, %v1153, 0
      %v1186 = vsel %vm940, %v1154, 0
      %v1189 = vsel %vm940, %v1155, 0
      %1191 = vmatprep.subr.mxu0 0.0
      %1192 = vmatpush1.msra.mxu0 %v1156
      %1193 = vmatprep.subr.mxu0 0.0
      %1194 = vmatpush1.msra.mxu0 %v1157
      %1195 = vmatprep.subr.mxu0 0.0
      %1196 = vmatpush1.msra.mxu0 %v1158
      %1197 = vmatprep.subr.mxu0 0.0
      %1198 = vmatpush1.msra.mxu0 %v1159
      %1199 = vmatprep.subr.mxu0 0.0
      %1200 = vmatpush1.msra.mxu0 0.0
      %1201 = vmatprep.subr.mxu0 0.0
      %1202 = vmatpush1.msra.mxu0 0.0
      %1203 = vmatprep.subr.mxu0 0.0
      %1204 = vmatpush1.msra.mxu0 0.0
      %1205 = vmatprep.subr.mxu0 0.0
      %1206 = vmatpush1.msra.mxu0 0.0
      %1207 = vmatprep.subr.mxu0 0.0
      %1208 = vmatpush1.msra.mxu0 0.0
      %1209 = vmatprep.subr.mxu0 0.0
      %1210 = vmatpush1.msra.mxu0 0.0
      %1211 = vmatprep.subr.mxu0 0.0
      %1212 = vmatpush1.msra.mxu0 0.0
      %1213 = vmatprep.subr.mxu0 0.0
      %1214 = vmatpush1.msra.mxu0 0.0
      %1215 = vmatprep.subr.mxu0 0.0
      %1216 = vmatpush1.msra.mxu0 0.0
      %1217 = vmatprep.subr.mxu0 0.0
      %1218 = vmatpush1.msra.mxu0 0.0
      %1219 = vmatprep.subr.mxu0 0.0
      %1220 = vmatpush1.msra.mxu0 0.0
      %1221 = vmatprep.subr.mxu0 0.0
      %1222 = vmatpush1.msra.mxu0 0.0
      %1223 = vmatprep.subr.mxu0 0.0
      %1224 = vmatpush1.msra.mxu0 0.0
      %1225 = vmatprep.subr.mxu0 0.0
      %1226 = vmatpush1.msra.mxu0 0.0
      %1227 = vmatprep.subr.mxu0 0.0
      %1228 = vmatpush1.msra.mxu0 0.0
      %1229 = vmatprep.subr.mxu0 0.0
      %1230 = vmatpush1.msra.mxu0 0.0
      %1231 = vmatprep.subr.mxu0 0.0
      %1232 = vmatpush1.msra.mxu0 0.0
      %1233 = vmatprep.subr.mxu0 0.0
      %1234 = vmatpush1.msra.mxu0 0.0
      %1235 = vmatprep.subr.mxu0 0.0
      %1236 = vmatpush1.msra.mxu0 0.0
      %1237 = vmatprep.subr.mxu0 0.0
      %1238 = vmatpush1.msra.mxu0 0.0
      %1239 = vmatprep.subr.mxu0 0.0
      %1240 = vmatpush1.msra.mxu0 0.0
      %1241 = vmatprep.subr.mxu0 0.0
      %1242 = vmatpush1.msra.mxu0 0.0
      %1243 = vmatprep.subr.mxu0 0.0
      %1244 = vmatpush1.msra.mxu0 0.0
      %1245 = vmatprep.subr.mxu0 0.0
      %1246 = vmatpush1.msra.mxu0 0.0
      %1247 = vmatprep.subr.mxu0 0.0
      %1248 = vmatpush1.msra.mxu0 0.0
      %1249 = vmatprep.subr.mxu0 0.0
      %1250 = vmatpush1.msra.mxu0 0.0
      %1251 = vmatprep.subr.mxu0 0.0
      %1252 = vmatpush1.msra.mxu0 0.0
      %1253 = vmatprep.subr.mxu0 0.0
      %1254 = vmatpush1.msra.mxu0 0.0
      %1255 = vmatprep.mubr.f32.mxu0 0.0
      %1256 = vmatmul.mubr.f32.gmra.mrb[0].mxu0 %v1168
      %v1257 = vpop.f32.mrb[0].mxu0
      %v1258 = vadd.f32 %v1165, %v1257
      %v1259 = vpop.f32.mrb[0].mxu0
      %1260 = vmatprep.mubr.f32.mxu0 0.0
      %1261 = vmatmul.mubr.f32.gmra.mrb[0].mxu0 %v1171
      %v1262 = vpop.f32.mrb[0].mxu0
      %v1263 = vadd.f32 %v1165, %v1262
      %v1264 = vpop.f32.mrb[0].mxu0
      %1265 = vmatprep.mubr.f32.mxu0 0.0
      %1266 = vmatmul.mubr.f32.gmra.mrb[0].mxu0 %v1174
      %v1267 = vpop.f32.mrb[0].mxu0
      %v1268 = vadd.f32 %v1165, %v1267
      %v1269 = vpop.f32.mrb[0].mxu0
      %1270 = vmatprep.mubr.f32.mxu0 0.0
      %1271 = vmatmul.mubr.f32.gmra.mrb[0].mxu0 %v1177
      %v1272 = vpop.f32.mrb[0].mxu0
      %v1273 = vadd.f32 %v1165, %v1272
      %v1274 = vpop.f32.mrb[0].mxu0
      %1275 = vmatprep.mubr.f32.mxu0 0.0
      %1276 = vmatmul.mubr.f32.gmra.mrb[0].mxu0 %v1180
      %v1277 = vpop.f32.mrb[0].mxu0
      %v1278 = vadd.f32 %v1165, %v1277
      %v1279 = vpop.f32.mrb[0].mxu0
      %1280 = vmatprep.mubr.f32.mxu0 0.0
      %1281 = vmatmul.mubr.f32.gmra.mrb[0].mxu0 %v1183
      %v1282 = vpop.f32.mrb[0].mxu0
      %v1283 = vadd.f32 %v1165, %v1282
      %v1284 = vpop.f32.mrb[0].mxu0
      %1285 = vmatprep.mubr.f32.mxu0 0.0
      %1286 = vmatmul.mubr.f32.gmra.mrb[0].mxu0 %v1186
      %v1287 = vpop.f32.mrb[0].mxu0
      %v1288 = vadd.f32 %v1165, %v1287
      %v1289 = vpop.f32.mrb[0].mxu0
      %1290 = vmatprep.mubr.f32.mxu0 0.0
      %1291 = vmatmul.mubr.f32.gmra.mrb[0].mxu0 %v1189
      %v1292 = vpop.f32.mrb[0].mxu0
      %v1293 = vadd.f32 %v1165, %v1292
      %v1294 = vpop.f32.mrb[0].mxu0
      %1295 = vdwg.mxu0
      %v1296 = vld [vmem:[%s588] sm:$0xff]
      %v1298 = vcombine.high %v1296, %v1296
      %v1300 = vunpack.c.l.s4 1966171168
      %v1301 = vunpack.c.0.s8 %v1300
      %v1302 = vlaneseq
      %v1303 = vshrl.u32 %v1302, 7
      %v1304 = vsub.s32 %v1301, %v1303
      %v1305 = vrot.slane %v1296, %v1304
      %v1307 = vunpack.c.l.s4 1966171168
      %v1308 = vunpack.c.0.s8 %v1307
      %v1309 = vlaneseq
      %v1310 = vshrl.u32 %v1309, 7
      %v1311 = vsub.s32 %v1308, %v1310
      %v1312 = vrot.slane %v1298, %v1311
      %v1313 = vcombine.high %v1305, %v1305
      %v1314 = vcombine.high %v1312, %v1312
      %v1316 = vunpack.c.l.s4 1966171168
      %v1317 = vunpack.c.0.s8 %v1316
      %v1318 = vlaneseq
      %v1319 = vshrl.u32 %v1318, 7
      %v1320 = vsub.s32 %v1317, %v1319
      %v1321 = vrot.slane %v1305, %v1320
      %v1323 = vunpack.c.l.s4 1966171168
      %v1324 = vunpack.c.0.s8 %v1323
      %v1325 = vlaneseq
      %v1326 = vshrl.u32 %v1325, 7
      %v1327 = vsub.s32 %v1324, %v1326
      %v1328 = vrot.slane %v1312, %v1327
      %v1330 = vunpack.c.l.s4 1966171168
      %v1331 = vunpack.c.0.s8 %v1330
      %v1332 = vlaneseq
      %v1333 = vshrl.u32 %v1332, 7
      %v1334 = vsub.s32 %v1331, %v1333
      %v1335 = vrot.slane %v1313, %v1334
      %v1337 = vunpack.c.l.s4 1966171168
      %v1338 = vunpack.c.0.s8 %v1337
      %v1339 = vlaneseq
      %v1340 = vshrl.u32 %v1339, 7
      %v1341 = vsub.s32 %v1338, %v1340
      %v1342 = vrot.slane %v1314, %v1341
      %v1343 = vcombine.high %v1321, %v1321
      %v1344 = vcombine.high %v1328, %v1328
      %v1345 = vcombine.high %v1335, %v1335
      %v1346 = vcombine.high %v1342, %v1342
      %v1347 = vld [vmem:[%s581] sm:$0xff]
      %v1348 = vlaneseq
      %v1349 = vshrl.u32 %v1348, 7
      %v1350 = vsub.s32 0, %v1349
      %v1351 = vrot.slane %v1321, %v1350
      %v1352 = vlaneseq
      %v1353 = vshrl.u32 %v1352, 7
      %v1354 = vsub.s32 0, %v1353
      %v1355 = vrot.slane %v1335, %v1354
      %v1356 = vlaneseq
      %v1357 = vshrl.u32 %v1356, 7
      %v1358 = vsub.s32 0, %v1357
      %v1359 = vrot.slane %v1343, %v1358
      %v1360 = vlaneseq
      %v1361 = vshrl.u32 %v1360, 7
      %v1362 = vsub.s32 0, %v1361
      %v1363 = vrot.slane %v1345, %v1362
      %v1364 = vlaneseq
      %v1365 = vshrl.u32 %v1364, 7
      %v1366 = vsub.s32 0, %v1365
      %v1367 = vrot.slane %v1328, %v1366
      %v1368 = vlaneseq
      %v1369 = vshrl.u32 %v1368, 7
      %v1370 = vsub.s32 0, %v1369
      %v1371 = vrot.slane %v1342, %v1370
      %v1372 = vlaneseq
      %v1373 = vshrl.u32 %v1372, 7
      %v1374 = vsub.s32 0, %v1373
      %v1375 = vrot.slane %v1344, %v1374
      %v1376 = vlaneseq
      %v1377 = vshrl.u32 %v1376, 7
      %v1378 = vsub.s32 0, %v1377
      %v1379 = vrot.slane %v1346, %v1378
      %v1388 = vmul.f32 %v1351, %v1347
      %v1389 = vmul.f32 %v1355, %v1347
      %v1390 = vmul.f32 %v1359, %v1347
      %v1391 = vmul.f32 %v1363, %v1347
      %v1392 = vmul.f32 %v1367, %v1347
      %v1393 = vmul.f32 %v1371, %v1347
      %v1394 = vmul.f32 %v1375, %v1347
      %v1395 = vmul.f32 %v1379, %v1347
      %1397 = vset.pattern.permute.xlu0 0
      %1398 = vperm.xlu0 %1397, %v1388
      %v1399 = vpop.permute.xlu0 %1398
      %1402 = vset.pattern.permute.xlu0 0
      %1403 = vperm.xlu0 %1402, %v1389
      %v1404 = vpop.permute.xlu0 %1403
      %1407 = vset.pattern.permute.xlu0 0
      %1408 = vperm.xlu0 %1407, %v1390
      %v1409 = vpop.permute.xlu0 %1408
      %1412 = vset.pattern.permute.xlu0 0
      %1413 = vperm.xlu0 %1412, %v1391
      %v1414 = vpop.permute.xlu0 %1413
      %1417 = vset.pattern.permute.xlu0 0
      %1418 = vperm.xlu0 %1417, %v1392
      %v1419 = vpop.permute.xlu0 %1418
      %1422 = vset.pattern.permute.xlu0 0
      %1423 = vperm.xlu0 %1422, %v1393
      %v1424 = vpop.permute.xlu0 %1423
      %1427 = vset.pattern.permute.xlu0 0
      %1428 = vperm.xlu0 %1427, %v1394
      %v1429 = vpop.permute.xlu0 %1428
      %1432 = vset.pattern.permute.xlu0 0
      %1433 = vperm.xlu0 %1432, %v1395
      %v1434 = vpop.permute.xlu0 %1433
      %v1436 = vmul.f32 %v1258, %v1399
      %v1437 = vmul.f32 %v1263, %v1404
      %v1438 = vmul.f32 %v1268, %v1409
      %v1439 = vmul.f32 %v1273, %v1414
      %v1440 = vmul.f32 %v1278, %v1419
      %v1441 = vmul.f32 %v1283, %v1424
      %v1442 = vmul.f32 %v1288, %v1429
      %v1443 = vmul.f32 %v1293, %v1434
      %v1444 = vld [vmem:[%s14] sm:$0x1]
      %vm1445 = vcmask 130048
      %v1446 = vsel %vm1445, %v1436, 0.0
      %v1447 = vsel %vm1445, %v1437, 0.0
      %v1448 = vadd.f32 %v1446, %v1447
      %v1449 = vsel %vm1445, %v1438, 0.0
      %v1450 = vadd.f32 %v1448, %v1449
      %v1451 = vsel %vm1445, %v1439, 0.0
      %v1452 = vadd.f32 %v1450, %v1451
      %v1453 = vsel %vm1445, %v1440, 0.0
      %v1454 = vadd.f32 %v1452, %v1453
      %v1455 = vsel %vm1445, %v1441, 0.0
      %v1456 = vadd.f32 %v1454, %v1455
      %v1457 = vsel %vm1445, %v1442, 0.0
      %v1458 = vadd.f32 %v1456, %v1457
      %v1459 = vsel %vm1445, %v1443, 0.0
      %v1460 = vadd.f32 %v1458, %v1459
      %v1461 = vrot.slane %v1460, 4
      %v1462 = vadd.f32 %v1460, %v1461
      %v1463 = vrot.slane %v1462, 2
      %v1464 = vadd.f32 %v1462, %v1463
      %v1465 = vrot.slane %v1464, 1
      %v1466 = vadd.f32 %v1464, %v1465
      %v1467 = vadd.f32 %v1444, %v1466
      %vm1468 = vcmask 122880
      %1469 = vst.msk [vmem:[%s14] sm:$0x1] %vm1468, %v1467
      %v1470 = vld [vmem:[%s15] sm:$0x1]
      %v1471 = vmul.f32 %v1436, %v1436
      %v1472 = vmul.f32 %v1437, %v1437
      %v1473 = vmul.f32 %v1438, %v1438
      %v1474 = vmul.f32 %v1439, %v1439
      %v1475 = vmul.f32 %v1440, %v1440
      %v1476 = vmul.f32 %v1441, %v1441
      %v1477 = vmul.f32 %v1442, %v1442
      %v1478 = vmul.f32 %v1443, %v1443
      %v1479 = vsel %vm1445, %v1471, 0.0
      %v1480 = vsel %vm1445, %v1472, 0.0
      %v1481 = vadd.f32 %v1479, %v1480
      %v1482 = vsel %vm1445, %v1473, 0.0
      %v1483 = vadd.f32 %v1481, %v1482
      %v1484 = vsel %vm1445, %v1474, 0.0
      %v1485 = vadd.f32 %v1483, %v1484
      %v1486 = vsel %vm1445, %v1475, 0.0
      %v1487 = vadd.f32 %v1485, %v1486
      %v1488 = vsel %vm1445, %v1476, 0.0
      %v1489 = vadd.f32 %v1487, %v1488
      %v1490 = vsel %vm1445, %v1477, 0.0
      %v1491 = vadd.f32 %v1489, %v1490
      %v1492 = vsel %vm1445, %v1478, 0.0
      %v1493 = vadd.f32 %v1491, %v1492
      %v1494 = vrot.slane %v1493, 4
      %v1495 = vadd.f32 %v1493, %v1494
      %v1496 = vrot.slane %v1495, 2
      %v1497 = vadd.f32 %v1495, %v1496
      %v1498 = vrot.slane %v1497, 1
      %v1499 = vadd.f32 %v1497, %v1498
      %v1500 = vadd.f32 %v1470, %v1499
      %1501 = vst.msk [vmem:[%s15] sm:$0x1] %vm1468, %v1500
      // Predicated region
      $region81: #{lieresnet_forward.31} parent=75 // pred_check
        %p1502 = pneg %p381
      $region82: #{lieresnet_forward.31} parent=75 // pred_check_branch
        %1504 = sbr.rel (%p1502) target = $region84
      $region83: #{lieresnet_forward.31} parent=75 // pred_region
        _
      $region84: #{lieresnet_forward.31} parent=75 // pred_fallthru
        _
      // Predicated region
      $region85: #{lieresnet_forward.31} parent=75 // pred_check
        %p1505 = pneg %p402
      $region86: #{lieresnet_forward.31} parent=75 // pred_check_branch
        %1507 = sbr.rel (%p1505) target = $region88
      $region87: #{lieresnet_forward.31} parent=75 // pred_region
        _
      $region88: #{lieresnet_forward.31} parent=75 // pred_fallthru
        _
      // Predicated region
      $region89: #{lieresnet_forward.31} parent=75 // pred_check
        %p1508 = pneg %p381
      $region90: #{lieresnet_forward.31} parent=75 // pred_check_branch
        %1510 = sbr.rel (%p1508) target = $region92
      $region91: #{lieresnet_forward.31} parent=75 // pred_region
        _
      $region92: #{lieresnet_forward.31} parent=75 // pred_fallthru
        _
      // Predicated region
      $region93: #{lieresnet_forward.31} parent=75 // pred_check
        %p1511 = pneg %p402
      $region94: #{lieresnet_forward.31} parent=75 // pred_check_branch
        %1513 = sbr.rel (%p1511) target = $region96
      $region95: #{lieresnet_forward.31} parent=75 // pred_region
        _
      $region96: #{lieresnet_forward.31} parent=75 // pred_fallthru
        _
    $region76: #{lieresnet_forward.31} parent=5 // pred_fallthru
      _
    %p1514 = scmp.le.s32.totalorder 2, %s22
    // Predicated region
    $region97: #{lieresnet_forward.31} parent=5 // pred_check
      %p1515 = pneg %p1514
    $region98: #{lieresnet_forward.31} parent=5 // pred_check_branch
      %1517 = sbr.rel (%p1515) target = $region100
    $region99: #{lieresnet_forward.31} parent=5 // pred_region
      %s1518 = ssub.s32 %s22, 2
    $region100: #{lieresnet_forward.31} parent=5 // pred_fallthru
      _
  $region6: #{lieresnet_forward.31} parent=0 // loop_footer
    %s26 = sadd.s32 1, %s22
  $region7: #{lieresnet_forward.31} parent=0 // loop_footer_branch
    %21 = sbr.rel target = $region3
  $region8: #{lieresnet_forward.31} parent=0 // loop_exit
    _

// kernel: lieresnet_forward.25
$region0: #{lieresnet_forward.25}
  #allocation0 [shape = 'u32[]', space=smem, size = 0x4, offset = 0x4, fixed_abs, tag = 'smem constant byte address 0x4 - core index']
  #allocation1 [shape = 'u32[144,128]{1,0:T(1,128)}', space=vmem, size = 0x12000, scoped, tag = 'internal scratch']
  %s0 = inlined_call_operand.vmem [shape: f32[16,32], index: 0, kind: input, shape index: {}]
  %s1 = inlined_call_operand.vmem [shape: f32[16,1], index: 1, kind: input, shape index: {}]
  %s2 = inlined_call_operand.vmem [shape: f32[1,32], index: 2, kind: output, shape index: {0}]
  %s3 = inlined_call_operand.vmem [shape: f32[1,32], index: 3, kind: output, shape index: {1}]
  %4 = xla_tuple %s2, %s3
  %s5 = sld [smem:[#allocation0]]
  $region30: #{lieresnet_forward.25} parent=0
    _
  %s7 = ssub.s32 1, %s5
  %s8 = scalar_select 0, %s7, %s5
  // Predicated region
  $region2: #{lieresnet_forward.25} parent=0 // pred_check
    _
  $region3: #{lieresnet_forward.25} parent=0 // pred_check_branch
    %10 = sbr.rel (0) target = $region5
  $region4: #{lieresnet_forward.25} parent=0 // pred_region
    _
  $region5: #{lieresnet_forward.25} parent=0 // pred_fallthru
    _
  // Predicated region
  $region6: #{lieresnet_forward.25} parent=0 // pred_check
    _
  $region7: #{lieresnet_forward.25} parent=0 // pred_check_branch
    %12 = sbr.rel (0) target = $region9
  $region8: #{lieresnet_forward.25} parent=0 // pred_region
    _
  $region9: #{lieresnet_forward.25} parent=0 // pred_fallthru
    _
  %p13 = scmp.eq.s32.totalorder 0, 0
  // Predicated region
  $region10: #{lieresnet_forward.25} parent=0 // pred_check
    %p14 = pneg %p13
  $region11: #{lieresnet_forward.25} parent=0 // pred_check_branch
    %16 = sbr.rel (%p14) target = $region13
  $region12: #{lieresnet_forward.25} parent=0 // pred_region
    %vm17 = vcmask 253952
    %18 = vst.msk [vmem:[%s2] sm:$0x1] %vm17, 0.0
    %19 = vst.msk [vmem:[%s3] sm:$0x1] %vm17, 0.0
  $region13: #{lieresnet_forward.25} parent=0 // pred_fallthru
    _
  %v20 = vld [vmem:[%s0] sm:$0xff]
  %v21 = vld [vmem:[%s0 + $0x8] sm:$0xff]
  %v22 = vld [vmem:[%s1] sm:$0xff]
  %v23 = vld [vmem:[%s1 + $0x8] sm:$0xff]
  %25 = vset.pattern.permute.xlu0 0
  %26 = vperm.xlu0 %25, %v22
  %v27 = vpop.permute.xlu0 %26
  %30 = vset.pattern.permute.xlu0 0
  %31 = vperm.xlu0 %30, %v23
  %v32 = vpop.permute.xlu0 %31
  %v34 = vmul.f32 %v20, %v27
  %v35 = vmul.f32 %v21, %v32
  %v36 = vld [vmem:[%s2] sm:$0x1]
  %vm37 = vcmask 261120
  %v38 = vsel %vm37, %v34, 0.0
  %v39 = vsel %vm37, %v35, 0.0
  %v40 = vadd.f32 %v38, %v39
  %v41 = vrot.slane %v40, 4
  %v42 = vadd.f32 %v40, %v41
  %v43 = vrot.slane %v42, 2
  %v44 = vadd.f32 %v42, %v43
  %v45 = vrot.slane %v44, 1
  %v46 = vadd.f32 %v44, %v45
  %v47 = vadd.f32 %v36, %v46
  %vm48 = vcmask 253952
  %49 = vst.msk [vmem:[%s2] sm:$0x1] %vm48, %v47
  %v50 = vld [vmem:[%s3] sm:$0x1]
  %v51 = vmul.f32 %v34, %v34
  %v52 = vmul.f32 %v35, %v35
  %v53 = vsel %vm37, %v51, 0.0
  %v54 = vsel %vm37, %v52, 0.0
  %v55 = vadd.f32 %v53, %v54
  %v56 = vrot.slane %v55, 4
  %v57 = vadd.f32 %v55, %v56
  %v58 = vrot.slane %v57, 2
  %v59 = vadd.f32 %v57, %v58
  %v60 = vrot.slane %v59, 1
  %v61 = vadd.f32 %v59, %v60
  %v62 = vadd.f32 %v50, %v61
  %63 = vst.msk [vmem:[%s3] sm:$0x1] %vm48, %v62
  // Predicated region
  $region14: #{lieresnet_forward.25} parent=0 // pred_check
    _
  $region15: #{lieresnet_forward.25} parent=0 // pred_check_branch
    %65 = sbr.rel (0) target = $region17
  $region16: #{lieresnet_forward.25} parent=0 // pred_region
    _
  $region17: #{lieresnet_forward.25} parent=0 // pred_fallthru
    _
  // Predicated region
  $region18: #{lieresnet_forward.25} parent=0 // pred_check
    _
  $region19: #{lieresnet_forward.25} parent=0 // pred_check_branch
    %67 = sbr.rel (0) target = $region21
  $region20: #{lieresnet_forward.25} parent=0 // pred_region
    _
  $region21: #{lieresnet_forward.25} parent=0 // pred_fallthru
    _
  // Predicated region
  $region22: #{lieresnet_forward.25} parent=0 // pred_check
    _
  $region23: #{lieresnet_forward.25} parent=0 // pred_check_branch
    %69 = sbr.rel (0) target = $region25
  $region24: #{lieresnet_forward.25} parent=0 // pred_region
    _
  $region25: #{lieresnet_forward.25} parent=0 // pred_fallthru
    _
  // Predicated region
  $region26: #{lieresnet_forward.25} parent=0 // pred_check
    _
  $region27: #{lieresnet_forward.25} parent=0 // pred_check_branch
    %71 = sbr.rel (0) target = $region29
  $region28: #{lieresnet_forward.25} parent=0 // pred_region
    _
  $region29: #{lieresnet_forward.25} parent=0 // pred_fallthru
    _

// kernel: lieresnet_forward.26
$region0: #{lieresnet_forward.26}
  #allocation0 [shape = 'u32[]', space=smem, size = 0x4, offset = 0x4, fixed_abs, tag = 'smem constant byte address 0x4 - core index']
  #allocation1 [shape = 'u32[144,128]{1,0:T(1,128)}', space=vmem, size = 0x12000, scoped, tag = 'internal scratch']
  %s0 = inlined_call_operand.vmem [shape: f32[16,32], index: 0, kind: input, shape index: {}]
  %s1 = inlined_call_operand.vmem [shape: f32[16,1], index: 1, kind: input, shape index: {}]
  %s2 = inlined_call_operand.vmem [shape: f32[1,32], index: 2, kind: input, shape index: {}]
  %s3 = inlined_call_operand.vmem [shape: f32[1,32], index: 3, kind: input, shape index: {}]
  %s4 = inlined_call_operand.vmem [shape: f32[32,8], index: 4, kind: input, shape index: {}]
  %s5 = inlined_call_operand.vmem [shape: f32[1,8], index: 5, kind: input, shape index: {}]
  %s6 = inlined_call_operand.vmem [shape: f32[16,8], index: 6, kind: output, shape index: {}]
  %s7 = sld [smem:[#allocation0]]
  $region34: #{lieresnet_forward.26} parent=0
    _
  %s9 = ssub.s32 1, %s7
  %s10 = scalar_select 0, %s9, %s7
  // Predicated region
  $region2: #{lieresnet_forward.26} parent=0 // pred_check
    _
  $region3: #{lieresnet_forward.26} parent=0 // pred_check_branch
    %12 = sbr.rel (0) target = $region5
  $region4: #{lieresnet_forward.26} parent=0 // pred_region
    _
  $region5: #{lieresnet_forward.26} parent=0 // pred_fallthru
    _
  // Predicated region
  $region6: #{lieresnet_forward.26} parent=0 // pred_check
    _
  $region7: #{lieresnet_forward.26} parent=0 // pred_check_branch
    %14 = sbr.rel (0) target = $region9
  $region8: #{lieresnet_forward.26} parent=0 // pred_region
    _
  $region9: #{lieresnet_forward.26} parent=0 // pred_fallthru
    _
  // Predicated region
  $region10: #{lieresnet_forward.26} parent=0 // pred_check
    _
  $region11: #{lieresnet_forward.26} parent=0 // pred_check_branch
    %16 = sbr.rel (0) target = $region13
  $region12: #{lieresnet_forward.26} parent=0 // pred_region
    _
  $region13: #{lieresnet_forward.26} parent=0 // pred_fallthru
    _
  // Predicated region
  $region14: #{lieresnet_forward.26} parent=0 // pred_check
    _
  $region15: #{lieresnet_forward.26} parent=0 // pred_check_branch
    %18 = sbr.rel (0) target = $region17
  $region16: #{lieresnet_forward.26} parent=0 // pred_region
    _
  $region17: #{lieresnet_forward.26} parent=0 // pred_fallthru
    _
  // Predicated region
  $region18: #{lieresnet_forward.26} parent=0 // pred_check
    _
  $region19: #{lieresnet_forward.26} parent=0 // pred_check_branch
    %20 = sbr.rel (0) target = $region21
  $region20: #{lieresnet_forward.26} parent=0 // pred_region
    _
  $region21: #{lieresnet_forward.26} parent=0 // pred_fallthru
    _
  // Predicated region
  $region22: #{lieresnet_forward.26} parent=0 // pred_check
    _
  $region23: #{lieresnet_forward.26} parent=0 // pred_check_branch
    %22 = sbr.rel (0) target = $region25
  $region24: #{lieresnet_forward.26} parent=0 // pred_region
    _
  $region25: #{lieresnet_forward.26} parent=0 // pred_fallthru
    _
  %v23 = vld [vmem:[%s0] sm:$0xff]
  %v24 = vld [vmem:[%s0 + $0x8] sm:$0xff]
  %v25 = vld [vmem:[%s1] sm:$0xff]
  %v26 = vld [vmem:[%s1 + $0x8] sm:$0xff]
  %28 = vset.pattern.permute.xlu0 0
  %29 = vperm.xlu0 %28, %v25
  %v30 = vpop.permute.xlu0 %29
  %33 = vset.pattern.permute.xlu0 0
  %34 = vperm.xlu0 %33, %v26
  %v35 = vpop.permute.xlu0 %34
  %v37 = vmul.f32 %v23, %v30
  %v38 = vmul.f32 %v24, %v35
  %v39 = vld [vmem:[%s2] sm:$0x1]
  %v41 = vlaneseq
  %v42 = vshrl.u32 %v41, 7
  %v43 = vsub.s32 0, %v42
  %v44 = vrot.slane %v39, %v43
  %v46 = vmul.f32 %v37, %v44
  %v47 = vmul.f32 %v38, %v44
  %v48 = vld [vmem:[%s3] sm:$0x1]
  %v50 = vlaneseq
  %v51 = vshrl.u32 %v50, 7
  %v52 = vsub.s32 0, %v51
  %v53 = vrot.slane %v48, %v52
  %v55 = vadd.f32 %v46, %v53
  %v56 = vadd.f32 %v47, %v53
  %v57 = vxor.u32 %v55, 2147483648
  %v58 = vxor.u32 %v56, 2147483648
  %v59 = vmul.f32 %v57, 1.442695
  %v60 = vpow.pop %v59
  %v61 = vmul.f32 %v58, 1.442695
  %v62 = vpow.pop %v61
  %v63 = vadd.f32 %v60, 1.0
  %v64 = vadd.f32 %v62, 1.0
  %v65 = vrcp.pop %v63
  %v66 = vmul.f32 1.0, %v65
  %v67 = vrcp.pop %v64
  %v68 = vmul.f32 1.0, %v67
  %v69 = vmul.f32 %v55, %v66
  %v70 = vmul.f32 %v56, %v68
  %v71 = vld [vmem:[%s4] sm:$0xff]
  %v72 = vld [vmem:[%s4 + $0x8] sm:$0xff]
  %v73 = vld [vmem:[%s4 + $0x10] sm:$0xff]
  %v74 = vld [vmem:[%s4 + $0x18] sm:$0xff]
  %v75 = vld [vmem:[%s5] sm:$0x1]
  %v77 = vlaneseq
  %v78 = vshrl.u32 %v77, 7
  %v79 = vsub.s32 0, %v78
  %v80 = vrot.slane %v75, %v79
  %vm82 = vcmask 261120
  %v84 = vsel %vm82, %v69, 0
  %v87 = vsel %vm82, %v70, 0
  %89 = vmatprep.subr.mxu0 0.0
  %90 = vmatpush1.msra.mxu0 %v71
  %91 = vmatprep.subr.mxu0 0.0
  %92 = vmatpush1.msra.mxu0 %v72
  %93 = vmatprep.subr.mxu0 0.0
  %94 = vmatpush1.msra.mxu0 %v73
  %95 = vmatprep.subr.mxu0 0.0
  %96 = vmatpush1.msra.mxu0 %v74
  %97 = vmatprep.subr.mxu0 0.0
  %98 = vmatpush1.msra.mxu0 0.0
  %99 = vmatprep.subr.mxu0 0.0
  %100 = vmatpush1.msra.mxu0 0.0
  %101 = vmatprep.subr.mxu0 0.0
  %102 = vmatpush1.msra.mxu0 0.0
  %103 = vmatprep.subr.mxu0 0.0
  %104 = vmatpush1.msra.mxu0 0.0
  %105 = vmatprep.subr.mxu0 0.0
  %106 = vmatpush1.msra.mxu0 0.0
  %107 = vmatprep.subr.mxu0 0.0
  %108 = vmatpush1.msra.mxu0 0.0
  %109 = vmatprep.subr.mxu0 0.0
  %110 = vmatpush1.msra.mxu0 0.0
  %111 = vmatprep.subr.mxu0 0.0
  %112 = vmatpush1.msra.mxu0 0.0
  %113 = vmatprep.subr.mxu0 0.0
  %114 = vmatpush1.msra.mxu0 0.0
  %115 = vmatprep.subr.mxu0 0.0
  %116 = vmatpush1.msra.mxu0 0.0
  %117 = vmatprep.subr.mxu0 0.0
  %118 = vmatpush1.msra.mxu0 0.0
  %119 = vmatprep.subr.mxu0 0.0
  %120 = vmatpush1.msra.mxu0 0.0
  %121 = vmatprep.subr.mxu0 0.0
  %122 = vmatpush1.msra.mxu0 0.0
  %123 = vmatprep.subr.mxu0 0.0
  %124 = vmatpush1.msra.mxu0 0.0
  %125 = vmatprep.subr.mxu0 0.0
  %126 = vmatpush1.msra.mxu0 0.0
  %127 = vmatprep.subr.mxu0 0.0
  %128 = vmatpush1.msra.mxu0 0.0
  %129 = vmatprep.subr.mxu0 0.0
  %130 = vmatpush1.msra.mxu0 0.0
  %131 = vmatprep.subr.mxu0 0.0
  %132 = vmatpush1.msra.mxu0 0.0
  %133 = vmatprep.subr.mxu0 0.0
  %134 = vmatpush1.msra.mxu0 0.0
  %135 = vmatprep.subr.mxu0 0.0
  %136 = vmatpush1.msra.mxu0 0.0
  %137 = vmatprep.subr.mxu0 0.0
  %138 = vmatpush1.msra.mxu0 0.0
  %139 = vmatprep.subr.mxu0 0.0
  %140 = vmatpush1.msra.mxu0 0.0
  %141 = vmatprep.subr.mxu0 0.0
  %142 = vmatpush1.msra.mxu0 0.0
  %143 = vmatprep.subr.mxu0 0.0
  %144 = vmatpush1.msra.mxu0 0.0
  %145 = vmatprep.subr.mxu0 0.0
  %146 = vmatpush1.msra.mxu0 0.0
  %147 = vmatprep.subr.mxu0 0.0
  %148 = vmatpush1.msra.mxu0 0.0
  %149 = vmatprep.subr.mxu0 0.0
  %150 = vmatpush1.msra.mxu0 0.0
  %151 = vmatprep.subr.mxu0 0.0
  %152 = vmatpush1.msra.mxu0 0.0
  %153 = vmatprep.mubr.f32.mxu0 0.0
  %154 = vmatmul.mubr.f32.gmra.mrb[0].mxu0 %v84
  %v155 = vpop.f32.mrb[0].mxu0
  %v156 = vadd.f32 %v80, %v155
  %v157 = vpop.f32.mrb[0].mxu0
  %158 = vmatprep.mubr.f32.mxu0 0.0
  %159 = vmatmul.mubr.f32.gmra.mrb[0].mxu0 %v87
  %v160 = vpop.f32.mrb[0].mxu0
  %v161 = vadd.f32 %v80, %v160
  %v162 = vpop.f32.mrb[0].mxu0
  %163 = vdwg.mxu0
  %vm164 = vcmask 64512
  %165 = vst.msk [vmem:[%s6] sm:$0xff] %vm164, %v156
  %166 = vst.msk [vmem:[%s6 + $0x8] sm:$0xff] %vm164, %v161
  // Predicated region
  $region26: #{lieresnet_forward.26} parent=0 // pred_check
    _
  $region27: #{lieresnet_forward.26} parent=0 // pred_check_branch
    %168 = sbr.rel (0) target = $region29
  $region28: #{lieresnet_forward.26} parent=0 // pred_region
    _
  $region29: #{lieresnet_forward.26} parent=0 // pred_fallthru
    _
  // Predicated region
  $region30: #{lieresnet_forward.26} parent=0 // pred_check
    _
  $region31: #{lieresnet_forward.26} parent=0 // pred_check_branch
    %170 = sbr.rel (0) target = $region33
  $region32: #{lieresnet_forward.26} parent=0 // pred_region
    _
  $region33: #{lieresnet_forward.26} parent=0 // pred_fallthru
    _

// kernel: lieresnet_forward.27
$region0: #{lieresnet_forward.27}
  #allocation0 [shape = 'u32[]', space=smem, size = 0x4, offset = 0x4, fixed_abs, tag = 'smem constant byte address 0x4 - core index']
  #allocation1 [shape = 'u32[144,128]{1,0:T(1,128)}', space=vmem, size = 0x12000, scoped, tag = 'internal scratch']
  %s0 = inlined_call_operand.vmem [shape: f32[16,8], index: 0, kind: input, shape index: {}]
  %s1 = inlined_call_operand.vmem [shape: f32[16,1], index: 1, kind: input, shape index: {}]
  %s2 = inlined_call_operand.vmem [shape: f32[1,8], index: 2, kind: output, shape index: {0}]
  %s3 = inlined_call_operand.vmem [shape: f32[1,8], index: 3, kind: output, shape index: {1}]
  %4 = xla_tuple %s2, %s3
  %s5 = sld [smem:[#allocation0]]
  $region30: #{lieresnet_forward.27} parent=0
    _
  %s7 = ssub.s32 1, %s5
  %s8 = scalar_select 0, %s7, %s5
  // Predicated region
  $region2: #{lieresnet_forward.27} parent=0 // pred_check
    _
  $region3: #{lieresnet_forward.27} parent=0 // pred_check_branch
    %10 = sbr.rel (0) target = $region5
  $region4: #{lieresnet_forward.27} parent=0 // pred_region
    _
  $region5: #{lieresnet_forward.27} parent=0 // pred_fallthru
    _
  // Predicated region
  $region6: #{lieresnet_forward.27} parent=0 // pred_check
    _
  $region7: #{lieresnet_forward.27} parent=0 // pred_check_branch
    %12 = sbr.rel (0) target = $region9
  $region8: #{lieresnet_forward.27} parent=0 // pred_region
    _
  $region9: #{lieresnet_forward.27} parent=0 // pred_fallthru
    _
  %p13 = scmp.eq.s32.totalorder 0, 0
  // Predicated region
  $region10: #{lieresnet_forward.27} parent=0 // pred_check
    %p14 = pneg %p13
  $region11: #{lieresnet_forward.27} parent=0 // pred_check_branch
    %16 = sbr.rel (%p14) target = $region13
  $region12: #{lieresnet_forward.27} parent=0 // pred_region
    %vm17 = vcmask 57344
    %18 = vst.msk [vmem:[%s2] sm:$0x1] %vm17, 0.0
    %19 = vst.msk [vmem:[%s3] sm:$0x1] %vm17, 0.0
  $region13: #{lieresnet_forward.27} parent=0 // pred_fallthru
    _
  %v20 = vld [vmem:[%s0] sm:$0xff]
  %v21 = vld [vmem:[%s0 + $0x8] sm:$0xff]
  %v22 = vld [vmem:[%s1] sm:$0xff]
  %v23 = vld [vmem:[%s1 + $0x8] sm:$0xff]
  %25 = vset.pattern.permute.xlu0 0
  %26 = vperm.xlu0 %25, %v22
  %v27 = vpop.permute.xlu0 %26
  %30 = vset.pattern.permute.xlu0 0
  %31 = vperm.xlu0 %30, %v23
  %v32 = vpop.permute.xlu0 %31
  %v34 = vmul.f32 %v20, %v27
  %v35 = vmul.f32 %v21, %v32
  %v36 = vld [vmem:[%s2] sm:$0x1]
  %vm37 = vcmask 64512
  %v38 = vsel %vm37, %v34, 0.0
  %v39 = vsel %vm37, %v35, 0.0
  %v40 = vadd.f32 %v38, %v39
  %v41 = vrot.slane %v40, 4
  %v42 = vadd.f32 %v40, %v41
  %v43 = vrot.slane %v42, 2
  %v44 = vadd.f32 %v42, %v43
  %v45 = vrot.slane %v44, 1
  %v46 = vadd.f32 %v44, %v45
  %v47 = vadd.f32 %v36, %v46
  %vm48 = vcmask 57344
  %49 = vst.msk [vmem:[%s2] sm:$0x1] %vm48, %v47
  %v50 = vld [vmem:[%s3] sm:$0x1]
  %v51 = vmul.f32 %v34, %v34
  %v52 = vmul.f32 %v35, %v35
  %v53 = vsel %vm37, %v51, 0.0
  %v54 = vsel %vm37, %v52, 0.0
  %v55 = vadd.f32 %v53, %v54
  %v56 = vrot.slane %v55, 4
  %v57 = vadd.f32 %v55, %v56
  %v58 = vrot.slane %v57, 2
  %v59 = vadd.f32 %v57, %v58
  %v60 = vrot.slane %v59, 1
  %v61 = vadd.f32 %v59, %v60
  %v62 = vadd.f32 %v50, %v61
  %63 = vst.msk [vmem:[%s3] sm:$0x1] %vm48, %v62
  // Predicated region
  $region14: #{lieresnet_forward.27} parent=0 // pred_check
    _
  $region15: #{lieresnet_forward.27} parent=0 // pred_check_branch
    %65 = sbr.rel (0) target = $region17
  $region16: #{lieresnet_forward.27} parent=0 // pred_region
    _
  $region17: #{lieresnet_forward.27} parent=0 // pred_fallthru
    _
  // Predicated region
  $region18: #{lieresnet_forward.27} parent=0 // pred_check
    _
  $region19: #{lieresnet_forward.27} parent=0 // pred_check_branch
    %67 = sbr.rel (0) target = $region21
  $region20: #{lieresnet_forward.27} parent=0 // pred_region
    _
  $region21: #{lieresnet_forward.27} parent=0 // pred_fallthru
    _
  // Predicated region
  $region22: #{lieresnet_forward.27} parent=0 // pred_check
    _
  $region23: #{lieresnet_forward.27} parent=0 // pred_check_branch
    %69 = sbr.rel (0) target = $region25
  $region24: #{lieresnet_forward.27} parent=0 // pred_region
    _
  $region25: #{lieresnet_forward.27} parent=0 // pred_fallthru
    _
  // Predicated region
  $region26: #{lieresnet_forward.27} parent=0 // pred_check
    _
  $region27: #{lieresnet_forward.27} parent=0 // pred_check_branch
    %71 = sbr.rel (0) target = $region29
  $region28: #{lieresnet_forward.27} parent=0 // pred_region
    _
  $region29: #{lieresnet_forward.27} parent=0 // pred_fallthru
    _

// kernel: lieresnet_forward.28
$region0: #{lieresnet_forward.28}
  #allocation0 [shape = 'u32[]', space=smem, size = 0x4, offset = 0x4, fixed_abs, tag = 'smem constant byte address 0x4 - core index']
  #allocation1 [shape = 'u32[144,128]{1,0:T(1,128)}', space=vmem, size = 0x12000, scoped, tag = 'internal scratch']
  %s0 = inlined_call_operand.vmem [shape: f32[16,8], index: 0, kind: input, shape index: {}]
  %s1 = inlined_call_operand.vmem [shape: f32[16,1], index: 1, kind: input, shape index: {}]
  %s2 = inlined_call_operand.vmem [shape: f32[1,8], index: 2, kind: input, shape index: {}]
  %s3 = inlined_call_operand.vmem [shape: f32[1,8], index: 3, kind: input, shape index: {}]
  %s4 = inlined_call_operand.vmem [shape: f32[16,8], index: 4, kind: output, shape index: {}]
  %s5 = sld [smem:[#allocation0]]
  $region26: #{lieresnet_forward.28} parent=0
    _
  %s7 = ssub.s32 1, %s5
  %s8 = scalar_select 0, %s7, %s5
  // Predicated region
  $region2: #{lieresnet_forward.28} parent=0 // pred_check
    _
  $region3: #{lieresnet_forward.28} parent=0 // pred_check_branch
    %10 = sbr.rel (0) target = $region5
  $region4: #{lieresnet_forward.28} parent=0 // pred_region
    _
  $region5: #{lieresnet_forward.28} parent=0 // pred_fallthru
    _
  // Predicated region
  $region6: #{lieresnet_forward.28} parent=0 // pred_check
    _
  $region7: #{lieresnet_forward.28} parent=0 // pred_check_branch
    %12 = sbr.rel (0) target = $region9
  $region8: #{lieresnet_forward.28} parent=0 // pred_region
    _
  $region9: #{lieresnet_forward.28} parent=0 // pred_fallthru
    _
  // Predicated region
  $region10: #{lieresnet_forward.28} parent=0 // pred_check
    _
  $region11: #{lieresnet_forward.28} parent=0 // pred_check_branch
    %14 = sbr.rel (0) target = $region13
  $region12: #{lieresnet_forward.28} parent=0 // pred_region
    _
  $region13: #{lieresnet_forward.28} parent=0 // pred_fallthru
    _
  // Predicated region
  $region14: #{lieresnet_forward.28} parent=0 // pred_check
    _
  $region15: #{lieresnet_forward.28} parent=0 // pred_check_branch
    %16 = sbr.rel (0) target = $region17
  $region16: #{lieresnet_forward.28} parent=0 // pred_region
    _
  $region17: #{lieresnet_forward.28} parent=0 // pred_fallthru
    _
  %v17 = vld [vmem:[%s0] sm:$0xff]
  %v18 = vld [vmem:[%s0 + $0x8] sm:$0xff]
  %v19 = vld [vmem:[%s1] sm:$0xff]
  %v20 = vld [vmem:[%s1 + $0x8] sm:$0xff]
  %22 = vset.pattern.permute.xlu0 0
  %23 = vperm.xlu0 %22, %v19
  %v24 = vpop.permute.xlu0 %23
  %27 = vset.pattern.permute.xlu0 0
  %28 = vperm.xlu0 %27, %v20
  %v29 = vpop.permute.xlu0 %28
  %v31 = vmul.f32 %v17, %v24
  %v32 = vmul.f32 %v18, %v29
  %v33 = vld [vmem:[%s2] sm:$0x1]
  %v35 = vlaneseq
  %v36 = vshrl.u32 %v35, 7
  %v37 = vsub.s32 0, %v36
  %v38 = vrot.slane %v33, %v37
  %v40 = vmul.f32 %v31, %v38
  %v41 = vmul.f32 %v32, %v38
  %v42 = vld [vmem:[%s3] sm:$0x1]
  %v44 = vlaneseq
  %v45 = vshrl.u32 %v44, 7
  %v46 = vsub.s32 0, %v45
  %v47 = vrot.slane %v42, %v46
  %v49 = vadd.f32 %v40, %v47
  %v50 = vadd.f32 %v41, %v47
  %v51 = vxor.u32 %v49, 2147483648
  %v52 = vxor.u32 %v50, 2147483648
  %v53 = vmul.f32 %v51, 1.442695
  %v54 = vpow.pop %v53
  %v55 = vmul.f32 %v52, 1.442695
  %v56 = vpow.pop %v55
  %v57 = vadd.f32 %v54, 1.0
  %v58 = vadd.f32 %v56, 1.0
  %v59 = vrcp.pop %v57
  %v60 = vmul.f32 1.0, %v59
  %v61 = vrcp.pop %v58
  %v62 = vmul.f32 1.0, %v61
  %v63 = vmul.f32 %v49, %v60
  %v64 = vmul.f32 %v50, %v62
  %vm65 = vcmask 64512
  %66 = vst.msk [vmem:[%s4] sm:$0xff] %vm65, %v63
  %67 = vst.msk [vmem:[%s4 + $0x8] sm:$0xff] %vm65, %v64
  // Predicated region
  $region18: #{lieresnet_forward.28} parent=0 // pred_check
    _
  $region19: #{lieresnet_forward.28} parent=0 // pred_check_branch
    %69 = sbr.rel (0) target = $region21
  $region20: #{lieresnet_forward.28} parent=0 // pred_region
    _
  $region21: #{lieresnet_forward.28} parent=0 // pred_fallthru
    _
  // Predicated region
  $region22: #{lieresnet_forward.28} parent=0 // pred_check
    _
  $region23: #{lieresnet_forward.28} parent=0 // pred_check_branch
    %71 = sbr.rel (0) target = $region25
  $region24: #{lieresnet_forward.28} parent=0 // pred_region
    _
  $region25: #{lieresnet_forward.28} parent=0 // pred_fallthru
    _

// kernel: lieresnet_forward.34
$region0: #{lieresnet_forward.34}
  #allocation0 [shape = 'u32[]', space=smem, size = 0x4, offset = 0x4, fixed_abs, tag = 'smem constant byte address 0x4 - core index']
  #allocation1 [shape = 'u32[144,128]{1,0:T(1,128)}', space=vmem, size = 0x12000, scoped, tag = 'internal scratch']
  %s0 = inlined_call_operand.vmem [shape: f32[16,8], index: 0, kind: input, shape index: {}]
  %s1 = inlined_call_operand.vmem [shape: f32[16,1], index: 1, kind: input, shape index: {}]
  %s2 = inlined_call_operand.vmem [shape: f32[1,8], index: 2, kind: input, shape index: {}]
  %s3 = inlined_call_operand.vmem [shape: f32[1,8], index: 3, kind: input, shape index: {}]
  %s4 = inlined_call_operand.vmem [shape: f32[8,32], index: 4, kind: input, shape index: {}]
  %s5 = inlined_call_operand.vmem [shape: f32[1,32], index: 5, kind: input, shape index: {}]
  %s6 = inlined_call_operand.vmem [shape: f32[16,32], index: 6, kind: output, shape index: {}]
  %s7 = sld [smem:[#allocation0]]
  $region34: #{lieresnet_forward.34} parent=0
    _
  %s9 = ssub.s32 1, %s7
  %s10 = scalar_select 0, %s9, %s7
  // Predicated region
  $region2: #{lieresnet_forward.34} parent=0 // pred_check
    _
  $region3: #{lieresnet_forward.34} parent=0 // pred_check_branch
    %12 = sbr.rel (0) target = $region5
  $region4: #{lieresnet_forward.34} parent=0 // pred_region
    _
  $region5: #{lieresnet_forward.34} parent=0 // pred_fallthru
    _
  // Predicated region
  $region6: #{lieresnet_forward.34} parent=0 // pred_check
    _
  $region7: #{lieresnet_forward.34} parent=0 // pred_check_branch
    %14 = sbr.rel (0) target = $region9
  $region8: #{lieresnet_forward.34} parent=0 // pred_region
    _
  $region9: #{lieresnet_forward.34} parent=0 // pred_fallthru
    _
  // Predicated region
  $region10: #{lieresnet_forward.34} parent=0 // pred_check
    _
  $region11: #{lieresnet_forward.34} parent=0 // pred_check_branch
    %16 = sbr.rel (0) target = $region13
  $region12: #{lieresnet_forward.34} parent=0 // pred_region
    _
  $region13: #{lieresnet_forward.34} parent=0 // pred_fallthru
    _
  // Predicated region
  $region14: #{lieresnet_forward.34} parent=0 // pred_check
    _
  $region15: #{lieresnet_forward.34} parent=0 // pred_check_branch
    %18 = sbr.rel (0) target = $region17
  $region16: #{lieresnet_forward.34} parent=0 // pred_region
    _
  $region17: #{lieresnet_forward.34} parent=0 // pred_fallthru
    _
  // Predicated region
  $region18: #{lieresnet_forward.34} parent=0 // pred_check
    _
  $region19: #{lieresnet_forward.34} parent=0 // pred_check_branch
    %20 = sbr.rel (0) target = $region21
  $region20: #{lieresnet_forward.34} parent=0 // pred_region
    _
  $region21: #{lieresnet_forward.34} parent=0 // pred_fallthru
    _
  // Predicated region
  $region22: #{lieresnet_forward.34} parent=0 // pred_check
    _
  $region23: #{lieresnet_forward.34} parent=0 // pred_check_branch
    %22 = sbr.rel (0) target = $region25
  $region24: #{lieresnet_forward.34} parent=0 // pred_region
    _
  $region25: #{lieresnet_forward.34} parent=0 // pred_fallthru
    _
  %v23 = vld [vmem:[%s0] sm:$0xff]
  %v24 = vld [vmem:[%s0 + $0x8] sm:$0xff]
  %v25 = vld [vmem:[%s1] sm:$0xff]
  %v26 = vld [vmem:[%s1 + $0x8] sm:$0xff]
  %28 = vset.pattern.permute.xlu0 0
  %29 = vperm.xlu0 %28, %v25
  %v30 = vpop.permute.xlu0 %29
  %33 = vset.pattern.permute.xlu0 0
  %34 = vperm.xlu0 %33, %v26
  %v35 = vpop.permute.xlu0 %34
  %v37 = vmul.f32 %v23, %v30
  %v38 = vmul.f32 %v24, %v35
  %v39 = vld [vmem:[%s2] sm:$0x1]
  %v41 = vlaneseq
  %v42 = vshrl.u32 %v41, 7
  %v43 = vsub.s32 0, %v42
  %v44 = vrot.slane %v39, %v43
  %v46 = vmul.f32 %v37, %v44
  %v47 = vmul.f32 %v38, %v44
  %v48 = vld [vmem:[%s3] sm:$0x1]
  %v50 = vlaneseq
  %v51 = vshrl.u32 %v50, 7
  %v52 = vsub.s32 0, %v51
  %v53 = vrot.slane %v48, %v52
  %v55 = vadd.f32 %v46, %v53
  %v56 = vadd.f32 %v47, %v53
  %v57 = vxor.u32 %v55, 2147483648
  %v58 = vxor.u32 %v56, 2147483648
  %v59 = vmul.f32 %v57, 1.442695
  %v60 = vpow.pop %v59
  %v61 = vmul.f32 %v58, 1.442695
  %v62 = vpow.pop %v61
  %v63 = vadd.f32 %v60, 1.0
  %v64 = vadd.f32 %v62, 1.0
  %v65 = vrcp.pop %v63
  %v66 = vmul.f32 1.0, %v65
  %v67 = vrcp.pop %v64
  %v68 = vmul.f32 1.0, %v67
  %v69 = vmul.f32 %v55, %v66
  %v70 = vmul.f32 %v56, %v68
  %v71 = vld [vmem:[%s4] sm:$0xff]
  %v72 = vld [vmem:[%s5] sm:$0x1]
  %v74 = vlaneseq
  %v75 = vshrl.u32 %v74, 7
  %v76 = vsub.s32 0, %v75
  %v77 = vrot.slane %v72, %v76
  %vm79 = vcmask 64512
  %v81 = vsel %vm79, %v69, 0
  %v84 = vsel %vm79, %v70, 0
  %86 = vmatprep.subr.mxu0 0.0
  %87 = vmatpush1.msra.mxu0 %v71
  %88 = vmatprep.subr.mxu0 0.0
  %89 = vmatpush1.msra.mxu0 0.0
  %90 = vmatprep.subr.mxu0 0.0
  %91 = vmatpush1.msra.mxu0 0.0
  %92 = vmatprep.subr.mxu0 0.0
  %93 = vmatpush1.msra.mxu0 0.0
  %94 = vmatprep.subr.mxu0 0.0
  %95 = vmatpush1.msra.mxu0 0.0
  %96 = vmatprep.subr.mxu0 0.0
  %97 = vmatpush1.msra.mxu0 0.0
  %98 = vmatprep.subr.mxu0 0.0
  %99 = vmatpush1.msra.mxu0 0.0
  %100 = vmatprep.subr.mxu0 0.0
  %101 = vmatpush1.msra.mxu0 0.0
  %102 = vmatprep.subr.mxu0 0.0
  %103 = vmatpush1.msra.mxu0 0.0
  %104 = vmatprep.subr.mxu0 0.0
  %105 = vmatpush1.msra.mxu0 0.0
  %106 = vmatprep.subr.mxu0 0.0
  %107 = vmatpush1.msra.mxu0 0.0
  %108 = vmatprep.subr.mxu0 0.0
  %109 = vmatpush1.msra.mxu0 0.0
  %110 = vmatprep.subr.mxu0 0.0
  %111 = vmatpush1.msra.mxu0 0.0
  %112 = vmatprep.subr.mxu0 0.0
  %113 = vmatpush1.msra.mxu0 0.0
  %114 = vmatprep.subr.mxu0 0.0
  %115 = vmatpush1.msra.mxu0 0.0
  %116 = vmatprep.subr.mxu0 0.0
  %117 = vmatpush1.msra.mxu0 0.0
  %118 = vmatprep.subr.mxu0 0.0
  %119 = vmatpush1.msra.mxu0 0.0
  %120 = vmatprep.subr.mxu0 0.0
  %121 = vmatpush1.msra.mxu0 0.0
  %122 = vmatprep.subr.mxu0 0.0
  %123 = vmatpush1.msra.mxu0 0.0
  %124 = vmatprep.subr.mxu0 0.0
  %125 = vmatpush1.msra.mxu0 0.0
  %126 = vmatprep.subr.mxu0 0.0
  %127 = vmatpush1.msra.mxu0 0.0
  %128 = vmatprep.subr.mxu0 0.0
  %129 = vmatpush1.msra.mxu0 0.0
  %130 = vmatprep.subr.mxu0 0.0
  %131 = vmatpush1.msra.mxu0 0.0
  %132 = vmatprep.subr.mxu0 0.0
  %133 = vmatpush1.msra.mxu0 0.0
  %134 = vmatprep.subr.mxu0 0.0
  %135 = vmatpush1.msra.mxu0 0.0
  %136 = vmatprep.subr.mxu0 0.0
  %137 = vmatpush1.msra.mxu0 0.0
  %138 = vmatprep.subr.mxu0 0.0
  %139 = vmatpush1.msra.mxu0 0.0
  %140 = vmatprep.subr.mxu0 0.0
  %141 = vmatpush1.msra.mxu0 0.0
  %142 = vmatprep.subr.mxu0 0.0
  %143 = vmatpush1.msra.mxu0 0.0
  %144 = vmatprep.subr.mxu0 0.0
  %145 = vmatpush1.msra.mxu0 0.0
  %146 = vmatprep.subr.mxu0 0.0
  %147 = vmatpush1.msra.mxu0 0.0
  %148 = vmatprep.subr.mxu0 0.0
  %149 = vmatpush1.msra.mxu0 0.0
  %150 = vmatprep.mubr.f32.mxu0 0.0
  %151 = vmatmul.mubr.f32.gmra.mrb[0].mxu0 %v81
  %v152 = vpop.f32.mrb[0].mxu0
  %v153 = vadd.f32 %v77, %v152
  %v154 = vpop.f32.mrb[0].mxu0
  %155 = vmatprep.mubr.f32.mxu0 0.0
  %156 = vmatmul.mubr.f32.gmra.mrb[0].mxu0 %v84
  %v157 = vpop.f32.mrb[0].mxu0
  %v158 = vadd.f32 %v77, %v157
  %v159 = vpop.f32.mrb[0].mxu0
  %160 = vdwg.mxu0
  %vm161 = vcmask 261120
  %162 = vst.msk [vmem:[%s6] sm:$0xff] %vm161, %v153
  %163 = vst.msk [vmem:[%s6 + $0x8] sm:$0xff] %vm161, %v158
  // Predicated region
  $region26: #{lieresnet_forward.34} parent=0 // pred_check
    _
  $region27: #{lieresnet_forward.34} parent=0 // pred_check_branch
    %165 = sbr.rel (0) target = $region29
  $region28: #{lieresnet_forward.34} parent=0 // pred_region
    _
  $region29: #{lieresnet_forward.34} parent=0 // pred_fallthru
    _
  // Predicated region
  $region30: #{lieresnet_forward.34} parent=0 // pred_check
    _
  $region31: #{lieresnet_forward.34} parent=0 // pred_check_branch
    %167 = sbr.rel (0) target = $region33
  $region32: #{lieresnet_forward.34} parent=0 // pred_region
    _
  $region33: #{lieresnet_forward.34} parent=0 // pred_fallthru
    _

// kernel: lieresnet_forward.46
$region0: #{lieresnet_forward.46}
  #allocation0 [shape = 'u32[]', space=smem, size = 0x4, offset = 0x4, fixed_abs, tag = 'smem constant byte address 0x4 - core index']
  #allocation1 [shape = 'u32[144,128]{1,0:T(1,128)}', space=vmem, size = 0x12000, scoped, tag = 'internal scratch']
  #allocation2 [shape = 'f32[1,1]{1,0:T(1,128)S(1)}', space=vmem, size = 0x200, scoped, tag = 'scoped memory for lieresnet_forward.46']
  %s0 = inlined_call_operand.vmem [shape: f32[16,32], index: 0, kind: input, shape index: {}]
  %s1 = inlined_call_operand.vmem [shape: f32[16,1], index: 1, kind: input, shape index: {}]
  %s2 = inlined_call_operand.vmem [shape: f32[1,32], index: 2, kind: input, shape index: {}]
  %s3 = inlined_call_operand.vmem [shape: f32[1,32], index: 3, kind: input, shape index: {}]
  %s4 = inlined_call_operand.vmem [shape: f32[32,1], index: 4, kind: input, shape index: {}]
  %s5 = inlined_call_operand.<no memory space> [shape: f32[1,1], index: 5, kind: input, shape index: {}]
  %s6 = inlined_call_operand.vmem [shape: f32[16,1], index: 6, kind: output, shape index: {}]
  %s7 = sld [smem:[#allocation0]]
  $region34: #{lieresnet_forward.46} parent=0
    _
  %s9 = ssub.s32 1, %s7
  %s10 = scalar_select 0, %s9, %s7
  %v11 = vstv %s5
  %12 = vst [vmem:[#allocation2] sm:$0x1] %v11
  // Predicated region
  $region2: #{lieresnet_forward.46} parent=0 // pred_check
    _
  $region3: #{lieresnet_forward.46} parent=0 // pred_check_branch
    %14 = sbr.rel (0) target = $region5
  $region4: #{lieresnet_forward.46} parent=0 // pred_region
    _
  $region5: #{lieresnet_forward.46} parent=0 // pred_fallthru
    _
  // Predicated region
  $region6: #{lieresnet_forward.46} parent=0 // pred_check
    _
  $region7: #{lieresnet_forward.46} parent=0 // pred_check_branch
    %16 = sbr.rel (0) target = $region9
  $region8: #{lieresnet_forward.46} parent=0 // pred_region
    _
  $region9: #{lieresnet_forward.46} parent=0 // pred_fallthru
    _
  // Predicated region
  $region10: #{lieresnet_forward.46} parent=0 // pred_check
    _
  $region11: #{lieresnet_forward.46} parent=0 // pred_check_branch
    %18 = sbr.rel (0) target = $region13
  $region12: #{lieresnet_forward.46} parent=0 // pred_region
    _
  $region13: #{lieresnet_forward.46} parent=0 // pred_fallthru
    _
  // Predicated region
  $region14: #{lieresnet_forward.46} parent=0 // pred_check
    _
  $region15: #{lieresnet_forward.46} parent=0 // pred_check_branch
    %20 = sbr.rel (0) target = $region17
  $region16: #{lieresnet_forward.46} parent=0 // pred_region
    _
  $region17: #{lieresnet_forward.46} parent=0 // pred_fallthru
    _
  // Predicated region
  $region18: #{lieresnet_forward.46} parent=0 // pred_check
    _
  $region19: #{lieresnet_forward.46} parent=0 // pred_check_branch
    %22 = sbr.rel (0) target = $region21
  $region20: #{lieresnet_forward.46} parent=0 // pred_region
    _
  $region21: #{lieresnet_forward.46} parent=0 // pred_fallthru
    _
  // Predicated region
  $region22: #{lieresnet_forward.46} parent=0 // pred_check
    _
  $region23: #{lieresnet_forward.46} parent=0 // pred_check_branch
    %24 = sbr.rel (0) target = $region25
  $region24: #{lieresnet_forward.46} parent=0 // pred_region
    _
  $region25: #{lieresnet_forward.46} parent=0 // pred_fallthru
    _
  %v25 = vld [vmem:[%s0] sm:$0xff]
  %v26 = vld [vmem:[%s0 + $0x8] sm:$0xff]
  %v27 = vld [vmem:[%s1] sm:$0xff]
  %v28 = vld [vmem:[%s1 + $0x8] sm:$0xff]
  %30 = vset.pattern.permute.xlu0 0
  %31 = vperm.xlu0 %30, %v27
  %v32 = vpop.permute.xlu0 %31
  %35 = vset.pattern.permute.xlu0 0
  %36 = vperm.xlu0 %35, %v28
  %v37 = vpop.permute.xlu0 %36
  %v39 = vmul.f32 %v25, %v32
  %v40 = vmul.f32 %v26, %v37
  %v41 = vld [vmem:[%s2] sm:$0x1]
  %v43 = vlaneseq
  %v44 = vshrl.u32 %v43, 7
  %v45 = vsub.s32 0, %v44
  %v46 = vrot.slane %v41, %v45
  %v48 = vmul.f32 %v39, %v46
  %v49 = vmul.f32 %v40, %v46
  %v50 = vld [vmem:[%s3] sm:$0x1]
  %v52 = vlaneseq
  %v53 = vshrl.u32 %v52, 7
  %v54 = vsub.s32 0, %v53
  %v55 = vrot.slane %v50, %v54
  %v57 = vadd.f32 %v48, %v55
  %v58 = vadd.f32 %v49, %v55
  %v59 = vxor.u32 %v57, 2147483648
  %v60 = vxor.u32 %v58, 2147483648
  %v61 = vmul.f32 %v59, 1.442695
  %v62 = vpow.pop %v61
  %v63 = vmul.f32 %v60, 1.442695
  %v64 = vpow.pop %v63
  %v65 = vadd.f32 %v62, 1.0
  %v66 = vadd.f32 %v64, 1.0
  %v67 = vrcp.pop %v65
  %v68 = vmul.f32 1.0, %v67
  %v69 = vrcp.pop %v66
  %v70 = vmul.f32 1.0, %v69
  %v71 = vmul.f32 %v57, %v68
  %v72 = vmul.f32 %v58, %v70
  %v73 = vld [vmem:[%s4] sm:$0xff]
  %v74 = vld [vmem:[%s4 + $0x8] sm:$0xff]
  %v75 = vld [vmem:[%s4 + $0x10] sm:$0xff]
  %v76 = vld [vmem:[%s4 + $0x18] sm:$0xff]
  %v77 = vld [vmem:[#allocation2] sm:$0x1]
  %v79 = vlaneseq
  %v80 = vshrl.u32 %v79, 7
  %v81 = vsub.s32 0, %v80
  %v82 = vrot.slane %v77, %v81
  %vm84 = vcmask 261120
  %v86 = vsel %vm84, %v71, 0
  %v89 = vsel %vm84, %v72, 0
  %91 = vmatprep.subr.mxu0 0.0
  %92 = vmatpush1.msra.mxu0 %v73
  %93 = vmatprep.subr.mxu0 0.0
  %94 = vmatpush1.msra.mxu0 %v74
  %95 = vmatprep.subr.mxu0 0.0
  %96 = vmatpush1.msra.mxu0 %v75
  %97 = vmatprep.subr.mxu0 0.0
  %98 = vmatpush1.msra.mxu0 %v76
  %99 = vmatprep.subr.mxu0 0.0
  %100 = vmatpush1.msra.mxu0 0.0
  %101 = vmatprep.subr.mxu0 0.0
  %102 = vmatpush1.msra.mxu0 0.0
  %103 = vmatprep.subr.mxu0 0.0
  %104 = vmatpush1.msra.mxu0 0.0
  %105 = vmatprep.subr.mxu0 0.0
  %106 = vmatpush1.msra.mxu0 0.0
  %107 = vmatprep.subr.mxu0 0.0
  %108 = vmatpush1.msra.mxu0 0.0
  %109 = vmatprep.subr.mxu0 0.0
  %110 = vmatpush1.msra.mxu0 0.0
  %111 = vmatprep.subr.mxu0 0.0
  %112 = vmatpush1.msra.mxu0 0.0
  %113 = vmatprep.subr.mxu0 0.0
  %114 = vmatpush1.msra.mxu0 0.0
  %115 = vmatprep.subr.mxu0 0.0
  %116 = vmatpush1.msra.mxu0 0.0
  %117 = vmatprep.subr.mxu0 0.0
  %118 = vmatpush1.msra.mxu0 0.0
  %119 = vmatprep.subr.mxu0 0.0
  %120 = vmatpush1.msra.mxu0 0.0
  %121 = vmatprep.subr.mxu0 0.0
  %122 = vmatpush1.msra.mxu0 0.0
  %123 = vmatprep.subr.mxu0 0.0
  %124 = vmatpush1.msra.mxu0 0.0
  %125 = vmatprep.subr.mxu0 0.0
  %126 = vmatpush1.msra.mxu0 0.0
  %127 = vmatprep.subr.mxu0 0.0
  %128 = vmatpush1.msra.mxu0 0.0
  %129 = vmatprep.subr.mxu0 0.0
  %130 = vmatpush1.msra.mxu0 0.0
  %131 = vmatprep.subr.mxu0 0.0
  %132 = vmatpush1.msra.mxu0 0.0
  %133 = vmatprep.subr.mxu0 0.0
  %134 = vmatpush1.msra.mxu0 0.0
  %135 = vmatprep.subr.mxu0 0.0
  %136 = vmatpush1.msra.mxu0 0.0
  %137 = vmatprep.subr.mxu0 0.0
  %138 = vmatpush1.msra.mxu0 0.0
  %139 = vmatprep.subr.mxu0 0.0
  %140 = vmatpush1.msra.mxu0 0.0
  %141 = vmatprep.subr.mxu0 0.0
  %142 = vmatpush1.msra.mxu0 0.0
  %143 = vmatprep.subr.mxu0 0.0
  %144 = vmatpush1.msra.mxu0 0.0
  %145 = vmatprep.subr.mxu0 0.0
  %146 = vmatpush1.msra.mxu0 0.0
  %147 = vmatprep.subr.mxu0 0.0
  %148 = vmatpush1.msra.mxu0 0.0
  %149 = vmatprep.subr.mxu0 0.0
  %150 = vmatpush1.msra.mxu0 0.0
  %151 = vmatprep.subr.mxu0 0.0
  %152 = vmatpush1.msra.mxu0 0.0
  %153 = vmatprep.subr.mxu0 0.0
  %154 = vmatpush1.msra.mxu0 0.0
  %155 = vmatprep.mubr.f32.mxu0 0.0
  %156 = vmatmul.mubr.f32.gmra.mrb[0].mxu0 %v86
  %v157 = vpop.f32.mrb[0].mxu0
  %v158 = vadd.f32 %v82, %v157
  %v159 = vpop.f32.mrb[0].mxu0
  %160 = vmatprep.mubr.f32.mxu0 0.0
  %161 = vmatmul.mubr.f32.gmra.mrb[0].mxu0 %v89
  %v162 = vpop.f32.mrb[0].mxu0
  %v163 = vadd.f32 %v82, %v162
  %v164 = vpop.f32.mrb[0].mxu0
  %165 = vdwg.mxu0
  %vm166 = vcmask 7168
  %167 = vst.msk [vmem:[%s6] sm:$0xff] %vm166, %v158
  %168 = vst.msk [vmem:[%s6 + $0x8] sm:$0xff] %vm166, %v163
  // Predicated region
  $region26: #{lieresnet_forward.46} parent=0 // pred_check
    _
  $region27: #{lieresnet_forward.46} parent=0 // pred_check_branch
    %170 = sbr.rel (0) target = $region29
  $region28: #{lieresnet_forward.46} parent=0 // pred_region
    _
  $region29: #{lieresnet_forward.46} parent=0 // pred_fallthru
    _
  // Predicated region
  $region30: #{lieresnet_forward.46} parent=0 // pred_check
    _
  $region31: #{lieresnet_forward.46} parent=0 // pred_check_branch
    %172 = sbr.rel (0) target = $region33
  $region32: #{lieresnet_forward.46} parent=0 // pred_region
    _
  $region33: #{lieresnet_forward.46} parent=0 // pred_fallthru
    _

// kernel: div.133
$region0: #{div.133}
  #allocation0 [shape = 's32[1]{0}', space=sflag, size = 0x4, scoped, tag = 'scoped memory for div.133']
  %s0 = inlined_call_operand.vmem [shape: f32[2,1], index: 0, kind: input, shape index: {}]
  %s1 = inlined_call_operand.vmem [shape: f32[2,1], index: 1, kind: input, shape index: {}]
  %s2 = inlined_call_operand.vmem [shape: f32[2,1], index: 2, kind: output, shape index: {}]
  %v3 = vld [vmem:[%s0] sm:$0x3]
  %v4 = vld [vmem:[%s1] sm:$0x3]
  %5 = xla_tuple %v3, %v4
  %6 = xla_tuple %5
  %v7 = vrcp.pop %v4
  %v8 = vmul.f32 %v3, %v7
  %9 = xla_tuple %v8
  %10 = vst [vmem:[%s2] sm:$0x3] %v8

// kernel: lieresnet_forward.47
$region0: #{lieresnet_forward.47}
  #allocation0 [shape = 'u32[]', space=smem, size = 0x4, offset = 0x4, fixed_abs, tag = 'smem constant byte address 0x4 - core index']
  #allocation1 [shape = 'u32[144,128]{1,0:T(1,128)}', space=vmem, size = 0x12000, scoped, tag = 'internal scratch']
  %s0 = inlined_call_operand.vmem [shape: f32[2,8,1], index: 0, kind: input, shape index: {}]
  %s1 = inlined_call_operand.vmem [shape: f32[2,8,1], index: 1, kind: input, shape index: {}]
  %s2 = inlined_call_operand.vmem [shape: f32[2,1], index: 2, kind: output, shape index: {}]
  %s3 = sld [smem:[#allocation0]]
  $region22: #{lieresnet_forward.47} parent=0
    _
  %s5 = ssub.s32 1, %s3
  %s6 = scalar_select 0, %s5, %s3
  // Predicated region
  $region2: #{lieresnet_forward.47} parent=0 // pred_check
    _
  $region3: #{lieresnet_forward.47} parent=0 // pred_check_branch
    %8 = sbr.rel (0) target = $region5
  $region4: #{lieresnet_forward.47} parent=0 // pred_region
    _
  $region5: #{lieresnet_forward.47} parent=0 // pred_fallthru
    _
  // Predicated region
  $region6: #{lieresnet_forward.47} parent=0 // pred_check
    _
  $region7: #{lieresnet_forward.47} parent=0 // pred_check_branch
    %10 = sbr.rel (0) target = $region9
  $region8: #{lieresnet_forward.47} parent=0 // pred_region
    _
  $region9: #{lieresnet_forward.47} parent=0 // pred_fallthru
    _
  %p11 = scmp.eq.s32.totalorder 0, 0
  // Predicated region
  $region10: #{lieresnet_forward.47} parent=0 // pred_check
    %p12 = pneg %p11
  $region11: #{lieresnet_forward.47} parent=0 // pred_check_branch
    %14 = sbr.rel (%p12) target = $region13
  $region12: #{lieresnet_forward.47} parent=0 // pred_region
    %vm15 = vcmask 1024
    %16 = vst.msk [vmem:[%s2] sm:$0x3] %vm15, 0.0
  $region13: #{lieresnet_forward.47} parent=0 // pred_fallthru
    _
  %v17 = vld [vmem:[%s2] sm:$0x3]
  %v18 = vld [vmem:[%s0] sm:$0xff]
  %v19 = vld [vmem:[%s0 + $0x8] sm:$0xff]
  %v20 = vld [vmem:[%s1] sm:$0xff]
  %v21 = vld [vmem:[%s1 + $0x8] sm:$0xff]
  %v22 = vmul.f32 %v18, %v20
  %v23 = vmul.f32 %v19, %v21
  %vm24 = vcmask 7168
  %v25 = vsel %vm24, %v22, 0.0
  %v26 = vrot.slane %v25, 4
  %v27 = vadd.f32 %v25, %v26
  %v28 = vrot.slane %v27, 2
  %v29 = vadd.f32 %v27, %v28
  %v30 = vrot.slane %v29, 1
  %v31 = vadd.f32 %v29, %v30
  %v32 = vsel %vm24, %v23, 0.0
  %v33 = vrot.slane %v32, 4
  %v34 = vadd.f32 %v32, %v33
  %v35 = vrot.slane %v34, 2
  %v36 = vadd.f32 %v34, %v35
  %v37 = vrot.slane %v36, 1
  %v38 = vadd.f32 %v36, %v37
  %vm41 = vcmask 1041409
  %v42 = vsel %vm41, %v38, %v31
  %v44 = vadd.f32 %v17, %v42
  %vm45 = vcmask 1024
  %46 = vst.msk [vmem:[%s2] sm:$0x3] %vm45, %v44
  // Predicated region
  $region14: #{lieresnet_forward.47} parent=0 // pred_check
    _
  $region15: #{lieresnet_forward.47} parent=0 // pred_check_branch
    %48 = sbr.rel (0) target = $region17
  $region16: #{lieresnet_forward.47} parent=0 // pred_region
    _
  $region17: #{lieresnet_forward.47} parent=0 // pred_fallthru
    _
  // Predicated region
  $region18: #{lieresnet_forward.47} parent=0 // pred_check
    _
  $region19: #{lieresnet_forward.47} parent=0 // pred_check_branch
    %50 = sbr.rel (0) target = $region21
  $region20: #{lieresnet_forward.47} parent=0 // pred_region
    _
  $region21: #{lieresnet_forward.47} parent=0 // pred_fallthru
    _

// kernel: lieresnet_forward.32
$region0: #{lieresnet_forward.32}
  #allocation0 [shape = 'u32[]', space=smem, size = 0x4, offset = 0x4, fixed_abs, tag = 'smem constant byte address 0x4 - core index']
  #allocation1 [shape = 'u32[144,128]{1,0:T(1,128)}', space=vmem, size = 0x12000, scoped, tag = 'internal scratch']
  #allocation2 [shape = 'f32[8,8,16]{2,1,0:T(8,128)}', space=vmem, size = 0x8000, scoped, tag = 'scratch operand']
  %s0 = inlined_call_operand.vmem [shape: f32[2,8,3], index: 0, kind: input, shape index: {}, may-alias: {0,1}]
  %s1 = inlined_call_operand.vmem [shape: f32[2,8,3], index: 1, kind: input, shape index: {}, may-alias: {0,1}]
  %s2 = inlined_call_operand.vmem [shape: f32[2,8,8], index: 2, kind: input, shape index: {}]
  %s3 = inlined_call_operand.vmem [shape: f32[2,8,1], index: 3, kind: input, shape index: {}, may-alias: {3,4}]
  %s4 = inlined_call_operand.vmem [shape: f32[2,8,1], index: 4, kind: input, shape index: {}, may-alias: {3,4}]
  %s5 = inlined_call_operand.vmem [shape: f32[2,1,1], index: 5, kind: input, shape index: {}]
  %s6 = inlined_call_operand.vmem [shape: f32[3,32], index: 6, kind: input, shape index: {}]
  %s7 = inlined_call_operand.vmem [shape: f32[1,32], index: 7, kind: input, shape index: {}]
  %s8 = inlined_call_operand.vmem [shape: f32[1,32], index: 8, kind: input, shape index: {}]
  %s9 = inlined_call_operand.vmem [shape: f32[1,32], index: 9, kind: input, shape index: {}]
  %s10 = inlined_call_operand.vmem [shape: f32[32,32], index: 10, kind: input, shape index: {}]
  %s11 = inlined_call_operand.vmem [shape: f32[1,32], index: 11, kind: input, shape index: {}]
  %s12 = inlined_call_operand.vmem [shape: f32[1,32], index: 12, kind: input, shape index: {}]
  %s13 = inlined_call_operand.vmem [shape: f32[1,32], index: 13, kind: input, shape index: {}]
  %s14 = inlined_call_operand.vmem [shape: f32[32,16], index: 14, kind: input, shape index: {}]
  %s15 = inlined_call_operand.vmem [shape: f32[1,16], index: 15, kind: input, shape index: {}]
  %s16 = inlined_call_operand.vmem [shape: f32[1,16], index: 16, kind: input, shape index: {}]
  %s17 = inlined_call_operand.vmem [shape: f32[1,16], index: 17, kind: input, shape index: {}]
  %s18 = inlined_call_operand.vmem [shape: f32[128,8], index: 18, kind: input, shape index: {}]
  %s19 = inlined_call_operand.vmem [shape: f32[1,8], index: 19, kind: input, shape index: {}]
  %s20 = inlined_call_operand.vmem [shape: f32[2,8,8], index: 20, kind: output, shape index: {}]
  %s21 = sld [smem:[#allocation0]]
  $region121: #{lieresnet_forward.32} parent=0
    _
  %s23 = ssub.s32 1, %s21
  %s24 = scalar_select 0, %s23, %s21
  loop: start=0, step=1, limit=4
  $region2: #{lieresnet_forward.32} parent=0 // loop_pre_header
    _
  $region3: #{lieresnet_forward.32} parent=0 // loop_header
    %s26 = sphi 0, %s30
    %p27 = scmp.ge.s32.totalorder %s26, 4
    %s33 = sphi 0, %s52
    %s34 = sphi 0, %s48
    %s35 = sphi 0, %s44
    %s36 = sphi 0, %s33
    %s37 = sphi 0, %s34
    %s38 = sphi 0, %s35
    %s39 = sphi 0, %s36
    %s40 = sphi 0, %s37
    %s41 = sphi 0, %s38
    %s57 = sphi 0, %s59
    %s60 = sphi 0, %s57
    %s61 = sphi 0, %s60
    %s77 = sphi 0, %s61
    %s85 = sphi 0, %s87
    %s88 = sphi 0, %s85
    %s89 = sphi 0, %s88
    %s105 = sphi 0, %s89
    %s113 = sphi 0, %s115
    %s116 = sphi 0, %s113
    %s117 = sphi 0, %s116
    %s133 = sphi 0, %s117
    %s141 = sphi 0, %s143
    %s144 = sphi 0, %s141
    %s145 = sphi 0, %s144
    %s161 = sphi 0, %s145
    %s169 = sphi 0, %s171
    %s172 = sphi 0, %s169
    %s173 = sphi 0, %s172
    %s189 = sphi 0, %s173
    %s195 = sphi 0, %s197
    %s198 = sphi 0, %s195
    %s199 = sphi 0, %s198
    %s215 = sphi 0, %s199
    %s219 = sphi 0, %s219
    %s221 = sphi 0, %s219
    %s222 = sphi 0, %s221
    %s236 = sphi 0, %s222
    %s240 = sphi 0, %s240
    %s242 = sphi 0, %s240
    %s243 = sphi 0, %s242
    %s257 = sphi 0, %s243
    %s261 = sphi 0, %s261
    %s263 = sphi 0, %s261
    %s264 = sphi 0, %s263
    %s278 = sphi 0, %s264
    %s282 = sphi 0, %s282
    %s284 = sphi 0, %s282
    %s285 = sphi 0, %s284
    %s299 = sphi 0, %s285
    %s303 = sphi 0, %s303
    %s305 = sphi 0, %s303
    %s306 = sphi 0, %s305
    %s320 = sphi 0, %s306
    %s324 = sphi 0, %s324
    %s326 = sphi 0, %s324
    %s327 = sphi 0, %s326
    %s341 = sphi 0, %s327
    %s345 = sphi 0, %s345
    %s347 = sphi 0, %s345
    %s348 = sphi 0, %s347
    %s362 = sphi 0, %s348
    %s366 = sphi 0, %s366
    %s368 = sphi 0, %s366
    %s369 = sphi 0, %s368
    %s383 = sphi 0, %s369
    %s387 = sphi 0, %s387
    %s389 = sphi 0, %s387
    %s390 = sphi 0, %s389
    %s404 = sphi 0, %s390
    %s408 = sphi 0, %s408
    %s410 = sphi 0, %s408
    %s411 = sphi 0, %s410
    %s425 = sphi 0, %s411
    %s429 = sphi 0, %s429
    %s431 = sphi 0, %s429
    %s432 = sphi 0, %s431
    %s446 = sphi 0, %s432
    %s450 = sphi 0, %s450
    %s452 = sphi 0, %s450
    %s453 = sphi 0, %s452
    %s467 = sphi 0, %s453
    %s471 = sphi 0, %s471
    %s473 = sphi 0, %s471
    %s474 = sphi 0, %s473
    %s488 = sphi 0, %s474
    %s492 = sphi 0, %s492
    %s494 = sphi 0, %s492
    %s495 = sphi 0, %s494
    %s509 = sphi 0, %s495
    %s517 = sphi 0, %s519
    %s520 = sphi 0, %s517
    %s521 = sphi 0, %s520
    %s537 = sphi 0, %s521
  $region4: #{lieresnet_forward.32} parent=0 // loop_header_branch
    %29 = sbr.rel (%p27) target = $region8
  $region5: #{lieresnet_forward.32} parent=0 // loop_body
    %s31 = ssub.s32 %s26, 1
    %s32 = ssub.s32 %s26, 2
    %s42 = sadd.s32 1, %s35
    %p43 = scmp.ge.s32.totalorder %s42, 1
    %s44 = scalar_select %p43, 0, %s42
    %s45 = sadd.s32 1, %s34
    %s46 = scalar_select %p43, %s45, %s34
    %p47 = scmp.ge.s32.totalorder %s46, 1
    %s48 = scalar_select %p47, 0, %s46
    %s49 = sadd.s32 1, %s33
    %s50 = scalar_select %p47, %s49, %s33
    %p51 = scmp.ge.s32.totalorder %s50, 2
    %s52 = scalar_select %p51, 0, %s50
    %s53 = ssub.s32 %s33, %s52
    %s54 = ssub.s32 %s34, %s48
    %s55 = sor.u32 %s53, %s54
    %p56 = scmp.eq.s32.totalorder %s55, 0
    %s58 = sadd.s32 %s57, 1
    %s59 = scalar_select %p56, %s57, %s58
    %p62 = pneg %p56
    %p63 = scmp.eq.s32.totalorder %s26, 1
    %p64 = por %p62, %p63
    %p65 = scmp.ne.s32.totalorder %s57, %s60
    %p66 = scmp.eq.s32.totalorder %s26, 0
    %p67 = por %p65, %p66
    %p68 = scmp.ne.s32.totalorder %s57, %s60
    %p69 = scmp.eq.s32.totalorder %s31, 1
    %p70 = por %p68, %p69
    %p71 = scmp.ne.s32.totalorder %s60, %s61
    %p72 = scmp.eq.s32.totalorder %s31, 0
    %p73 = por %p71, %p72
    %p74 = scmp.ne.s32.totalorder %s60, %s61
    %p75 = scmp.eq.s32.totalorder %s32, 1
    %p76 = por %p74, %p75
    %p78 = scmp.ne.s32.totalorder %s61, %s77
    %p79 = scmp.eq.s32.totalorder %s32, 0
    %p80 = por %p78, %p79
    %s81 = ssub.s32 %s33, %s52
    %s82 = ssub.s32 %s35, %s44
    %s83 = sor.u32 %s81, %s82
    %p84 = scmp.eq.s32.totalorder %s83, 0
    %s86 = sadd.s32 %s85, 1
    %s87 = scalar_select %p84, %s85, %s86
    %p90 = pneg %p84
    %p91 = scmp.eq.s32.totalorder %s26, 1
    %p92 = por %p90, %p91
    %p93 = scmp.ne.s32.totalorder %s85, %s88
    %p94 = scmp.eq.s32.totalorder %s26, 0
    %p95 = por %p93, %p94
    %p96 = scmp.ne.s32.totalorder %s85, %s88
    %p97 = scmp.eq.s32.totalorder %s31, 1
    %p98 = por %p96, %p97
    %p99 = scmp.ne.s32.totalorder %s88, %s89
    %p100 = scmp.eq.s32.totalorder %s31, 0
    %p101 = por %p99, %p100
    %p102 = scmp.ne.s32.totalorder %s88, %s89
    %p103 = scmp.eq.s32.totalorder %s32, 1
    %p104 = por %p102, %p103
    %p106 = scmp.ne.s32.totalorder %s89, %s105
    %p107 = scmp.eq.s32.totalorder %s32, 0
    %p108 = por %p106, %p107
    %s109 = ssub.s32 %s33, %s52
    %s110 = ssub.s32 %s35, %s44
    %s111 = sor.u32 %s109, %s110
    %p112 = scmp.eq.s32.totalorder %s111, 0
    %s114 = sadd.s32 %s113, 1
    %s115 = scalar_select %p112, %s113, %s114
    %p118 = pneg %p112
    %p119 = scmp.eq.s32.totalorder %s26, 1
    %p120 = por %p118, %p119
    %p121 = scmp.ne.s32.totalorder %s113, %s116
    %p122 = scmp.eq.s32.totalorder %s26, 0
    %p123 = por %p121, %p122
    %p124 = scmp.ne.s32.totalorder %s113, %s116
    %p125 = scmp.eq.s32.totalorder %s31, 1
    %p126 = por %p124, %p125
    %p127 = scmp.ne.s32.totalorder %s116, %s117
    %p128 = scmp.eq.s32.totalorder %s31, 0
    %p129 = por %p127, %p128
    %p130 = scmp.ne.s32.totalorder %s116, %s117
    %p131 = scmp.eq.s32.totalorder %s32, 1
    %p132 = por %p130, %p131
    %p134 = scmp.ne.s32.totalorder %s117, %s133
    %p135 = scmp.eq.s32.totalorder %s32, 0
    %p136 = por %p134, %p135
    %s137 = ssub.s32 %s33, %s52
    %s138 = ssub.s32 %s35, %s44
    %s139 = sor.u32 %s137, %s138
    %p140 = scmp.eq.s32.totalorder %s139, 0
    %s142 = sadd.s32 %s141, 1
    %s143 = scalar_select %p140, %s141, %s142
    %p146 = pneg %p140
    %p147 = scmp.eq.s32.totalorder %s26, 1
    %p148 = por %p146, %p147
    %p149 = scmp.ne.s32.totalorder %s141, %s144
    %p150 = scmp.eq.s32.totalorder %s26, 0
    %p151 = por %p149, %p150
    %p152 = scmp.ne.s32.totalorder %s141, %s144
    %p153 = scmp.eq.s32.totalorder %s31, 1
    %p154 = por %p152, %p153
    %p155 = scmp.ne.s32.totalorder %s144, %s145
    %p156 = scmp.eq.s32.totalorder %s31, 0
    %p157 = por %p155, %p156
    %p158 = scmp.ne.s32.totalorder %s144, %s145
    %p159 = scmp.eq.s32.totalorder %s32, 1
    %p160 = por %p158, %p159
    %p162 = scmp.ne.s32.totalorder %s145, %s161
    %p163 = scmp.eq.s32.totalorder %s32, 0
    %p164 = por %p162, %p163
    %s165 = ssub.s32 %s33, %s52
    %s166 = ssub.s32 %s34, %s48
    %s167 = sor.u32 %s165, %s166
    %p168 = scmp.eq.s32.totalorder %s167, 0
    %s170 = sadd.s32 %s169, 1
    %s171 = scalar_select %p168, %s169, %s170
    %p174 = pneg %p168
    %p175 = scmp.eq.s32.totalorder %s26, 1
    %p176 = por %p174, %p175
    %p177 = scmp.ne.s32.totalorder %s169, %s172
    %p178 = scmp.eq.s32.totalorder %s26, 0
    %p179 = por %p177, %p178
    %p180 = scmp.ne.s32.totalorder %s169, %s172
    %p181 = scmp.eq.s32.totalorder %s31, 1
    %p182 = por %p180, %p181
    %p183 = scmp.ne.s32.totalorder %s172, %s173
    %p184 = scmp.eq.s32.totalorder %s31, 0
    %p185 = por %p183, %p184
    %p186 = scmp.ne.s32.totalorder %s172, %s173
    %p187 = scmp.eq.s32.totalorder %s32, 1
    %p188 = por %p186, %p187
    %p190 = scmp.ne.s32.totalorder %s173, %s189
    %p191 = scmp.eq.s32.totalorder %s32, 0
    %p192 = por %p190, %p191
    %s193 = ssub.s32 %s33, %s52
    %p194 = scmp.eq.s32.totalorder %s193, 0
    %s196 = sadd.s32 %s195, 1
    %s197 = scalar_select %p194, %s195, %s196
    %p200 = pneg %p194
    %p201 = scmp.eq.s32.totalorder %s26, 1
    %p202 = por %p200, %p201
    %p203 = scmp.ne.s32.totalorder %s195, %s198
    %p204 = scmp.eq.s32.totalorder %s26, 0
    %p205 = por %p203, %p204
    %p206 = scmp.ne.s32.totalorder %s195, %s198
    %p207 = scmp.eq.s32.totalorder %s31, 1
    %p208 = por %p206, %p207
    %p209 = scmp.ne.s32.totalorder %s198, %s199
    %p210 = scmp.eq.s32.totalorder %s31, 0
    %p211 = por %p209, %p210
    %p212 = scmp.ne.s32.totalorder %s198, %s199
    %p213 = scmp.eq.s32.totalorder %s32, 1
    %p214 = por %p212, %p213
    %p216 = scmp.ne.s32.totalorder %s199, %s215
    %p217 = scmp.eq.s32.totalorder %s32, 0
    %p218 = por %p216, %p217
    %s220 = sadd.s32 %s219, 1
    %p223 = scmp.eq.s32.totalorder %s26, 1
    %p224 = scmp.ne.s32.totalorder %s219, %s221
    %p225 = scmp.eq.s32.totalorder %s26, 0
    %p226 = por %p224, %p225
    %p227 = scmp.ne.s32.totalorder %s219, %s221
    %p228 = scmp.eq.s32.totalorder %s31, 1
    %p229 = por %p227, %p228
    %p230 = scmp.ne.s32.totalorder %s221, %s222
    %p231 = scmp.eq.s32.totalorder %s31, 0
    %p232 = por %p230, %p231
    %p233 = scmp.ne.s32.totalorder %s221, %s222
    %p234 = scmp.eq.s32.totalorder %s32, 1
    %p235 = por %p233, %p234
    %p237 = scmp.ne.s32.totalorder %s222, %s236
    %p238 = scmp.eq.s32.totalorder %s32, 0
    %p239 = por %p237, %p238
    %s241 = sadd.s32 %s240, 1
    %p244 = scmp.eq.s32.totalorder %s26, 1
    %p245 = scmp.ne.s32.totalorder %s240, %s242
    %p246 = scmp.eq.s32.totalorder %s26, 0
    %p247 = por %p245, %p246
    %p248 = scmp.ne.s32.totalorder %s240, %s242
    %p249 = scmp.eq.s32.totalorder %s31, 1
    %p250 = por %p248, %p249
    %p251 = scmp.ne.s32.totalorder %s242, %s243
    %p252 = scmp.eq.s32.totalorder %s31, 0
    %p253 = por %p251, %p252
    %p254 = scmp.ne.s32.totalorder %s242, %s243
    %p255 = scmp.eq.s32.totalorder %s32, 1
    %p256 = por %p254, %p255
    %p258 = scmp.ne.s32.totalorder %s243, %s257
    %p259 = scmp.eq.s32.totalorder %s32, 0
    %p260 = por %p258, %p259
    %s262 = sadd.s32 %s261, 1
    %p265 = scmp.eq.s32.totalorder %s26, 1
    %p266 = scmp.ne.s32.totalorder %s261, %s263
    %p267 = scmp.eq.s32.totalorder %s26, 0
    %p268 = por %p266, %p267
    %p269 = scmp.ne.s32.totalorder %s261, %s263
    %p270 = scmp.eq.s32.totalorder %s31, 1
    %p271 = por %p269, %p270
    %p272 = scmp.ne.s32.totalorder %s263, %s264
    %p273 = scmp.eq.s32.totalorder %s31, 0
    %p274 = por %p272, %p273
    %p275 = scmp.ne.s32.totalorder %s263, %s264
    %p276 = scmp.eq.s32.totalorder %s32, 1
    %p277 = por %p275, %p276
    %p279 = scmp.ne.s32.totalorder %s264, %s278
    %p280 = scmp.eq.s32.totalorder %s32, 0
    %p281 = por %p279, %p280
    %s283 = sadd.s32 %s282, 1
    %p286 = scmp.eq.s32.totalorder %s26, 1
    %p287 = scmp.ne.s32.totalorder %s282, %s284
    %p288 = scmp.eq.s32.totalorder %s26, 0
    %p289 = por %p287, %p288
    %p290 = scmp.ne.s32.totalorder %s282, %s284
    %p291 = scmp.eq.s32.totalorder %s31, 1
    %p292 = por %p290, %p291
    %p293 = scmp.ne.s32.totalorder %s284, %s285
    %p294 = scmp.eq.s32.totalorder %s31, 0
    %p295 = por %p293, %p294
    %p296 = scmp.ne.s32.totalorder %s284, %s285
    %p297 = scmp.eq.s32.totalorder %s32, 1
    %p298 = por %p296, %p297
    %p300 = scmp.ne.s32.totalorder %s285, %s299
    %p301 = scmp.eq.s32.totalorder %s32, 0
    %p302 = por %p300, %p301
    %s304 = sadd.s32 %s303, 1
    %p307 = scmp.eq.s32.totalorder %s26, 1
    %p308 = scmp.ne.s32.totalorder %s303, %s305
    %p309 = scmp.eq.s32.totalorder %s26, 0
    %p310 = por %p308, %p309
    %p311 = scmp.ne.s32.totalorder %s303, %s305
    %p312 = scmp.eq.s32.totalorder %s31, 1
    %p313 = por %p311, %p312
    %p314 = scmp.ne.s32.totalorder %s305, %s306
    %p315 = scmp.eq.s32.totalorder %s31, 0
    %p316 = por %p314, %p315
    %p317 = scmp.ne.s32.totalorder %s305, %s306
    %p318 = scmp.eq.s32.totalorder %s32, 1
    %p319 = por %p317, %p318
    %p321 = scmp.ne.s32.totalorder %s306, %s320
    %p322 = scmp.eq.s32.totalorder %s32, 0
    %p323 = por %p321, %p322
    %s325 = sadd.s32 %s324, 1
    %p328 = scmp.eq.s32.totalorder %s26, 1
    %p329 = scmp.ne.s32.totalorder %s324, %s326
    %p330 = scmp.eq.s32.totalorder %s26, 0
    %p331 = por %p329, %p330
    %p332 = scmp.ne.s32.totalorder %s324, %s326
    %p333 = scmp.eq.s32.totalorder %s31, 1
    %p334 = por %p332, %p333
    %p335 = scmp.ne.s32.totalorder %s326, %s327
    %p336 = scmp.eq.s32.totalorder %s31, 0
    %p337 = por %p335, %p336
    %p338 = scmp.ne.s32.totalorder %s326, %s327
    %p339 = scmp.eq.s32.totalorder %s32, 1
    %p340 = por %p338, %p339
    %p342 = scmp.ne.s32.totalorder %s327, %s341
    %p343 = scmp.eq.s32.totalorder %s32, 0
    %p344 = por %p342, %p343
    %s346 = sadd.s32 %s345, 1
    %p349 = scmp.eq.s32.totalorder %s26, 1
    %p350 = scmp.ne.s32.totalorder %s345, %s347
    %p351 = scmp.eq.s32.totalorder %s26, 0
    %p352 = por %p350, %p351
    %p353 = scmp.ne.s32.totalorder %s345, %s347
    %p354 = scmp.eq.s32.totalorder %s31, 1
    %p355 = por %p353, %p354
    %p356 = scmp.ne.s32.totalorder %s347, %s348
    %p357 = scmp.eq.s32.totalorder %s31, 0
    %p358 = por %p356, %p357
    %p359 = scmp.ne.s32.totalorder %s347, %s348
    %p360 = scmp.eq.s32.totalorder %s32, 1
    %p361 = por %p359, %p360
    %p363 = scmp.ne.s32.totalorder %s348, %s362
    %p364 = scmp.eq.s32.totalorder %s32, 0
    %p365 = por %p363, %p364
    %s367 = sadd.s32 %s366, 1
    %p370 = scmp.eq.s32.totalorder %s26, 1
    %p371 = scmp.ne.s32.totalorder %s366, %s368
    %p372 = scmp.eq.s32.totalorder %s26, 0
    %p373 = por %p371, %p372
    %p374 = scmp.ne.s32.totalorder %s366, %s368
    %p375 = scmp.eq.s32.totalorder %s31, 1
    %p376 = por %p374, %p375
    %p377 = scmp.ne.s32.totalorder %s368, %s369
    %p378 = scmp.eq.s32.totalorder %s31, 0
    %p379 = por %p377, %p378
    %p380 = scmp.ne.s32.totalorder %s368, %s369
    %p381 = scmp.eq.s32.totalorder %s32, 1
    %p382 = por %p380, %p381
    %p384 = scmp.ne.s32.totalorder %s369, %s383
    %p385 = scmp.eq.s32.totalorder %s32, 0
    %p386 = por %p384, %p385
    %s388 = sadd.s32 %s387, 1
    %p391 = scmp.eq.s32.totalorder %s26, 1
    %p392 = scmp.ne.s32.totalorder %s387, %s389
    %p393 = scmp.eq.s32.totalorder %s26, 0
    %p394 = por %p392, %p393
    %p395 = scmp.ne.s32.totalorder %s387, %s389
    %p396 = scmp.eq.s32.totalorder %s31, 1
    %p397 = por %p395, %p396
    %p398 = scmp.ne.s32.totalorder %s389, %s390
    %p399 = scmp.eq.s32.totalorder %s31, 0
    %p400 = por %p398, %p399
    %p401 = scmp.ne.s32.totalorder %s389, %s390
    %p402 = scmp.eq.s32.totalorder %s32, 1
    %p403 = por %p401, %p402
    %p405 = scmp.ne.s32.totalorder %s390, %s404
    %p406 = scmp.eq.s32.totalorder %s32, 0
    %p407 = por %p405, %p406
    %s409 = sadd.s32 %s408, 1
    %p412 = scmp.eq.s32.totalorder %s26, 1
    %p413 = scmp.ne.s32.totalorder %s408, %s410
    %p414 = scmp.eq.s32.totalorder %s26, 0
    %p415 = por %p413, %p414
    %p416 = scmp.ne.s32.totalorder %s408, %s410
    %p417 = scmp.eq.s32.totalorder %s31, 1
    %p418 = por %p416, %p417
    %p419 = scmp.ne.s32.totalorder %s410, %s411
    %p420 = scmp.eq.s32.totalorder %s31, 0
    %p421 = por %p419, %p420
    %p422 = scmp.ne.s32.totalorder %s410, %s411
    %p423 = scmp.eq.s32.totalorder %s32, 1
    %p424 = por %p422, %p423
    %p426 = scmp.ne.s32.totalorder %s411, %s425
    %p427 = scmp.eq.s32.totalorder %s32, 0
    %p428 = por %p426, %p427
    %s430 = sadd.s32 %s429, 1
    %p433 = scmp.eq.s32.totalorder %s26, 1
    %p434 = scmp.ne.s32.totalorder %s429, %s431
    %p435 = scmp.eq.s32.totalorder %s26, 0
    %p436 = por %p434, %p435
    %p437 = scmp.ne.s32.totalorder %s429, %s431
    %p438 = scmp.eq.s32.totalorder %s31, 1
    %p439 = por %p437, %p438
    %p440 = scmp.ne.s32.totalorder %s431, %s432
    %p441 = scmp.eq.s32.totalorder %s31, 0
    %p442 = por %p440, %p441
    %p443 = scmp.ne.s32.totalorder %s431, %s432
    %p444 = scmp.eq.s32.totalorder %s32, 1
    %p445 = por %p443, %p444
    %p447 = scmp.ne.s32.totalorder %s432, %s446
    %p448 = scmp.eq.s32.totalorder %s32, 0
    %p449 = por %p447, %p448
    %s451 = sadd.s32 %s450, 1
    %p454 = scmp.eq.s32.totalorder %s26, 1
    %p455 = scmp.ne.s32.totalorder %s450, %s452
    %p456 = scmp.eq.s32.totalorder %s26, 0
    %p457 = por %p455, %p456
    %p458 = scmp.ne.s32.totalorder %s450, %s452
    %p459 = scmp.eq.s32.totalorder %s31, 1
    %p460 = por %p458, %p459
    %p461 = scmp.ne.s32.totalorder %s452, %s453
    %p462 = scmp.eq.s32.totalorder %s31, 0
    %p463 = por %p461, %p462
    %p464 = scmp.ne.s32.totalorder %s452, %s453
    %p465 = scmp.eq.s32.totalorder %s32, 1
    %p466 = por %p464, %p465
    %p468 = scmp.ne.s32.totalorder %s453, %s467
    %p469 = scmp.eq.s32.totalorder %s32, 0
    %p470 = por %p468, %p469
    %s472 = sadd.s32 %s471, 1
    %p475 = scmp.eq.s32.totalorder %s26, 1
    %p476 = scmp.ne.s32.totalorder %s471, %s473
    %p477 = scmp.eq.s32.totalorder %s26, 0
    %p478 = por %p476, %p477
    %p479 = scmp.ne.s32.totalorder %s471, %s473
    %p480 = scmp.eq.s32.totalorder %s31, 1
    %p481 = por %p479, %p480
    %p482 = scmp.ne.s32.totalorder %s473, %s474
    %p483 = scmp.eq.s32.totalorder %s31, 0
    %p484 = por %p482, %p483
    %p485 = scmp.ne.s32.totalorder %s473, %s474
    %p486 = scmp.eq.s32.totalorder %s32, 1
    %p487 = por %p485, %p486
    %p489 = scmp.ne.s32.totalorder %s474, %s488
    %p490 = scmp.eq.s32.totalorder %s32, 0
    %p491 = por %p489, %p490
    %s493 = sadd.s32 %s492, 1
    %p496 = scmp.eq.s32.totalorder %s26, 1
    %p497 = scmp.ne.s32.totalorder %s492, %s494
    %p498 = scmp.eq.s32.totalorder %s26, 0
    %p499 = por %p497, %p498
    %p500 = scmp.ne.s32.totalorder %s492, %s494
    %p501 = scmp.eq.s32.totalorder %s31, 1
    %p502 = por %p500, %p501
    %p503 = scmp.ne.s32.totalorder %s494, %s495
    %p504 = scmp.eq.s32.totalorder %s31, 0
    %p505 = por %p503, %p504
    %p506 = scmp.ne.s32.totalorder %s494, %s495
    %p507 = scmp.eq.s32.totalorder %s32, 1
    %p508 = por %p506, %p507
    %p510 = scmp.ne.s32.totalorder %s495, %s509
    %p511 = scmp.eq.s32.totalorder %s32, 0
    %p512 = por %p510, %p511
    %s513 = ssub.s32 %s33, %s52
    %s514 = ssub.s32 %s34, %s48
    %s515 = sor.u32 %s513, %s514
    %p516 = scmp.eq.s32.totalorder %s515, 0
    %s518 = sadd.s32 %s517, 1
    %s519 = scalar_select %p516, %s517, %s518
    %p522 = pneg %p516
    %p523 = scmp.eq.s32.totalorder %s26, 1
    %p524 = por %p522, %p523
    %p525 = scmp.ne.s32.totalorder %s517, %s520
    %p526 = scmp.eq.s32.totalorder %s26, 0
    %p527 = por %p525, %p526
    %p528 = scmp.ne.s32.totalorder %s517, %s520
    %p529 = scmp.eq.s32.totalorder %s31, 1
    %p530 = por %p528, %p529
    %p531 = scmp.ne.s32.totalorder %s520, %s521
    %p532 = scmp.eq.s32.totalorder %s31, 0
    %p533 = por %p531, %p532
    %p534 = scmp.ne.s32.totalorder %s520, %s521
    %p535 = scmp.eq.s32.totalorder %s32, 1
    %p536 = por %p534, %p535
    %p538 = scmp.ne.s32.totalorder %s521, %s537
    %p539 = scmp.eq.s32.totalorder %s32, 0
    %p540 = por %p538, %p539
    %p541 = scmp.le.s32.totalorder 1, %s26
    %p542 = scmp.lt.s32.totalorder %s26, 3
    %p543 = pnand %p541, %p542
    %p544 = pneg %p543
    // Predicated region
    $region9: #{lieresnet_forward.32} parent=5 // pred_check
      _
    $region10: #{lieresnet_forward.32} parent=5 // pred_check_branch
      %546 = sbr.rel (%p543) target = $region12
    $region11: #{lieresnet_forward.32} parent=5 // pred_region
      %s547 = ssub.s32 %s26, 1
      // Predicated region
      $region13: #{lieresnet_forward.32} parent=11 // pred_check
        %p548 = pneg %p232
      $region14: #{lieresnet_forward.32} parent=11 // pred_check_branch
        %550 = sbr.rel (%p548) target = $region16
      $region15: #{lieresnet_forward.32} parent=11 // pred_region
        _
      $region16: #{lieresnet_forward.32} parent=11 // pred_fallthru
        _
      // Predicated region
      $region17: #{lieresnet_forward.32} parent=11 // pred_check
        %p551 = pneg %p253
      $region18: #{lieresnet_forward.32} parent=11 // pred_check_branch
        %553 = sbr.rel (%p551) target = $region20
      $region19: #{lieresnet_forward.32} parent=11 // pred_region
        _
      $region20: #{lieresnet_forward.32} parent=11 // pred_fallthru
        _
      // Predicated region
      $region21: #{lieresnet_forward.32} parent=11 // pred_check
        %p554 = pneg %p274
      $region22: #{lieresnet_forward.32} parent=11 // pred_check_branch
        %556 = sbr.rel (%p554) target = $region24
      $region23: #{lieresnet_forward.32} parent=11 // pred_region
        _
      $region24: #{lieresnet_forward.32} parent=11 // pred_fallthru
        _
      // Predicated region
      $region25: #{lieresnet_forward.32} parent=11 // pred_check
        %p557 = pneg %p295
      $region26: #{lieresnet_forward.32} parent=11 // pred_check_branch
        %559 = sbr.rel (%p557) target = $region28
      $region27: #{lieresnet_forward.32} parent=11 // pred_region
        _
      $region28: #{lieresnet_forward.32} parent=11 // pred_fallthru
        _
      // Predicated region
      $region29: #{lieresnet_forward.32} parent=11 // pred_check
        %p560 = pneg %p316
      $region30: #{lieresnet_forward.32} parent=11 // pred_check_branch
        %562 = sbr.rel (%p560) target = $region32
      $region31: #{lieresnet_forward.32} parent=11 // pred_region
        _
      $region32: #{lieresnet_forward.32} parent=11 // pred_fallthru
        _
      // Predicated region
      $region33: #{lieresnet_forward.32} parent=11 // pred_check
        %p563 = pneg %p337
      $region34: #{lieresnet_forward.32} parent=11 // pred_check_branch
        %565 = sbr.rel (%p563) target = $region36
      $region35: #{lieresnet_forward.32} parent=11 // pred_region
        _
      $region36: #{lieresnet_forward.32} parent=11 // pred_fallthru
        _
      // Predicated region
      $region37: #{lieresnet_forward.32} parent=11 // pred_check
        %p566 = pneg %p358
      $region38: #{lieresnet_forward.32} parent=11 // pred_check_branch
        %568 = sbr.rel (%p566) target = $region40
      $region39: #{lieresnet_forward.32} parent=11 // pred_region
        _
      $region40: #{lieresnet_forward.32} parent=11 // pred_fallthru
        _
      // Predicated region
      $region41: #{lieresnet_forward.32} parent=11 // pred_check
        %p569 = pneg %p379
      $region42: #{lieresnet_forward.32} parent=11 // pred_check_branch
        %571 = sbr.rel (%p569) target = $region44
      $region43: #{lieresnet_forward.32} parent=11 // pred_region
        _
      $region44: #{lieresnet_forward.32} parent=11 // pred_fallthru
        _
      // Predicated region
      $region45: #{lieresnet_forward.32} parent=11 // pred_check
        %p572 = pneg %p400
      $region46: #{lieresnet_forward.32} parent=11 // pred_check_branch
        %574 = sbr.rel (%p572) target = $region48
      $region47: #{lieresnet_forward.32} parent=11 // pred_region
        _
      $region48: #{lieresnet_forward.32} parent=11 // pred_fallthru
        _
      // Predicated region
      $region49: #{lieresnet_forward.32} parent=11 // pred_check
        %p575 = pneg %p421
      $region50: #{lieresnet_forward.32} parent=11 // pred_check_branch
        %577 = sbr.rel (%p575) target = $region52
      $region51: #{lieresnet_forward.32} parent=11 // pred_region
        _
      $region52: #{lieresnet_forward.32} parent=11 // pred_fallthru
        _
      // Predicated region
      $region53: #{lieresnet_forward.32} parent=11 // pred_check
        %p578 = pneg %p442
      $region54: #{lieresnet_forward.32} parent=11 // pred_check_branch
        %580 = sbr.rel (%p578) target = $region56
      $region55: #{lieresnet_forward.32} parent=11 // pred_region
        _
      $region56: #{lieresnet_forward.32} parent=11 // pred_fallthru
        _
      // Predicated region
      $region57: #{lieresnet_forward.32} parent=11 // pred_check
        %p581 = pneg %p463
      $region58: #{lieresnet_forward.32} parent=11 // pred_check_branch
        %583 = sbr.rel (%p581) target = $region60
      $region59: #{lieresnet_forward.32} parent=11 // pred_region
        _
      $region60: #{lieresnet_forward.32} parent=11 // pred_fallthru
        _
      // Predicated region
      $region61: #{lieresnet_forward.32} parent=11 // pred_check
        %p584 = pneg %p484
      $region62: #{lieresnet_forward.32} parent=11 // pred_check_branch
        %586 = sbr.rel (%p584) target = $region64
      $region63: #{lieresnet_forward.32} parent=11 // pred_region
        _
      $region64: #{lieresnet_forward.32} parent=11 // pred_fallthru
        _
      // Predicated region
      $region65: #{lieresnet_forward.32} parent=11 // pred_check
        %p587 = pneg %p505
      $region66: #{lieresnet_forward.32} parent=11 // pred_check_branch
        %589 = sbr.rel (%p587) target = $region68
      $region67: #{lieresnet_forward.32} parent=11 // pred_region
        _
      $region68: #{lieresnet_forward.32} parent=11 // pred_fallthru
        _
    $region12: #{lieresnet_forward.32} parent=5 // pred_fallthru
      _
    %p590 = scmp.lt.s32.totalorder %s26, 2
    // Predicated region
    $region69: #{lieresnet_forward.32} parent=5 // pred_check
      %p591 = pneg %p590
    $region70: #{lieresnet_forward.32} parent=5 // pred_check_branch
      %593 = sbr.rel (%p591) target = $region72
    $region71: #{lieresnet_forward.32} parent=5 // pred_region
      // Predicated region
      $region73: #{lieresnet_forward.32} parent=71 // pred_check
        %p594 = pneg %p67
      $region74: #{lieresnet_forward.32} parent=71 // pred_check_branch
        %596 = sbr.rel (%p594) target = $region76
      $region75: #{lieresnet_forward.32} parent=71 // pred_region
        %p597 = scmp.lt.s32.totalorder %s33, 1
        %s598 = scalar_select %p597, %s33, 1
        %p599 = scmp.lt.s32.totalorder %s34, 0
        %s600 = scalar_select %p599, %s34, 0
        %s601 = sadd.s32 %s600, %s598
        %s602 = smul.addr %s601, 8
        %s603 = scalar_lea.vmem %s0, %s602
      $region76: #{lieresnet_forward.32} parent=71 // pred_fallthru
        _
      // Predicated region
      $region77: #{lieresnet_forward.32} parent=71 // pred_check
        %p604 = pneg %p95
      $region78: #{lieresnet_forward.32} parent=71 // pred_check_branch
        %606 = sbr.rel (%p604) target = $region80
      $region79: #{lieresnet_forward.32} parent=71 // pred_region
        %p607 = scmp.lt.s32.totalorder %s33, 1
        %s608 = scalar_select %p607, %s33, 1
        %p609 = scmp.lt.s32.totalorder %s35, 0
        %s610 = scalar_select %p609, %s35, 0
        %s611 = sadd.s32 %s610, %s608
        %s612 = smul.addr %s611, 8
        %s613 = scalar_lea.vmem %s1, %s612
      $region80: #{lieresnet_forward.32} parent=71 // pred_fallthru
        _
      // Predicated region
      $region81: #{lieresnet_forward.32} parent=71 // pred_check
        %p614 = pneg %p123
      $region82: #{lieresnet_forward.32} parent=71 // pred_check_branch
        %616 = sbr.rel (%p614) target = $region84
      $region83: #{lieresnet_forward.32} parent=71 // pred_region
        %p617 = scmp.lt.s32.totalorder %s33, 1
        %s618 = scalar_select %p617, %s33, 1
        %p619 = scmp.lt.s32.totalorder %s35, 0
        %s620 = scalar_select %p619, %s35, 0
        %s621 = sadd.s32 %s620, %s618
        %s622 = smul.addr %s621, 8
        %s623 = scalar_lea.vmem %s2, %s622
      $region84: #{lieresnet_forward.32} parent=71 // pred_fallthru
        _
      // Predicated region
      $region85: #{lieresnet_forward.32} parent=71 // pred_check
        %p624 = pneg %p151
      $region86: #{lieresnet_forward.32} parent=71 // pred_check_branch
        %626 = sbr.rel (%p624) target = $region88
      $region87: #{lieresnet_forward.32} parent=71 // pred_region
        %p627 = scmp.lt.s32.totalorder %s33, 1
        %s628 = scalar_select %p627, %s33, 1
        %p629 = scmp.lt.s32.totalorder %s35, 0
        %s630 = scalar_select %p629, %s35, 0
        %s631 = sadd.s32 %s630, %s628
        %s632 = smul.addr %s631, 8
        %s633 = scalar_lea.vmem %s3, %s632
      $region88: #{lieresnet_forward.32} parent=71 // pred_fallthru
        _
      // Predicated region
      $region89: #{lieresnet_forward.32} parent=71 // pred_check
        %p634 = pneg %p179
      $region90: #{lieresnet_forward.32} parent=71 // pred_check_branch
        %636 = sbr.rel (%p634) target = $region92
      $region91: #{lieresnet_forward.32} parent=71 // pred_region
        %p637 = scmp.lt.s32.totalorder %s33, 1
        %s638 = scalar_select %p637, %s33, 1
        %p639 = scmp.lt.s32.totalorder %s34, 0
        %s640 = scalar_select %p639, %s34, 0
        %s641 = sadd.s32 %s640, %s638
        %s642 = smul.addr %s641, 8
        %s643 = scalar_lea.vmem %s4, %s642
      $region92: #{lieresnet_forward.32} parent=71 // pred_fallthru
        _
      // Predicated region
      $region93: #{lieresnet_forward.32} parent=71 // pred_check
        %p644 = pneg %p205
      $region94: #{lieresnet_forward.32} parent=71 // pred_check_branch
        %646 = sbr.rel (%p644) target = $region96
      $region95: #{lieresnet_forward.32} parent=71 // pred_region
        %p647 = scmp.lt.s32.totalorder %s33, 1
        %s648 = scalar_select %p647, %s33, 1
        %s649 = scalar_lea.vmem %s5, %s648
      $region96: #{lieresnet_forward.32} parent=71 // pred_fallthru
        _
    $region72: #{lieresnet_forward.32} parent=5 // pred_fallthru
      _
    %p650 = scmp.le.s32.totalorder 1, %s26
    %p651 = scmp.lt.s32.totalorder %s26, 3
    %p652 = pnand %p650, %p651
    %p653 = pneg %p652
    // Predicated region
    $region97: #{lieresnet_forward.32} parent=5 // pred_check
      _
    $region98: #{lieresnet_forward.32} parent=5 // pred_check_branch
      %655 = sbr.rel (%p652) target = $region100
    $region99: #{lieresnet_forward.32} parent=5 // pred_region
      %s656 = ssub.s32 %s26, 1
      %p657 = scmp.lt.s32.totalorder %s36, 1
      %s658 = scalar_select %p657, %s36, 1
      %p659 = scmp.lt.s32.totalorder %s37, 0
      %s660 = scalar_select %p659, %s37, 0
      %s661 = sadd.s32 %s660, %s658
      %s662 = smul.addr %s661, 8
      %s663 = scalar_lea.vmem %s0, %s662
      %p664 = pneg %p73
      %p665 = pneg %p70
      %p666 = scmp.lt.s32.totalorder %s36, 1
      %s667 = scalar_select %p666, %s36, 1
      %p668 = scmp.lt.s32.totalorder %s38, 0
      %s669 = scalar_select %p668, %s38, 0
      %s670 = sadd.s32 %s669, %s667
      %s671 = smul.addr %s670, 8
      %s672 = scalar_lea.vmem %s1, %s671
      %p673 = pneg %p101
      %p674 = pneg %p98
      %p675 = scmp.lt.s32.totalorder %s36, 1
      %s676 = scalar_select %p675, %s36, 1
      %p677 = scmp.lt.s32.totalorder %s38, 0
      %s678 = scalar_select %p677, %s38, 0
      %s679 = sadd.s32 %s678, %s676
      %s680 = smul.addr %s679, 8
      %s681 = scalar_lea.vmem %s2, %s680
      %p682 = pneg %p129
      %p683 = pneg %p126
      %p684 = scmp.lt.s32.totalorder %s36, 1
      %s685 = scalar_select %p684, %s36, 1
      %p686 = scmp.lt.s32.totalorder %s38, 0
      %s687 = scalar_select %p686, %s38, 0
      %s688 = sadd.s32 %s687, %s685
      %s689 = smul.addr %s688, 8
      %s690 = scalar_lea.vmem %s3, %s689
      %p691 = pneg %p157
      %p692 = pneg %p154
      %p693 = scmp.lt.s32.totalorder %s36, 1
      %s694 = scalar_select %p693, %s36, 1
      %p695 = scmp.lt.s32.totalorder %s37, 0
      %s696 = scalar_select %p695, %s37, 0
      %s697 = sadd.s32 %s696, %s694
      %s698 = smul.addr %s697, 8
      %s699 = scalar_lea.vmem %s4, %s698
      %p700 = pneg %p185
      %p701 = pneg %p182
      %p702 = scmp.lt.s32.totalorder %s36, 1
      %s703 = scalar_select %p702, %s36, 1
      %s704 = scalar_lea.vmem %s5, %s703
      %p705 = pneg %p211
      %p706 = pneg %p208
      %p707 = pneg %p232
      %p708 = pneg %p229
      %p709 = pneg %p253
      %p710 = pneg %p250
      %p711 = pneg %p274
      %p712 = pneg %p271
      %p713 = pneg %p295
      %p714 = pneg %p292
      %p715 = pneg %p316
      %p716 = pneg %p313
      %p717 = pneg %p337
      %p718 = pneg %p334
      %p719 = pneg %p358
      %p720 = pneg %p355
      %p721 = pneg %p379
      %p722 = pneg %p376
      %p723 = pneg %p400
      %p724 = pneg %p397
      %p725 = pneg %p421
      %p726 = pneg %p418
      %p727 = pneg %p442
      %p728 = pneg %p439
      %p729 = pneg %p463
      %p730 = pneg %p460
      %p731 = pneg %p484
      %p732 = pneg %p481
      %p733 = pneg %p505
      %p734 = pneg %p502
      %p735 = pneg %p533
      %p736 = pneg %p530
      %p737 = scmp.lt.s32.totalorder %s36, 1
      %s738 = scalar_select %p737, %s36, 1
      %p739 = scmp.lt.s32.totalorder %s37, 0
      %s740 = scalar_select %p739, %s37, 0
      %s741 = sadd.s32 %s740, %s738
      %s742 = smul.addr %s741, 8
      %s743 = scalar_lea.vmem %s20, %s742
      %p744 = scmp.lt.s32.totalorder %s36, 1
      %s745 = scalar_select %p744, %s36, 1
      %p746 = scmp.lt.s32.totalorder %s37, 0
      %s747 = scalar_select %p746, %s37, 0
      %s748 = sadd.s32 %s747, %s745
      %s749 = smul.addr %s748, 8
      %s750 = scalar_lea.vmem %s0, %s749
      %p751 = scmp.lt.s32.totalorder %s36, 1
      %s752 = scalar_select %p751, %s36, 1
      %p753 = scmp.lt.s32.totalorder %s38, 0
      %s754 = scalar_select %p753, %s38, 0
      %s755 = sadd.s32 %s754, %s752
      %s756 = smul.addr %s755, 8
      %s757 = scalar_lea.vmem %s1, %s756
      %p758 = scmp.lt.s32.totalorder %s36, 1
      %s759 = scalar_select %p758, %s36, 1
      %p760 = scmp.lt.s32.totalorder %s38, 0
      %s761 = scalar_select %p760, %s38, 0
      %s762 = sadd.s32 %s761, %s759
      %s763 = smul.addr %s762, 8
      %s764 = scalar_lea.vmem %s2, %s763
      %p765 = scmp.lt.s32.totalorder %s36, 1
      %s766 = scalar_select %p765, %s36, 1
      %p767 = scmp.lt.s32.totalorder %s38, 0
      %s768 = scalar_select %p767, %s38, 0
      %s769 = sadd.s32 %s768, %s766
      %s770 = smul.addr %s769, 8
      %s771 = scalar_lea.vmem %s3, %s770
      %p772 = scmp.lt.s32.totalorder %s36, 1
      %s773 = scalar_select %p772, %s36, 1
      %p774 = scmp.lt.s32.totalorder %s37, 0
      %s775 = scalar_select %p774, %s37, 0
      %s776 = sadd.s32 %s775, %s773
      %s777 = smul.addr %s776, 8
      %s778 = scalar_lea.vmem %s4, %s777
      %p779 = scmp.lt.s32.totalorder %s36, 1
      %s780 = scalar_select %p779, %s36, 1
      %s781 = scalar_lea.vmem %s5, %s780
      %p782 = scmp.lt.s32.totalorder %s36, 1
      %s783 = scalar_select %p782, %s36, 1
      %p784 = scmp.lt.s32.totalorder %s37, 0
      %s785 = scalar_select %p784, %s37, 0
      %s786 = sadd.s32 %s785, %s783
      %s787 = smul.addr %s786, 8
      %s788 = scalar_lea.vmem %s20, %s787
      %p789 = scmp.eq.s32.totalorder %s38, 0
      // Predicated region
      $region101: #{lieresnet_forward.32} parent=99 // pred_check
        %p790 = pneg %p789
      $region102: #{lieresnet_forward.32} parent=99 // pred_check_branch
        %792 = sbr.rel (%p790) target = $region104
      $region103: #{lieresnet_forward.32} parent=99 // pred_region
        %vm793 = vcmask 130048
        %794 = vst.msk [vmem:[#allocation2] sm:$0xff] %vm793, 0.0
        %795 = vst.msk [vmem:[#allocation2 + $0x8] sm:$0xff] %vm793, 0.0
        %796 = vst.msk [vmem:[#allocation2 + $0x10] sm:$0xff] %vm793, 0.0
        %797 = vst.msk [vmem:[#allocation2 + $0x18] sm:$0xff] %vm793, 0.0
        %798 = vst.msk [vmem:[#allocation2 + $0x20] sm:$0xff] %vm793, 0.0
        %799 = vst.msk [vmem:[#allocation2 + $0x28] sm:$0xff] %vm793, 0.0
        %800 = vst.msk [vmem:[#allocation2 + $0x30] sm:$0xff] %vm793, 0.0
        %801 = vst.msk [vmem:[#allocation2 + $0x38] sm:$0xff] %vm793, 0.0
      $region104: #{lieresnet_forward.32} parent=99 // pred_fallthru
        _
      %v802 = vld [vmem:[%s750] sm:$0xff]
      %v803 = vld [vmem:[%s757] sm:$0xff]
      %v805 = vcombine.high %v802, %v802
      %v807 = vunpack.c.l.s4 1966171168
      %v808 = vunpack.c.0.s8 %v807
      %v809 = vlaneseq
      %v810 = vshrl.u32 %v809, 7
      %v811 = vsub.s32 %v808, %v810
      %v812 = vrot.slane %v802, %v811
      %v814 = vunpack.c.l.s4 1966171168
      %v815 = vunpack.c.0.s8 %v814
      %v816 = vlaneseq
      %v817 = vshrl.u32 %v816, 7
      %v818 = vsub.s32 %v815, %v817
      %v819 = vrot.slane %v805, %v818
      %v820 = vcombine.high %v812, %v812
      %v821 = vcombine.high %v819, %v819
      %v823 = vunpack.c.l.s4 1966171168
      %v824 = vunpack.c.0.s8 %v823
      %v825 = vlaneseq
      %v826 = vshrl.u32 %v825, 7
      %v827 = vsub.s32 %v824, %v826
      %v828 = vrot.slane %v812, %v827
      %v830 = vunpack.c.l.s4 1966171168
      %v831 = vunpack.c.0.s8 %v830
      %v832 = vlaneseq
      %v833 = vshrl.u32 %v832, 7
      %v834 = vsub.s32 %v831, %v833
      %v835 = vrot.slane %v819, %v834
      %v837 = vunpack.c.l.s4 1966171168
      %v838 = vunpack.c.0.s8 %v837
      %v839 = vlaneseq
      %v840 = vshrl.u32 %v839, 7
      %v841 = vsub.s32 %v838, %v840
      %v842 = vrot.slane %v820, %v841
      %v844 = vunpack.c.l.s4 1966171168
      %v845 = vunpack.c.0.s8 %v844
      %v846 = vlaneseq
      %v847 = vshrl.u32 %v846, 7
      %v848 = vsub.s32 %v845, %v847
      %v849 = vrot.slane %v821, %v848
      %v850 = vcombine.high %v828, %v828
      %v851 = vcombine.high %v835, %v835
      %v852 = vcombine.high %v842, %v842
      %v853 = vcombine.high %v849, %v849
      %v854 = vlaneseq
      %v855 = vshrl.u32 %v854, 7
      %v856 = vsub.s32 0, %v855
      %v857 = vrot.slane %v828, %v856
      %v858 = vlaneseq
      %v859 = vshrl.u32 %v858, 7
      %v860 = vsub.s32 0, %v859
      %v861 = vrot.slane %v842, %v860
      %v862 = vlaneseq
      %v863 = vshrl.u32 %v862, 7
      %v864 = vsub.s32 0, %v863
      %v865 = vrot.slane %v850, %v864
      %v866 = vlaneseq
      %v867 = vshrl.u32 %v866, 7
      %v868 = vsub.s32 0, %v867
      %v869 = vrot.slane %v852, %v868
      %v870 = vlaneseq
      %v871 = vshrl.u32 %v870, 7
      %v872 = vsub.s32 0, %v871
      %v873 = vrot.slane %v835, %v872
      %v874 = vlaneseq
      %v875 = vshrl.u32 %v874, 7
      %v876 = vsub.s32 0, %v875
      %v877 = vrot.slane %v849, %v876
      %v878 = vlaneseq
      %v879 = vshrl.u32 %v878, 7
      %v880 = vsub.s32 0, %v879
      %v881 = vrot.slane %v851, %v880
      %v882 = vlaneseq
      %v883 = vshrl.u32 %v882, 7
      %v884 = vsub.s32 0, %v883
      %v885 = vrot.slane %v853, %v884
      %v894 = vsub.f32 %v857, %v803
      %v895 = vsub.f32 %v861, %v803
      %v896 = vsub.f32 %v865, %v803
      %v897 = vsub.f32 %v869, %v803
      %v898 = vsub.f32 %v873, %v803
      %v899 = vsub.f32 %v877, %v803
      %v900 = vsub.f32 %v881, %v803
      %v901 = vsub.f32 %v885, %v803
      %v902 = vld [vmem:[%s6] sm:$0x7]
      %v903 = vld [vmem:[%s7] sm:$0x1]
      %v905 = vlaneseq
      %v906 = vshrl.u32 %v905, 7
      %v907 = vsub.s32 0, %v906
      %v908 = vrot.slane %v903, %v907
      %vm910 = vcmask 23552
      %v912 = vsel %vm910, %v894, 0
      %v915 = vsel %vm910, %v895, 0
      %v918 = vsel %vm910, %v896, 0
      %v921 = vsel %vm910, %v897, 0
      %v924 = vsel %vm910, %v898, 0
      %v927 = vsel %vm910, %v899, 0
      %v930 = vsel %vm910, %v900, 0
      %v933 = vsel %vm910, %v901, 0
      %vm935 = vcmask 1042432
      %v937 = vsel %vm935, %v902, 0
      %939 = vmatprep.subr.mxu0 0.0
      %940 = vmatpush1.msra.mxu0 %v937
      %941 = vmatprep.subr.mxu0 0.0
      %942 = vmatpush1.msra.mxu0 0.0
      %943 = vmatprep.subr.mxu0 0.0
      %944 = vmatpush1.msra.mxu0 0.0
      %945 = vmatprep.subr.mxu0 0.0
      %946 = vmatpush1.msra.mxu0 0.0
      %947 = vmatprep.subr.mxu0 0.0
      %948 = vmatpush1.msra.mxu0 0.0
      %949 = vmatprep.subr.mxu0 0.0
      %950 = vmatpush1.msra.mxu0 0.0
      %951 = vmatprep.subr.mxu0 0.0
      %952 = vmatpush1.msra.mxu0 0.0
      %953 = vmatprep.subr.mxu0 0.0
      %954 = vmatpush1.msra.mxu0 0.0
      %955 = vmatprep.subr.mxu0 0.0
      %956 = vmatpush1.msra.mxu0 0.0
      %957 = vmatprep.subr.mxu0 0.0
      %958 = vmatpush1.msra.mxu0 0.0
      %959 = vmatprep.subr.mxu0 0.0
      %960 = vmatpush1.msra.mxu0 0.0
      %961 = vmatprep.subr.mxu0 0.0
      %962 = vmatpush1.msra.mxu0 0.0
      %963 = vmatprep.subr.mxu0 0.0
      %964 = vmatpush1.msra.mxu0 0.0
      %965 = vmatprep.subr.mxu0 0.0
      %966 = vmatpush1.msra.mxu0 0.0
      %967 = vmatprep.subr.mxu0 0.0
      %968 = vmatpush1.msra.mxu0 0.0
      %969 = vmatprep.subr.mxu0 0.0
      %970 = vmatpush1.msra.mxu0 0.0
      %971 = vmatprep.subr.mxu0 0.0
      %972 = vmatpush1.msra.mxu0 0.0
      %973 = vmatprep.subr.mxu0 0.0
      %974 = vmatpush1.msra.mxu0 0.0
      %975 = vmatprep.subr.mxu0 0.0
      %976 = vmatpush1.msra.mxu0 0.0
      %977 = vmatprep.subr.mxu0 0.0
      %978 = vmatpush1.msra.mxu0 0.0
      %979 = vmatprep.subr.mxu0 0.0
      %980 = vmatpush1.msra.mxu0 0.0
      %981 = vmatprep.subr.mxu0 0.0
      %982 = vmatpush1.msra.mxu0 0.0
      %983 = vmatprep.subr.mxu0 0.0
      %984 = vmatpush1.msra.mxu0 0.0
      %985 = vmatprep.subr.mxu0 0.0
      %986 = vmatpush1.msra.mxu0 0.0
      %987 = vmatprep.subr.mxu0 0.0
      %988 = vmatpush1.msra.mxu0 0.0
      %989 = vmatprep.subr.mxu0 0.0
      %990 = vmatpush1.msra.mxu0 0.0
      %991 = vmatprep.subr.mxu0 0.0
      %992 = vmatpush1.msra.mxu0 0.0
      %993 = vmatprep.subr.mxu0 0.0
      %994 = vmatpush1.msra.mxu0 0.0
      %995 = vmatprep.subr.mxu0 0.0
      %996 = vmatpush1.msra.mxu0 0.0
      %997 = vmatprep.subr.mxu0 0.0
      %998 = vmatpush1.msra.mxu0 0.0
      %999 = vmatprep.subr.mxu0 0.0
      %1000 = vmatpush1.msra.mxu0 0.0
      %1001 = vmatprep.subr.mxu0 0.0
      %1002 = vmatpush1.msra.mxu0 0.0
      %1003 = vmatprep.mubr.f32.mxu0 0.0
      %1004 = vmatmul.mubr.f32.gmra.mrb[0].mxu0 %v912
      %v1005 = vpop.f32.mrb[0].mxu0
      %v1006 = vadd.f32 %v908, %v1005
      %v1007 = vpop.f32.mrb[0].mxu0
      %1008 = vmatprep.mubr.f32.mxu0 0.0
      %1009 = vmatmul.mubr.f32.gmra.mrb[0].mxu0 %v915
      %v1010 = vpop.f32.mrb[0].mxu0
      %v1011 = vadd.f32 %v908, %v1010
      %v1012 = vpop.f32.mrb[0].mxu0
      %1013 = vmatprep.mubr.f32.mxu0 0.0
      %1014 = vmatmul.mubr.f32.gmra.mrb[0].mxu0 %v918
      %v1015 = vpop.f32.mrb[0].mxu0
      %v1016 = vadd.f32 %v908, %v1015
      %v1017 = vpop.f32.mrb[0].mxu0
      %1018 = vmatprep.mubr.f32.mxu0 0.0
      %1019 = vmatmul.mubr.f32.gmra.mrb[0].mxu0 %v921
      %v1020 = vpop.f32.mrb[0].mxu0
      %v1021 = vadd.f32 %v908, %v1020
      %v1022 = vpop.f32.mrb[0].mxu0
      %1023 = vmatprep.mubr.f32.mxu0 0.0
      %1024 = vmatmul.mubr.f32.gmra.mrb[0].mxu0 %v924
      %v1025 = vpop.f32.mrb[0].mxu0
      %v1026 = vadd.f32 %v908, %v1025
      %v1027 = vpop.f32.mrb[0].mxu0
      %1028 = vmatprep.mubr.f32.mxu0 0.0
      %1029 = vmatmul.mubr.f32.gmra.mrb[0].mxu0 %v927
      %v1030 = vpop.f32.mrb[0].mxu0
      %v1031 = vadd.f32 %v908, %v1030
      %v1032 = vpop.f32.mrb[0].mxu0
      %1033 = vmatprep.mubr.f32.mxu0 0.0
      %1034 = vmatmul.mubr.f32.gmra.mrb[0].mxu0 %v930
      %v1035 = vpop.f32.mrb[0].mxu0
      %v1036 = vadd.f32 %v908, %v1035
      %v1037 = vpop.f32.mrb[0].mxu0
      %1038 = vmatprep.mubr.f32.mxu0 0.0
      %1039 = vmatmul.mubr.f32.gmra.mrb[0].mxu0 %v933
      %v1040 = vpop.f32.mrb[0].mxu0
      %v1041 = vadd.f32 %v908, %v1040
      %v1042 = vpop.f32.mrb[0].mxu0
      %1043 = vdwg.mxu0
      %v1044 = vld [vmem:[%s8] sm:$0x1]
      %v1046 = vlaneseq
      %v1047 = vshrl.u32 %v1046, 7
      %v1048 = vsub.s32 0, %v1047
      %v1049 = vrot.slane %v1044, %v1048
      %v1051 = vmul.f32 %v1006, %v1049
      %v1052 = vmul.f32 %v1011, %v1049
      %v1053 = vmul.f32 %v1016, %v1049
      %v1054 = vmul.f32 %v1021, %v1049
      %v1055 = vmul.f32 %v1026, %v1049
      %v1056 = vmul.f32 %v1031, %v1049
      %v1057 = vmul.f32 %v1036, %v1049
      %v1058 = vmul.f32 %v1041, %v1049
      %v1059 = vld [vmem:[%s9] sm:$0x1]
      %v1061 = vlaneseq
      %v1062 = vshrl.u32 %v1061, 7
      %v1063 = vsub.s32 0, %v1062
      %v1064 = vrot.slane %v1059, %v1063
      %v1066 = vadd.f32 %v1051, %v1064
      %v1067 = vadd.f32 %v1052, %v1064
      %v1068 = vadd.f32 %v1053, %v1064
      %v1069 = vadd.f32 %v1054, %v1064
      %v1070 = vadd.f32 %v1055, %v1064
      %v1071 = vadd.f32 %v1056, %v1064
      %v1072 = vadd.f32 %v1057, %v1064
      %v1073 = vadd.f32 %v1058, %v1064
      %v1074 = vxor.u32 %v1066, 2147483648
      %v1075 = vxor.u32 %v1067, 2147483648
      %v1076 = vxor.u32 %v1068, 2147483648
      %v1077 = vxor.u32 %v1069, 2147483648
      %v1078 = vxor.u32 %v1070, 2147483648
      %v1079 = vxor.u32 %v1071, 2147483648
      %v1080 = vxor.u32 %v1072, 2147483648
      %v1081 = vxor.u32 %v1073, 2147483648
      %v1082 = vmul.f32 %v1074, 1.442695
      %v1083 = vpow.pop %v1082
      %v1084 = vmul.f32 %v1075, 1.442695
      %v1085 = vpow.pop %v1084
      %v1086 = vmul.f32 %v1076, 1.442695
      %v1087 = vpow.pop %v1086
      %v1088 = vmul.f32 %v1077, 1.442695
      %v1089 = vpow.pop %v1088
      %v1090 = vmul.f32 %v1078, 1.442695
      %v1091 = vpow.pop %v1090
      %v1092 = vmul.f32 %v1079, 1.442695
      %v1093 = vpow.pop %v1092
      %v1094 = vmul.f32 %v1080, 1.442695
      %v1095 = vpow.pop %v1094
      %v1096 = vmul.f32 %v1081, 1.442695
      %v1097 = vpow.pop %v1096
      %v1098 = vadd.f32 %v1083, 1.0
      %v1099 = vadd.f32 %v1085, 1.0
      %v1100 = vadd.f32 %v1087, 1.0
      %v1101 = vadd.f32 %v1089, 1.0
      %v1102 = vadd.f32 %v1091, 1.0
      %v1103 = vadd.f32 %v1093, 1.0
      %v1104 = vadd.f32 %v1095, 1.0
      %v1105 = vadd.f32 %v1097, 1.0
      %v1106 = vrcp.pop %v1098
      %v1107 = vmul.f32 1.0, %v1106
      %v1108 = vrcp.pop %v1099
      %v1109 = vmul.f32 1.0, %v1108
      %v1110 = vrcp.pop %v1100
      %v1111 = vmul.f32 1.0, %v1110
      %v1112 = vrcp.pop %v1101
      %v1113 = vmul.f32 1.0, %v1112
      %v1114 = vrcp.pop %v1102
      %v1115 = vmul.f32 1.0, %v1114
      %v1116 = vrcp.pop %v1103
      %v1117 = vmul.f32 1.0, %v1116
      %v1118 = vrcp.pop %v1104
      %v1119 = vmul.f32 1.0, %v1118
      %v1120 = vrcp.pop %v1105
      %v1121 = vmul.f32 1.0, %v1120
      %v1122 = vmul.f32 %v1066, %v1107
      %v1123 = vmul.f32 %v1067, %v1109
      %v1124 = vmul.f32 %v1068, %v1111
      %v1125 = vmul.f32 %v1069, %v1113
      %v1126 = vmul.f32 %v1070, %v1115
      %v1127 = vmul.f32 %v1071, %v1117
      %v1128 = vmul.f32 %v1072, %v1119
      %v1129 = vmul.f32 %v1073, %v1121
      %v1130 = vld [vmem:[%s10] sm:$0xff]
      %v1131 = vld [vmem:[%s10 + $0x8] sm:$0xff]
      %v1132 = vld [vmem:[%s10 + $0x10] sm:$0xff]
      %v1133 = vld [vmem:[%s10 + $0x18] sm:$0xff]
      %v1134 = vld [vmem:[%s11] sm:$0x1]
      %v1136 = vlaneseq
      %v1137 = vshrl.u32 %v1136, 7
      %v1138 = vsub.s32 0, %v1137
      %v1139 = vrot.slane %v1134, %v1138
      %vm1141 = vcmask 261120
      %v1143 = vsel %vm1141, %v1122, 0
      %v1146 = vsel %vm1141, %v1123, 0
      %v1149 = vsel %vm1141, %v1124, 0
      %v1152 = vsel %vm1141, %v1125, 0
      %v1155 = vsel %vm1141, %v1126, 0
      %v1158 = vsel %vm1141, %v1127, 0
      %v1161 = vsel %vm1141, %v1128, 0
      %v1164 = vsel %vm1141, %v1129, 0
      %1166 = vmatprep.subr.mxu0 0.0
      %1167 = vmatpush1.msra.mxu0 %v1130
      %1168 = vmatprep.subr.mxu0 0.0
      %1169 = vmatpush1.msra.mxu0 %v1131
      %1170 = vmatprep.subr.mxu0 0.0
      %1171 = vmatpush1.msra.mxu0 %v1132
      %1172 = vmatprep.subr.mxu0 0.0
      %1173 = vmatpush1.msra.mxu0 %v1133
      %1174 = vmatprep.subr.mxu0 0.0
      %1175 = vmatpush1.msra.mxu0 0.0
      %1176 = vmatprep.subr.mxu0 0.0
      %1177 = vmatpush1.msra.mxu0 0.0
      %1178 = vmatprep.subr.mxu0 0.0
      %1179 = vmatpush1.msra.mxu0 0.0
      %1180 = vmatprep.subr.mxu0 0.0
      %1181 = vmatpush1.msra.mxu0 0.0
      %1182 = vmatprep.subr.mxu0 0.0
      %1183 = vmatpush1.msra.mxu0 0.0
      %1184 = vmatprep.subr.mxu0 0.0
      %1185 = vmatpush1.msra.mxu0 0.0
      %1186 = vmatprep.subr.mxu0 0.0
      %1187 = vmatpush1.msra.mxu0 0.0
      %1188 = vmatprep.subr.mxu0 0.0
      %1189 = vmatpush1.msra.mxu0 0.0
      %1190 = vmatprep.subr.mxu0 0.0
      %1191 = vmatpush1.msra.mxu0 0.0
      %1192 = vmatprep.subr.mxu0 0.0
      %1193 = vmatpush1.msra.mxu0 0.0
      %1194 = vmatprep.subr.mxu0 0.0
      %1195 = vmatpush1.msra.mxu0 0.0
      %1196 = vmatprep.subr.mxu0 0.0
      %1197 = vmatpush1.msra.mxu0 0.0
      %1198 = vmatprep.subr.mxu0 0.0
      %1199 = vmatpush1.msra.mxu0 0.0
      %1200 = vmatprep.subr.mxu0 0.0
      %1201 = vmatpush1.msra.mxu0 0.0
      %1202 = vmatprep.subr.mxu0 0.0
      %1203 = vmatpush1.msra.mxu0 0.0
      %1204 = vmatprep.subr.mxu0 0.0
      %1205 = vmatpush1.msra.mxu0 0.0
      %1206 = vmatprep.subr.mxu0 0.0
      %1207 = vmatpush1.msra.mxu0 0.0
      %1208 = vmatprep.subr.mxu0 0.0
      %1209 = vmatpush1.msra.mxu0 0.0
      %1210 = vmatprep.subr.mxu0 0.0
      %1211 = vmatpush1.msra.mxu0 0.0
      %1212 = vmatprep.subr.mxu0 0.0
      %1213 = vmatpush1.msra.mxu0 0.0
      %1214 = vmatprep.subr.mxu0 0.0
      %1215 = vmatpush1.msra.mxu0 0.0
      %1216 = vmatprep.subr.mxu0 0.0
      %1217 = vmatpush1.msra.mxu0 0.0
      %1218 = vmatprep.subr.mxu0 0.0
      %1219 = vmatpush1.msra.mxu0 0.0
      %1220 = vmatprep.subr.mxu0 0.0
      %1221 = vmatpush1.msra.mxu0 0.0
      %1222 = vmatprep.subr.mxu0 0.0
      %1223 = vmatpush1.msra.mxu0 0.0
      %1224 = vmatprep.subr.mxu0 0.0
      %1225 = vmatpush1.msra.mxu0 0.0
      %1226 = vmatprep.subr.mxu0 0.0
      %1227 = vmatpush1.msra.mxu0 0.0
      %1228 = vmatprep.subr.mxu0 0.0
      %1229 = vmatpush1.msra.mxu0 0.0
      %1230 = vmatprep.mubr.f32.mxu0 0.0
      %1231 = vmatmul.mubr.f32.gmra.mrb[0].mxu0 %v1143
      %v1232 = vpop.f32.mrb[0].mxu0
      %v1233 = vadd.f32 %v1139, %v1232
      %v1234 = vpop.f32.mrb[0].mxu0
      %1235 = vmatprep.mubr.f32.mxu0 0.0
      %1236 = vmatmul.mubr.f32.gmra.mrb[0].mxu0 %v1146
      %v1237 = vpop.f32.mrb[0].mxu0
      %v1238 = vadd.f32 %v1139, %v1237
      %v1239 = vpop.f32.mrb[0].mxu0
      %1240 = vmatprep.mubr.f32.mxu0 0.0
      %1241 = vmatmul.mubr.f32.gmra.mrb[0].mxu0 %v1149
      %v1242 = vpop.f32.mrb[0].mxu0
      %v1243 = vadd.f32 %v1139, %v1242
      %v1244 = vpop.f32.mrb[0].mxu0
      %1245 = vmatprep.mubr.f32.mxu0 0.0
      %1246 = vmatmul.mubr.f32.gmra.mrb[0].mxu0 %v1152
      %v1247 = vpop.f32.mrb[0].mxu0
      %v1248 = vadd.f32 %v1139, %v1247
      %v1249 = vpop.f32.mrb[0].mxu0
      %1250 = vmatprep.mubr.f32.mxu0 0.0
      %1251 = vmatmul.mubr.f32.gmra.mrb[0].mxu0 %v1155
      %v1252 = vpop.f32.mrb[0].mxu0
      %v1253 = vadd.f32 %v1139, %v1252
      %v1254 = vpop.f32.mrb[0].mxu0
      %1255 = vmatprep.mubr.f32.mxu0 0.0
      %1256 = vmatmul.mubr.f32.gmra.mrb[0].mxu0 %v1158
      %v1257 = vpop.f32.mrb[0].mxu0
      %v1258 = vadd.f32 %v1139, %v1257
      %v1259 = vpop.f32.mrb[0].mxu0
      %1260 = vmatprep.mubr.f32.mxu0 0.0
      %1261 = vmatmul.mubr.f32.gmra.mrb[0].mxu0 %v1161
      %v1262 = vpop.f32.mrb[0].mxu0
      %v1263 = vadd.f32 %v1139, %v1262
      %v1264 = vpop.f32.mrb[0].mxu0
      %1265 = vmatprep.mubr.f32.mxu0 0.0
      %1266 = vmatmul.mubr.f32.gmra.mrb[0].mxu0 %v1164
      %v1267 = vpop.f32.mrb[0].mxu0
      %v1268 = vadd.f32 %v1139, %v1267
      %v1269 = vpop.f32.mrb[0].mxu0
      %1270 = vdwg.mxu0
      %v1271 = vld [vmem:[%s12] sm:$0x1]
      %v1273 = vlaneseq
      %v1274 = vshrl.u32 %v1273, 7
      %v1275 = vsub.s32 0, %v1274
      %v1276 = vrot.slane %v1271, %v1275
      %v1278 = vmul.f32 %v1233, %v1276
      %v1279 = vmul.f32 %v1238, %v1276
      %v1280 = vmul.f32 %v1243, %v1276
      %v1281 = vmul.f32 %v1248, %v1276
      %v1282 = vmul.f32 %v1253, %v1276
      %v1283 = vmul.f32 %v1258, %v1276
      %v1284 = vmul.f32 %v1263, %v1276
      %v1285 = vmul.f32 %v1268, %v1276
      %v1286 = vld [vmem:[%s13] sm:$0x1]
      %v1288 = vlaneseq
      %v1289 = vshrl.u32 %v1288, 7
      %v1290 = vsub.s32 0, %v1289
      %v1291 = vrot.slane %v1286, %v1290
      %v1293 = vadd.f32 %v1278, %v1291
      %v1294 = vadd.f32 %v1279, %v1291
      %v1295 = vadd.f32 %v1280, %v1291
      %v1296 = vadd.f32 %v1281, %v1291
      %v1297 = vadd.f32 %v1282, %v1291
      %v1298 = vadd.f32 %v1283, %v1291
      %v1299 = vadd.f32 %v1284, %v1291
      %v1300 = vadd.f32 %v1285, %v1291
      %v1301 = vxor.u32 %v1293, 2147483648
      %v1302 = vxor.u32 %v1294, 2147483648
      %v1303 = vxor.u32 %v1295, 2147483648
      %v1304 = vxor.u32 %v1296, 2147483648
      %v1305 = vxor.u32 %v1297, 2147483648
      %v1306 = vxor.u32 %v1298, 2147483648
      %v1307 = vxor.u32 %v1299, 2147483648
      %v1308 = vxor.u32 %v1300, 2147483648
      %v1309 = vmul.f32 %v1301, 1.442695
      %v1310 = vpow.pop %v1309
      %v1311 = vmul.f32 %v1302, 1.442695
      %v1312 = vpow.pop %v1311
      %v1313 = vmul.f32 %v1303, 1.442695
      %v1314 = vpow.pop %v1313
      %v1315 = vmul.f32 %v1304, 1.442695
      %v1316 = vpow.pop %v1315
      %v1317 = vmul.f32 %v1305, 1.442695
      %v1318 = vpow.pop %v1317
      %v1319 = vmul.f32 %v1306, 1.442695
      %v1320 = vpow.pop %v1319
      %v1321 = vmul.f32 %v1307, 1.442695
      %v1322 = vpow.pop %v1321
      %v1323 = vmul.f32 %v1308, 1.442695
      %v1324 = vpow.pop %v1323
      %v1325 = vadd.f32 %v1310, 1.0
      %v1326 = vadd.f32 %v1312, 1.0
      %v1327 = vadd.f32 %v1314, 1.0
      %v1328 = vadd.f32 %v1316, 1.0
      %v1329 = vadd.f32 %v1318, 1.0
      %v1330 = vadd.f32 %v1320, 1.0
      %v1331 = vadd.f32 %v1322, 1.0
      %v1332 = vadd.f32 %v1324, 1.0
      %v1333 = vrcp.pop %v1325
      %v1334 = vmul.f32 1.0, %v1333
      %v1335 = vrcp.pop %v1326
      %v1336 = vmul.f32 1.0, %v1335
      %v1337 = vrcp.pop %v1327
      %v1338 = vmul.f32 1.0, %v1337
      %v1339 = vrcp.pop %v1328
      %v1340 = vmul.f32 1.0, %v1339
      %v1341 = vrcp.pop %v1329
      %v1342 = vmul.f32 1.0, %v1341
      %v1343 = vrcp.pop %v1330
      %v1344 = vmul.f32 1.0, %v1343
      %v1345 = vrcp.pop %v1331
      %v1346 = vmul.f32 1.0, %v1345
      %v1347 = vrcp.pop %v1332
      %v1348 = vmul.f32 1.0, %v1347
      %v1349 = vmul.f32 %v1293, %v1334
      %v1350 = vmul.f32 %v1294, %v1336
      %v1351 = vmul.f32 %v1295, %v1338
      %v1352 = vmul.f32 %v1296, %v1340
      %v1353 = vmul.f32 %v1297, %v1342
      %v1354 = vmul.f32 %v1298, %v1344
      %v1355 = vmul.f32 %v1299, %v1346
      %v1356 = vmul.f32 %v1300, %v1348
      %v1357 = vld [vmem:[%s14] sm:$0xff]
      %v1358 = vld [vmem:[%s14 + $0x8] sm:$0xff]
      %v1359 = vld [vmem:[%s14 + $0x10] sm:$0xff]
      %v1360 = vld [vmem:[%s14 + $0x18] sm:$0xff]
      %v1361 = vld [vmem:[%s15] sm:$0x1]
      %v1363 = vlaneseq
      %v1364 = vshrl.u32 %v1363, 7
      %v1365 = vsub.s32 0, %v1364
      %v1366 = vrot.slane %v1361, %v1365
      %v1369 = vsel %vm1141, %v1349, 0
      %v1372 = vsel %vm1141, %v1350, 0
      %v1375 = vsel %vm1141, %v1351, 0
      %v1378 = vsel %vm1141, %v1352, 0
      %v1381 = vsel %vm1141, %v1353, 0
      %v1384 = vsel %vm1141, %v1354, 0
      %v1387 = vsel %vm1141, %v1355, 0
      %v1390 = vsel %vm1141, %v1356, 0
      %1392 = vmatprep.subr.mxu0 0.0
      %1393 = vmatpush1.msra.mxu0 %v1357
      %1394 = vmatprep.subr.mxu0 0.0
      %1395 = vmatpush1.msra.mxu0 %v1358
      %1396 = vmatprep.subr.mxu0 0.0
      %1397 = vmatpush1.msra.mxu0 %v1359
      %1398 = vmatprep.subr.mxu0 0.0
      %1399 = vmatpush1.msra.mxu0 %v1360
      %1400 = vmatprep.subr.mxu0 0.0
      %1401 = vmatpush1.msra.mxu0 0.0
      %1402 = vmatprep.subr.mxu0 0.0
      %1403 = vmatpush1.msra.mxu0 0.0
      %1404 = vmatprep.subr.mxu0 0.0
      %1405 = vmatpush1.msra.mxu0 0.0
      %1406 = vmatprep.subr.mxu0 0.0
      %1407 = vmatpush1.msra.mxu0 0.0
      %1408 = vmatprep.subr.mxu0 0.0
      %1409 = vmatpush1.msra.mxu0 0.0
      %1410 = vmatprep.subr.mxu0 0.0
      %1411 = vmatpush1.msra.mxu0 0.0
      %1412 = vmatprep.subr.mxu0 0.0
      %1413 = vmatpush1.msra.mxu0 0.0
      %1414 = vmatprep.subr.mxu0 0.0
      %1415 = vmatpush1.msra.mxu0 0.0
      %1416 = vmatprep.subr.mxu0 0.0
      %1417 = vmatpush1.msra.mxu0 0.0
      %1418 = vmatprep.subr.mxu0 0.0
      %1419 = vmatpush1.msra.mxu0 0.0
      %1420 = vmatprep.subr.mxu0 0.0
      %1421 = vmatpush1.msra.mxu0 0.0
      %1422 = vmatprep.subr.mxu0 0.0
      %1423 = vmatpush1.msra.mxu0 0.0
      %1424 = vmatprep.subr.mxu0 0.0
      %1425 = vmatpush1.msra.mxu0 0.0
      %1426 = vmatprep.subr.mxu0 0.0
      %1427 = vmatpush1.msra.mxu0 0.0
      %1428 = vmatprep.subr.mxu0 0.0
      %1429 = vmatpush1.msra.mxu0 0.0
      %1430 = vmatprep.subr.mxu0 0.0
      %1431 = vmatpush1.msra.mxu0 0.0
      %1432 = vmatprep.subr.mxu0 0.0
      %1433 = vmatpush1.msra.mxu0 0.0
      %1434 = vmatprep.subr.mxu0 0.0
      %1435 = vmatpush1.msra.mxu0 0.0
      %1436 = vmatprep.subr.mxu0 0.0
      %1437 = vmatpush1.msra.mxu0 0.0
      %1438 = vmatprep.subr.mxu0 0.0
      %1439 = vmatpush1.msra.mxu0 0.0
      %1440 = vmatprep.subr.mxu0 0.0
      %1441 = vmatpush1.msra.mxu0 0.0
      %1442 = vmatprep.subr.mxu0 0.0
      %1443 = vmatpush1.msra.mxu0 0.0
      %1444 = vmatprep.subr.mxu0 0.0
      %1445 = vmatpush1.msra.mxu0 0.0
      %1446 = vmatprep.subr.mxu0 0.0
      %1447 = vmatpush1.msra.mxu0 0.0
      %1448 = vmatprep.subr.mxu0 0.0
      %1449 = vmatpush1.msra.mxu0 0.0
      %1450 = vmatprep.subr.mxu0 0.0
      %1451 = vmatpush1.msra.mxu0 0.0
      %1452 = vmatprep.subr.mxu0 0.0
      %1453 = vmatpush1.msra.mxu0 0.0
      %1454 = vmatprep.subr.mxu0 0.0
      %1455 = vmatpush1.msra.mxu0 0.0
      %1456 = vmatprep.mubr.f32.mxu0 0.0
      %1457 = vmatmul.mubr.f32.gmra.mrb[0].mxu0 %v1369
      %v1458 = vpop.f32.mrb[0].mxu0
      %v1459 = vadd.f32 %v1366, %v1458
      %v1460 = vpop.f32.mrb[0].mxu0
      %1461 = vmatprep.mubr.f32.mxu0 0.0
      %1462 = vmatmul.mubr.f32.gmra.mrb[0].mxu0 %v1372
      %v1463 = vpop.f32.mrb[0].mxu0
      %v1464 = vadd.f32 %v1366, %v1463
      %v1465 = vpop.f32.mrb[0].mxu0
      %1466 = vmatprep.mubr.f32.mxu0 0.0
      %1467 = vmatmul.mubr.f32.gmra.mrb[0].mxu0 %v1375
      %v1468 = vpop.f32.mrb[0].mxu0
      %v1469 = vadd.f32 %v1366, %v1468
      %v1470 = vpop.f32.mrb[0].mxu0
      %1471 = vmatprep.mubr.f32.mxu0 0.0
      %1472 = vmatmul.mubr.f32.gmra.mrb[0].mxu0 %v1378
      %v1473 = vpop.f32.mrb[0].mxu0
      %v1474 = vadd.f32 %v1366, %v1473
      %v1475 = vpop.f32.mrb[0].mxu0
      %1476 = vmatprep.mubr.f32.mxu0 0.0
      %1477 = vmatmul.mubr.f32.gmra.mrb[0].mxu0 %v1381
      %v1478 = vpop.f32.mrb[0].mxu0
      %v1479 = vadd.f32 %v1366, %v1478
      %v1480 = vpop.f32.mrb[0].mxu0
      %1481 = vmatprep.mubr.f32.mxu0 0.0
      %1482 = vmatmul.mubr.f32.gmra.mrb[0].mxu0 %v1384
      %v1483 = vpop.f32.mrb[0].mxu0
      %v1484 = vadd.f32 %v1366, %v1483
      %v1485 = vpop.f32.mrb[0].mxu0
      %1486 = vmatprep.mubr.f32.mxu0 0.0
      %1487 = vmatmul.mubr.f32.gmra.mrb[0].mxu0 %v1387
      %v1488 = vpop.f32.mrb[0].mxu0
      %v1489 = vadd.f32 %v1366, %v1488
      %v1490 = vpop.f32.mrb[0].mxu0
      %1491 = vmatprep.mubr.f32.mxu0 0.0
      %1492 = vmatmul.mubr.f32.gmra.mrb[0].mxu0 %v1390
      %v1493 = vpop.f32.mrb[0].mxu0
      %v1494 = vadd.f32 %v1366, %v1493
      %v1495 = vpop.f32.mrb[0].mxu0
      %1496 = vdwg.mxu0
      %v1497 = vld [vmem:[%s16] sm:$0x1]
      %v1499 = vlaneseq
      %v1500 = vshrl.u32 %v1499, 7
      %v1501 = vsub.s32 0, %v1500
      %v1502 = vrot.slane %v1497, %v1501
      %v1504 = vmul.f32 %v1459, %v1502
      %v1505 = vmul.f32 %v1464, %v1502
      %v1506 = vmul.f32 %v1469, %v1502
      %v1507 = vmul.f32 %v1474, %v1502
      %v1508 = vmul.f32 %v1479, %v1502
      %v1509 = vmul.f32 %v1484, %v1502
      %v1510 = vmul.f32 %v1489, %v1502
      %v1511 = vmul.f32 %v1494, %v1502
      %v1512 = vld [vmem:[%s17] sm:$0x1]
      %v1514 = vlaneseq
      %v1515 = vshrl.u32 %v1514, 7
      %v1516 = vsub.s32 0, %v1515
      %v1517 = vrot.slane %v1512, %v1516
      %v1519 = vadd.f32 %v1504, %v1517
      %v1520 = vadd.f32 %v1505, %v1517
      %v1521 = vadd.f32 %v1506, %v1517
      %v1522 = vadd.f32 %v1507, %v1517
      %v1523 = vadd.f32 %v1508, %v1517
      %v1524 = vadd.f32 %v1509, %v1517
      %v1525 = vadd.f32 %v1510, %v1517
      %v1526 = vadd.f32 %v1511, %v1517
      %v1527 = vxor.u32 %v1519, 2147483648
      %v1528 = vxor.u32 %v1520, 2147483648
      %v1529 = vxor.u32 %v1521, 2147483648
      %v1530 = vxor.u32 %v1522, 2147483648
      %v1531 = vxor.u32 %v1523, 2147483648
      %v1532 = vxor.u32 %v1524, 2147483648
      %v1533 = vxor.u32 %v1525, 2147483648
      %v1534 = vxor.u32 %v1526, 2147483648
      %v1535 = vmul.f32 %v1527, 1.442695
      %v1536 = vpow.pop %v1535
      %v1537 = vmul.f32 %v1528, 1.442695
      %v1538 = vpow.pop %v1537
      %v1539 = vmul.f32 %v1529, 1.442695
      %v1540 = vpow.pop %v1539
      %v1541 = vmul.f32 %v1530, 1.442695
      %v1542 = vpow.pop %v1541
      %v1543 = vmul.f32 %v1531, 1.442695
      %v1544 = vpow.pop %v1543
      %v1545 = vmul.f32 %v1532, 1.442695
      %v1546 = vpow.pop %v1545
      %v1547 = vmul.f32 %v1533, 1.442695
      %v1548 = vpow.pop %v1547
      %v1549 = vmul.f32 %v1534, 1.442695
      %v1550 = vpow.pop %v1549
      %v1551 = vadd.f32 %v1536, 1.0
      %v1552 = vadd.f32 %v1538, 1.0
      %v1553 = vadd.f32 %v1540, 1.0
      %v1554 = vadd.f32 %v1542, 1.0
      %v1555 = vadd.f32 %v1544, 1.0
      %v1556 = vadd.f32 %v1546, 1.0
      %v1557 = vadd.f32 %v1548, 1.0
      %v1558 = vadd.f32 %v1550, 1.0
      %v1559 = vrcp.pop %v1551
      %v1560 = vmul.f32 1.0, %v1559
      %v1561 = vrcp.pop %v1552
      %v1562 = vmul.f32 1.0, %v1561
      %v1563 = vrcp.pop %v1553
      %v1564 = vmul.f32 1.0, %v1563
      %v1565 = vrcp.pop %v1554
      %v1566 = vmul.f32 1.0, %v1565
      %v1567 = vrcp.pop %v1555
      %v1568 = vmul.f32 1.0, %v1567
      %v1569 = vrcp.pop %v1556
      %v1570 = vmul.f32 1.0, %v1569
      %v1571 = vrcp.pop %v1557
      %v1572 = vmul.f32 1.0, %v1571
      %v1573 = vrcp.pop %v1558
      %v1574 = vmul.f32 1.0, %v1573
      %v1575 = vmul.f32 %v1519, %v1560
      %v1576 = vmul.f32 %v1520, %v1562
      %v1577 = vmul.f32 %v1521, %v1564
      %v1578 = vmul.f32 %v1522, %v1566
      %v1579 = vmul.f32 %v1523, %v1568
      %v1580 = vmul.f32 %v1524, %v1570
      %v1581 = vmul.f32 %v1525, %v1572
      %v1582 = vmul.f32 %v1526, %v1574
      %v1583 = vld [vmem:[%s771] sm:$0xff]
      %1585 = vset.pattern.permute.xlu0 0
      %1586 = vperm.xlu0 %1585, %v1583
      %v1587 = vpop.permute.xlu0 %1586
      %v1589 = vmul.f32 %v1575, %v1587
      %v1590 = vmul.f32 %v1576, %v1587
      %v1591 = vmul.f32 %v1577, %v1587
      %v1592 = vmul.f32 %v1578, %v1587
      %v1593 = vmul.f32 %v1579, %v1587
      %v1594 = vmul.f32 %v1580, %v1587
      %v1595 = vmul.f32 %v1581, %v1587
      %v1596 = vmul.f32 %v1582, %v1587
      %v1597 = vld [vmem:[%s764] sm:$0xff]
      %v1598 = vmul.f32 %v1597, %v1587
      %1599 = vxpose.xlu0.b32.start [1/16] %v1598, 128
      %1600 = vxpose.xlu0.b32.cont [2/16] 0.0, 128
      %1601 = vxpose.xlu0.b32.cont [3/16] 0.0, 128
      %1602 = vxpose.xlu0.b32.cont [4/16] 0.0, 128
      %1603 = vxpose.xlu0.b32.cont [5/16] 0.0, 128
      %1604 = vxpose.xlu0.b32.cont [6/16] 0.0, 128
      %1605 = vxpose.xlu0.b32.cont [7/16] 0.0, 128
      %1606 = vxpose.xlu0.b32.cont [8/16] 0.0, 128
      %1607 = vxpose.xlu0.b32.cont [9/16] 0.0, 128
      %1608 = vxpose.xlu0.b32.cont [10/16] 0.0, 128
      %1609 = vxpose.xlu0.b32.cont [11/16] 0.0, 128
      %1610 = vxpose.xlu0.b32.cont [12/16] 0.0, 128
      %1611 = vxpose.xlu0.b32.cont [13/16] 0.0, 128
      %1612 = vxpose.xlu0.b32.cont [14/16] 0.0, 128
      %1613 = vxpose.xlu0.b32.cont [15/16] 0.0, 128
      %1614 = vxpose.xlu0.b32.end [16/16] 0.0, 128
      %v1615 = vpop.trf.xlu0
      %v1616 = vpop.trf.xlu0
      %v1617 = vpop.trf.xlu0
      %v1618 = vpop.trf.xlu0
      %v1619 = vpop.trf.xlu0
      %v1620 = vpop.trf.xlu0
      %v1621 = vpop.trf.xlu0
      %v1622 = vpop.trf.xlu0
      %v1623 = vpop.trf.xlu0
      %v1624 = vpop.trf.xlu0
      %v1625 = vpop.trf.xlu0
      %v1626 = vpop.trf.xlu0
      %v1627 = vpop.trf.xlu0
      %v1628 = vpop.trf.xlu0
      %v1629 = vpop.trf.xlu0
      %v1630 = vpop.trf.xlu0
      %vm1631 = vcmask 64512
      %v1633 = vsel %vm1631, %v1615, 0
      %1635 = vmatprep.subr.mxu0 0.0
      %1636 = vmatpush1.msra.mxu0 %v1589
      %1637 = vmatprep.subr.mxu0 0.0
      %1638 = vmatpush1.msra.mxu0 0.0
      %1639 = vmatprep.subr.mxu0 0.0
      %1640 = vmatpush1.msra.mxu0 0.0
      %1641 = vmatprep.subr.mxu0 0.0
      %1642 = vmatpush1.msra.mxu0 0.0
      %1643 = vmatprep.subr.mxu0 0.0
      %1644 = vmatpush1.msra.mxu0 0.0
      %1645 = vmatprep.subr.mxu0 0.0
      %1646 = vmatpush1.msra.mxu0 0.0
      %1647 = vmatprep.subr.mxu0 0.0
      %1648 = vmatpush1.msra.mxu0 0.0
      %1649 = vmatprep.subr.mxu0 0.0
      %1650 = vmatpush1.msra.mxu0 0.0
      %1651 = vmatprep.subr.mxu0 0.0
      %1652 = vmatpush1.msra.mxu0 0.0
      %1653 = vmatprep.subr.mxu0 0.0
      %1654 = vmatpush1.msra.mxu0 0.0
      %1655 = vmatprep.subr.mxu0 0.0
      %1656 = vmatpush1.msra.mxu0 0.0
      %1657 = vmatprep.subr.mxu0 0.0
      %1658 = vmatpush1.msra.mxu0 0.0
      %1659 = vmatprep.subr.mxu0 0.0
      %1660 = vmatpush1.msra.mxu0 0.0
      %1661 = vmatprep.subr.mxu0 0.0
      %1662 = vmatpush1.msra.mxu0 0.0
      %1663 = vmatprep.subr.mxu0 0.0
      %1664 = vmatpush1.msra.mxu0 0.0
      %1665 = vmatprep.subr.mxu0 0.0
      %1666 = vmatpush1.msra.mxu0 0.0
      %1667 = vmatprep.subr.mxu0 0.0
      %1668 = vmatpush1.msra.mxu0 0.0
      %1669 = vmatprep.subr.mxu0 0.0
      %1670 = vmatpush1.msra.mxu0 0.0
      %1671 = vmatprep.subr.mxu0 0.0
      %1672 = vmatpush1.msra.mxu0 0.0
      %1673 = vmatprep.subr.mxu0 0.0
      %1674 = vmatpush1.msra.mxu0 0.0
      %1675 = vmatprep.subr.mxu0 0.0
      %1676 = vmatpush1.msra.mxu0 0.0
      %1677 = vmatprep.subr.mxu0 0.0
      %1678 = vmatpush1.msra.mxu0 0.0
      %1679 = vmatprep.subr.mxu0 0.0
      %1680 = vmatpush1.msra.mxu0 0.0
      %1681 = vmatprep.subr.mxu0 0.0
      %1682 = vmatpush1.msra.mxu0 0.0
      %1683 = vmatprep.subr.mxu0 0.0
      %1684 = vmatpush1.msra.mxu0 0.0
      %1685 = vmatprep.subr.mxu0 0.0
      %1686 = vmatpush1.msra.mxu0 0.0
      %1687 = vmatprep.subr.mxu0 0.0
      %1688 = vmatpush1.msra.mxu0 0.0
      %1689 = vmatprep.subr.mxu0 0.0
      %1690 = vmatpush1.msra.mxu0 0.0
      %1691 = vmatprep.subr.mxu0 0.0
      %1692 = vmatpush1.msra.mxu0 0.0
      %1693 = vmatprep.subr.mxu0 0.0
      %1694 = vmatpush1.msra.mxu0 0.0
      %1695 = vmatprep.subr.mxu0 0.0
      %1696 = vmatpush1.msra.mxu0 0.0
      %1697 = vmatprep.subr.mxu0 0.0
      %1698 = vmatpush1.msra.mxu0 0.0
      %1699 = vmatprep.mubr.f32.mxu0 0.0
      %1700 = vmatmul.mubr.f32.gmra.mrb[0].mxu0 %v1633
      %v1701 = vpop.f32.mrb[0].mxu0
      %v1702 = vadd.f32 0.0, %v1701
      %v1703 = vpop.f32.mrb[0].mxu0
      %1704 = vdwg.mxu0
      %1705 = vmatprep.subr.mxu0 0.0
      %1706 = vmatpush1.msra.mxu0 %v1590
      %1707 = vmatprep.subr.mxu0 0.0
      %1708 = vmatpush1.msra.mxu0 0.0
      %1709 = vmatprep.subr.mxu0 0.0
      %1710 = vmatpush1.msra.mxu0 0.0
      %1711 = vmatprep.subr.mxu0 0.0
      %1712 = vmatpush1.msra.mxu0 0.0
      %1713 = vmatprep.subr.mxu0 0.0
      %1714 = vmatpush1.msra.mxu0 0.0
      %1715 = vmatprep.subr.mxu0 0.0
      %1716 = vmatpush1.msra.mxu0 0.0
      %1717 = vmatprep.subr.mxu0 0.0
      %1718 = vmatpush1.msra.mxu0 0.0
      %1719 = vmatprep.subr.mxu0 0.0
      %1720 = vmatpush1.msra.mxu0 0.0
      %1721 = vmatprep.subr.mxu0 0.0
      %1722 = vmatpush1.msra.mxu0 0.0
      %1723 = vmatprep.subr.mxu0 0.0
      %1724 = vmatpush1.msra.mxu0 0.0
      %1725 = vmatprep.subr.mxu0 0.0
      %1726 = vmatpush1.msra.mxu0 0.0
      %1727 = vmatprep.subr.mxu0 0.0
      %1728 = vmatpush1.msra.mxu0 0.0
      %1729 = vmatprep.subr.mxu0 0.0
      %1730 = vmatpush1.msra.mxu0 0.0
      %1731 = vmatprep.subr.mxu0 0.0
      %1732 = vmatpush1.msra.mxu0 0.0
      %1733 = vmatprep.subr.mxu0 0.0
      %1734 = vmatpush1.msra.mxu0 0.0
      %1735 = vmatprep.subr.mxu0 0.0
      %1736 = vmatpush1.msra.mxu0 0.0
      %1737 = vmatprep.subr.mxu0 0.0
      %1738 = vmatpush1.msra.mxu0 0.0
      %1739 = vmatprep.subr.mxu0 0.0
      %1740 = vmatpush1.msra.mxu0 0.0
      %1741 = vmatprep.subr.mxu0 0.0
      %1742 = vmatpush1.msra.mxu0 0.0
      %1743 = vmatprep.subr.mxu0 0.0
      %1744 = vmatpush1.msra.mxu0 0.0
      %1745 = vmatprep.subr.mxu0 0.0
      %1746 = vmatpush1.msra.mxu0 0.0
      %1747 = vmatprep.subr.mxu0 0.0
      %1748 = vmatpush1.msra.mxu0 0.0
      %1749 = vmatprep.subr.mxu0 0.0
      %1750 = vmatpush1.msra.mxu0 0.0
      %1751 = vmatprep.subr.mxu0 0.0
      %1752 = vmatpush1.msra.mxu0 0.0
      %1753 = vmatprep.subr.mxu0 0.0
      %1754 = vmatpush1.msra.mxu0 0.0
      %1755 = vmatprep.subr.mxu0 0.0
      %1756 = vmatpush1.msra.mxu0 0.0
      %1757 = vmatprep.subr.mxu0 0.0
      %1758 = vmatpush1.msra.mxu0 0.0
      %1759 = vmatprep.subr.mxu0 0.0
      %1760 = vmatpush1.msra.mxu0 0.0
      %1761 = vmatprep.subr.mxu0 0.0
      %1762 = vmatpush1.msra.mxu0 0.0
      %1763 = vmatprep.subr.mxu0 0.0
      %1764 = vmatpush1.msra.mxu0 0.0
      %1765 = vmatprep.subr.mxu0 0.0
      %1766 = vmatpush1.msra.mxu0 0.0
      %1767 = vmatprep.subr.mxu0 0.0
      %1768 = vmatpush1.msra.mxu0 0.0
      %1769 = vmatprep.mubr.f32.mxu0 0.0
      %1770 = vmatmul.mubr.f32.gmra.mrb[0].mxu0 %v1633
      %v1771 = vpop.f32.mrb[0].mxu0
      %v1772 = vadd.f32 0.0, %v1771
      %v1773 = vpop.f32.mrb[0].mxu0
      %1774 = vdwg.mxu0
      %1775 = vmatprep.subr.mxu0 0.0
      %1776 = vmatpush1.msra.mxu0 %v1591
      %1777 = vmatprep.subr.mxu0 0.0
      %1778 = vmatpush1.msra.mxu0 0.0
      %1779 = vmatprep.subr.mxu0 0.0
      %1780 = vmatpush1.msra.mxu0 0.0
      %1781 = vmatprep.subr.mxu0 0.0
      %1782 = vmatpush1.msra.mxu0 0.0
      %1783 = vmatprep.subr.mxu0 0.0
      %1784 = vmatpush1.msra.mxu0 0.0
      %1785 = vmatprep.subr.mxu0 0.0
      %1786 = vmatpush1.msra.mxu0 0.0
      %1787 = vmatprep.subr.mxu0 0.0
      %1788 = vmatpush1.msra.mxu0 0.0
      %1789 = vmatprep.subr.mxu0 0.0
      %1790 = vmatpush1.msra.mxu0 0.0
      %1791 = vmatprep.subr.mxu0 0.0
      %1792 = vmatpush1.msra.mxu0 0.0
      %1793 = vmatprep.subr.mxu0 0.0
      %1794 = vmatpush1.msra.mxu0 0.0
      %1795 = vmatprep.subr.mxu0 0.0
      %1796 = vmatpush1.msra.mxu0 0.0
      %1797 = vmatprep.subr.mxu0 0.0
      %1798 = vmatpush1.msra.mxu0 0.0
      %1799 = vmatprep.subr.mxu0 0.0
      %1800 = vmatpush1.msra.mxu0 0.0
      %1801 = vmatprep.subr.mxu0 0.0
      %1802 = vmatpush1.msra.mxu0 0.0
      %1803 = vmatprep.subr.mxu0 0.0
      %1804 = vmatpush1.msra.mxu0 0.0
      %1805 = vmatprep.subr.mxu0 0.0
      %1806 = vmatpush1.msra.mxu0 0.0
      %1807 = vmatprep.subr.mxu0 0.0
      %1808 = vmatpush1.msra.mxu0 0.0
      %1809 = vmatprep.subr.mxu0 0.0
      %1810 = vmatpush1.msra.mxu0 0.0
      %1811 = vmatprep.subr.mxu0 0.0
      %1812 = vmatpush1.msra.mxu0 0.0
      %1813 = vmatprep.subr.mxu0 0.0
      %1814 = vmatpush1.msra.mxu0 0.0
      %1815 = vmatprep.subr.mxu0 0.0
      %1816 = vmatpush1.msra.mxu0 0.0
      %1817 = vmatprep.subr.mxu0 0.0
      %1818 = vmatpush1.msra.mxu0 0.0
      %1819 = vmatprep.subr.mxu0 0.0
      %1820 = vmatpush1.msra.mxu0 0.0
      %1821 = vmatprep.subr.mxu0 0.0
      %1822 = vmatpush1.msra.mxu0 0.0
      %1823 = vmatprep.subr.mxu0 0.0
      %1824 = vmatpush1.msra.mxu0 0.0
      %1825 = vmatprep.subr.mxu0 0.0
      %1826 = vmatpush1.msra.mxu0 0.0
      %1827 = vmatprep.subr.mxu0 0.0
      %1828 = vmatpush1.msra.mxu0 0.0
      %1829 = vmatprep.subr.mxu0 0.0
      %1830 = vmatpush1.msra.mxu0 0.0
      %1831 = vmatprep.subr.mxu0 0.0
      %1832 = vmatpush1.msra.mxu0 0.0
      %1833 = vmatprep.subr.mxu0 0.0
      %1834 = vmatpush1.msra.mxu0 0.0
      %1835 = vmatprep.subr.mxu0 0.0
      %1836 = vmatpush1.msra.mxu0 0.0
      %1837 = vmatprep.subr.mxu0 0.0
      %1838 = vmatpush1.msra.mxu0 0.0
      %1839 = vmatprep.mubr.f32.mxu0 0.0
      %1840 = vmatmul.mubr.f32.gmra.mrb[0].mxu0 %v1633
      %v1841 = vpop.f32.mrb[0].mxu0
      %v1842 = vadd.f32 0.0, %v1841
      %v1843 = vpop.f32.mrb[0].mxu0
      %1844 = vdwg.mxu0
      %1845 = vmatprep.subr.mxu0 0.0
      %1846 = vmatpush1.msra.mxu0 %v1592
      %1847 = vmatprep.subr.mxu0 0.0
      %1848 = vmatpush1.msra.mxu0 0.0
      %1849 = vmatprep.subr.mxu0 0.0
      %1850 = vmatpush1.msra.mxu0 0.0
      %1851 = vmatprep.subr.mxu0 0.0
      %1852 = vmatpush1.msra.mxu0 0.0
      %1853 = vmatprep.subr.mxu0 0.0
      %1854 = vmatpush1.msra.mxu0 0.0
      %1855 = vmatprep.subr.mxu0 0.0
      %1856 = vmatpush1.msra.mxu0 0.0
      %1857 = vmatprep.subr.mxu0 0.0
      %1858 = vmatpush1.msra.mxu0 0.0
      %1859 = vmatprep.subr.mxu0 0.0
      %1860 = vmatpush1.msra.mxu0 0.0
      %1861 = vmatprep.subr.mxu0 0.0
      %1862 = vmatpush1.msra.mxu0 0.0
      %1863 = vmatprep.subr.mxu0 0.0
      %1864 = vmatpush1.msra.mxu0 0.0
      %1865 = vmatprep.subr.mxu0 0.0
      %1866 = vmatpush1.msra.mxu0 0.0
      %1867 = vmatprep.subr.mxu0 0.0
      %1868 = vmatpush1.msra.mxu0 0.0
      %1869 = vmatprep.subr.mxu0 0.0
      %1870 = vmatpush1.msra.mxu0 0.0
      %1871 = vmatprep.subr.mxu0 0.0
      %1872 = vmatpush1.msra.mxu0 0.0
      %1873 = vmatprep.subr.mxu0 0.0
      %1874 = vmatpush1.msra.mxu0 0.0
      %1875 = vmatprep.subr.mxu0 0.0
      %1876 = vmatpush1.msra.mxu0 0.0
      %1877 = vmatprep.subr.mxu0 0.0
      %1878 = vmatpush1.msra.mxu0 0.0
      %1879 = vmatprep.subr.mxu0 0.0
      %1880 = vmatpush1.msra.mxu0 0.0
      %1881 = vmatprep.subr.mxu0 0.0
      %1882 = vmatpush1.msra.mxu0 0.0
      %1883 = vmatprep.subr.mxu0 0.0
      %1884 = vmatpush1.msra.mxu0 0.0
      %1885 = vmatprep.subr.mxu0 0.0
      %1886 = vmatpush1.msra.mxu0 0.0
      %1887 = vmatprep.subr.mxu0 0.0
      %1888 = vmatpush1.msra.mxu0 0.0
      %1889 = vmatprep.subr.mxu0 0.0
      %1890 = vmatpush1.msra.mxu0 0.0
      %1891 = vmatprep.subr.mxu0 0.0
      %1892 = vmatpush1.msra.mxu0 0.0
      %1893 = vmatprep.subr.mxu0 0.0
      %1894 = vmatpush1.msra.mxu0 0.0
      %1895 = vmatprep.subr.mxu0 0.0
      %1896 = vmatpush1.msra.mxu0 0.0
      %1897 = vmatprep.subr.mxu0 0.0
      %1898 = vmatpush1.msra.mxu0 0.0
      %1899 = vmatprep.subr.mxu0 0.0
      %1900 = vmatpush1.msra.mxu0 0.0
      %1901 = vmatprep.subr.mxu0 0.0
      %1902 = vmatpush1.msra.mxu0 0.0
      %1903 = vmatprep.subr.mxu0 0.0
      %1904 = vmatpush1.msra.mxu0 0.0
      %1905 = vmatprep.subr.mxu0 0.0
      %1906 = vmatpush1.msra.mxu0 0.0
      %1907 = vmatprep.subr.mxu0 0.0
      %1908 = vmatpush1.msra.mxu0 0.0
      %1909 = vmatprep.mubr.f32.mxu0 0.0
      %1910 = vmatmul.mubr.f32.gmra.mrb[0].mxu0 %v1633
      %v1911 = vpop.f32.mrb[0].mxu0
      %v1912 = vadd.f32 0.0, %v1911
      %v1913 = vpop.f32.mrb[0].mxu0
      %1914 = vdwg.mxu0
      %1915 = vmatprep.subr.mxu0 0.0
      %1916 = vmatpush1.msra.mxu0 %v1593
      %1917 = vmatprep.subr.mxu0 0.0
      %1918 = vmatpush1.msra.mxu0 0.0
      %1919 = vmatprep.subr.mxu0 0.0
      %1920 = vmatpush1.msra.mxu0 0.0
      %1921 = vmatprep.subr.mxu0 0.0
      %1922 = vmatpush1.msra.mxu0 0.0
      %1923 = vmatprep.subr.mxu0 0.0
      %1924 = vmatpush1.msra.mxu0 0.0
      %1925 = vmatprep.subr.mxu0 0.0
      %1926 = vmatpush1.msra.mxu0 0.0
      %1927 = vmatprep.subr.mxu0 0.0
      %1928 = vmatpush1.msra.mxu0 0.0
      %1929 = vmatprep.subr.mxu0 0.0
      %1930 = vmatpush1.msra.mxu0 0.0
      %1931 = vmatprep.subr.mxu0 0.0
      %1932 = vmatpush1.msra.mxu0 0.0
      %1933 = vmatprep.subr.mxu0 0.0
      %1934 = vmatpush1.msra.mxu0 0.0
      %1935 = vmatprep.subr.mxu0 0.0
      %1936 = vmatpush1.msra.mxu0 0.0
      %1937 = vmatprep.subr.mxu0 0.0
      %1938 = vmatpush1.msra.mxu0 0.0
      %1939 = vmatprep.subr.mxu0 0.0
      %1940 = vmatpush1.msra.mxu0 0.0
      %1941 = vmatprep.subr.mxu0 0.0
      %1942 = vmatpush1.msra.mxu0 0.0
      %1943 = vmatprep.subr.mxu0 0.0
      %1944 = vmatpush1.msra.mxu0 0.0
      %1945 = vmatprep.subr.mxu0 0.0
      %1946 = vmatpush1.msra.mxu0 0.0
      %1947 = vmatprep.subr.mxu0 0.0
      %1948 = vmatpush1.msra.mxu0 0.0
      %1949 = vmatprep.subr.mxu0 0.0
      %1950 = vmatpush1.msra.mxu0 0.0
      %1951 = vmatprep.subr.mxu0 0.0
      %1952 = vmatpush1.msra.mxu0 0.0
      %1953 = vmatprep.subr.mxu0 0.0
      %1954 = vmatpush1.msra.mxu0 0.0
      %1955 = vmatprep.subr.mxu0 0.0
      %1956 = vmatpush1.msra.mxu0 0.0
      %1957 = vmatprep.subr.mxu0 0.0
      %1958 = vmatpush1.msra.mxu0 0.0
      %1959 = vmatprep.subr.mxu0 0.0
      %1960 = vmatpush1.msra.mxu0 0.0
      %1961 = vmatprep.subr.mxu0 0.0
      %1962 = vmatpush1.msra.mxu0 0.0
      %1963 = vmatprep.subr.mxu0 0.0
      %1964 = vmatpush1.msra.mxu0 0.0
      %1965 = vmatprep.subr.mxu0 0.0
      %1966 = vmatpush1.msra.mxu0 0.0
      %1967 = vmatprep.subr.mxu0 0.0
      %1968 = vmatpush1.msra.mxu0 0.0
      %1969 = vmatprep.subr.mxu0 0.0
      %1970 = vmatpush1.msra.mxu0 0.0
      %1971 = vmatprep.subr.mxu0 0.0
      %1972 = vmatpush1.msra.mxu0 0.0
      %1973 = vmatprep.subr.mxu0 0.0
      %1974 = vmatpush1.msra.mxu0 0.0
      %1975 = vmatprep.subr.mxu0 0.0
      %1976 = vmatpush1.msra.mxu0 0.0
      %1977 = vmatprep.subr.mxu0 0.0
      %1978 = vmatpush1.msra.mxu0 0.0
      %1979 = vmatprep.mubr.f32.mxu0 0.0
      %1980 = vmatmul.mubr.f32.gmra.mrb[0].mxu0 %v1633
      %v1981 = vpop.f32.mrb[0].mxu0
      %v1982 = vadd.f32 0.0, %v1981
      %v1983 = vpop.f32.mrb[0].mxu0
      %1984 = vdwg.mxu0
      %1985 = vmatprep.subr.mxu0 0.0
      %1986 = vmatpush1.msra.mxu0 %v1594
      %1987 = vmatprep.subr.mxu0 0.0
      %1988 = vmatpush1.msra.mxu0 0.0
      %1989 = vmatprep.subr.mxu0 0.0
      %1990 = vmatpush1.msra.mxu0 0.0
      %1991 = vmatprep.subr.mxu0 0.0
      %1992 = vmatpush1.msra.mxu0 0.0
      %1993 = vmatprep.subr.mxu0 0.0
      %1994 = vmatpush1.msra.mxu0 0.0
      %1995 = vmatprep.subr.mxu0 0.0
      %1996 = vmatpush1.msra.mxu0 0.0
      %1997 = vmatprep.subr.mxu0 0.0
      %1998 = vmatpush1.msra.mxu0 0.0
      %1999 = vmatprep.subr.mxu0 0.0
      %2000 = vmatpush1.msra.mxu0 0.0
      %2001 = vmatprep.subr.mxu0 0.0
      %2002 = vmatpush1.msra.mxu0 0.0
      %2003 = vmatprep.subr.mxu0 0.0
      %2004 = vmatpush1.msra.mxu0 0.0
      %2005 = vmatprep.subr.mxu0 0.0
      %2006 = vmatpush1.msra.mxu0 0.0
      %2007 = vmatprep.subr.mxu0 0.0
      %2008 = vmatpush1.msra.mxu0 0.0
      %2009 = vmatprep.subr.mxu0 0.0
      %2010 = vmatpush1.msra.mxu0 0.0
      %2011 = vmatprep.subr.mxu0 0.0
      %2012 = vmatpush1.msra.mxu0 0.0
      %2013 = vmatprep.subr.mxu0 0.0
      %2014 = vmatpush1.msra.mxu0 0.0
      %2015 = vmatprep.subr.mxu0 0.0
      %2016 = vmatpush1.msra.mxu0 0.0
      %2017 = vmatprep.subr.mxu0 0.0
      %2018 = vmatpush1.msra.mxu0 0.0
      %2019 = vmatprep.subr.mxu0 0.0
      %2020 = vmatpush1.msra.mxu0 0.0
      %2021 = vmatprep.subr.mxu0 0.0
      %2022 = vmatpush1.msra.mxu0 0.0
      %2023 = vmatprep.subr.mxu0 0.0
      %2024 = vmatpush1.msra.mxu0 0.0
      %2025 = vmatprep.subr.mxu0 0.0
      %2026 = vmatpush1.msra.mxu0 0.0
      %2027 = vmatprep.subr.mxu0 0.0
      %2028 = vmatpush1.msra.mxu0 0.0
      %2029 = vmatprep.subr.mxu0 0.0
      %2030 = vmatpush1.msra.mxu0 0.0
      %2031 = vmatprep.subr.mxu0 0.0
      %2032 = vmatpush1.msra.mxu0 0.0
      %2033 = vmatprep.subr.mxu0 0.0
      %2034 = vmatpush1.msra.mxu0 0.0
      %2035 = vmatprep.subr.mxu0 0.0
      %2036 = vmatpush1.msra.mxu0 0.0
      %2037 = vmatprep.subr.mxu0 0.0
      %2038 = vmatpush1.msra.mxu0 0.0
      %2039 = vmatprep.subr.mxu0 0.0
      %2040 = vmatpush1.msra.mxu0 0.0
      %2041 = vmatprep.subr.mxu0 0.0
      %2042 = vmatpush1.msra.mxu0 0.0
      %2043 = vmatprep.subr.mxu0 0.0
      %2044 = vmatpush1.msra.mxu0 0.0
      %2045 = vmatprep.subr.mxu0 0.0
      %2046 = vmatpush1.msra.mxu0 0.0
      %2047 = vmatprep.subr.mxu0 0.0
      %2048 = vmatpush1.msra.mxu0 0.0
      %2049 = vmatprep.mubr.f32.mxu0 0.0
      %2050 = vmatmul.mubr.f32.gmra.mrb[0].mxu0 %v1633
      %v2051 = vpop.f32.mrb[0].mxu0
      %v2052 = vadd.f32 0.0, %v2051
      %v2053 = vpop.f32.mrb[0].mxu0
      %2054 = vdwg.mxu0
      %2055 = vmatprep.subr.mxu0 0.0
      %2056 = vmatpush1.msra.mxu0 %v1595
      %2057 = vmatprep.subr.mxu0 0.0
      %2058 = vmatpush1.msra.mxu0 0.0
      %2059 = vmatprep.subr.mxu0 0.0
      %2060 = vmatpush1.msra.mxu0 0.0
      %2061 = vmatprep.subr.mxu0 0.0
      %2062 = vmatpush1.msra.mxu0 0.0
      %2063 = vmatprep.subr.mxu0 0.0
      %2064 = vmatpush1.msra.mxu0 0.0
      %2065 = vmatprep.subr.mxu0 0.0
      %2066 = vmatpush1.msra.mxu0 0.0
      %2067 = vmatprep.subr.mxu0 0.0
      %2068 = vmatpush1.msra.mxu0 0.0
      %2069 = vmatprep.subr.mxu0 0.0
      %2070 = vmatpush1.msra.mxu0 0.0
      %2071 = vmatprep.subr.mxu0 0.0
      %2072 = vmatpush1.msra.mxu0 0.0
      %2073 = vmatprep.subr.mxu0 0.0
      %2074 = vmatpush1.msra.mxu0 0.0
      %2075 = vmatprep.subr.mxu0 0.0
      %2076 = vmatpush1.msra.mxu0 0.0
      %2077 = vmatprep.subr.mxu0 0.0
      %2078 = vmatpush1.msra.mxu0 0.0
      %2079 = vmatprep.subr.mxu0 0.0
      %2080 = vmatpush1.msra.mxu0 0.0
      %2081 = vmatprep.subr.mxu0 0.0
      %2082 = vmatpush1.msra.mxu0 0.0
      %2083 = vmatprep.subr.mxu0 0.0
      %2084 = vmatpush1.msra.mxu0 0.0
      %2085 = vmatprep.subr.mxu0 0.0
      %2086 = vmatpush1.msra.mxu0 0.0
      %2087 = vmatprep.subr.mxu0 0.0
      %2088 = vmatpush1.msra.mxu0 0.0
      %2089 = vmatprep.subr.mxu0 0.0
      %2090 = vmatpush1.msra.mxu0 0.0
      %2091 = vmatprep.subr.mxu0 0.0
      %2092 = vmatpush1.msra.mxu0 0.0
      %2093 = vmatprep.subr.mxu0 0.0
      %2094 = vmatpush1.msra.mxu0 0.0
      %2095 = vmatprep.subr.mxu0 0.0
      %2096 = vmatpush1.msra.mxu0 0.0
      %2097 = vmatprep.subr.mxu0 0.0
      %2098 = vmatpush1.msra.mxu0 0.0
      %2099 = vmatprep.subr.mxu0 0.0
      %2100 = vmatpush1.msra.mxu0 0.0
      %2101 = vmatprep.subr.mxu0 0.0
      %2102 = vmatpush1.msra.mxu0 0.0
      %2103 = vmatprep.subr.mxu0 0.0
      %2104 = vmatpush1.msra.mxu0 0.0
      %2105 = vmatprep.subr.mxu0 0.0
      %2106 = vmatpush1.msra.mxu0 0.0
      %2107 = vmatprep.subr.mxu0 0.0
      %2108 = vmatpush1.msra.mxu0 0.0
      %2109 = vmatprep.subr.mxu0 0.0
      %2110 = vmatpush1.msra.mxu0 0.0
      %2111 = vmatprep.subr.mxu0 0.0
      %2112 = vmatpush1.msra.mxu0 0.0
      %2113 = vmatprep.subr.mxu0 0.0
      %2114 = vmatpush1.msra.mxu0 0.0
      %2115 = vmatprep.subr.mxu0 0.0
      %2116 = vmatpush1.msra.mxu0 0.0
      %2117 = vmatprep.subr.mxu0 0.0
      %2118 = vmatpush1.msra.mxu0 0.0
      %2119 = vmatprep.mubr.f32.mxu0 0.0
      %2120 = vmatmul.mubr.f32.gmra.mrb[0].mxu0 %v1633
      %v2121 = vpop.f32.mrb[0].mxu0
      %v2122 = vadd.f32 0.0, %v2121
      %v2123 = vpop.f32.mrb[0].mxu0
      %2124 = vdwg.mxu0
      %2125 = vmatprep.subr.mxu0 0.0
      %2126 = vmatpush1.msra.mxu0 %v1596
      %2127 = vmatprep.subr.mxu0 0.0
      %2128 = vmatpush1.msra.mxu0 0.0
      %2129 = vmatprep.subr.mxu0 0.0
      %2130 = vmatpush1.msra.mxu0 0.0
      %2131 = vmatprep.subr.mxu0 0.0
      %2132 = vmatpush1.msra.mxu0 0.0
      %2133 = vmatprep.subr.mxu0 0.0
      %2134 = vmatpush1.msra.mxu0 0.0
      %2135 = vmatprep.subr.mxu0 0.0
      %2136 = vmatpush1.msra.mxu0 0.0
      %2137 = vmatprep.subr.mxu0 0.0
      %2138 = vmatpush1.msra.mxu0 0.0
      %2139 = vmatprep.subr.mxu0 0.0
      %2140 = vmatpush1.msra.mxu0 0.0
      %2141 = vmatprep.subr.mxu0 0.0
      %2142 = vmatpush1.msra.mxu0 0.0
      %2143 = vmatprep.subr.mxu0 0.0
      %2144 = vmatpush1.msra.mxu0 0.0
      %2145 = vmatprep.subr.mxu0 0.0
      %2146 = vmatpush1.msra.mxu0 0.0
      %2147 = vmatprep.subr.mxu0 0.0
      %2148 = vmatpush1.msra.mxu0 0.0
      %2149 = vmatprep.subr.mxu0 0.0
      %2150 = vmatpush1.msra.mxu0 0.0
      %2151 = vmatprep.subr.mxu0 0.0
      %2152 = vmatpush1.msra.mxu0 0.0
      %2153 = vmatprep.subr.mxu0 0.0
      %2154 = vmatpush1.msra.mxu0 0.0
      %2155 = vmatprep.subr.mxu0 0.0
      %2156 = vmatpush1.msra.mxu0 0.0
      %2157 = vmatprep.subr.mxu0 0.0
      %2158 = vmatpush1.msra.mxu0 0.0
      %2159 = vmatprep.subr.mxu0 0.0
      %2160 = vmatpush1.msra.mxu0 0.0
      %2161 = vmatprep.subr.mxu0 0.0
      %2162 = vmatpush1.msra.mxu0 0.0
      %2163 = vmatprep.subr.mxu0 0.0
      %2164 = vmatpush1.msra.mxu0 0.0
      %2165 = vmatprep.subr.mxu0 0.0
      %2166 = vmatpush1.msra.mxu0 0.0
      %2167 = vmatprep.subr.mxu0 0.0
      %2168 = vmatpush1.msra.mxu0 0.0
      %2169 = vmatprep.subr.mxu0 0.0
      %2170 = vmatpush1.msra.mxu0 0.0
      %2171 = vmatprep.subr.mxu0 0.0
      %2172 = vmatpush1.msra.mxu0 0.0
      %2173 = vmatprep.subr.mxu0 0.0
      %2174 = vmatpush1.msra.mxu0 0.0
      %2175 = vmatprep.subr.mxu0 0.0
      %2176 = vmatpush1.msra.mxu0 0.0
      %2177 = vmatprep.subr.mxu0 0.0
      %2178 = vmatpush1.msra.mxu0 0.0
      %2179 = vmatprep.subr.mxu0 0.0
      %2180 = vmatpush1.msra.mxu0 0.0
      %2181 = vmatprep.subr.mxu0 0.0
      %2182 = vmatpush1.msra.mxu0 0.0
      %2183 = vmatprep.subr.mxu0 0.0
      %2184 = vmatpush1.msra.mxu0 0.0
      %2185 = vmatprep.subr.mxu0 0.0
      %2186 = vmatpush1.msra.mxu0 0.0
      %2187 = vmatprep.subr.mxu0 0.0
      %2188 = vmatpush1.msra.mxu0 0.0
      %2189 = vmatprep.mubr.f32.mxu0 0.0
      %2190 = vmatmul.mubr.f32.gmra.mrb[0].mxu0 %v1633
      %v2191 = vpop.f32.mrb[0].mxu0
      %v2192 = vadd.f32 0.0, %v2191
      %v2193 = vpop.f32.mrb[0].mxu0
      %2194 = vdwg.mxu0
      %v2195 = vld [vmem:[#allocation2] sm:$0xff]
      %v2196 = vld [vmem:[#allocation2 + $0x8] sm:$0xff]
      %v2197 = vld [vmem:[#allocation2 + $0x10] sm:$0xff]
      %v2198 = vld [vmem:[#allocation2 + $0x18] sm:$0xff]
      %v2199 = vld [vmem:[#allocation2 + $0x20] sm:$0xff]
      %v2200 = vld [vmem:[#allocation2 + $0x28] sm:$0xff]
      %v2201 = vld [vmem:[#allocation2 + $0x30] sm:$0xff]
      %v2202 = vld [vmem:[#allocation2 + $0x38] sm:$0xff]
      %v2203 = vadd.f32 %v2195, %v1702
      %v2204 = vadd.f32 %v2196, %v1772
      %v2205 = vadd.f32 %v2197, %v1842
      %v2206 = vadd.f32 %v2198, %v1912
      %v2207 = vadd.f32 %v2199, %v1982
      %v2208 = vadd.f32 %v2200, %v2052
      %v2209 = vadd.f32 %v2201, %v2122
      %v2210 = vadd.f32 %v2202, %v2192
      %vm2211 = vcmask 130048
      %2212 = vst.msk [vmem:[#allocation2] sm:$0xff] %vm2211, %v2203
      %2213 = vst.msk [vmem:[#allocation2 + $0x8] sm:$0xff] %vm2211, %v2204
      %2214 = vst.msk [vmem:[#allocation2 + $0x10] sm:$0xff] %vm2211, %v2205
      %2215 = vst.msk [vmem:[#allocation2 + $0x18] sm:$0xff] %vm2211, %v2206
      %2216 = vst.msk [vmem:[#allocation2 + $0x20] sm:$0xff] %vm2211, %v2207
      %2217 = vst.msk [vmem:[#allocation2 + $0x28] sm:$0xff] %vm2211, %v2208
      %2218 = vst.msk [vmem:[#allocation2 + $0x30] sm:$0xff] %vm2211, %v2209
      %2219 = vst.msk [vmem:[#allocation2 + $0x38] sm:$0xff] %vm2211, %v2210
      // Predicated region
      $region105: #{lieresnet_forward.32} parent=99 // pred_check
        %p2220 = pneg %p789
      $region106: #{lieresnet_forward.32} parent=99 // pred_check_branch
        %2222 = sbr.rel (%p2220) target = $region108
      $region107: #{lieresnet_forward.32} parent=99 // pred_region
        %v2223 = vld [vmem:[#allocation2] sm:$0xff]
        %v2224 = vld [vmem:[#allocation2 + $0x8] sm:$0xff]
        %v2225 = vld [vmem:[#allocation2 + $0x10] sm:$0xff]
        %v2226 = vld [vmem:[#allocation2 + $0x18] sm:$0xff]
        %v2227 = vld [vmem:[#allocation2 + $0x20] sm:$0xff]
        %v2228 = vld [vmem:[#allocation2 + $0x28] sm:$0xff]
        %v2229 = vld [vmem:[#allocation2 + $0x30] sm:$0xff]
        %v2230 = vld [vmem:[#allocation2 + $0x38] sm:$0xff]
        %v2231 = vld [vmem:[%s18] sm:$0xff]
        %v2232 = vld [vmem:[%s18 + $0x8] sm:$0xff]
        %v2233 = vld [vmem:[%s18 + $0x10] sm:$0xff]
        %v2234 = vld [vmem:[%s18 + $0x18] sm:$0xff]
        %v2243 = vrot.slane %v2223, 1
        %vm2244 = vcmask 1041409
        %v2245 = vsel %vm2244, %v2224, %v2243
        %v2246 = vrot.slane %v2225, 7
        %vm2247 = vcmask 1042434
        %v2248 = vsel %vm2247, %v2246, %v2245
        %v2249 = vrot.slane %v2226, 6
        %vm2250 = vcmask 1043459
        %v2251 = vsel %vm2250, %v2249, %v2248
        %v2252 = vrot.slane %v2227, 5
        %vm2253 = vcmask 1044484
        %v2254 = vsel %vm2253, %v2252, %v2251
        %v2255 = vrot.slane %v2228, 4
        %vm2256 = vcmask 1045509
        %v2257 = vsel %vm2256, %v2255, %v2254
        %v2258 = vrot.slane %v2229, 3
        %vm2259 = vcmask 1046534
        %v2260 = vsel %vm2259, %v2258, %v2257
        %v2261 = vrot.slane %v2230, 2
        %vm2262 = vcmask 1047559
        %v2263 = vsel %vm2262, %v2261, %v2260
        %v2264 = vsel %vm2211, %v2263, 0
        %2266 = vmatprep.subr.mxu0 0.0
        %2267 = vmatpush1.msra.mxu0 %v2233
        %2268 = vmatprep.subr.mxu0 0.0
        %2269 = vmatpush1.msra.mxu0 %v2234
        %2270 = vmatprep.subr.mxu0 0.0
        %2271 = vmatpush1.msra.mxu0 0.0
        %2272 = vmatprep.subr.mxu0 0.0
        %2273 = vmatpush1.msra.mxu0 0.0
        %2274 = vmatprep.subr.mxu0 0.0
        %2275 = vmatpush1.msra.mxu0 0.0
        %2276 = vmatprep.subr.mxu0 0.0
        %2277 = vmatpush1.msra.mxu0 0.0
        %2278 = vmatprep.subr.mxu0 0.0
        %2279 = vmatpush1.msra.mxu0 0.0
        %2280 = vmatprep.subr.mxu0 0.0
        %2281 = vmatpush1.msra.mxu0 0.0
        %2282 = vmatprep.subr.mxu0 0.0
        %2283 = vmatpush1.msra.mxu0 0.0
        %2284 = vmatprep.subr.mxu0 0.0
        %2285 = vmatpush1.msra.mxu0 0.0
        %2286 = vmatprep.subr.mxu0 0.0
        %2287 = vmatpush1.msra.mxu0 0.0
        %2288 = vmatprep.subr.mxu0 0.0
        %2289 = vmatpush1.msra.mxu0 0.0
        %2290 = vmatprep.subr.mxu0 0.0
        %2291 = vmatpush1.msra.mxu0 0.0
        %2292 = vmatprep.subr.mxu0 0.0
        %2293 = vmatpush1.msra.mxu0 0.0
        %2294 = vmatprep.subr.mxu0 0.0
        %2295 = vmatpush1.msra.mxu0 0.0
        %2296 = vmatprep.subr.mxu0 0.0
        %2297 = vmatpush1.msra.mxu0 0.0
        %2298 = vmatprep.subr.mxu0 0.0
        %2299 = vmatpush1.msra.mxu0 0.0
        %2300 = vmatprep.subr.mxu0 0.0
        %2301 = vmatpush1.msra.mxu0 0.0
        %2302 = vmatprep.subr.mxu0 0.0
        %2303 = vmatpush1.msra.mxu0 0.0
        %2304 = vmatprep.subr.mxu0 0.0
        %2305 = vmatpush1.msra.mxu0 0.0
        %2306 = vmatprep.subr.mxu0 0.0
        %2307 = vmatpush1.msra.mxu0 0.0
        %2308 = vmatprep.subr.mxu0 0.0
        %2309 = vmatpush1.msra.mxu0 0.0
        %2310 = vmatprep.subr.mxu0 0.0
        %2311 = vmatpush1.msra.mxu0 0.0
        %2312 = vmatprep.subr.mxu0 0.0
        %2313 = vmatpush1.msra.mxu0 0.0
        %2314 = vmatprep.subr.mxu0 0.0
        %2315 = vmatpush1.msra.mxu0 0.0
        %2316 = vmatprep.subr.mxu0 0.0
        %2317 = vmatpush1.msra.mxu0 0.0
        %2318 = vmatprep.subr.mxu0 0.0
        %2319 = vmatpush1.msra.mxu0 0.0
        %2320 = vmatprep.subr.mxu0 0.0
        %2321 = vmatpush1.msra.mxu0 0.0
        %2322 = vmatprep.subr.mxu0 0.0
        %2323 = vmatpush1.msra.mxu0 0.0
        %2324 = vmatprep.subr.mxu0 0.0
        %2325 = vmatpush1.msra.mxu0 0.0
        %2326 = vmatprep.subr.mxu0 0.0
        %2327 = vmatpush1.msra.mxu0 0.0
        %2328 = vmatprep.subr.mxu0 0.0
        %2329 = vmatpush1.msra.mxu0 0.0
        %2330 = vmatprep.mubr.f32.mxu0 0.0
        %2331 = vmatmul.mubr.f32.gmra.mrb[0].mxu0 %v2264
        %v2332 = vpop.f32.mrb[0].mxu0
        %v2333 = vadd.f32 0.0, %v2332
        %v2334 = vpop.f32.mrb[0].mxu0
        %2335 = vdwg.mxu0
        %v2336 = vrot.slane %v2224, 7
        %v2337 = vsel %vm2244, %v2336, %v2223
        %v2338 = vrot.slane %v2225, 6
        %v2339 = vsel %vm2247, %v2338, %v2337
        %v2340 = vrot.slane %v2226, 5
        %v2341 = vsel %vm2250, %v2340, %v2339
        %v2342 = vrot.slane %v2227, 4
        %v2343 = vsel %vm2253, %v2342, %v2341
        %v2344 = vrot.slane %v2228, 3
        %v2345 = vsel %vm2256, %v2344, %v2343
        %v2346 = vrot.slane %v2229, 2
        %v2347 = vsel %vm2259, %v2346, %v2345
        %v2348 = vrot.slane %v2230, 1
        %v2349 = vsel %vm2262, %v2348, %v2347
        %v2350 = vsel %vm2211, %v2349, 0
        %2352 = vmatprep.subr.mxu0 0.0
        %2353 = vmatpush1.msra.mxu0 %v2231
        %2354 = vmatprep.subr.mxu0 0.0
        %2355 = vmatpush1.msra.mxu0 %v2232
        %2356 = vmatprep.subr.mxu0 0.0
        %2357 = vmatpush1.msra.mxu0 0.0
        %2358 = vmatprep.subr.mxu0 0.0
        %2359 = vmatpush1.msra.mxu0 0.0
        %2360 = vmatprep.subr.mxu0 0.0
        %2361 = vmatpush1.msra.mxu0 0.0
        %2362 = vmatprep.subr.mxu0 0.0
        %2363 = vmatpush1.msra.mxu0 0.0
        %2364 = vmatprep.subr.mxu0 0.0
        %2365 = vmatpush1.msra.mxu0 0.0
        %2366 = vmatprep.subr.mxu0 0.0
        %2367 = vmatpush1.msra.mxu0 0.0
        %2368 = vmatprep.subr.mxu0 0.0
        %2369 = vmatpush1.msra.mxu0 0.0
        %2370 = vmatprep.subr.mxu0 0.0
        %2371 = vmatpush1.msra.mxu0 0.0
        %2372 = vmatprep.subr.mxu0 0.0
        %2373 = vmatpush1.msra.mxu0 0.0
        %2374 = vmatprep.subr.mxu0 0.0
        %2375 = vmatpush1.msra.mxu0 0.0
        %2376 = vmatprep.subr.mxu0 0.0
        %2377 = vmatpush1.msra.mxu0 0.0
        %2378 = vmatprep.subr.mxu0 0.0
        %2379 = vmatpush1.msra.mxu0 0.0
        %2380 = vmatprep.subr.mxu0 0.0
        %2381 = vmatpush1.msra.mxu0 0.0
        %2382 = vmatprep.subr.mxu0 0.0
        %2383 = vmatpush1.msra.mxu0 0.0
        %2384 = vmatprep.subr.mxu0 0.0
        %2385 = vmatpush1.msra.mxu0 0.0
        %2386 = vmatprep.subr.mxu0 0.0
        %2387 = vmatpush1.msra.mxu0 0.0
        %2388 = vmatprep.subr.mxu0 0.0
        %2389 = vmatpush1.msra.mxu0 0.0
        %2390 = vmatprep.subr.mxu0 0.0
        %2391 = vmatpush1.msra.mxu0 0.0
        %2392 = vmatprep.subr.mxu0 0.0
        %2393 = vmatpush1.msra.mxu0 0.0
        %2394 = vmatprep.subr.mxu0 0.0
        %2395 = vmatpush1.msra.mxu0 0.0
        %2396 = vmatprep.subr.mxu0 0.0
        %2397 = vmatpush1.msra.mxu0 0.0
        %2398 = vmatprep.subr.mxu0 0.0
        %2399 = vmatpush1.msra.mxu0 0.0
        %2400 = vmatprep.subr.mxu0 0.0
        %2401 = vmatpush1.msra.mxu0 0.0
        %2402 = vmatprep.subr.mxu0 0.0
        %2403 = vmatpush1.msra.mxu0 0.0
        %2404 = vmatprep.subr.mxu0 0.0
        %2405 = vmatpush1.msra.mxu0 0.0
        %2406 = vmatprep.subr.mxu0 0.0
        %2407 = vmatpush1.msra.mxu0 0.0
        %2408 = vmatprep.subr.mxu0 0.0
        %2409 = vmatpush1.msra.mxu0 0.0
        %2410 = vmatprep.subr.mxu0 0.0
        %2411 = vmatpush1.msra.mxu0 0.0
        %2412 = vmatprep.subr.mxu0 0.0
        %2413 = vmatpush1.msra.mxu0 0.0
        %2414 = vmatprep.subr.mxu0 0.0
        %2415 = vmatpush1.msra.mxu0 0.0
        %2416 = vmatprep.mubr.f32.mxu0 0.0
        %2417 = vmatmul.mubr.f32.gmra.mrb[0].mxu0 %v2350
        %v2418 = vpop.f32.mrb[0].mxu0
        %v2419 = vadd.f32 %v2333, %v2418
        %v2420 = vpop.f32.mrb[0].mxu0
        %2421 = vdwg.mxu0
        %v2422 = vld [vmem:[%s18 + $0x20] sm:$0xff]
        %v2423 = vld [vmem:[%s18 + $0x28] sm:$0xff]
        %v2424 = vrot.slane %v2223, 2
        %v2425 = vrot.slane %v2224, 1
        %v2426 = vsel %vm2244, %v2425, %v2424
        %v2427 = vsel %vm2247, %v2225, %v2426
        %v2428 = vrot.slane %v2226, 7
        %v2429 = vsel %vm2250, %v2428, %v2427
        %v2430 = vrot.slane %v2227, 6
        %v2431 = vsel %vm2253, %v2430, %v2429
        %v2432 = vrot.slane %v2228, 5
        %v2433 = vsel %vm2256, %v2432, %v2431
        %v2434 = vrot.slane %v2229, 4
        %v2435 = vsel %vm2259, %v2434, %v2433
        %v2436 = vrot.slane %v2230, 3
        %v2437 = vsel %vm2262, %v2436, %v2435
        %v2438 = vsel %vm2211, %v2437, 0
        %2440 = vmatprep.subr.mxu0 0.0
        %2441 = vmatpush1.msra.mxu0 %v2422
        %2442 = vmatprep.subr.mxu0 0.0
        %2443 = vmatpush1.msra.mxu0 %v2423
        %2444 = vmatprep.subr.mxu0 0.0
        %2445 = vmatpush1.msra.mxu0 0.0
        %2446 = vmatprep.subr.mxu0 0.0
        %2447 = vmatpush1.msra.mxu0 0.0
        %2448 = vmatprep.subr.mxu0 0.0
        %2449 = vmatpush1.msra.mxu0 0.0
        %2450 = vmatprep.subr.mxu0 0.0
        %2451 = vmatpush1.msra.mxu0 0.0
        %2452 = vmatprep.subr.mxu0 0.0
        %2453 = vmatpush1.msra.mxu0 0.0
        %2454 = vmatprep.subr.mxu0 0.0
        %2455 = vmatpush1.msra.mxu0 0.0
        %2456 = vmatprep.subr.mxu0 0.0
        %2457 = vmatpush1.msra.mxu0 0.0
        %2458 = vmatprep.subr.mxu0 0.0
        %2459 = vmatpush1.msra.mxu0 0.0
        %2460 = vmatprep.subr.mxu0 0.0
        %2461 = vmatpush1.msra.mxu0 0.0
        %2462 = vmatprep.subr.mxu0 0.0
        %2463 = vmatpush1.msra.mxu0 0.0
        %2464 = vmatprep.subr.mxu0 0.0
        %2465 = vmatpush1.msra.mxu0 0.0
        %2466 = vmatprep.subr.mxu0 0.0
        %2467 = vmatpush1.msra.mxu0 0.0
        %2468 = vmatprep.subr.mxu0 0.0
        %2469 = vmatpush1.msra.mxu0 0.0
        %2470 = vmatprep.subr.mxu0 0.0
        %2471 = vmatpush1.msra.mxu0 0.0
        %2472 = vmatprep.subr.mxu0 0.0
        %2473 = vmatpush1.msra.mxu0 0.0
        %2474 = vmatprep.subr.mxu0 0.0
        %2475 = vmatpush1.msra.mxu0 0.0
        %2476 = vmatprep.subr.mxu0 0.0
        %2477 = vmatpush1.msra.mxu0 0.0
        %2478 = vmatprep.subr.mxu0 0.0
        %2479 = vmatpush1.msra.mxu0 0.0
        %2480 = vmatprep.subr.mxu0 0.0
        %2481 = vmatpush1.msra.mxu0 0.0
        %2482 = vmatprep.subr.mxu0 0.0
        %2483 = vmatpush1.msra.mxu0 0.0
        %2484 = vmatprep.subr.mxu0 0.0
        %2485 = vmatpush1.msra.mxu0 0.0
        %2486 = vmatprep.subr.mxu0 0.0
        %2487 = vmatpush1.msra.mxu0 0.0
        %2488 = vmatprep.subr.mxu0 0.0
        %2489 = vmatpush1.msra.mxu0 0.0
        %2490 = vmatprep.subr.mxu0 0.0
        %2491 = vmatpush1.msra.mxu0 0.0
        %2492 = vmatprep.subr.mxu0 0.0
        %2493 = vmatpush1.msra.mxu0 0.0
        %2494 = vmatprep.subr.mxu0 0.0
        %2495 = vmatpush1.msra.mxu0 0.0
        %2496 = vmatprep.subr.mxu0 0.0
        %2497 = vmatpush1.msra.mxu0 0.0
        %2498 = vmatprep.subr.mxu0 0.0
        %2499 = vmatpush1.msra.mxu0 0.0
        %2500 = vmatprep.subr.mxu0 0.0
        %2501 = vmatpush1.msra.mxu0 0.0
        %2502 = vmatprep.subr.mxu0 0.0
        %2503 = vmatpush1.msra.mxu0 0.0
        %2504 = vmatprep.mubr.f32.mxu0 0.0
        %2505 = vmatmul.mubr.f32.gmra.mrb[0].mxu0 %v2438
        %v2506 = vpop.f32.mrb[0].mxu0
        %v2507 = vadd.f32 0.0, %v2506
        %v2508 = vpop.f32.mrb[0].mxu0
        %2509 = vdwg.mxu0
        %v2510 = vadd.f32 %v2419, %v2507
        %v2511 = vld [vmem:[%s18 + $0x30] sm:$0xff]
        %v2512 = vld [vmem:[%s18 + $0x38] sm:$0xff]
        %v2513 = vrot.slane %v2223, 3
        %v2514 = vrot.slane %v2224, 2
        %v2515 = vsel %vm2244, %v2514, %v2513
        %v2516 = vrot.slane %v2225, 1
        %v2517 = vsel %vm2247, %v2516, %v2515
        %v2518 = vsel %vm2250, %v2226, %v2517
        %v2519 = vrot.slane %v2227, 7
        %v2520 = vsel %vm2253, %v2519, %v2518
        %v2521 = vrot.slane %v2228, 6
        %v2522 = vsel %vm2256, %v2521, %v2520
        %v2523 = vrot.slane %v2229, 5
        %v2524 = vsel %vm2259, %v2523, %v2522
        %v2525 = vrot.slane %v2230, 4
        %v2526 = vsel %vm2262, %v2525, %v2524
        %v2527 = vsel %vm2211, %v2526, 0
        %2529 = vmatprep.subr.mxu0 0.0
        %2530 = vmatpush1.msra.mxu0 %v2511
        %2531 = vmatprep.subr.mxu0 0.0
        %2532 = vmatpush1.msra.mxu0 %v2512
        %2533 = vmatprep.subr.mxu0 0.0
        %2534 = vmatpush1.msra.mxu0 0.0
        %2535 = vmatprep.subr.mxu0 0.0
        %2536 = vmatpush1.msra.mxu0 0.0
        %2537 = vmatprep.subr.mxu0 0.0
        %2538 = vmatpush1.msra.mxu0 0.0
        %2539 = vmatprep.subr.mxu0 0.0
        %2540 = vmatpush1.msra.mxu0 0.0
        %2541 = vmatprep.subr.mxu0 0.0
        %2542 = vmatpush1.msra.mxu0 0.0
        %2543 = vmatprep.subr.mxu0 0.0
        %2544 = vmatpush1.msra.mxu0 0.0
        %2545 = vmatprep.subr.mxu0 0.0
        %2546 = vmatpush1.msra.mxu0 0.0
        %2547 = vmatprep.subr.mxu0 0.0
        %2548 = vmatpush1.msra.mxu0 0.0
        %2549 = vmatprep.subr.mxu0 0.0
        %2550 = vmatpush1.msra.mxu0 0.0
        %2551 = vmatprep.subr.mxu0 0.0
        %2552 = vmatpush1.msra.mxu0 0.0
        %2553 = vmatprep.subr.mxu0 0.0
        %2554 = vmatpush1.msra.mxu0 0.0
        %2555 = vmatprep.subr.mxu0 0.0
        %2556 = vmatpush1.msra.mxu0 0.0
        %2557 = vmatprep.subr.mxu0 0.0
        %2558 = vmatpush1.msra.mxu0 0.0
        %2559 = vmatprep.subr.mxu0 0.0
        %2560 = vmatpush1.msra.mxu0 0.0
        %2561 = vmatprep.subr.mxu0 0.0
        %2562 = vmatpush1.msra.mxu0 0.0
        %2563 = vmatprep.subr.mxu0 0.0
        %2564 = vmatpush1.msra.mxu0 0.0
        %2565 = vmatprep.subr.mxu0 0.0
        %2566 = vmatpush1.msra.mxu0 0.0
        %2567 = vmatprep.subr.mxu0 0.0
        %2568 = vmatpush1.msra.mxu0 0.0
        %2569 = vmatprep.subr.mxu0 0.0
        %2570 = vmatpush1.msra.mxu0 0.0
        %2571 = vmatprep.subr.mxu0 0.0
        %2572 = vmatpush1.msra.mxu0 0.0
        %2573 = vmatprep.subr.mxu0 0.0
        %2574 = vmatpush1.msra.mxu0 0.0
        %2575 = vmatprep.subr.mxu0 0.0
        %2576 = vmatpush1.msra.mxu0 0.0
        %2577 = vmatprep.subr.mxu0 0.0
        %2578 = vmatpush1.msra.mxu0 0.0
        %2579 = vmatprep.subr.mxu0 0.0
        %2580 = vmatpush1.msra.mxu0 0.0
        %2581 = vmatprep.subr.mxu0 0.0
        %2582 = vmatpush1.msra.mxu0 0.0
        %2583 = vmatprep.subr.mxu0 0.0
        %2584 = vmatpush1.msra.mxu0 0.0
        %2585 = vmatprep.subr.mxu0 0.0
        %2586 = vmatpush1.msra.mxu0 0.0
        %2587 = vmatprep.subr.mxu0 0.0
        %2588 = vmatpush1.msra.mxu0 0.0
        %2589 = vmatprep.subr.mxu0 0.0
        %2590 = vmatpush1.msra.mxu0 0.0
        %2591 = vmatprep.subr.mxu0 0.0
        %2592 = vmatpush1.msra.mxu0 0.0
        %2593 = vmatprep.mubr.f32.mxu0 0.0
        %2594 = vmatmul.mubr.f32.gmra.mrb[0].mxu0 %v2527
        %v2595 = vpop.f32.mrb[0].mxu0
        %v2596 = vadd.f32 0.0, %v2595
        %v2597 = vpop.f32.mrb[0].mxu0
        %2598 = vdwg.mxu0
        %v2599 = vadd.f32 %v2510, %v2596
        %v2600 = vld [vmem:[%s18 + $0x40] sm:$0xff]
        %v2601 = vld [vmem:[%s18 + $0x48] sm:$0xff]
        %v2602 = vrot.slane %v2223, 4
        %v2603 = vrot.slane %v2224, 3
        %v2604 = vsel %vm2244, %v2603, %v2602
        %v2605 = vrot.slane %v2225, 2
        %v2606 = vsel %vm2247, %v2605, %v2604
        %v2607 = vrot.slane %v2226, 1
        %v2608 = vsel %vm2250, %v2607, %v2606
        %v2609 = vsel %vm2253, %v2227, %v2608
        %v2610 = vrot.slane %v2228, 7
        %v2611 = vsel %vm2256, %v2610, %v2609
        %v2612 = vrot.slane %v2229, 6
        %v2613 = vsel %vm2259, %v2612, %v2611
        %v2614 = vrot.slane %v2230, 5
        %v2615 = vsel %vm2262, %v2614, %v2613
        %v2616 = vsel %vm2211, %v2615, 0
        %2618 = vmatprep.subr.mxu0 0.0
        %2619 = vmatpush1.msra.mxu0 %v2600
        %2620 = vmatprep.subr.mxu0 0.0
        %2621 = vmatpush1.msra.mxu0 %v2601
        %2622 = vmatprep.subr.mxu0 0.0
        %2623 = vmatpush1.msra.mxu0 0.0
        %2624 = vmatprep.subr.mxu0 0.0
        %2625 = vmatpush1.msra.mxu0 0.0
        %2626 = vmatprep.subr.mxu0 0.0
        %2627 = vmatpush1.msra.mxu0 0.0
        %2628 = vmatprep.subr.mxu0 0.0
        %2629 = vmatpush1.msra.mxu0 0.0
        %2630 = vmatprep.subr.mxu0 0.0
        %2631 = vmatpush1.msra.mxu0 0.0
        %2632 = vmatprep.subr.mxu0 0.0
        %2633 = vmatpush1.msra.mxu0 0.0
        %2634 = vmatprep.subr.mxu0 0.0
        %2635 = vmatpush1.msra.mxu0 0.0
        %2636 = vmatprep.subr.mxu0 0.0
        %2637 = vmatpush1.msra.mxu0 0.0
        %2638 = vmatprep.subr.mxu0 0.0
        %2639 = vmatpush1.msra.mxu0 0.0
        %2640 = vmatprep.subr.mxu0 0.0
        %2641 = vmatpush1.msra.mxu0 0.0
        %2642 = vmatprep.subr.mxu0 0.0
        %2643 = vmatpush1.msra.mxu0 0.0
        %2644 = vmatprep.subr.mxu0 0.0
        %2645 = vmatpush1.msra.mxu0 0.0
        %2646 = vmatprep.subr.mxu0 0.0
        %2647 = vmatpush1.msra.mxu0 0.0
        %2648 = vmatprep.subr.mxu0 0.0
        %2649 = vmatpush1.msra.mxu0 0.0
        %2650 = vmatprep.subr.mxu0 0.0
        %2651 = vmatpush1.msra.mxu0 0.0
        %2652 = vmatprep.subr.mxu0 0.0
        %2653 = vmatpush1.msra.mxu0 0.0
        %2654 = vmatprep.subr.mxu0 0.0
        %2655 = vmatpush1.msra.mxu0 0.0
        %2656 = vmatprep.subr.mxu0 0.0
        %2657 = vmatpush1.msra.mxu0 0.0
        %2658 = vmatprep.subr.mxu0 0.0
        %2659 = vmatpush1.msra.mxu0 0.0
        %2660 = vmatprep.subr.mxu0 0.0
        %2661 = vmatpush1.msra.mxu0 0.0
        %2662 = vmatprep.subr.mxu0 0.0
        %2663 = vmatpush1.msra.mxu0 0.0
        %2664 = vmatprep.subr.mxu0 0.0
        %2665 = vmatpush1.msra.mxu0 0.0
        %2666 = vmatprep.subr.mxu0 0.0
        %2667 = vmatpush1.msra.mxu0 0.0
        %2668 = vmatprep.subr.mxu0 0.0
        %2669 = vmatpush1.msra.mxu0 0.0
        %2670 = vmatprep.subr.mxu0 0.0
        %2671 = vmatpush1.msra.mxu0 0.0
        %2672 = vmatprep.subr.mxu0 0.0
        %2673 = vmatpush1.msra.mxu0 0.0
        %2674 = vmatprep.subr.mxu0 0.0
        %2675 = vmatpush1.msra.mxu0 0.0
        %2676 = vmatprep.subr.mxu0 0.0
        %2677 = vmatpush1.msra.mxu0 0.0
        %2678 = vmatprep.subr.mxu0 0.0
        %2679 = vmatpush1.msra.mxu0 0.0
        %2680 = vmatprep.subr.mxu0 0.0
        %2681 = vmatpush1.msra.mxu0 0.0
        %2682 = vmatprep.mubr.f32.mxu0 0.0
        %2683 = vmatmul.mubr.f32.gmra.mrb[0].mxu0 %v2616
        %v2684 = vpop.f32.mrb[0].mxu0
        %v2685 = vadd.f32 0.0, %v2684
        %v2686 = vpop.f32.mrb[0].mxu0
        %2687 = vdwg.mxu0
        %v2688 = vadd.f32 %v2599, %v2685
        %v2689 = vld [vmem:[%s18 + $0x50] sm:$0xff]
        %v2690 = vld [vmem:[%s18 + $0x58] sm:$0xff]
        %v2691 = vrot.slane %v2223, 5
        %v2692 = vrot.slane %v2224, 4
        %v2693 = vsel %vm2244, %v2692, %v2691
        %v2694 = vrot.slane %v2225, 3
        %v2695 = vsel %vm2247, %v2694, %v2693
        %v2696 = vrot.slane %v2226, 2
        %v2697 = vsel %vm2250, %v2696, %v2695
        %v2698 = vrot.slane %v2227, 1
        %v2699 = vsel %vm2253, %v2698, %v2697
        %v2700 = vsel %vm2256, %v2228, %v2699
        %v2701 = vrot.slane %v2229, 7
        %v2702 = vsel %vm2259, %v2701, %v2700
        %v2703 = vrot.slane %v2230, 6
        %v2704 = vsel %vm2262, %v2703, %v2702
        %v2705 = vsel %vm2211, %v2704, 0
        %2707 = vmatprep.subr.mxu0 0.0
        %2708 = vmatpush1.msra.mxu0 %v2689
        %2709 = vmatprep.subr.mxu0 0.0
        %2710 = vmatpush1.msra.mxu0 %v2690
        %2711 = vmatprep.subr.mxu0 0.0
        %2712 = vmatpush1.msra.mxu0 0.0
        %2713 = vmatprep.subr.mxu0 0.0
        %2714 = vmatpush1.msra.mxu0 0.0
        %2715 = vmatprep.subr.mxu0 0.0
        %2716 = vmatpush1.msra.mxu0 0.0
        %2717 = vmatprep.subr.mxu0 0.0
        %2718 = vmatpush1.msra.mxu0 0.0
        %2719 = vmatprep.subr.mxu0 0.0
        %2720 = vmatpush1.msra.mxu0 0.0
        %2721 = vmatprep.subr.mxu0 0.0
        %2722 = vmatpush1.msra.mxu0 0.0
        %2723 = vmatprep.subr.mxu0 0.0
        %2724 = vmatpush1.msra.mxu0 0.0
        %2725 = vmatprep.subr.mxu0 0.0
        %2726 = vmatpush1.msra.mxu0 0.0
        %2727 = vmatprep.subr.mxu0 0.0
        %2728 = vmatpush1.msra.mxu0 0.0
        %2729 = vmatprep.subr.mxu0 0.0
        %2730 = vmatpush1.msra.mxu0 0.0
        %2731 = vmatprep.subr.mxu0 0.0
        %2732 = vmatpush1.msra.mxu0 0.0
        %2733 = vmatprep.subr.mxu0 0.0
        %2734 = vmatpush1.msra.mxu0 0.0
        %2735 = vmatprep.subr.mxu0 0.0
        %2736 = vmatpush1.msra.mxu0 0.0
        %2737 = vmatprep.subr.mxu0 0.0
        %2738 = vmatpush1.msra.mxu0 0.0
        %2739 = vmatprep.subr.mxu0 0.0
        %2740 = vmatpush1.msra.mxu0 0.0
        %2741 = vmatprep.subr.mxu0 0.0
        %2742 = vmatpush1.msra.mxu0 0.0
        %2743 = vmatprep.subr.mxu0 0.0
        %2744 = vmatpush1.msra.mxu0 0.0
        %2745 = vmatprep.subr.mxu0 0.0
        %2746 = vmatpush1.msra.mxu0 0.0
        %2747 = vmatprep.subr.mxu0 0.0
        %2748 = vmatpush1.msra.mxu0 0.0
        %2749 = vmatprep.subr.mxu0 0.0
        %2750 = vmatpush1.msra.mxu0 0.0
        %2751 = vmatprep.subr.mxu0 0.0
        %2752 = vmatpush1.msra.mxu0 0.0
        %2753 = vmatprep.subr.mxu0 0.0
        %2754 = vmatpush1.msra.mxu0 0.0
        %2755 = vmatprep.subr.mxu0 0.0
        %2756 = vmatpush1.msra.mxu0 0.0
        %2757 = vmatprep.subr.mxu0 0.0
        %2758 = vmatpush1.msra.mxu0 0.0
        %2759 = vmatprep.subr.mxu0 0.0
        %2760 = vmatpush1.msra.mxu0 0.0
        %2761 = vmatprep.subr.mxu0 0.0
        %2762 = vmatpush1.msra.mxu0 0.0
        %2763 = vmatprep.subr.mxu0 0.0
        %2764 = vmatpush1.msra.mxu0 0.0
        %2765 = vmatprep.subr.mxu0 0.0
        %2766 = vmatpush1.msra.mxu0 0.0
        %2767 = vmatprep.subr.mxu0 0.0
        %2768 = vmatpush1.msra.mxu0 0.0
        %2769 = vmatprep.subr.mxu0 0.0
        %2770 = vmatpush1.msra.mxu0 0.0
        %2771 = vmatprep.mubr.f32.mxu0 0.0
        %2772 = vmatmul.mubr.f32.gmra.mrb[0].mxu0 %v2705
        %v2773 = vpop.f32.mrb[0].mxu0
        %v2774 = vadd.f32 0.0, %v2773
        %v2775 = vpop.f32.mrb[0].mxu0
        %2776 = vdwg.mxu0
        %v2777 = vadd.f32 %v2688, %v2774
        %v2778 = vld [vmem:[%s18 + $0x60] sm:$0xff]
        %v2779 = vld [vmem:[%s18 + $0x68] sm:$0xff]
        %v2780 = vrot.slane %v2223, 6
        %v2781 = vrot.slane %v2224, 5
        %v2782 = vsel %vm2244, %v2781, %v2780
        %v2783 = vrot.slane %v2225, 4
        %v2784 = vsel %vm2247, %v2783, %v2782
        %v2785 = vrot.slane %v2226, 3
        %v2786 = vsel %vm2250, %v2785, %v2784
        %v2787 = vrot.slane %v2227, 2
        %v2788 = vsel %vm2253, %v2787, %v2786
        %v2789 = vrot.slane %v2228, 1
        %v2790 = vsel %vm2256, %v2789, %v2788
        %v2791 = vsel %vm2259, %v2229, %v2790
        %v2792 = vrot.slane %v2230, 7
        %v2793 = vsel %vm2262, %v2792, %v2791
        %v2794 = vsel %vm2211, %v2793, 0
        %2796 = vmatprep.subr.mxu0 0.0
        %2797 = vmatpush1.msra.mxu0 %v2778
        %2798 = vmatprep.subr.mxu0 0.0
        %2799 = vmatpush1.msra.mxu0 %v2779
        %2800 = vmatprep.subr.mxu0 0.0
        %2801 = vmatpush1.msra.mxu0 0.0
        %2802 = vmatprep.subr.mxu0 0.0
        %2803 = vmatpush1.msra.mxu0 0.0
        %2804 = vmatprep.subr.mxu0 0.0
        %2805 = vmatpush1.msra.mxu0 0.0
        %2806 = vmatprep.subr.mxu0 0.0
        %2807 = vmatpush1.msra.mxu0 0.0
        %2808 = vmatprep.subr.mxu0 0.0
        %2809 = vmatpush1.msra.mxu0 0.0
        %2810 = vmatprep.subr.mxu0 0.0
        %2811 = vmatpush1.msra.mxu0 0.0
        %2812 = vmatprep.subr.mxu0 0.0
        %2813 = vmatpush1.msra.mxu0 0.0
        %2814 = vmatprep.subr.mxu0 0.0
        %2815 = vmatpush1.msra.mxu0 0.0
        %2816 = vmatprep.subr.mxu0 0.0
        %2817 = vmatpush1.msra.mxu0 0.0
        %2818 = vmatprep.subr.mxu0 0.0
        %2819 = vmatpush1.msra.mxu0 0.0
        %2820 = vmatprep.subr.mxu0 0.0
        %2821 = vmatpush1.msra.mxu0 0.0
        %2822 = vmatprep.subr.mxu0 0.0
        %2823 = vmatpush1.msra.mxu0 0.0
        %2824 = vmatprep.subr.mxu0 0.0
        %2825 = vmatpush1.msra.mxu0 0.0
        %2826 = vmatprep.subr.mxu0 0.0
        %2827 = vmatpush1.msra.mxu0 0.0
        %2828 = vmatprep.subr.mxu0 0.0
        %2829 = vmatpush1.msra.mxu0 0.0
        %2830 = vmatprep.subr.mxu0 0.0
        %2831 = vmatpush1.msra.mxu0 0.0
        %2832 = vmatprep.subr.mxu0 0.0
        %2833 = vmatpush1.msra.mxu0 0.0
        %2834 = vmatprep.subr.mxu0 0.0
        %2835 = vmatpush1.msra.mxu0 0.0
        %2836 = vmatprep.subr.mxu0 0.0
        %2837 = vmatpush1.msra.mxu0 0.0
        %2838 = vmatprep.subr.mxu0 0.0
        %2839 = vmatpush1.msra.mxu0 0.0
        %2840 = vmatprep.subr.mxu0 0.0
        %2841 = vmatpush1.msra.mxu0 0.0
        %2842 = vmatprep.subr.mxu0 0.0
        %2843 = vmatpush1.msra.mxu0 0.0
        %2844 = vmatprep.subr.mxu0 0.0
        %2845 = vmatpush1.msra.mxu0 0.0
        %2846 = vmatprep.subr.mxu0 0.0
        %2847 = vmatpush1.msra.mxu0 0.0
        %2848 = vmatprep.subr.mxu0 0.0
        %2849 = vmatpush1.msra.mxu0 0.0
        %2850 = vmatprep.subr.mxu0 0.0
        %2851 = vmatpush1.msra.mxu0 0.0
        %2852 = vmatprep.subr.mxu0 0.0
        %2853 = vmatpush1.msra.mxu0 0.0
        %2854 = vmatprep.subr.mxu0 0.0
        %2855 = vmatpush1.msra.mxu0 0.0
        %2856 = vmatprep.subr.mxu0 0.0
        %2857 = vmatpush1.msra.mxu0 0.0
        %2858 = vmatprep.subr.mxu0 0.0
        %2859 = vmatpush1.msra.mxu0 0.0
        %2860 = vmatprep.mubr.f32.mxu0 0.0
        %2861 = vmatmul.mubr.f32.gmra.mrb[0].mxu0 %v2794
        %v2862 = vpop.f32.mrb[0].mxu0
        %v2863 = vadd.f32 0.0, %v2862
        %v2864 = vpop.f32.mrb[0].mxu0
        %2865 = vdwg.mxu0
        %v2866 = vadd.f32 %v2777, %v2863
        %v2867 = vld [vmem:[%s18 + $0x70] sm:$0xff]
        %v2868 = vld [vmem:[%s18 + $0x78] sm:$0xff]
        %v2869 = vrot.slane %v2223, 7
        %v2870 = vrot.slane %v2224, 6
        %v2871 = vsel %vm2244, %v2870, %v2869
        %v2872 = vrot.slane %v2225, 5
        %v2873 = vsel %vm2247, %v2872, %v2871
        %v2874 = vrot.slane %v2226, 4
        %v2875 = vsel %vm2250, %v2874, %v2873
        %v2876 = vrot.slane %v2227, 3
        %v2877 = vsel %vm2253, %v2876, %v2875
        %v2878 = vrot.slane %v2228, 2
        %v2879 = vsel %vm2256, %v2878, %v2877
        %v2880 = vrot.slane %v2229, 1
        %v2881 = vsel %vm2259, %v2880, %v2879
        %v2882 = vsel %vm2262, %v2230, %v2881
        %v2883 = vsel %vm2211, %v2882, 0
        %2885 = vmatprep.subr.mxu0 0.0
        %2886 = vmatpush1.msra.mxu0 %v2867
        %2887 = vmatprep.subr.mxu0 0.0
        %2888 = vmatpush1.msra.mxu0 %v2868
        %2889 = vmatprep.subr.mxu0 0.0
        %2890 = vmatpush1.msra.mxu0 0.0
        %2891 = vmatprep.subr.mxu0 0.0
        %2892 = vmatpush1.msra.mxu0 0.0
        %2893 = vmatprep.subr.mxu0 0.0
        %2894 = vmatpush1.msra.mxu0 0.0
        %2895 = vmatprep.subr.mxu0 0.0
        %2896 = vmatpush1.msra.mxu0 0.0
        %2897 = vmatprep.subr.mxu0 0.0
        %2898 = vmatpush1.msra.mxu0 0.0
        %2899 = vmatprep.subr.mxu0 0.0
        %2900 = vmatpush1.msra.mxu0 0.0
        %2901 = vmatprep.subr.mxu0 0.0
        %2902 = vmatpush1.msra.mxu0 0.0
        %2903 = vmatprep.subr.mxu0 0.0
        %2904 = vmatpush1.msra.mxu0 0.0
        %2905 = vmatprep.subr.mxu0 0.0
        %2906 = vmatpush1.msra.mxu0 0.0
        %2907 = vmatprep.subr.mxu0 0.0
        %2908 = vmatpush1.msra.mxu0 0.0
        %2909 = vmatprep.subr.mxu0 0.0
        %2910 = vmatpush1.msra.mxu0 0.0
        %2911 = vmatprep.subr.mxu0 0.0
        %2912 = vmatpush1.msra.mxu0 0.0
        %2913 = vmatprep.subr.mxu0 0.0
        %2914 = vmatpush1.msra.mxu0 0.0
        %2915 = vmatprep.subr.mxu0 0.0
        %2916 = vmatpush1.msra.mxu0 0.0
        %2917 = vmatprep.subr.mxu0 0.0
        %2918 = vmatpush1.msra.mxu0 0.0
        %2919 = vmatprep.subr.mxu0 0.0
        %2920 = vmatpush1.msra.mxu0 0.0
        %2921 = vmatprep.subr.mxu0 0.0
        %2922 = vmatpush1.msra.mxu0 0.0
        %2923 = vmatprep.subr.mxu0 0.0
        %2924 = vmatpush1.msra.mxu0 0.0
        %2925 = vmatprep.subr.mxu0 0.0
        %2926 = vmatpush1.msra.mxu0 0.0
        %2927 = vmatprep.subr.mxu0 0.0
        %2928 = vmatpush1.msra.mxu0 0.0
        %2929 = vmatprep.subr.mxu0 0.0
        %2930 = vmatpush1.msra.mxu0 0.0
        %2931 = vmatprep.subr.mxu0 0.0
        %2932 = vmatpush1.msra.mxu0 0.0
        %2933 = vmatprep.subr.mxu0 0.0
        %2934 = vmatpush1.msra.mxu0 0.0
        %2935 = vmatprep.subr.mxu0 0.0
        %2936 = vmatpush1.msra.mxu0 0.0
        %2937 = vmatprep.subr.mxu0 0.0
        %2938 = vmatpush1.msra.mxu0 0.0
        %2939 = vmatprep.subr.mxu0 0.0
        %2940 = vmatpush1.msra.mxu0 0.0
        %2941 = vmatprep.subr.mxu0 0.0
        %2942 = vmatpush1.msra.mxu0 0.0
        %2943 = vmatprep.subr.mxu0 0.0
        %2944 = vmatpush1.msra.mxu0 0.0
        %2945 = vmatprep.subr.mxu0 0.0
        %2946 = vmatpush1.msra.mxu0 0.0
        %2947 = vmatprep.subr.mxu0 0.0
        %2948 = vmatpush1.msra.mxu0 0.0
        %2949 = vmatprep.mubr.f32.mxu0 0.0
        %2950 = vmatmul.mubr.f32.gmra.mrb[0].mxu0 %v2883
        %v2951 = vpop.f32.mrb[0].mxu0
        %v2952 = vadd.f32 0.0, %v2951
        %v2953 = vpop.f32.mrb[0].mxu0
        %2954 = vdwg.mxu0
        %v2955 = vadd.f32 %v2866, %v2952
        %v2956 = vld [vmem:[%s19] sm:$0x1]
        %v2958 = vlaneseq
        %v2959 = vshrl.u32 %v2958, 7
        %v2960 = vsub.s32 0, %v2959
        %v2961 = vrot.slane %v2956, %v2960
        %v2963 = vadd.f32 %v2955, %v2961
        %v2964 = vld [vmem:[%s781] sm:$0x1]
        %v2966 = vlaneseq
        %v2967 = vshrl.u32 %v2966, 7
        %v2968 = vsub.s32 0, %v2967
        %v2969 = vrot.slane %v2964, %v2968
        %2970 = vset.pattern.permute.xlu0 0
        %2971 = vperm.xlu0 %2970, %v2969
        %v2972 = vpop.permute.xlu0 %2971
        %v2974 = vmul.f32 %v2963, %v2972
        %v2975 = vld [vmem:[%s778] sm:$0xff]
        %2977 = vset.pattern.permute.xlu0 0
        %2978 = vperm.xlu0 %2977, %v2975
        %v2979 = vpop.permute.xlu0 %2978
        %v2981 = vmul.f32 %v2974, %v2979
        %2982 = vst.msk [vmem:[%s788] sm:$0xff] %vm1631, %v2981
      $region108: #{lieresnet_forward.32} parent=99 // pred_fallthru
        _
      %p2983 = scmp.lt.s32.totalorder %s36, 1
      %s2984 = scalar_select %p2983, %s36, 1
      %p2985 = scmp.lt.s32.totalorder %s37, 0
      %s2986 = scalar_select %p2985, %s37, 0
      %s2987 = sadd.s32 %s2986, %s2984
      %s2988 = smul.addr %s2987, 8
      %s2989 = scalar_lea.vmem %s20, %s2988
      // Predicated region
      $region109: #{lieresnet_forward.32} parent=99 // pred_check
        %p2990 = pneg %p530
      $region110: #{lieresnet_forward.32} parent=99 // pred_check_branch
        %2992 = sbr.rel (%p2990) target = $region112
      $region111: #{lieresnet_forward.32} parent=99 // pred_region
        _
      $region112: #{lieresnet_forward.32} parent=99 // pred_fallthru
        _
    $region100: #{lieresnet_forward.32} parent=5 // pred_fallthru
      _
    %p2993 = scmp.le.s32.totalorder 2, %s26
    // Predicated region
    $region113: #{lieresnet_forward.32} parent=5 // pred_check
      %p2994 = pneg %p2993
    $region114: #{lieresnet_forward.32} parent=5 // pred_check_branch
      %2996 = sbr.rel (%p2994) target = $region116
    $region115: #{lieresnet_forward.32} parent=5 // pred_region
      %s2997 = ssub.s32 %s26, 2
      // Predicated region
      $region117: #{lieresnet_forward.32} parent=115 // pred_check
        %p2998 = pneg %p536
      $region118: #{lieresnet_forward.32} parent=115 // pred_check_branch
        %3000 = sbr.rel (%p2998) target = $region120
      $region119: #{lieresnet_forward.32} parent=115 // pred_region
        %p3001 = scmp.lt.s32.totalorder %s39, 1
        %s3002 = scalar_select %p3001, %s39, 1
        %p3003 = scmp.lt.s32.totalorder %s40, 0
        %s3004 = scalar_select %p3003, %s40, 0
        %s3005 = sadd.s32 %s3004, %s3002
        %s3006 = smul.addr %s3005, 8
        %s3007 = scalar_lea.vmem %s20, %s3006
      $region120: #{lieresnet_forward.32} parent=115 // pred_fallthru
        _
    $region116: #{lieresnet_forward.32} parent=5 // pred_fallthru
      _
  $region6: #{lieresnet_forward.32} parent=0 // loop_footer
    %s30 = sadd.s32 1, %s26
  $region7: #{lieresnet_forward.32} parent=0 // loop_footer_branch
    %25 = sbr.rel target = $region3
  $region8: #{lieresnet_forward.32} parent=0 // loop_exit
    _

</llo_original>
